<compile_context>
chip_gen: v7x
topology: tpu7x:2x2x1
jax: 0.10.0
libtpu: 0.0.40
codegen_flags: <defaults>
</compile_context>

<pallas_src>
import functools

import jax
import jax.numpy as jnp
from jax.experimental import pallas as pl
from jax.experimental.pallas import tpu as pltpu

_EPS = 1e-5


# ----------------------------------------------------------------------------
# Fused Conv2dBlock kernel:  act(norm(A @ W + b)) [+ residual]
# ----------------------------------------------------------------------------
def _conv_block_kernel(*refs, norm, act, has_res, eps):
    it = iter(refs)
    a_ref = next(it)                       # (TM, K)    bf16 im2col tile
    w_ref = next(it)                       # (K, Cout)  bf16 (cached across grid)
    b_ref = next(it)                       # (1, Cout)  f32
    g_ref = be_ref = r_ref = None
    if norm == "ln":
        g_ref = next(it)                   # (1, Cout)  f32
        be_ref = next(it)                  # (1, Cout)  f32
    if has_res:
        r_ref = next(it)                   # (TM, Cout) bf16
    o_ref = next(it)                       # (TM, Cout)

    # MXU matmul with f32 accumulation; fused bias.
    acc = jnp.dot(a_ref[...], w_ref[...], preferred_element_type=jnp.float32)
    acc = acc + b_ref[...]

    if norm == "in":
        # nn.InstanceNorm2d(affine=False): per-(b, c) stats over H*W (= rows),
        # biased variance.  TM == full per-sample H*W for these layers.
        n = acc.shape[0]
        mean = jnp.sum(acc, axis=0, keepdims=True) * (1.0 / n)
        d = acc - mean
        var = jnp.sum(d * d, axis=0, keepdims=True) * (1.0 / n)
        acc = d * jax.lax.rsqrt(var + eps)
    elif norm == "ln":
        # Custom LayerNorm: per-sample mean / unbiased std over (C, H, W),
        # x = (x - mean) / (std + eps), then per-channel affine.
        n = acc.shape[0] * acc.shape[1]
        row = jnp.sum(acc, axis=1, keepdims=True)                 # lane reduce
        mean = jnp.sum(row, axis=0, keepdims=True) * (1.0 / n)    # sublane reduce
        d = acc - mean
        ss = jnp.sum(jnp.sum(d * d, axis=1, keepdims=True), axis=0, keepdims=True)
        std = jnp.sqrt(ss * (1.0 / (n - 1)))                      # torch unbiased std
        acc = d * pl.reciprocal(std + eps, approx=True)           # EUP slot
        acc = acc * g_ref[...] + be_ref[...]

    if act == "relu":
        acc = jnp.maximum(acc, 0.0)
    elif act == "tanh":
        acc = jnp.tanh(acc)

    if has_res:
        acc = acc + r_ref[...].astype(jnp.float32)

    o_ref[...] = acc.astype(o_ref.dtype)


def _conv_out_transposed_kernel(at_ref, wt_ref, b_ref, o_ref, *, act):
    # Lane-dense variant for narrow-Cout output layer:
    #   (Cout, K) @ (K, M) -> (Cout, M), M (=H*W) on the lane axis -> dense vst,
    # and the result is already in NCHW order for the final output.
    acc = jnp.dot(wt_ref[...], at_ref[...], preferred_element_type=jnp.float32)
    acc = acc + b_ref[...]                 # (Cout, 1) broadcasts over lanes
    if act == "tanh":
        acc = jnp.tanh(acc)
    elif act == "relu":
        acc = jnp.maximum(acc, 0.0)
    o_ref[...] = acc.astype(o_ref.dtype)


# ----------------------------------------------------------------------------
# Glue: zero-pad + im2col patch gather (plain JAX, fused by XLA).
# TODO(synk): fold this into the Pallas kernel via shifted-window index maps.
# ----------------------------------------------------------------------------
def _im2col(x, KH, KW, stride, pad):
    B, H, W, Cin = x.shape
    if pad > 0:
        x = jnp.pad(x, ((0, 0), (pad, pad), (pad, pad), (0, 0)))
    Hp, Wp = x.shape[1], x.shape[2]
    Ho = (Hp - KH) // stride + 1
    Wo = (Wp - KW) // stride + 1
    patches = []
    for i in range(KH):
        for j in range(KW):
            patches.append(
                x[:, i:i + (Ho - 1) * stride + 1:stride,
                     j:j + (Wo - 1) * stride + 1:stride, :])
    a = jnp.concatenate(patches, axis=-1)        # (B,Ho,Wo,KH*KW*Cin), (kh,kw,cin) order
    return a.reshape(B, Ho * Wo, KH * KW * Cin), Ho, Wo


def _choose_m_tile(M, norm):
    """Rows per block.  Norm layers need the whole per-sample spatial extent
    (per-sample statistics); norm-free layers tile M to bound VMEM on v7x
    (64 MiB physical / 32 MiB scoped): at worst K=1600, a 1024-row bf16 A tile
    double-buffered is ~6.5 MiB."""
    if norm != "none":
        return M
    for tm in (1024, 512, 256, 128, 64, 32, 16):   # multiples of 16 (bf16 sublanes)
        if M > tm and M % tm == 0:
            return tm
    return M


# ----------------------------------------------------------------------------
# Conv2dBlock wrappers
# ----------------------------------------------------------------------------
def conv_block(x, wp, stride, pad, norm, act, ln_params=None, residual=None):
    """Fused conv -> norm -> activation [-> +residual] in one pallas_call."""
    w, b = wp
    KH, KW, Cin, Cout = w.shape
    a, Ho, Wo = _im2col(x.astype(jnp.bfloat16), KH, KW, stride, pad)
    B, M, K = a.shape
    TM = _choose_m_tile(M, norm)
    grid = (B, M // TM)

    wm = w.reshape(K, Cout).astype(jnp.bfloat16)
    bv = b.reshape(1, Cout).astype(jnp.float32)

    inputs = [a, wm, bv]
    in_specs = [
        pl.BlockSpec((None, TM, K), lambda bb, mm: (bb, mm, 0)),
        pl.BlockSpec((K, Cout), lambda bb, mm: (0, 0)),
        pl.BlockSpec((1, Cout), lambda bb, mm: (0, 0)),
    ]
    if norm == "ln":
        gamma, beta = ln_params
        inputs += [gamma.reshape(1, Cout).astype(jnp.float32),
                   beta.reshape(1, Cout).astype(jnp.float32)]
        in_specs += [pl.BlockSpec((1, Cout), lambda bb, mm: (0, 0)),
                     pl.BlockSpec((1, Cout), lambda bb, mm: (0, 0))]
    has_res = residual is not None
    if has_res:
        inputs.append(residual.reshape(B, M, Cout).astype(jnp.bfloat16))
        in_specs.append(pl.BlockSpec((None, TM, Cout), lambda bb, mm: (bb, mm, 0)))

    kernel = functools.partial(_conv_block_kernel, norm=norm, act=act,
                               has_res=has_res, eps=_EPS)
    out = pl.pallas_call(
        kernel,
        out_shape=jax.ShapeDtypeStruct((B, M, Cout), jnp.bfloat16),
        grid=grid,
        in_specs=in_specs,
        out_specs=pl.BlockSpec((None, TM, Cout), lambda bb, mm: (bb, mm, 0)),
        compiler_params=pltpu.CompilerParams(
            dimension_semantics=("parallel", "parallel")),
    )(*inputs)
    return out.reshape(B, Ho, Wo, Cout)


def conv_block_out_transposed(x, wp, pad, act):
    """Final narrow-Cout conv, computed transposed for a lane-dense output slab;
    returns NCHW float32 directly (no trailing transpose needed)."""
    w, b = wp
    KH, KW, Cin, Cout = w.shape
    a, Ho, Wo = _im2col(x.astype(jnp.bfloat16), KH, KW, 1, pad)
    B, M, K = a.shape
    at = jnp.transpose(a, (0, 2, 1))                    # (B, K, M)
    wt = w.reshape(K, Cout).T.astype(jnp.bfloat16)      # (Cout, K)
    bt = b.reshape(Cout, 1).astype(jnp.float32)

    kernel = functools.partial(_conv_out_transposed_kernel, act=act)
    out = pl.pallas_call(
        kernel,
        out_shape=jax.ShapeDtypeStruct((B, Cout, M), jnp.float32),
        grid=(B,),
        in_specs=[
            pl.BlockSpec((None, K, M), lambda bb: (bb, 0, 0)),
            pl.BlockSpec((Cout, K), lambda bb: (0, 0)),
            pl.BlockSpec((Cout, 1), lambda bb: (0, 0)),
        ],
        out_specs=pl.BlockSpec((None, Cout, M), lambda bb: (bb, 0, 0)),
        compiler_params=pltpu.CompilerParams(dimension_semantics=("parallel",)),
    )(at, wt, bt)
    return out.reshape(B, Cout, Ho, Wo)                 # NCHW


def res_block(x, p1, p2):
    y = conv_block(x, p1, 1, 1, "in", "relu")
    # residual add fused into the second conv's epilogue (extra input ref)
    return conv_block(y, p2, 1, 1, "in", "none", residual=x)


def upsample2(x):
    # nn.Upsample(scale_factor=2, mode='nearest').  Glue; XLA fuses it into the
    # following im2col gather.  TODO(synk): fold into the conv's index_map so the
    # 4x intermediate never exists.
    return jnp.repeat(jnp.repeat(x, 2, axis=1), 2, axis=2)


# ----------------------------------------------------------------------------
# Parameter construction (deterministic, synthetic)
# ----------------------------------------------------------------------------
def _conv_params(key, kh, kw, cin, cout):
    k1, k2 = jax.random.split(key)
    fan_in = kh * kw * cin
    w = jax.random.normal(k1, (kh, kw, cin, cout), jnp.float32) / jnp.sqrt(fan_in)
    b = jax.random.normal(k2, (cout,), jnp.float32) * 0.01
    return w, b


def make_params(key, input_dim=3, dim=16, n_downsample=2, n_res=2):
    keys = jax.random.split(key, 64)
    ki = iter(range(64))
    nxt = lambda: keys[next(ki)]

    enc = {}
    enc["c0"] = _conv_params(nxt(), 7, 7, input_dim, dim)          # 7x7 s1 p3, in, relu
    d = dim
    enc["down"] = []
    for _ in range(n_downsample):
        enc["down"].append(_conv_params(nxt(), 4, 4, d, 2 * d))    # 4x4 s2 p1, in, relu
        d *= 2
    enc["res"] = []
    for _ in range(n_res):
        enc["res"].append((_conv_params(nxt(), 3, 3, d, d),
                           _conv_params(nxt(), 3, 3, d, d)))
    enc["out"] = _conv_params(nxt(), 3, 3, d, 8)                   # 3x3 s1 p1, none, relu

    dec = {}
    dec["c0"] = _conv_params(nxt(), 3, 3, 8, d)                    # 3x3 s1 p1, none, relu
    dec["res"] = []
    for _ in range(n_res):                                         # res_norm='in'
        dec["res"].append((_conv_params(nxt(), 3, 3, d, d),
                           _conv_params(nxt(), 3, 3, d, d)))
    dec["up"] = []
    for _ in range(n_downsample):
        cp = _conv_params(nxt(), 5, 5, d, d // 2)                  # 5x5 s1 p2, ln, relu
        gamma = jax.random.uniform(nxt(), (d // 2,), jnp.float32)  # torch .uniform_()
        beta = jnp.zeros((d // 2,), jnp.float32)
        dec["up"].append((cp, (gamma, beta)))
        d //= 2
    dec["out"] = _conv_params(nxt(), 7, 7, d, input_dim)           # 7x7 s1 p3, none, tanh

    return {"enc": enc, "dec": dec}


# ----------------------------------------------------------------------------
# Forward pass:  images -> encode -> decode -> images_recon
# ----------------------------------------------------------------------------
def encoder_forward(p, x):
    h = conv_block(x, p["c0"], 1, 3, "in", "relu")
    for cp in p["down"]:
        h = conv_block(h, cp, 2, 1, "in", "relu")
    for (p1, p2) in p["res"]:
        h = res_block(h, p1, p2)
    return conv_block(h, p["out"], 1, 1, "none", "relu")


def decoder_forward(p, x):
    h = conv_block(x, p["c0"], 1, 1, "none", "relu")
    for (p1, p2) in p["res"]:
        h = res_block(h, p1, p2)
    for (cp, ln) in p["up"]:
        h = upsample2(h)
        h = conv_block(h, cp, 1, 2, "ln", "relu", ln_params=ln)
    return conv_block_out_transposed(h, p["out"], 3, "tanh")       # NCHW f32


def styleless_gen_forward(params, images_nchw):
    # NOTE: ResBlocks / ContentEncoder / Decoder call their submodel twice in the
    # reference code but the second call is identical & stateless, so one pass
    # reproduces the semantics exactly.
    x = jnp.transpose(images_nchw, (0, 2, 3, 1)).astype(jnp.bfloat16)  # NCHW -> NHWC
    content = encoder_forward(params["enc"], x)
    return decoder_forward(params["dec"], content)                     # already NCHW


# ----------------------------------------------------------------------------
if __name__ == "__main__":
    key = jax.random.PRNGKey(0)
    k_param, k_data = jax.random.split(key)

    INPUT_DIM, DIM, N_DOWN, N_RES = 3, 16, 2, 2
    params = make_params(k_param, INPUT_DIM, DIM, N_DOWN, N_RES)

    # images: NCHW, like the PyTorch module expects
    images = jax.random.normal(k_data, (2, 3, 16, 16), jnp.float32)

    fwd = jax.jit(functools.partial(styleless_gen_forward, params))
    out = fwd(images)
    out = jax.block_until_ready(out)

    assert out.shape == (2, 3, 16, 16), out.shape
    assert out.dtype == jnp.float32, out.dtype
    assert bool(jnp.all(jnp.isfinite(out)))
    print("KERNEL_OK")
</pallas_src>

<mosaic_0001>
module attributes {stable_mosaic.version = 11 : i64} {
  func.func @_conv_block_kernel(%arg0: i32, %arg1: i32, %arg2: memref<1x256x147xbf16, #tpu.memory_space<vmem>>, %arg3: memref<147x16xbf16, #tpu.memory_space<vmem>>, %arg4: memref<1x16xf32, #tpu.memory_space<vmem>>, %arg5: memref<1x256x16xbf16, #tpu.memory_space<vmem>>) attributes {dimension_semantics = [#tpu.dimension_semantics<parallel>, #tpu.dimension_semantics<parallel>], iteration_bounds = array<i64: 2, 1>, scalar_prefetch = 0 : i64, scratch_operands = 0 : i64, tpu.core_type = #tpu.core_type<tc>, window_params = [{transform_indices = @transform_0, window_bounds = array<i64: 1, 256, 147>}, {pipeline_mode = #tpu.pipeline_mode<synchronous>, transform_indices = @transform_1, window_bounds = array<i64: 147, 16>}, {pipeline_mode = #tpu.pipeline_mode<synchronous>, transform_indices = @transform_2, window_bounds = array<i64: 1, 16>}, {transform_indices = @transform_3, window_bounds = array<i64: 1, 256, 16>}]} {
    %c0 = arith.constant 0 : index
    %c0_0 = arith.constant 0 : index
    %c0_1 = arith.constant 0 : index
    %0 = vector.load %arg2[%c0, %c0_0, %c0_1] : memref<1x256x147xbf16, #tpu.memory_space<vmem>>, vector<1x256x147xbf16>
    %1 = vector.shape_cast %0 : vector<1x256x147xbf16> to vector<256x147xbf16>
    %c0_2 = arith.constant 0 : index
    %c0_3 = arith.constant 0 : index
    %2 = vector.load %arg3[%c0_2, %c0_3] : memref<147x16xbf16, #tpu.memory_space<vmem>>, vector<147x16xbf16>
    %cst = arith.constant dense<0.000000e+00> : vector<256x16xf32>
    %3 = tpu.matmul %1, %2, %cst {dimension_numbers = #tpu.dot_dimension_numbers<[1], [0], [0], [1], [0, 0, 1, 1], [], []>} : vector<256x147xbf16>, vector<147x16xbf16>, vector<256x16xf32> -> vector<256x16xf32>
    %c0_4 = arith.constant 0 : index
    %c0_5 = arith.constant 0 : index
    %4 = vector.load %arg4[%c0_4, %c0_5] : memref<1x16xf32, #tpu.memory_space<vmem>>, vector<1x16xf32>
    %5 = vector.broadcast %4 : vector<1x16xf32> to vector<256x16xf32>
    %6 = arith.addf %3, %5 : vector<256x16xf32>
    %cst_6 = arith.constant dense<0.000000e+00> : vector<16xf32>
    %7 = vector.multi_reduction <add>, %6, %cst_6 [0] : vector<256x16xf32> to vector<16xf32>
    %8 = vector.shape_cast %7 : vector<16xf32> to vector<1x16xf32>
    %cst_7 = arith.constant 3.906250e-03 : f32
    %9 = vector.broadcast %cst_7 : f32 to vector<1x16xf32>
    %10 = arith.mulf %8, %9 : vector<1x16xf32>
    %11 = vector.broadcast %10 : vector<1x16xf32> to vector<256x16xf32>
    %12 = arith.subf %6, %11 : vector<256x16xf32>
    %13 = arith.mulf %12, %12 : vector<256x16xf32>
    %cst_8 = arith.constant dense<0.000000e+00> : vector<16xf32>
    %14 = vector.multi_reduction <add>, %13, %cst_8 [0] : vector<256x16xf32> to vector<16xf32>
    %15 = vector.shape_cast %14 : vector<16xf32> to vector<1x16xf32>
    %cst_9 = arith.constant 3.906250e-03 : f32
    %16 = vector.broadcast %cst_9 : f32 to vector<1x16xf32>
    %17 = arith.mulf %15, %16 : vector<1x16xf32>
    %cst_10 = arith.constant 9.99999974E-6 : f32
    %18 = vector.broadcast %cst_10 : f32 to vector<1x16xf32>
    %19 = arith.addf %17, %18 : vector<1x16xf32>
    %20 = math.rsqrt %19 : vector<1x16xf32>
    %21 = vector.broadcast %20 : vector<1x16xf32> to vector<256x16xf32>
    %22 = arith.mulf %12, %21 : vector<256x16xf32>
    %cst_11 = arith.constant 0.000000e+00 : f32
    %23 = vector.broadcast %cst_11 : f32 to vector<256x16xf32>
    %24 = arith.maximumf %22, %23 : vector<256x16xf32>
    %25 = arith.truncf %24 : vector<256x16xf32> to vector<256x16xbf16>
    %c0_12 = arith.constant 0 : index
    %c0_13 = arith.constant 0 : index
    %c0_14 = arith.constant 0 : index
    %26 = vector.load %arg5[%c0_12, %c0_13, %c0_14] : memref<1x256x16xbf16, #tpu.memory_space<vmem>>, vector<1x256x16xbf16>
    %27 = vector.shape_cast %26 : vector<1x256x16xbf16> to vector<256x16xbf16>
    %28 = vector.shape_cast %25 : vector<256x16xbf16> to vector<1x256x16xbf16>
    tpu.vector_store %arg5[%c0_12, %c0_13, %c0_14], %28 {strides = array<i32>} : memref<1x256x16xbf16, #tpu.memory_space<vmem>>, vector<1x256x16xbf16>,
    return
  }
  func.func @transform_0(%arg0: i32, %arg1: i32) -> (i32, i32, i32) {
    %c0_i32 = arith.constant 0 : i32
    %c0_i32_0 = arith.constant 0 : i32
    return %arg0, %arg1, %c0_i32 : i32, i32, i32
  }
  func.func @transform_1(%arg0: i32, %arg1: i32) -> (i32, i32) {
    %c0_i32 = arith.constant 0 : i32
    %c0_i32_0 = arith.constant 0 : i32
    %c0_i32_1 = arith.constant 0 : i32
    return %c0_i32, %c0_i32_0 : i32, i32
  }
  func.func @transform_2(%arg0: i32, %arg1: i32) -> (i32, i32) {
    %c0_i32 = arith.constant 0 : i32
    %c0_i32_0 = arith.constant 0 : i32
    %c0_i32_1 = arith.constant 0 : i32
    return %c0_i32, %c0_i32_0 : i32, i32
  }
  func.func @transform_3(%arg0: i32, %arg1: i32) -> (i32, i32, i32) {
    %c0_i32 = arith.constant 0 : i32
    %c0_i32_0 = arith.constant 0 : i32
    return %arg0, %arg1, %c0_i32 : i32, i32, i32
  }
}

module attributes {stable_mosaic.version = 11 : i64} {
  func.func @_conv_block_kernel(%arg0: i32, %arg1: i32, %arg2: memref<1x64x256xbf16, #tpu.memory_space<vmem>>, %arg3: memref<256x32xbf16, #tpu.memory_space<vmem>>, %arg4: memref<1x32xf32, #tpu.memory_space<vmem>>, %arg5: memref<1x64x32xbf16, #tpu.memory_space<vmem>>) attributes {dimension_semantics = [#tpu.dimension_semantics<parallel>, #tpu.dimension_semantics<parallel>], iteration_bounds = array<i64: 2, 1>, scalar_prefetch = 0 : i64, scratch_operands = 0 : i64, tpu.core_type = #tpu.core_type<tc>, window_params = [{transform_indices = @transform_0, window_bounds = array<i64: 1, 64, 256>}, {pipeline_mode = #tpu.pipeline_mode<synchronous>, transform_indices = @transform_1, window_bounds = array<i64: 256, 32>}, {pipeline_mode = #tpu.pipeline_mode<synchronous>, transform_indices = @transform_2, window_bounds = array<i64: 1, 32>}, {transform_indices = @transform_3, window_bounds = array<i64: 1, 64, 32>}]} {
    %c0 = arith.constant 0 : index
    %c0_0 = arith.constant 0 : index
    %c0_1 = arith.constant 0 : index
    %0 = vector.load %arg2[%c0, %c0_0, %c0_1] : memref<1x64x256xbf16, #tpu.memory_space<vmem>>, vector<1x64x256xbf16>
    %1 = vector.shape_cast %0 : vector<1x64x256xbf16> to vector<64x256xbf16>
    %c0_2 = arith.constant 0 : index
    %c0_3 = arith.constant 0 : index
    %2 = vector.load %arg3[%c0_2, %c0_3] : memref<256x32xbf16, #tpu.memory_space<vmem>>, vector<256x32xbf16>
    %cst = arith.constant dense<0.000000e+00> : vector<64x32xf32>
    %3 = tpu.matmul %1, %2, %cst {dimension_numbers = #tpu.dot_dimension_numbers<[1], [0], [0], [1], [0, 0, 1, 1], [], []>} : vector<64x256xbf16>, vector<256x32xbf16>, vector<64x32xf32> -> vector<64x32xf32>
    %c0_4 = arith.constant 0 : index
    %c0_5 = arith.constant 0 : index
    %4 = vector.load %arg4[%c0_4, %c0_5] : memref<1x32xf32, #tpu.memory_space<vmem>>, vector<1x32xf32>
    %5 = vector.broadcast %4 : vector<1x32xf32> to vector<64x32xf32>
    %6 = arith.addf %3, %5 : vector<64x32xf32>
    %cst_6 = arith.constant dense<0.000000e+00> : vector<32xf32>
    %7 = vector.multi_reduction <add>, %6, %cst_6 [0] : vector<64x32xf32> to vector<32xf32>
    %8 = vector.shape_cast %7 : vector<32xf32> to vector<1x32xf32>
    %cst_7 = arith.constant 1.562500e-02 : f32
    %9 = vector.broadcast %cst_7 : f32 to vector<1x32xf32>
    %10 = arith.mulf %8, %9 : vector<1x32xf32>
    %11 = vector.broadcast %10 : vector<1x32xf32> to vector<64x32xf32>
    %12 = arith.subf %6, %11 : vector<64x32xf32>
    %13 = arith.mulf %12, %12 : vector<64x32xf32>
    %cst_8 = arith.constant dense<0.000000e+00> : vector<32xf32>
    %14 = vector.multi_reduction <add>, %13, %cst_8 [0] : vector<64x32xf32> to vector<32xf32>
    %15 = vector.shape_cast %14 : vector<32xf32> to vector<1x32xf32>
    %cst_9 = arith.constant 1.562500e-02 : f32
    %16 = vector.broadcast %cst_9 : f32 to vector<1x32xf32>
    %17 = arith.mulf %15, %16 : vector<1x32xf32>
    %cst_10 = arith.constant 9.99999974E-6 : f32
    %18 = vector.broadcast %cst_10 : f32 to vector<1x32xf32>
    %19 = arith.addf %17, %18 : vector<1x32xf32>
    %20 = math.rsqrt %19 : vector<1x32xf32>
    %21 = vector.broadcast %20 : vector<1x32xf32> to vector<64x32xf32>
    %22 = arith.mulf %12, %21 : vector<64x32xf32>
    %cst_11 = arith.constant 0.000000e+00 : f32
    %23 = vector.broadcast %cst_11 : f32 to vector<64x32xf32>
    %24 = arith.maximumf %22, %23 : vector<64x32xf32>
    %25 = arith.truncf %24 : vector<64x32xf32> to vector<64x32xbf16>
    %c0_12 = arith.constant 0 : index
    %c0_13 = arith.constant 0 : index
    %c0_14 = arith.constant 0 : index
    %26 = vector.load %arg5[%c0_12, %c0_13, %c0_14] : memref<1x64x32xbf16, #tpu.memory_space<vmem>>, vector<1x64x32xbf16>
    %27 = vector.shape_cast %26 : vector<1x64x32xbf16> to vector<64x32xbf16>
    %28 = vector.shape_cast %25 : vector<64x32xbf16> to vector<1x64x32xbf16>
    tpu.vector_store %arg5[%c0_12, %c0_13, %c0_14], %28 {strides = array<i32>} : memref<1x64x32xbf16, #tpu.memory_space<vmem>>, vector<1x64x32xbf16>,
    return
  }
  func.func @transform_0(%arg0: i32, %arg1: i32) -> (i32, i32, i32) {
    %c0_i32 = arith.constant 0 : i32
    %c0_i32_0 = arith.constant 0 : i32
    return %arg0, %arg1, %c0_i32 : i32, i32, i32
  }
  func.func @transform_1(%arg0: i32, %arg1: i32) -> (i32, i32) {
    %c0_i32 = arith.constant 0 : i32
    %c0_i32_0 = arith.constant 0 : i32
    %c0_i32_1 = arith.constant 0 : i32
    return %c0_i32, %c0_i32_0 : i32, i32
  }
  func.func @transform_2(%arg0: i32, %arg1: i32) -> (i32, i32) {
    %c0_i32 = arith.constant 0 : i32
    %c0_i32_0 = arith.constant 0 : i32
    %c0_i32_1 = arith.constant 0 : i32
    return %c0_i32, %c0_i32_0 : i32, i32
  }
  func.func @transform_3(%arg0: i32, %arg1: i32) -> (i32, i32, i32) {
    %c0_i32 = arith.constant 0 : i32
    %c0_i32_0 = arith.constant 0 : i32
    return %arg0, %arg1, %c0_i32 : i32, i32, i32
  }
}

module attributes {stable_mosaic.version = 11 : i64} {
  func.func @_conv_block_kernel(%arg0: i32, %arg1: i32, %arg2: memref<1x16x512xbf16, #tpu.memory_space<vmem>>, %arg3: memref<512x64xbf16, #tpu.memory_space<vmem>>, %arg4: memref<1x64xf32, #tpu.memory_space<vmem>>, %arg5: memref<1x16x64xbf16, #tpu.memory_space<vmem>>) attributes {dimension_semantics = [#tpu.dimension_semantics<parallel>, #tpu.dimension_semantics<parallel>], iteration_bounds = array<i64: 2, 1>, scalar_prefetch = 0 : i64, scratch_operands = 0 : i64, tpu.core_type = #tpu.core_type<tc>, window_params = [{transform_indices = @transform_0, window_bounds = array<i64: 1, 16, 512>}, {pipeline_mode = #tpu.pipeline_mode<synchronous>, transform_indices = @transform_1, window_bounds = array<i64: 512, 64>}, {pipeline_mode = #tpu.pipeline_mode<synchronous>, transform_indices = @transform_2, window_bounds = array<i64: 1, 64>}, {transform_indices = @transform_3, window_bounds = array<i64: 1, 16, 64>}]} {
    %c0 = arith.constant 0 : index
    %c0_0 = arith.constant 0 : index
    %c0_1 = arith.constant 0 : index
    %0 = vector.load %arg2[%c0, %c0_0, %c0_1] : memref<1x16x512xbf16, #tpu.memory_space<vmem>>, vector<1x16x512xbf16>
    %1 = vector.shape_cast %0 : vector<1x16x512xbf16> to vector<16x512xbf16>
    %c0_2 = arith.constant 0 : index
    %c0_3 = arith.constant 0 : index
    %2 = vector.load %arg3[%c0_2, %c0_3] : memref<512x64xbf16, #tpu.memory_space<vmem>>, vector<512x64xbf16>
    %cst = arith.constant dense<0.000000e+00> : vector<16x64xf32>
    %3 = tpu.matmul %1, %2, %cst {dimension_numbers = #tpu.dot_dimension_numbers<[1], [0], [0], [1], [0, 0, 1, 1], [], []>} : vector<16x512xbf16>, vector<512x64xbf16>, vector<16x64xf32> -> vector<16x64xf32>
    %c0_4 = arith.constant 0 : index
    %c0_5 = arith.constant 0 : index
    %4 = vector.load %arg4[%c0_4, %c0_5] : memref<1x64xf32, #tpu.memory_space<vmem>>, vector<1x64xf32>
    %5 = vector.broadcast %4 : vector<1x64xf32> to vector<16x64xf32>
    %6 = arith.addf %3, %5 : vector<16x64xf32>
    %cst_6 = arith.constant dense<0.000000e+00> : vector<64xf32>
    %7 = vector.multi_reduction <add>, %6, %cst_6 [0] : vector<16x64xf32> to vector<64xf32>
    %8 = vector.shape_cast %7 : vector<64xf32> to vector<1x64xf32>
    %cst_7 = arith.constant 6.250000e-02 : f32
    %9 = vector.broadcast %cst_7 : f32 to vector<1x64xf32>
    %10 = arith.mulf %8, %9 : vector<1x64xf32>
    %11 = vector.broadcast %10 : vector<1x64xf32> to vector<16x64xf32>
    %12 = arith.subf %6, %11 : vector<16x64xf32>
    %13 = arith.mulf %12, %12 : vector<16x64xf32>
    %cst_8 = arith.constant dense<0.000000e+00> : vector<64xf32>
    %14 = vector.multi_reduction <add>, %13, %cst_8 [0] : vector<16x64xf32> to vector<64xf32>
    %15 = vector.shape_cast %14 : vector<64xf32> to vector<1x64xf32>
    %cst_9 = arith.constant 6.250000e-02 : f32
    %16 = vector.broadcast %cst_9 : f32 to vector<1x64xf32>
    %17 = arith.mulf %15, %16 : vector<1x64xf32>
    %cst_10 = arith.constant 9.99999974E-6 : f32
    %18 = vector.broadcast %cst_10 : f32 to vector<1x64xf32>
    %19 = arith.addf %17, %18 : vector<1x64xf32>
    %20 = math.rsqrt %19 : vector<1x64xf32>
    %21 = vector.broadcast %20 : vector<1x64xf32> to vector<16x64xf32>
    %22 = arith.mulf %12, %21 : vector<16x64xf32>
    %cst_11 = arith.constant 0.000000e+00 : f32
    %23 = vector.broadcast %cst_11 : f32 to vector<16x64xf32>
    %24 = arith.maximumf %22, %23 : vector<16x64xf32>
    %25 = arith.truncf %24 : vector<16x64xf32> to vector<16x64xbf16>
    %c0_12 = arith.constant 0 : index
    %c0_13 = arith.constant 0 : index
    %c0_14 = arith.constant 0 : index
    %26 = vector.load %arg5[%c0_12, %c0_13, %c0_14] : memref<1x16x64xbf16, #tpu.memory_space<vmem>>, vector<1x16x64xbf16>
    %27 = vector.shape_cast %26 : vector<1x16x64xbf16> to vector<16x64xbf16>
    %28 = vector.shape_cast %25 : vector<16x64xbf16> to vector<1x16x64xbf16>
    tpu.vector_store %arg5[%c0_12, %c0_13, %c0_14], %28 {strides = array<i32>} : memref<1x16x64xbf16, #tpu.memory_space<vmem>>, vector<1x16x64xbf16>,
    return
  }
  func.func @transform_0(%arg0: i32, %arg1: i32) -> (i32, i32, i32) {
    %c0_i32 = arith.constant 0 : i32
    %c0_i32_0 = arith.constant 0 : i32
    return %arg0, %arg1, %c0_i32 : i32, i32, i32
  }
  func.func @transform_1(%arg0: i32, %arg1: i32) -> (i32, i32) {
    %c0_i32 = arith.constant 0 : i32
    %c0_i32_0 = arith.constant 0 : i32
    %c0_i32_1 = arith.constant 0 : i32
    return %c0_i32, %c0_i32_0 : i32, i32
  }
  func.func @transform_2(%arg0: i32, %arg1: i32) -> (i32, i32) {
    %c0_i32 = arith.constant 0 : i32
    %c0_i32_0 = arith.constant 0 : i32
    %c0_i32_1 = arith.constant 0 : i32
    return %c0_i32, %c0_i32_0 : i32, i32
  }
  func.func @transform_3(%arg0: i32, %arg1: i32) -> (i32, i32, i32) {
    %c0_i32 = arith.constant 0 : i32
    %c0_i32_0 = arith.constant 0 : i32
    return %arg0, %arg1, %c0_i32 : i32, i32, i32
  }
}

module attributes {stable_mosaic.version = 11 : i64} {
  func.func @_conv_block_kernel(%arg0: i32, %arg1: i32, %arg2: memref<1x16x576xbf16, #tpu.memory_space<vmem>>, %arg3: memref<576x64xbf16, #tpu.memory_space<vmem>>, %arg4: memref<1x64xf32, #tpu.memory_space<vmem>>, %arg5: memref<1x16x64xbf16, #tpu.memory_space<vmem>>) attributes {dimension_semantics = [#tpu.dimension_semantics<parallel>, #tpu.dimension_semantics<parallel>], iteration_bounds = array<i64: 2, 1>, scalar_prefetch = 0 : i64, scratch_operands = 0 : i64, tpu.core_type = #tpu.core_type<tc>, window_params = [{transform_indices = @transform_0, window_bounds = array<i64: 1, 16, 576>}, {pipeline_mode = #tpu.pipeline_mode<synchronous>, transform_indices = @transform_1, window_bounds = array<i64: 576, 64>}, {pipeline_mode = #tpu.pipeline_mode<synchronous>, transform_indices = @transform_2, window_bounds = array<i64: 1, 64>}, {transform_indices = @transform_3, window_bounds = array<i64: 1, 16, 64>}]} {
    %c0 = arith.constant 0 : index
    %c0_0 = arith.constant 0 : index
    %c0_1 = arith.constant 0 : index
    %0 = vector.load %arg2[%c0, %c0_0, %c0_1] : memref<1x16x576xbf16, #tpu.memory_space<vmem>>, vector<1x16x576xbf16>
    %1 = vector.shape_cast %0 : vector<1x16x576xbf16> to vector<16x576xbf16>
    %c0_2 = arith.constant 0 : index
    %c0_3 = arith.constant 0 : index
    %2 = vector.load %arg3[%c0_2, %c0_3] : memref<576x64xbf16, #tpu.memory_space<vmem>>, vector<576x64xbf16>
    %cst = arith.constant dense<0.000000e+00> : vector<16x64xf32>
    %3 = tpu.matmul %1, %2, %cst {dimension_numbers = #tpu.dot_dimension_numbers<[1], [0], [0], [1], [0, 0, 1, 1], [], []>} : vector<16x576xbf16>, vector<576x64xbf16>, vector<16x64xf32> -> vector<16x64xf32>
    %c0_4 = arith.constant 0 : index
    %c0_5 = arith.constant 0 : index
    %4 = vector.load %arg4[%c0_4, %c0_5] : memref<1x64xf32, #tpu.memory_space<vmem>>, vector<1x64xf32>
    %5 = vector.broadcast %4 : vector<1x64xf32> to vector<16x64xf32>
    %6 = arith.addf %3, %5 : vector<16x64xf32>
    %cst_6 = arith.constant dense<0.000000e+00> : vector<64xf32>
    %7 = vector.multi_reduction <add>, %6, %cst_6 [0] : vector<16x64xf32> to vector<64xf32>
    %8 = vector.shape_cast %7 : vector<64xf32> to vector<1x64xf32>
    %cst_7 = arith.constant 6.250000e-02 : f32
    %9 = vector.broadcast %cst_7 : f32 to vector<1x64xf32>
    %10 = arith.mulf %8, %9 : vector<1x64xf32>
    %11 = vector.broadcast %10 : vector<1x64xf32> to vector<16x64xf32>
    %12 = arith.subf %6, %11 : vector<16x64xf32>
    %13 = arith.mulf %12, %12 : vector<16x64xf32>
    %cst_8 = arith.constant dense<0.000000e+00> : vector<64xf32>
    %14 = vector.multi_reduction <add>, %13, %cst_8 [0] : vector<16x64xf32> to vector<64xf32>
    %15 = vector.shape_cast %14 : vector<64xf32> to vector<1x64xf32>
    %cst_9 = arith.constant 6.250000e-02 : f32
    %16 = vector.broadcast %cst_9 : f32 to vector<1x64xf32>
    %17 = arith.mulf %15, %16 : vector<1x64xf32>
    %cst_10 = arith.constant 9.99999974E-6 : f32
    %18 = vector.broadcast %cst_10 : f32 to vector<1x64xf32>
    %19 = arith.addf %17, %18 : vector<1x64xf32>
    %20 = math.rsqrt %19 : vector<1x64xf32>
    %21 = vector.broadcast %20 : vector<1x64xf32> to vector<16x64xf32>
    %22 = arith.mulf %12, %21 : vector<16x64xf32>
    %cst_11 = arith.constant 0.000000e+00 : f32
    %23 = vector.broadcast %cst_11 : f32 to vector<16x64xf32>
    %24 = arith.maximumf %22, %23 : vector<16x64xf32>
    %25 = arith.truncf %24 : vector<16x64xf32> to vector<16x64xbf16>
    %c0_12 = arith.constant 0 : index
    %c0_13 = arith.constant 0 : index
    %c0_14 = arith.constant 0 : index
    %26 = vector.load %arg5[%c0_12, %c0_13, %c0_14] : memref<1x16x64xbf16, #tpu.memory_space<vmem>>, vector<1x16x64xbf16>
    %27 = vector.shape_cast %26 : vector<1x16x64xbf16> to vector<16x64xbf16>
    %28 = vector.shape_cast %25 : vector<16x64xbf16> to vector<1x16x64xbf16>
    tpu.vector_store %arg5[%c0_12, %c0_13, %c0_14], %28 {strides = array<i32>} : memref<1x16x64xbf16, #tpu.memory_space<vmem>>, vector<1x16x64xbf16>,
    return
  }
  func.func @transform_0(%arg0: i32, %arg1: i32) -> (i32, i32, i32) {
    %c0_i32 = arith.constant 0 : i32
    %c0_i32_0 = arith.constant 0 : i32
    return %arg0, %arg1, %c0_i32 : i32, i32, i32
  }
  func.func @transform_1(%arg0: i32, %arg1: i32) -> (i32, i32) {
    %c0_i32 = arith.constant 0 : i32
    %c0_i32_0 = arith.constant 0 : i32
    %c0_i32_1 = arith.constant 0 : i32
    return %c0_i32, %c0_i32_0 : i32, i32
  }
  func.func @transform_2(%arg0: i32, %arg1: i32) -> (i32, i32) {
    %c0_i32 = arith.constant 0 : i32
    %c0_i32_0 = arith.constant 0 : i32
    %c0_i32_1 = arith.constant 0 : i32
    return %c0_i32, %c0_i32_0 : i32, i32
  }
  func.func @transform_3(%arg0: i32, %arg1: i32) -> (i32, i32, i32) {
    %c0_i32 = arith.constant 0 : i32
    %c0_i32_0 = arith.constant 0 : i32
    return %arg0, %arg1, %c0_i32 : i32, i32, i32
  }
}

module attributes {stable_mosaic.version = 11 : i64} {
  func.func @_conv_block_kernel(%arg0: i32, %arg1: i32, %arg2: memref<1x16x576xbf16, #tpu.memory_space<vmem>>, %arg3: memref<576x64xbf16, #tpu.memory_space<vmem>>, %arg4: memref<1x64xf32, #tpu.memory_space<vmem>>, %arg5: memref<1x16x64xbf16, #tpu.memory_space<vmem>>, %arg6: memref<1x16x64xbf16, #tpu.memory_space<vmem>>) attributes {dimension_semantics = [#tpu.dimension_semantics<parallel>, #tpu.dimension_semantics<parallel>], iteration_bounds = array<i64: 2, 1>, scalar_prefetch = 0 : i64, scratch_operands = 0 : i64, tpu.core_type = #tpu.core_type<tc>, window_params = [{transform_indices = @transform_0, window_bounds = array<i64: 1, 16, 576>}, {pipeline_mode = #tpu.pipeline_mode<synchronous>, transform_indices = @transform_1, window_bounds = array<i64: 576, 64>}, {pipeline_mode = #tpu.pipeline_mode<synchronous>, transform_indices = @transform_2, window_bounds = array<i64: 1, 64>}, {transform_indices = @transform_3, window_bounds = array<i64: 1, 16, 64>}, {transform_indices = @transform_4, window_bounds = array<i64: 1, 16, 64>}]} {
    %c0 = arith.constant 0 : index
    %c0_0 = arith.constant 0 : index
    %c0_1 = arith.constant 0 : index
    %0 = vector.load %arg2[%c0, %c0_0, %c0_1] : memref<1x16x576xbf16, #tpu.memory_space<vmem>>, vector<1x16x576xbf16>
    %1 = vector.shape_cast %0 : vector<1x16x576xbf16> to vector<16x576xbf16>
    %c0_2 = arith.constant 0 : index
    %c0_3 = arith.constant 0 : index
    %2 = vector.load %arg3[%c0_2, %c0_3] : memref<576x64xbf16, #tpu.memory_space<vmem>>, vector<576x64xbf16>
    %cst = arith.constant dense<0.000000e+00> : vector<16x64xf32>
    %3 = tpu.matmul %1, %2, %cst {dimension_numbers = #tpu.dot_dimension_numbers<[1], [0], [0], [1], [0, 0, 1, 1], [], []>} : vector<16x576xbf16>, vector<576x64xbf16>, vector<16x64xf32> -> vector<16x64xf32>
    %c0_4 = arith.constant 0 : index
    %c0_5 = arith.constant 0 : index
    %4 = vector.load %arg4[%c0_4, %c0_5] : memref<1x64xf32, #tpu.memory_space<vmem>>, vector<1x64xf32>
    %5 = vector.broadcast %4 : vector<1x64xf32> to vector<16x64xf32>
    %6 = arith.addf %3, %5 : vector<16x64xf32>
    %cst_6 = arith.constant dense<0.000000e+00> : vector<64xf32>
    %7 = vector.multi_reduction <add>, %6, %cst_6 [0] : vector<16x64xf32> to vector<64xf32>
    %8 = vector.shape_cast %7 : vector<64xf32> to vector<1x64xf32>
    %cst_7 = arith.constant 6.250000e-02 : f32
    %9 = vector.broadcast %cst_7 : f32 to vector<1x64xf32>
    %10 = arith.mulf %8, %9 : vector<1x64xf32>
    %11 = vector.broadcast %10 : vector<1x64xf32> to vector<16x64xf32>
    %12 = arith.subf %6, %11 : vector<16x64xf32>
    %13 = arith.mulf %12, %12 : vector<16x64xf32>
    %cst_8 = arith.constant dense<0.000000e+00> : vector<64xf32>
    %14 = vector.multi_reduction <add>, %13, %cst_8 [0] : vector<16x64xf32> to vector<64xf32>
    %15 = vector.shape_cast %14 : vector<64xf32> to vector<1x64xf32>
    %cst_9 = arith.constant 6.250000e-02 : f32
    %16 = vector.broadcast %cst_9 : f32 to vector<1x64xf32>
    %17 = arith.mulf %15, %16 : vector<1x64xf32>
    %cst_10 = arith.constant 9.99999974E-6 : f32
    %18 = vector.broadcast %cst_10 : f32 to vector<1x64xf32>
    %19 = arith.addf %17, %18 : vector<1x64xf32>
    %20 = math.rsqrt %19 : vector<1x64xf32>
    %21 = vector.broadcast %20 : vector<1x64xf32> to vector<16x64xf32>
    %22 = arith.mulf %12, %21 : vector<16x64xf32>
    %c0_11 = arith.constant 0 : index
    %c0_12 = arith.constant 0 : index
    %c0_13 = arith.constant 0 : index
    %23 = vector.load %arg5[%c0_11, %c0_12, %c0_13] : memref<1x16x64xbf16, #tpu.memory_space<vmem>>, vector<1x16x64xbf16>
    %24 = vector.shape_cast %23 : vector<1x16x64xbf16> to vector<16x64xbf16>
    %25 = arith.extf %24 : vector<16x64xbf16> to vector<16x64xf32>
    %26 = arith.addf %22, %25 : vector<16x64xf32>
    %27 = arith.truncf %26 : vector<16x64xf32> to vector<16x64xbf16>
    %c0_14 = arith.constant 0 : index
    %c0_15 = arith.constant 0 : index
    %c0_16 = arith.constant 0 : index
    %28 = vector.load %arg6[%c0_14, %c0_15, %c0_16] : memref<1x16x64xbf16, #tpu.memory_space<vmem>>, vector<1x16x64xbf16>
    %29 = vector.shape_cast %28 : vector<1x16x64xbf16> to vector<16x64xbf16>
    %30 = vector.shape_cast %27 : vector<16x64xbf16> to vector<1x16x64xbf16>
    tpu.vector_store %arg6[%c0_14, %c0_15, %c0_16], %30 {strides = array<i32>} : memref<1x16x64xbf16, #tpu.memory_space<vmem>>, vector<1x16x64xbf16>,
    return
  }
  func.func @transform_0(%arg0: i32, %arg1: i32) -> (i32, i32, i32) {
    %c0_i32 = arith.constant 0 : i32
    %c0_i32_0 = arith.constant 0 : i32
    return %arg0, %arg1, %c0_i32 : i32, i32, i32
  }
  func.func @transform_1(%arg0: i32, %arg1: i32) -> (i32, i32) {
    %c0_i32 = arith.constant 0 : i32
    %c0_i32_0 = arith.constant 0 : i32
    %c0_i32_1 = arith.constant 0 : i32
    return %c0_i32, %c0_i32_0 : i32, i32
  }
  func.func @transform_2(%arg0: i32, %arg1: i32) -> (i32, i32) {
    %c0_i32 = arith.constant 0 : i32
    %c0_i32_0 = arith.constant 0 : i32
    %c0_i32_1 = arith.constant 0 : i32
    return %c0_i32, %c0_i32_0 : i32, i32
  }
  func.func @transform_3(%arg0: i32, %arg1: i32) -> (i32, i32, i32) {
    %c0_i32 = arith.constant 0 : i32
    %c0_i32_0 = arith.constant 0 : i32
    return %arg0, %arg1, %c0_i32 : i32, i32, i32
  }
  func.func @transform_4(%arg0: i32, %arg1: i32) -> (i32, i32, i32) {
    %c0_i32 = arith.constant 0 : i32
    %c0_i32_0 = arith.constant 0 : i32
    return %arg0, %arg1, %c0_i32 : i32, i32, i32
  }
}

module attributes {stable_mosaic.version = 11 : i64} {
  func.func @_conv_block_kernel(%arg0: i32, %arg1: i32, %arg2: memref<1x16x576xbf16, #tpu.memory_space<vmem>>, %arg3: memref<576x8xbf16, #tpu.memory_space<vmem>>, %arg4: memref<1x8xf32, #tpu.memory_space<vmem>>, %arg5: memref<1x16x8xbf16, #tpu.memory_space<vmem>>) attributes {dimension_semantics = [#tpu.dimension_semantics<parallel>, #tpu.dimension_semantics<parallel>], iteration_bounds = array<i64: 2, 1>, scalar_prefetch = 0 : i64, scratch_operands = 0 : i64, tpu.core_type = #tpu.core_type<tc>, window_params = [{transform_indices = @transform_0, window_bounds = array<i64: 1, 16, 576>}, {pipeline_mode = #tpu.pipeline_mode<synchronous>, transform_indices = @transform_1, window_bounds = array<i64: 576, 8>}, {pipeline_mode = #tpu.pipeline_mode<synchronous>, transform_indices = @transform_2, window_bounds = array<i64: 1, 8>}, {transform_indices = @transform_3, window_bounds = array<i64: 1, 16, 8>}]} {
    %c0 = arith.constant 0 : index
    %c0_0 = arith.constant 0 : index
    %c0_1 = arith.constant 0 : index
    %0 = vector.load %arg2[%c0, %c0_0, %c0_1] : memref<1x16x576xbf16, #tpu.memory_space<vmem>>, vector<1x16x576xbf16>
    %1 = vector.shape_cast %0 : vector<1x16x576xbf16> to vector<16x576xbf16>
    %c0_2 = arith.constant 0 : index
    %c0_3 = arith.constant 0 : index
    %2 = vector.load %arg3[%c0_2, %c0_3] : memref<576x8xbf16, #tpu.memory_space<vmem>>, vector<576x8xbf16>
    %cst = arith.constant dense<0.000000e+00> : vector<16x8xf32>
    %3 = tpu.matmul %1, %2, %cst {dimension_numbers = #tpu.dot_dimension_numbers<[1], [0], [0], [1], [0, 0, 1, 1], [], []>} : vector<16x576xbf16>, vector<576x8xbf16>, vector<16x8xf32> -> vector<16x8xf32>
    %c0_4 = arith.constant 0 : index
    %c0_5 = arith.constant 0 : index
    %4 = vector.load %arg4[%c0_4, %c0_5] : memref<1x8xf32, #tpu.memory_space<vmem>>, vector<1x8xf32>
    %5 = vector.broadcast %4 : vector<1x8xf32> to vector<16x8xf32>
    %6 = arith.addf %3, %5 : vector<16x8xf32>
    %cst_6 = arith.constant 0.000000e+00 : f32
    %7 = vector.broadcast %cst_6 : f32 to vector<16x8xf32>
    %8 = arith.maximumf %6, %7 : vector<16x8xf32>
    %9 = arith.truncf %8 : vector<16x8xf32> to vector<16x8xbf16>
    %c0_7 = arith.constant 0 : index
    %c0_8 = arith.constant 0 : index
    %c0_9 = arith.constant 0 : index
    %10 = vector.load %arg5[%c0_7, %c0_8, %c0_9] : memref<1x16x8xbf16, #tpu.memory_space<vmem>>, vector<1x16x8xbf16>
    %11 = vector.shape_cast %10 : vector<1x16x8xbf16> to vector<16x8xbf16>
    %12 = vector.shape_cast %9 : vector<16x8xbf16> to vector<1x16x8xbf16>
    tpu.vector_store %arg5[%c0_7, %c0_8, %c0_9], %12 {strides = array<i32>} : memref<1x16x8xbf16, #tpu.memory_space<vmem>>, vector<1x16x8xbf16>,
    return
  }
  func.func @transform_0(%arg0: i32, %arg1: i32) -> (i32, i32, i32) {
    %c0_i32 = arith.constant 0 : i32
    %c0_i32_0 = arith.constant 0 : i32
    return %arg0, %arg1, %c0_i32 : i32, i32, i32
  }
  func.func @transform_1(%arg0: i32, %arg1: i32) -> (i32, i32) {
    %c0_i32 = arith.constant 0 : i32
    %c0_i32_0 = arith.constant 0 : i32
    %c0_i32_1 = arith.constant 0 : i32
    return %c0_i32, %c0_i32_0 : i32, i32
  }
  func.func @transform_2(%arg0: i32, %arg1: i32) -> (i32, i32) {
    %c0_i32 = arith.constant 0 : i32
    %c0_i32_0 = arith.constant 0 : i32
    %c0_i32_1 = arith.constant 0 : i32
    return %c0_i32, %c0_i32_0 : i32, i32
  }
  func.func @transform_3(%arg0: i32, %arg1: i32) -> (i32, i32, i32) {
    %c0_i32 = arith.constant 0 : i32
    %c0_i32_0 = arith.constant 0 : i32
    return %arg0, %arg1, %c0_i32 : i32, i32, i32
  }
}

module attributes {stable_mosaic.version = 11 : i64} {
  func.func @_conv_block_kernel(%arg0: i32, %arg1: i32, %arg2: memref<1x16x72xbf16, #tpu.memory_space<vmem>>, %arg3: memref<72x64xbf16, #tpu.memory_space<vmem>>, %arg4: memref<1x64xf32, #tpu.memory_space<vmem>>, %arg5: memref<1x16x64xbf16, #tpu.memory_space<vmem>>) attributes {dimension_semantics = [#tpu.dimension_semantics<parallel>, #tpu.dimension_semantics<parallel>], iteration_bounds = array<i64: 2, 1>, scalar_prefetch = 0 : i64, scratch_operands = 0 : i64, tpu.core_type = #tpu.core_type<tc>, window_params = [{transform_indices = @transform_0, window_bounds = array<i64: 1, 16, 72>}, {pipeline_mode = #tpu.pipeline_mode<synchronous>, transform_indices = @transform_1, window_bounds = array<i64: 72, 64>}, {pipeline_mode = #tpu.pipeline_mode<synchronous>, transform_indices = @transform_2, window_bounds = array<i64: 1, 64>}, {transform_indices = @transform_3, window_bounds = array<i64: 1, 16, 64>}]} {
    %c0 = arith.constant 0 : index
    %c0_0 = arith.constant 0 : index
    %c0_1 = arith.constant 0 : index
    %0 = vector.load %arg2[%c0, %c0_0, %c0_1] : memref<1x16x72xbf16, #tpu.memory_space<vmem>>, vector<1x16x72xbf16>
    %1 = vector.shape_cast %0 : vector<1x16x72xbf16> to vector<16x72xbf16>
    %c0_2 = arith.constant 0 : index
    %c0_3 = arith.constant 0 : index
    %2 = vector.load %arg3[%c0_2, %c0_3] : memref<72x64xbf16, #tpu.memory_space<vmem>>, vector<72x64xbf16>
    %cst = arith.constant dense<0.000000e+00> : vector<16x64xf32>
    %3 = tpu.matmul %1, %2, %cst {dimension_numbers = #tpu.dot_dimension_numbers<[1], [0], [0], [1], [0, 0, 1, 1], [], []>} : vector<16x72xbf16>, vector<72x64xbf16>, vector<16x64xf32> -> vector<16x64xf32>
    %c0_4 = arith.constant 0 : index
    %c0_5 = arith.constant 0 : index
    %4 = vector.load %arg4[%c0_4, %c0_5] : memref<1x64xf32, #tpu.memory_space<vmem>>, vector<1x64xf32>
    %5 = vector.broadcast %4 : vector<1x64xf32> to vector<16x64xf32>
    %6 = arith.addf %3, %5 : vector<16x64xf32>
    %cst_6 = arith.constant 0.000000e+00 : f32
    %7 = vector.broadcast %cst_6 : f32 to vector<16x64xf32>
    %8 = arith.maximumf %6, %7 : vector<16x64xf32>
    %9 = arith.truncf %8 : vector<16x64xf32> to vector<16x64xbf16>
    %c0_7 = arith.constant 0 : index
    %c0_8 = arith.constant 0 : index
    %c0_9 = arith.constant 0 : index
    %10 = vector.load %arg5[%c0_7, %c0_8, %c0_9] : memref<1x16x64xbf16, #tpu.memory_space<vmem>>, vector<1x16x64xbf16>
    %11 = vector.shape_cast %10 : vector<1x16x64xbf16> to vector<16x64xbf16>
    %12 = vector.shape_cast %9 : vector<16x64xbf16> to vector<1x16x64xbf16>
    tpu.vector_store %arg5[%c0_7, %c0_8, %c0_9], %12 {strides = array<i32>} : memref<1x16x64xbf16, #tpu.memory_space<vmem>>, vector<1x16x64xbf16>,
    return
  }
  func.func @transform_0(%arg0: i32, %arg1: i32) -> (i32, i32, i32) {
    %c0_i32 = arith.constant 0 : i32
    %c0_i32_0 = arith.constant 0 : i32
    return %arg0, %arg1, %c0_i32 : i32, i32, i32
  }
  func.func @transform_1(%arg0: i32, %arg1: i32) -> (i32, i32) {
    %c0_i32 = arith.constant 0 : i32
    %c0_i32_0 = arith.constant 0 : i32
    %c0_i32_1 = arith.constant 0 : i32
    return %c0_i32, %c0_i32_0 : i32, i32
  }
  func.func @transform_2(%arg0: i32, %arg1: i32) -> (i32, i32) {
    %c0_i32 = arith.constant 0 : i32
    %c0_i32_0 = arith.constant 0 : i32
    %c0_i32_1 = arith.constant 0 : i32
    return %c0_i32, %c0_i32_0 : i32, i32
  }
  func.func @transform_3(%arg0: i32, %arg1: i32) -> (i32, i32, i32) {
    %c0_i32 = arith.constant 0 : i32
    %c0_i32_0 = arith.constant 0 : i32
    return %arg0, %arg1, %c0_i32 : i32, i32, i32
  }
}

module attributes {stable_mosaic.version = 11 : i64} {
  func.func @_conv_block_kernel(%arg0: i32, %arg1: i32, %arg2: memref<1x64x1600xbf16, #tpu.memory_space<vmem>>, %arg3: memref<1600x32xbf16, #tpu.memory_space<vmem>>, %arg4: memref<1x32xf32, #tpu.memory_space<vmem>>, %arg5: memref<1x32xf32, #tpu.memory_space<vmem>>, %arg6: memref<1x32xf32, #tpu.memory_space<vmem>>, %arg7: memref<1x64x32xbf16, #tpu.memory_space<vmem>>) attributes {dimension_semantics = [#tpu.dimension_semantics<parallel>, #tpu.dimension_semantics<parallel>], iteration_bounds = array<i64: 2, 1>, scalar_prefetch = 0 : i64, scratch_operands = 0 : i64, tpu.core_type = #tpu.core_type<tc>, window_params = [{transform_indices = @transform_0, window_bounds = array<i64: 1, 64, 1600>}, {pipeline_mode = #tpu.pipeline_mode<synchronous>, transform_indices = @transform_1, window_bounds = array<i64: 1600, 32>}, {pipeline_mode = #tpu.pipeline_mode<synchronous>, transform_indices = @transform_2, window_bounds = array<i64: 1, 32>}, {pipeline_mode = #tpu.pipeline_mode<synchronous>, transform_indices = @transform_3, window_bounds = array<i64: 1, 32>}, {pipeline_mode = #tpu.pipeline_mode<synchronous>, transform_indices = @transform_4, window_bounds = array<i64: 1, 32>}, {transform_indices = @transform_5, window_bounds = array<i64: 1, 64, 32>}]} {
    %c0 = arith.constant 0 : index
    %c0_0 = arith.constant 0 : index
    %c0_1 = arith.constant 0 : index
    %0 = vector.load %arg2[%c0, %c0_0, %c0_1] : memref<1x64x1600xbf16, #tpu.memory_space<vmem>>, vector<1x64x1600xbf16>
    %1 = vector.shape_cast %0 : vector<1x64x1600xbf16> to vector<64x1600xbf16>
    %c0_2 = arith.constant 0 : index
    %c0_3 = arith.constant 0 : index
    %2 = vector.load %arg3[%c0_2, %c0_3] : memref<1600x32xbf16, #tpu.memory_space<vmem>>, vector<1600x32xbf16>
    %cst = arith.constant dense<0.000000e+00> : vector<64x32xf32>
    %3 = tpu.matmul %1, %2, %cst {dimension_numbers = #tpu.dot_dimension_numbers<[1], [0], [0], [1], [0, 0, 1, 1], [], []>} : vector<64x1600xbf16>, vector<1600x32xbf16>, vector<64x32xf32> -> vector<64x32xf32>
    %c0_4 = arith.constant 0 : index
    %c0_5 = arith.constant 0 : index
    %4 = vector.load %arg4[%c0_4, %c0_5] : memref<1x32xf32, #tpu.memory_space<vmem>>, vector<1x32xf32>
    %5 = vector.broadcast %4 : vector<1x32xf32> to vector<64x32xf32>
    %6 = arith.addf %3, %5 : vector<64x32xf32>
    %cst_6 = arith.constant dense<0.000000e+00> : vector<64xf32>
    %7 = vector.multi_reduction <add>, %6, %cst_6 [1] : vector<64x32xf32> to vector<64xf32>
    %8 = vector.shape_cast %7 : vector<64xf32> to vector<64x1xf32>
    %cst_7 = arith.constant dense<0.000000e+00> : vector<1xf32>
    %9 = vector.multi_reduction <add>, %8, %cst_7 [0] : vector<64x1xf32> to vector<1xf32>
    %10 = vector.shape_cast %9 : vector<1xf32> to vector<1x1xf32>
    %cst_8 = arith.constant 4.8828125E-4 : f32
    %11 = vector.broadcast %cst_8 : f32 to vector<1x1xf32>
    %12 = arith.mulf %10, %11 : vector<1x1xf32>
    %13 = vector.broadcast %12 : vector<1x1xf32> to vector<64x32xf32>
    %14 = arith.subf %6, %13 : vector<64x32xf32>
    %15 = arith.mulf %14, %14 : vector<64x32xf32>
    %cst_9 = arith.constant dense<0.000000e+00> : vector<64xf32>
    %16 = vector.multi_reduction <add>, %15, %cst_9 [1] : vector<64x32xf32> to vector<64xf32>
    %17 = vector.shape_cast %16 : vector<64xf32> to vector<64x1xf32>
    %cst_10 = arith.constant dense<0.000000e+00> : vector<1xf32>
    %18 = vector.multi_reduction <add>, %17, %cst_10 [0] : vector<64x1xf32> to vector<1xf32>
    %19 = vector.shape_cast %18 : vector<1xf32> to vector<1x1xf32>
    %cst_11 = arith.constant 4.88519785E-4 : f32
    %20 = vector.broadcast %cst_11 : f32 to vector<1x1xf32>
    %21 = arith.mulf %19, %20 : vector<1x1xf32>
    %22 = math.sqrt %21 : vector<1x1xf32>
    %cst_12 = arith.constant 9.99999974E-6 : f32
    %23 = vector.broadcast %cst_12 : f32 to vector<1x1xf32>
    %24 = arith.addf %22, %23 : vector<1x1xf32>
    %25 = tpu.reciprocal %24 {approx = true} : vector<1x1xf32> -> vector<1x1xf32>
    %26 = vector.broadcast %25 : vector<1x1xf32> to vector<64x32xf32>
    %27 = arith.mulf %14, %26 : vector<64x32xf32>
    %c0_13 = arith.constant 0 : index
    %c0_14 = arith.constant 0 : index
    %28 = vector.load %arg5[%c0_13, %c0_14] : memref<1x32xf32, #tpu.memory_space<vmem>>, vector<1x32xf32>
    %29 = vector.broadcast %28 : vector<1x32xf32> to vector<64x32xf32>
    %30 = arith.mulf %27, %29 : vector<64x32xf32>
    %c0_15 = arith.constant 0 : index
    %c0_16 = arith.constant 0 : index
    %31 = vector.load %arg6[%c0_15, %c0_16] : memref<1x32xf32, #tpu.memory_space<vmem>>, vector<1x32xf32>
    %32 = vector.broadcast %31 : vector<1x32xf32> to vector<64x32xf32>
    %33 = arith.addf %30, %32 : vector<64x32xf32>
    %cst_17 = arith.constant 0.000000e+00 : f32
    %34 = vector.broadcast %cst_17 : f32 to vector<64x32xf32>
    %35 = arith.maximumf %33, %34 : vector<64x32xf32>
    %36 = arith.truncf %35 : vector<64x32xf32> to vector<64x32xbf16>
    %c0_18 = arith.constant 0 : index
    %c0_19 = arith.constant 0 : index
    %c0_20 = arith.constant 0 : index
    %37 = vector.load %arg7[%c0_18, %c0_19, %c0_20] : memref<1x64x32xbf16, #tpu.memory_space<vmem>>, vector<1x64x32xbf16>
    %38 = vector.shape_cast %37 : vector<1x64x32xbf16> to vector<64x32xbf16>
    %39 = vector.shape_cast %36 : vector<64x32xbf16> to vector<1x64x32xbf16>
    tpu.vector_store %arg7[%c0_18, %c0_19, %c0_20], %39 {strides = array<i32>} : memref<1x64x32xbf16, #tpu.memory_space<vmem>>, vector<1x64x32xbf16>,
    return
  }
  func.func @transform_0(%arg0: i32, %arg1: i32) -> (i32, i32, i32) {
    %c0_i32 = arith.constant 0 : i32
    %c0_i32_0 = arith.constant 0 : i32
    return %arg0, %arg1, %c0_i32 : i32, i32, i32
  }
  func.func @transform_1(%arg0: i32, %arg1: i32) -> (i32, i32) {
    %c0_i32 = arith.constant 0 : i32
    %c0_i32_0 = arith.constant 0 : i32
    %c0_i32_1 = arith.constant 0 : i32
    return %c0_i32, %c0_i32_0 : i32, i32
  }
  func.func @transform_2(%arg0: i32, %arg1: i32) -> (i32, i32) {
    %c0_i32 = arith.constant 0 : i32
    %c0_i32_0 = arith.constant 0 : i32
    %c0_i32_1 = arith.constant 0 : i32
    return %c0_i32, %c0_i32_0 : i32, i32
  }
  func.func @transform_3(%arg0: i32, %arg1: i32) -> (i32, i32) {
    %c0_i32 = arith.constant 0 : i32
    %c0_i32_0 = arith.constant 0 : i32
    %c0_i32_1 = arith.constant 0 : i32
    return %c0_i32, %c0_i32_0 : i32, i32
  }
  func.func @transform_4(%arg0: i32, %arg1: i32) -> (i32, i32) {
    %c0_i32 = arith.constant 0 : i32
    %c0_i32_0 = arith.constant 0 : i32
    %c0_i32_1 = arith.constant 0 : i32
    return %c0_i32, %c0_i32_0 : i32, i32
  }
  func.func @transform_5(%arg0: i32, %arg1: i32) -> (i32, i32, i32) {
    %c0_i32 = arith.constant 0 : i32
    %c0_i32_0 = arith.constant 0 : i32
    return %arg0, %arg1, %c0_i32 : i32, i32, i32
  }
}

module attributes {stable_mosaic.version = 11 : i64} {
  func.func @_conv_block_kernel(%arg0: i32, %arg1: i32, %arg2: memref<1x256x800xbf16, #tpu.memory_space<vmem>>, %arg3: memref<800x16xbf16, #tpu.memory_space<vmem>>, %arg4: memref<1x16xf32, #tpu.memory_space<vmem>>, %arg5: memref<1x16xf32, #tpu.memory_space<vmem>>, %arg6: memref<1x16xf32, #tpu.memory_space<vmem>>, %arg7: memref<1x256x16xbf16, #tpu.memory_space<vmem>>) attributes {dimension_semantics = [#tpu.dimension_semantics<parallel>, #tpu.dimension_semantics<parallel>], iteration_bounds = array<i64: 2, 1>, scalar_prefetch = 0 : i64, scratch_operands = 0 : i64, tpu.core_type = #tpu.core_type<tc>, window_params = [{transform_indices = @transform_0, window_bounds = array<i64: 1, 256, 800>}, {pipeline_mode = #tpu.pipeline_mode<synchronous>, transform_indices = @transform_1, window_bounds = array<i64: 800, 16>}, {pipeline_mode = #tpu.pipeline_mode<synchronous>, transform_indices = @transform_2, window_bounds = array<i64: 1, 16>}, {pipeline_mode = #tpu.pipeline_mode<synchronous>, transform_indices = @transform_3, window_bounds = array<i64: 1, 16>}, {pipeline_mode = #tpu.pipeline_mode<synchronous>, transform_indices = @transform_4, window_bounds = array<i64: 1, 16>}, {transform_indices = @transform_5, window_bounds = array<i64: 1, 256, 16>}]} {
    %c0 = arith.constant 0 : index
    %c0_0 = arith.constant 0 : index
    %c0_1 = arith.constant 0 : index
    %0 = vector.load %arg2[%c0, %c0_0, %c0_1] : memref<1x256x800xbf16, #tpu.memory_space<vmem>>, vector<1x256x800xbf16>
    %1 = vector.shape_cast %0 : vector<1x256x800xbf16> to vector<256x800xbf16>
    %c0_2 = arith.constant 0 : index
    %c0_3 = arith.constant 0 : index
    %2 = vector.load %arg3[%c0_2, %c0_3] : memref<800x16xbf16, #tpu.memory_space<vmem>>, vector<800x16xbf16>
    %cst = arith.constant dense<0.000000e+00> : vector<256x16xf32>
    %3 = tpu.matmul %1, %2, %cst {dimension_numbers = #tpu.dot_dimension_numbers<[1], [0], [0], [1], [0, 0, 1, 1], [], []>} : vector<256x800xbf16>, vector<800x16xbf16>, vector<256x16xf32> -> vector<256x16xf32>
    %c0_4 = arith.constant 0 : index
    %c0_5 = arith.constant 0 : index
    %4 = vector.load %arg4[%c0_4, %c0_5] : memref<1x16xf32, #tpu.memory_space<vmem>>, vector<1x16xf32>
    %5 = vector.broadcast %4 : vector<1x16xf32> to vector<256x16xf32>
    %6 = arith.addf %3, %5 : vector<256x16xf32>
    %cst_6 = arith.constant dense<0.000000e+00> : vector<256xf32>
    %7 = vector.multi_reduction <add>, %6, %cst_6 [1] : vector<256x16xf32> to vector<256xf32>
    %8 = vector.shape_cast %7 : vector<256xf32> to vector<256x1xf32>
    %cst_7 = arith.constant dense<0.000000e+00> : vector<1xf32>
    %9 = vector.multi_reduction <add>, %8, %cst_7 [0] : vector<256x1xf32> to vector<1xf32>
    %10 = vector.shape_cast %9 : vector<1xf32> to vector<1x1xf32>
    %cst_8 = arith.constant 2.44140625E-4 : f32
    %11 = vector.broadcast %cst_8 : f32 to vector<1x1xf32>
    %12 = arith.mulf %10, %11 : vector<1x1xf32>
    %13 = vector.broadcast %12 : vector<1x1xf32> to vector<256x16xf32>
    %14 = arith.subf %6, %13 : vector<256x16xf32>
    %15 = arith.mulf %14, %14 : vector<256x16xf32>
    %cst_9 = arith.constant dense<0.000000e+00> : vector<256xf32>
    %16 = vector.multi_reduction <add>, %15, %cst_9 [1] : vector<256x16xf32> to vector<256xf32>
    %17 = vector.shape_cast %16 : vector<256xf32> to vector<256x1xf32>
    %cst_10 = arith.constant dense<0.000000e+00> : vector<1xf32>
    %18 = vector.multi_reduction <add>, %17, %cst_10 [0] : vector<256x1xf32> to vector<1xf32>
    %19 = vector.shape_cast %18 : vector<1xf32> to vector<1x1xf32>
    %cst_11 = arith.constant 2.44200259E-4 : f32
    %20 = vector.broadcast %cst_11 : f32 to vector<1x1xf32>
    %21 = arith.mulf %19, %20 : vector<1x1xf32>
    %22 = math.sqrt %21 : vector<1x1xf32>
    %cst_12 = arith.constant 9.99999974E-6 : f32
    %23 = vector.broadcast %cst_12 : f32 to vector<1x1xf32>
    %24 = arith.addf %22, %23 : vector<1x1xf32>
    %25 = tpu.reciprocal %24 {approx = true} : vector<1x1xf32> -> vector<1x1xf32>
    %26 = vector.broadcast %25 : vector<1x1xf32> to vector<256x16xf32>
    %27 = arith.mulf %14, %26 : vector<256x16xf32>
    %c0_13 = arith.constant 0 : index
    %c0_14 = arith.constant 0 : index
    %28 = vector.load %arg5[%c0_13, %c0_14] : memref<1x16xf32, #tpu.memory_space<vmem>>, vector<1x16xf32>
    %29 = vector.broadcast %28 : vector<1x16xf32> to vector<256x16xf32>
    %30 = arith.mulf %27, %29 : vector<256x16xf32>
    %c0_15 = arith.constant 0 : index
    %c0_16 = arith.constant 0 : index
    %31 = vector.load %arg6[%c0_15, %c0_16] : memref<1x16xf32, #tpu.memory_space<vmem>>, vector<1x16xf32>
    %32 = vector.broadcast %31 : vector<1x16xf32> to vector<256x16xf32>
    %33 = arith.addf %30, %32 : vector<256x16xf32>
    %cst_17 = arith.constant 0.000000e+00 : f32
    %34 = vector.broadcast %cst_17 : f32 to vector<256x16xf32>
    %35 = arith.maximumf %33, %34 : vector<256x16xf32>
    %36 = arith.truncf %35 : vector<256x16xf32> to vector<256x16xbf16>
    %c0_18 = arith.constant 0 : index
    %c0_19 = arith.constant 0 : index
    %c0_20 = arith.constant 0 : index
    %37 = vector.load %arg7[%c0_18, %c0_19, %c0_20] : memref<1x256x16xbf16, #tpu.memory_space<vmem>>, vector<1x256x16xbf16>
    %38 = vector.shape_cast %37 : vector<1x256x16xbf16> to vector<256x16xbf16>
    %39 = vector.shape_cast %36 : vector<256x16xbf16> to vector<1x256x16xbf16>
    tpu.vector_store %arg7[%c0_18, %c0_19, %c0_20], %39 {strides = array<i32>} : memref<1x256x16xbf16, #tpu.memory_space<vmem>>, vector<1x256x16xbf16>,
    return
  }
  func.func @transform_0(%arg0: i32, %arg1: i32) -> (i32, i32, i32) {
    %c0_i32 = arith.constant 0 : i32
    %c0_i32_0 = arith.constant 0 : i32
    return %arg0, %arg1, %c0_i32 : i32, i32, i32
  }
  func.func @transform_1(%arg0: i32, %arg1: i32) -> (i32, i32) {
    %c0_i32 = arith.constant 0 : i32
    %c0_i32_0 = arith.constant 0 : i32
    %c0_i32_1 = arith.constant 0 : i32
    return %c0_i32, %c0_i32_0 : i32, i32
  }
  func.func @transform_2(%arg0: i32, %arg1: i32) -> (i32, i32) {
    %c0_i32 = arith.constant 0 : i32
    %c0_i32_0 = arith.constant 0 : i32
    %c0_i32_1 = arith.constant 0 : i32
    return %c0_i32, %c0_i32_0 : i32, i32
  }
  func.func @transform_3(%arg0: i32, %arg1: i32) -> (i32, i32) {
    %c0_i32 = arith.constant 0 : i32
    %c0_i32_0 = arith.constant 0 : i32
    %c0_i32_1 = arith.constant 0 : i32
    return %c0_i32, %c0_i32_0 : i32, i32
  }
  func.func @transform_4(%arg0: i32, %arg1: i32) -> (i32, i32) {
    %c0_i32 = arith.constant 0 : i32
    %c0_i32_0 = arith.constant 0 : i32
    %c0_i32_1 = arith.constant 0 : i32
    return %c0_i32, %c0_i32_0 : i32, i32
  }
  func.func @transform_5(%arg0: i32, %arg1: i32) -> (i32, i32, i32) {
    %c0_i32 = arith.constant 0 : i32
    %c0_i32_0 = arith.constant 0 : i32
    return %arg0, %arg1, %c0_i32 : i32, i32, i32
  }
}

module attributes {stable_mosaic.version = 11 : i64} {
  func.func @_conv_out_transposed_kernel(%arg0: i32, %arg1: memref<1x784x256xbf16, #tpu.memory_space<vmem>>, %arg2: memref<3x784xbf16, #tpu.memory_space<vmem>>, %arg3: memref<3x1xf32, #tpu.memory_space<vmem>>, %arg4: memref<1x3x256xf32, #tpu.memory_space<vmem>>) attributes {dimension_semantics = [#tpu.dimension_semantics<parallel>], iteration_bounds = array<i64: 2>, scalar_prefetch = 0 : i64, scratch_operands = 0 : i64, tpu.core_type = #tpu.core_type<tc>, window_params = [{transform_indices = @transform_0, window_bounds = array<i64: 1, 784, 256>}, {pipeline_mode = #tpu.pipeline_mode<synchronous>, transform_indices = @transform_1, window_bounds = array<i64: 3, 784>}, {pipeline_mode = #tpu.pipeline_mode<synchronous>, transform_indices = @transform_2, window_bounds = array<i64: 3, 1>}, {transform_indices = @transform_3, window_bounds = array<i64: 1, 3, 256>}]} {
    %c0 = arith.constant 0 : index
    %c0_0 = arith.constant 0 : index
    %0 = vector.load %arg2[%c0, %c0_0] : memref<3x784xbf16, #tpu.memory_space<vmem>>, vector<3x784xbf16>
    %c0_1 = arith.constant 0 : index
    %c0_2 = arith.constant 0 : index
    %c0_3 = arith.constant 0 : index
    %1 = vector.load %arg1[%c0_1, %c0_2, %c0_3] : memref<1x784x256xbf16, #tpu.memory_space<vmem>>, vector<1x784x256xbf16>
    %2 = vector.shape_cast %1 : vector<1x784x256xbf16> to vector<784x256xbf16>
    %cst = arith.constant dense<0.000000e+00> : vector<3x256xf32>
    %3 = tpu.matmul %0, %2, %cst {dimension_numbers = #tpu.dot_dimension_numbers<[1], [0], [0], [1], [0, 0, 1, 1], [], []>} : vector<3x784xbf16>, vector<784x256xbf16>, vector<3x256xf32> -> vector<3x256xf32>
    %c0_4 = arith.constant 0 : index
    %c0_5 = arith.constant 0 : index
    %4 = vector.load %arg3[%c0_4, %c0_5] : memref<3x1xf32, #tpu.memory_space<vmem>>, vector<3x1xf32>
    %5 = vector.broadcast %4 : vector<3x1xf32> to vector<3x256xf32>
    %6 = arith.addf %3, %5 : vector<3x256xf32>
    %7 = math.tanh %6 : vector<3x256xf32>
    %c0_6 = arith.constant 0 : index
    %c0_7 = arith.constant 0 : index
    %c0_8 = arith.constant 0 : index
    %8 = vector.load %arg4[%c0_6, %c0_7, %c0_8] : memref<1x3x256xf32, #tpu.memory_space<vmem>>, vector<1x3x256xf32>
    %9 = vector.shape_cast %8 : vector<1x3x256xf32> to vector<3x256xf32>
    %10 = vector.shape_cast %7 : vector<3x256xf32> to vector<1x3x256xf32>
    tpu.vector_store %arg4[%c0_6, %c0_7, %c0_8], %10 {strides = array<i32>} : memref<1x3x256xf32, #tpu.memory_space<vmem>>, vector<1x3x256xf32>,
    return
  }
  func.func @transform_0(%arg0: i32) -> (i32, i32, i32) {
    %c0_i32 = arith.constant 0 : i32
    %c0_i32_0 = arith.constant 0 : i32
    %c0_i32_1 = arith.constant 0 : i32
    return %arg0, %c0_i32, %c0_i32_0 : i32, i32, i32
  }
  func.func @transform_1(%arg0: i32) -> (i32, i32) {
    %c0_i32 = arith.constant 0 : i32
    %c0_i32_0 = arith.constant 0 : i32
    %c0_i32_1 = arith.constant 0 : i32
    return %c0_i32, %c0_i32_0 : i32, i32
  }
  func.func @transform_2(%arg0: i32) -> (i32, i32) {
    %c0_i32 = arith.constant 0 : i32
    %c0_i32_0 = arith.constant 0 : i32
    %c0_i32_1 = arith.constant 0 : i32
    return %c0_i32, %c0_i32_0 : i32, i32
  }
  func.func @transform_3(%arg0: i32) -> (i32, i32, i32) {
    %c0_i32 = arith.constant 0 : i32
    %c0_i32_0 = arith.constant 0 : i32
    %c0_i32_1 = arith.constant 0 : i32
    return %arg0, %c0_i32, %c0_i32_0 : i32, i32, i32
  }
}

</mosaic_0001>

<llo_original>
// kernel: styleless_gen_forward.17
$region0: #{styleless_gen_forward.17}
  #allocation0 [shape = 'u32[]', space=smem, size = 0x4, offset = 0x4, fixed_abs, tag = 'smem constant byte address 0x4 - core index']
  #allocation1 [shape = 'u32[144,128]{1,0:T(1,128)}', space=vmem, size = 0x12000, scoped, tag = 'internal scratch']
  %s0 = inlined_call_operand.vmem [shape: bf16[2,64,256], index: 0, kind: input, shape index: {}]
  %s1 = inlined_call_operand.vmem [shape: bf16[256,32], index: 1, kind: input, shape index: {}]
  %s2 = inlined_call_operand.vmem [shape: f32[1,32], index: 2, kind: input, shape index: {}]
  %s3 = inlined_call_operand.vmem [shape: bf16[2,64,32], index: 3, kind: output, shape index: {}]
  %s4 = sld [smem:[#allocation0]]
  $region45: #{styleless_gen_forward.17} parent=0
    _
  %s6 = ssub.s32 1, %s4
  %s7 = scalar_select 0, %s6, %s4
  loop: start=0, step=1, limit=4
  $region2: #{styleless_gen_forward.17} parent=0 // loop_pre_header
    _
  $region3: #{styleless_gen_forward.17} parent=0 // loop_header
    %s9 = sphi 0, %s13
    %p10 = scmp.ge.s32.totalorder %s9, 4
    %s16 = sphi 0, %s28
    %s17 = sphi 0, %s24
    %s18 = sphi 0, %s16
    %s19 = sphi 0, %s17
    %s20 = sphi 0, %s18
    %s21 = sphi 0, %s19
    %s33 = sphi 0, %s35
    %s36 = sphi 0, %s33
    %s37 = sphi 0, %s36
    %s53 = sphi 0, %s37
    %s57 = sphi 0, %s57
    %s59 = sphi 0, %s57
    %s60 = sphi 0, %s59
    %s74 = sphi 0, %s60
    %s78 = sphi 0, %s78
    %s80 = sphi 0, %s78
    %s81 = sphi 0, %s80
    %s95 = sphi 0, %s81
    %s103 = sphi 0, %s105
    %s106 = sphi 0, %s103
    %s107 = sphi 0, %s106
    %s123 = sphi 0, %s107
  $region4: #{styleless_gen_forward.17} parent=0 // loop_header_branch
    %12 = sbr.rel (%p10) target = $region8
  $region5: #{styleless_gen_forward.17} parent=0 // loop_body
    %s14 = ssub.s32 %s9, 1
    %s15 = ssub.s32 %s9, 2
    %s22 = sadd.s32 1, %s17
    %p23 = scmp.ge.s32.totalorder %s22, 1
    %s24 = scalar_select %p23, 0, %s22
    %s25 = sadd.s32 1, %s16
    %s26 = scalar_select %p23, %s25, %s16
    %p27 = scmp.ge.s32.totalorder %s26, 2
    %s28 = scalar_select %p27, 0, %s26
    %s29 = ssub.s32 %s16, %s28
    %s30 = ssub.s32 %s17, %s24
    %s31 = sor.u32 %s29, %s30
    %p32 = scmp.eq.s32.totalorder %s31, 0
    %s34 = sadd.s32 %s33, 1
    %s35 = scalar_select %p32, %s33, %s34
    %p38 = pneg %p32
    %p39 = scmp.eq.s32.totalorder %s9, 1
    %p40 = por %p38, %p39
    %p41 = scmp.ne.s32.totalorder %s33, %s36
    %p42 = scmp.eq.s32.totalorder %s9, 0
    %p43 = por %p41, %p42
    %p44 = scmp.ne.s32.totalorder %s33, %s36
    %p45 = scmp.eq.s32.totalorder %s14, 1
    %p46 = por %p44, %p45
    %p47 = scmp.ne.s32.totalorder %s36, %s37
    %p48 = scmp.eq.s32.totalorder %s14, 0
    %p49 = por %p47, %p48
    %p50 = scmp.ne.s32.totalorder %s36, %s37
    %p51 = scmp.eq.s32.totalorder %s15, 1
    %p52 = por %p50, %p51
    %p54 = scmp.ne.s32.totalorder %s37, %s53
    %p55 = scmp.eq.s32.totalorder %s15, 0
    %p56 = por %p54, %p55
    %s58 = sadd.s32 %s57, 1
    %p61 = scmp.eq.s32.totalorder %s9, 1
    %p62 = scmp.ne.s32.totalorder %s57, %s59
    %p63 = scmp.eq.s32.totalorder %s9, 0
    %p64 = por %p62, %p63
    %p65 = scmp.ne.s32.totalorder %s57, %s59
    %p66 = scmp.eq.s32.totalorder %s14, 1
    %p67 = por %p65, %p66
    %p68 = scmp.ne.s32.totalorder %s59, %s60
    %p69 = scmp.eq.s32.totalorder %s14, 0
    %p70 = por %p68, %p69
    %p71 = scmp.ne.s32.totalorder %s59, %s60
    %p72 = scmp.eq.s32.totalorder %s15, 1
    %p73 = por %p71, %p72
    %p75 = scmp.ne.s32.totalorder %s60, %s74
    %p76 = scmp.eq.s32.totalorder %s15, 0
    %p77 = por %p75, %p76
    %s79 = sadd.s32 %s78, 1
    %p82 = scmp.eq.s32.totalorder %s9, 1
    %p83 = scmp.ne.s32.totalorder %s78, %s80
    %p84 = scmp.eq.s32.totalorder %s9, 0
    %p85 = por %p83, %p84
    %p86 = scmp.ne.s32.totalorder %s78, %s80
    %p87 = scmp.eq.s32.totalorder %s14, 1
    %p88 = por %p86, %p87
    %p89 = scmp.ne.s32.totalorder %s80, %s81
    %p90 = scmp.eq.s32.totalorder %s14, 0
    %p91 = por %p89, %p90
    %p92 = scmp.ne.s32.totalorder %s80, %s81
    %p93 = scmp.eq.s32.totalorder %s15, 1
    %p94 = por %p92, %p93
    %p96 = scmp.ne.s32.totalorder %s81, %s95
    %p97 = scmp.eq.s32.totalorder %s15, 0
    %p98 = por %p96, %p97
    %s99 = ssub.s32 %s16, %s28
    %s100 = ssub.s32 %s17, %s24
    %s101 = sor.u32 %s99, %s100
    %p102 = scmp.eq.s32.totalorder %s101, 0
    %s104 = sadd.s32 %s103, 1
    %s105 = scalar_select %p102, %s103, %s104
    %p108 = pneg %p102
    %p109 = scmp.eq.s32.totalorder %s9, 1
    %p110 = por %p108, %p109
    %p111 = scmp.ne.s32.totalorder %s103, %s106
    %p112 = scmp.eq.s32.totalorder %s9, 0
    %p113 = por %p111, %p112
    %p114 = scmp.ne.s32.totalorder %s103, %s106
    %p115 = scmp.eq.s32.totalorder %s14, 1
    %p116 = por %p114, %p115
    %p117 = scmp.ne.s32.totalorder %s106, %s107
    %p118 = scmp.eq.s32.totalorder %s14, 0
    %p119 = por %p117, %p118
    %p120 = scmp.ne.s32.totalorder %s106, %s107
    %p121 = scmp.eq.s32.totalorder %s15, 1
    %p122 = por %p120, %p121
    %p124 = scmp.ne.s32.totalorder %s107, %s123
    %p125 = scmp.eq.s32.totalorder %s15, 0
    %p126 = por %p124, %p125
    %p127 = scmp.le.s32.totalorder 1, %s9
    %p128 = scmp.lt.s32.totalorder %s9, 3
    %p129 = pnand %p127, %p128
    %p130 = pneg %p129
    // Predicated region
    $region9: #{styleless_gen_forward.17} parent=5 // pred_check
      _
    $region10: #{styleless_gen_forward.17} parent=5 // pred_check_branch
      %132 = sbr.rel (%p129) target = $region12
    $region11: #{styleless_gen_forward.17} parent=5 // pred_region
      %s133 = ssub.s32 %s9, 1
      // Predicated region
      $region13: #{styleless_gen_forward.17} parent=11 // pred_check
        %p134 = pneg %p70
      $region14: #{styleless_gen_forward.17} parent=11 // pred_check_branch
        %136 = sbr.rel (%p134) target = $region16
      $region15: #{styleless_gen_forward.17} parent=11 // pred_region
        _
      $region16: #{styleless_gen_forward.17} parent=11 // pred_fallthru
        _
      // Predicated region
      $region17: #{styleless_gen_forward.17} parent=11 // pred_check
        %p137 = pneg %p91
      $region18: #{styleless_gen_forward.17} parent=11 // pred_check_branch
        %139 = sbr.rel (%p137) target = $region20
      $region19: #{styleless_gen_forward.17} parent=11 // pred_region
        _
      $region20: #{styleless_gen_forward.17} parent=11 // pred_fallthru
        _
    $region12: #{styleless_gen_forward.17} parent=5 // pred_fallthru
      _
    %p140 = scmp.lt.s32.totalorder %s9, 2
    // Predicated region
    $region21: #{styleless_gen_forward.17} parent=5 // pred_check
      %p141 = pneg %p140
    $region22: #{styleless_gen_forward.17} parent=5 // pred_check_branch
      %143 = sbr.rel (%p141) target = $region24
    $region23: #{styleless_gen_forward.17} parent=5 // pred_region
      // Predicated region
      $region25: #{styleless_gen_forward.17} parent=23 // pred_check
        %p144 = pneg %p43
      $region26: #{styleless_gen_forward.17} parent=23 // pred_check_branch
        %146 = sbr.rel (%p144) target = $region28
      $region27: #{styleless_gen_forward.17} parent=23 // pred_region
        %s147 = smul.u32 8, %s17
        %p148 = scmp.lt.s32.totalorder %s16, 1
        %s149 = scalar_select %p148, %s16, 1
        %p150 = scmp.lt.s32.totalorder %s147, 7
        %s151 = scalar_select %p150, %s147, 7
        %s152 = smul.addr %s151, 2
        %s153 = smul.addr %s149, 16
        %s154 = sadd.s32 %s152, %s153
        %s155 = smul.addr %s154, 4
        %s156 = scalar_lea.vmem %s0, %s155
        %s157 = smul.u32 8, %s17
      $region28: #{styleless_gen_forward.17} parent=23 // pred_fallthru
        _
    $region24: #{styleless_gen_forward.17} parent=5 // pred_fallthru
      _
    %p158 = scmp.le.s32.totalorder 1, %s9
    %p159 = scmp.lt.s32.totalorder %s9, 3
    %p160 = pnand %p158, %p159
    %p161 = pneg %p160
    // Predicated region
    $region29: #{styleless_gen_forward.17} parent=5 // pred_check
      _
    $region30: #{styleless_gen_forward.17} parent=5 // pred_check_branch
      %163 = sbr.rel (%p160) target = $region32
    $region31: #{styleless_gen_forward.17} parent=5 // pred_region
      %s164 = ssub.s32 %s9, 1
      %s165 = smul.u32 8, %s19
      %p166 = scmp.lt.s32.totalorder %s18, 1
      %s167 = scalar_select %p166, %s18, 1
      %p168 = scmp.lt.s32.totalorder %s165, 7
      %s169 = scalar_select %p168, %s165, 7
      %s170 = smul.addr %s169, 2
      %s171 = smul.addr %s167, 16
      %s172 = sadd.s32 %s170, %s171
      %s173 = smul.addr %s172, 4
      %s174 = scalar_lea.vmem %s0, %s173
      %p175 = pneg %p49
      %p176 = pneg %p46
      %p177 = pneg %p70
      %p178 = pneg %p67
      %p179 = pneg %p91
      %p180 = pneg %p88
      %p181 = pneg %p119
      %p182 = pneg %p116
      %s183 = smul.u32 8, %s19
      %p184 = scmp.lt.s32.totalorder %s18, 1
      %s185 = scalar_select %p184, %s18, 1
      %p186 = scmp.lt.s32.totalorder %s183, 7
      %s187 = scalar_select %p186, %s183, 7
      %s188 = smul.addr %s185, 8
      %s189 = sadd.s32 %s187, %s188
      %s190 = smul.addr %s189, 4
      %s191 = scalar_lea.vmem %s3, %s190
      %s192 = smul.u32 8, %s19
      %p193 = scmp.lt.s32.totalorder %s18, 1
      %s194 = scalar_select %p193, %s18, 1
      %p195 = scmp.lt.s32.totalorder %s192, 7
      %s196 = scalar_select %p195, %s192, 7
      %s197 = smul.addr %s196, 2
      %s198 = smul.addr %s194, 16
      %s199 = sadd.s32 %s197, %s198
      %s200 = smul.addr %s199, 4
      %s201 = scalar_lea.vmem %s0, %s200
      %s202 = smul.u32 8, %s19
      %s203 = smul.u32 8, %s19
      %p204 = scmp.lt.s32.totalorder %s18, 1
      %s205 = scalar_select %p204, %s18, 1
      %p206 = scmp.lt.s32.totalorder %s203, 7
      %s207 = scalar_select %p206, %s203, 7
      %s208 = smul.addr %s205, 8
      %s209 = sadd.s32 %s207, %s208
      %s210 = smul.addr %s209, 4
      %s211 = scalar_lea.vmem %s3, %s210
      %s212 = smul.u32 8, %s19
      %v214 = vld [vmem:[%s201] sm:$0xff]
      %v215 = vld [vmem:[%s201 + $0x8] sm:$0xff]
      %v216 = vld [vmem:[%s201 + $0x10] sm:$0xff]
      %v217 = vld [vmem:[%s201 + $0x18] sm:$0xff]
      %v218 = vld [vmem:[%s201 + $0x20] sm:$0xff]
      %v219 = vld [vmem:[%s201 + $0x28] sm:$0xff]
      %v220 = vld [vmem:[%s201 + $0x30] sm:$0xff]
      %v221 = vld [vmem:[%s201 + $0x38] sm:$0xff]
      %v222 = vld [vmem:[%s1] sm:$0xf]
      %v223 = vld [vmem:[%s1 + $0x4] sm:$0xf]
      %v224 = vld [vmem:[%s1 + $0x8] sm:$0xf]
      %v225 = vld [vmem:[%s1 + $0xc] sm:$0xf]
      %v226 = vld [vmem:[%s1 + $0x10] sm:$0xf]
      %v227 = vld [vmem:[%s1 + $0x14] sm:$0xf]
      %v228 = vld [vmem:[%s1 + $0x18] sm:$0xf]
      %v229 = vld [vmem:[%s1 + $0x1c] sm:$0xf]
      %v230 = vld [vmem:[%s1 + $0x20] sm:$0xf]
      %v231 = vld [vmem:[%s1 + $0x24] sm:$0xf]
      %v232 = vld [vmem:[%s1 + $0x28] sm:$0xf]
      %v233 = vld [vmem:[%s1 + $0x2c] sm:$0xf]
      %v234 = vld [vmem:[%s1 + $0x30] sm:$0xf]
      %v235 = vld [vmem:[%s1 + $0x34] sm:$0xf]
      %v236 = vld [vmem:[%s1 + $0x38] sm:$0xf]
      %v237 = vld [vmem:[%s1 + $0x3c] sm:$0xf]
      %v238 = vld [vmem:[%s1 + $0x40] sm:$0xf]
      %v239 = vld [vmem:[%s1 + $0x44] sm:$0xf]
      %v240 = vld [vmem:[%s1 + $0x48] sm:$0xf]
      %v241 = vld [vmem:[%s1 + $0x4c] sm:$0xf]
      %v242 = vld [vmem:[%s1 + $0x50] sm:$0xf]
      %v243 = vld [vmem:[%s1 + $0x54] sm:$0xf]
      %v244 = vld [vmem:[%s1 + $0x58] sm:$0xf]
      %v245 = vld [vmem:[%s1 + $0x5c] sm:$0xf]
      %v246 = vld [vmem:[%s1 + $0x60] sm:$0xf]
      %v247 = vld [vmem:[%s1 + $0x64] sm:$0xf]
      %v248 = vld [vmem:[%s1 + $0x68] sm:$0xf]
      %v249 = vld [vmem:[%s1 + $0x6c] sm:$0xf]
      %v250 = vld [vmem:[%s1 + $0x70] sm:$0xf]
      %v251 = vld [vmem:[%s1 + $0x74] sm:$0xf]
      %v252 = vld [vmem:[%s1 + $0x78] sm:$0xf]
      %v253 = vld [vmem:[%s1 + $0x7c] sm:$0xf]
      %v254 = vld [vmem:[%s2] sm:$0x1]
      %v256 = vlaneseq
      %v257 = vshrl.u32 %v256, 7
      %v258 = vsub.s32 0, %v257
      %v259 = vrot.slane %v254, %v258
      %v269 = vunpack.c.l.b16 %v214
      %v270 = vunpack.c.h.b16 %v214
      %v271 = vunpack.c.l.b16 %v215
      %v272 = vunpack.c.h.b16 %v215
      %v273 = vunpack.c.l.b16 %v216
      %v274 = vunpack.c.h.b16 %v216
      %v275 = vunpack.c.l.b16 %v217
      %v276 = vunpack.c.h.b16 %v217
      %v277 = vunpack.c.l.b16 %v218
      %v278 = vunpack.c.h.b16 %v218
      %v279 = vunpack.c.l.b16 %v219
      %v280 = vunpack.c.h.b16 %v219
      %v281 = vunpack.c.l.b16 %v220
      %v282 = vunpack.c.h.b16 %v220
      %v283 = vunpack.c.l.b16 %v221
      %v284 = vunpack.c.h.b16 %v221
      %v285 = vpack.c.b16 %v271, %v269
      %v286 = vpack.c.b16 %v272, %v270
      %v287 = vpack.c.b16 %v275, %v273
      %v288 = vpack.c.b16 %v276, %v274
      %v289 = vpack.c.b16 %v279, %v277
      %v290 = vpack.c.b16 %v280, %v278
      %v291 = vpack.c.b16 %v283, %v281
      %v292 = vpack.c.b16 %v284, %v282
      %v333 = vunpack.c.l.b16 %v222
      %v334 = vunpack.c.l.b16 %v223
      %v335 = vunpack.c.l.b16 %v224
      %v336 = vunpack.c.l.b16 %v225
      %v337 = vunpack.c.l.b16 %v226
      %v338 = vunpack.c.l.b16 %v227
      %v339 = vunpack.c.l.b16 %v228
      %v340 = vunpack.c.l.b16 %v229
      %v341 = vunpack.c.l.b16 %v230
      %v342 = vunpack.c.l.b16 %v231
      %v343 = vunpack.c.l.b16 %v232
      %v344 = vunpack.c.l.b16 %v233
      %v345 = vunpack.c.l.b16 %v234
      %v346 = vunpack.c.l.b16 %v235
      %v347 = vunpack.c.l.b16 %v236
      %v348 = vunpack.c.l.b16 %v237
      %v349 = vunpack.c.l.b16 %v238
      %v350 = vunpack.c.l.b16 %v239
      %v351 = vunpack.c.l.b16 %v240
      %v352 = vunpack.c.l.b16 %v241
      %v353 = vunpack.c.l.b16 %v242
      %v354 = vunpack.c.l.b16 %v243
      %v355 = vunpack.c.l.b16 %v244
      %v356 = vunpack.c.l.b16 %v245
      %v357 = vunpack.c.l.b16 %v246
      %v358 = vunpack.c.l.b16 %v247
      %v359 = vunpack.c.l.b16 %v248
      %v360 = vunpack.c.l.b16 %v249
      %v361 = vunpack.c.l.b16 %v250
      %v362 = vunpack.c.l.b16 %v251
      %v363 = vunpack.c.l.b16 %v252
      %v364 = vunpack.c.l.b16 %v253
      %v365 = vpack.c.b16 %v334, %v333
      %v366 = vpack.c.b16 %v336, %v335
      %v367 = vpack.c.b16 %v338, %v337
      %v368 = vpack.c.b16 %v340, %v339
      %v369 = vpack.c.b16 %v342, %v341
      %v370 = vpack.c.b16 %v344, %v343
      %v371 = vpack.c.b16 %v346, %v345
      %v372 = vpack.c.b16 %v348, %v347
      %v373 = vpack.c.b16 %v350, %v349
      %v374 = vpack.c.b16 %v352, %v351
      %v375 = vpack.c.b16 %v354, %v353
      %v376 = vpack.c.b16 %v356, %v355
      %v377 = vpack.c.b16 %v358, %v357
      %v378 = vpack.c.b16 %v360, %v359
      %v379 = vpack.c.b16 %v362, %v361
      %v380 = vpack.c.b16 %v364, %v363
      %397 = vmatprep.subr.bf16.mxu0 0
      %398 = vmatpush1.bf16.msra.mxu0 %v365
      %399 = vmatprep.subr.bf16.mxu0 0
      %400 = vmatpush1.bf16.msra.mxu0 %v366
      %401 = vmatprep.subr.bf16.mxu0 0
      %402 = vmatpush1.bf16.msra.mxu0 %v367
      %403 = vmatprep.subr.bf16.mxu0 0
      %404 = vmatpush1.bf16.msra.mxu0 %v368
      %405 = vmatprep.subr.bf16.mxu0 0
      %406 = vmatpush1.bf16.msra.mxu0 %v369
      %407 = vmatprep.subr.bf16.mxu0 0
      %408 = vmatpush1.bf16.msra.mxu0 %v370
      %409 = vmatprep.subr.bf16.mxu0 0
      %410 = vmatpush1.bf16.msra.mxu0 %v371
      %411 = vmatprep.subr.bf16.mxu0 0
      %412 = vmatpush1.bf16.msra.mxu0 %v372
      %413 = vmatprep.subr.bf16.mxu0 0
      %414 = vmatpush1.bf16.msra.mxu0 %v373
      %415 = vmatprep.subr.bf16.mxu0 0
      %416 = vmatpush1.bf16.msra.mxu0 %v374
      %417 = vmatprep.subr.bf16.mxu0 0
      %418 = vmatpush1.bf16.msra.mxu0 %v375
      %419 = vmatprep.subr.bf16.mxu0 0
      %420 = vmatpush1.bf16.msra.mxu0 %v376
      %421 = vmatprep.subr.bf16.mxu0 0
      %422 = vmatpush1.bf16.msra.mxu0 %v377
      %423 = vmatprep.subr.bf16.mxu0 0
      %424 = vmatpush1.bf16.msra.mxu0 %v378
      %425 = vmatprep.subr.bf16.mxu0 0
      %426 = vmatpush1.bf16.msra.mxu0 %v379
      %427 = vmatprep.subr.bf16.mxu0 0
      %428 = vmatpush1.bf16.msra.mxu0 %v380
      %429 = vmatprep.mubr.bf16.mxu0 %v286
      %430 = vmatmul.mubr.bf16.gmra.mrb[0].mxu0 %v285
      %v431 = vpop.f32.mrb[0].mxu0
      %v432 = vadd.f32 %v259, %v431
      %v433 = vpop.f32.mrb[0].mxu0
      %v434 = vpop.f32.mrb[0].mxu0
      %v435 = vadd.f32 %v259, %v434
      %v436 = vpop.f32.mrb[0].mxu0
      %437 = vmatprep.mubr.bf16.mxu0 %v288
      %438 = vmatmul.mubr.bf16.gmra.mrb[0].mxu0 %v287
      %v439 = vpop.f32.mrb[0].mxu0
      %v440 = vadd.f32 %v259, %v439
      %v441 = vpop.f32.mrb[0].mxu0
      %v442 = vpop.f32.mrb[0].mxu0
      %v443 = vadd.f32 %v259, %v442
      %v444 = vpop.f32.mrb[0].mxu0
      %445 = vmatprep.mubr.bf16.mxu0 %v290
      %446 = vmatmul.mubr.bf16.gmra.mrb[0].mxu0 %v289
      %v447 = vpop.f32.mrb[0].mxu0
      %v448 = vadd.f32 %v259, %v447
      %v449 = vpop.f32.mrb[0].mxu0
      %v450 = vpop.f32.mrb[0].mxu0
      %v451 = vadd.f32 %v259, %v450
      %v452 = vpop.f32.mrb[0].mxu0
      %453 = vmatprep.mubr.bf16.mxu0 %v292
      %454 = vmatmul.mubr.bf16.gmra.mrb[0].mxu0 %v291
      %v455 = vpop.f32.mrb[0].mxu0
      %v456 = vadd.f32 %v259, %v455
      %v457 = vpop.f32.mrb[0].mxu0
      %v458 = vpop.f32.mrb[0].mxu0
      %v459 = vadd.f32 %v259, %v458
      %v460 = vpop.f32.mrb[0].mxu0
      %461 = vdwg.mxu0
      %vm462 = vcmask 261120
      %v463 = vsel %vm462, %v432, 0.0
      %v464 = vsel %vm462, %v435, 0.0
      %v465 = vadd.f32 %v463, %v464
      %v466 = vsel %vm462, %v440, 0.0
      %v467 = vadd.f32 %v465, %v466
      %v468 = vsel %vm462, %v443, 0.0
      %v469 = vadd.f32 %v467, %v468
      %v470 = vsel %vm462, %v448, 0.0
      %v471 = vadd.f32 %v469, %v470
      %v472 = vsel %vm462, %v451, 0.0
      %v473 = vadd.f32 %v471, %v472
      %v474 = vsel %vm462, %v456, 0.0
      %v475 = vadd.f32 %v473, %v474
      %v476 = vsel %vm462, %v459, 0.0
      %v477 = vadd.f32 %v475, %v476
      %v478 = vrot.slane %v477, 4
      %v479 = vadd.f32 %v477, %v478
      %v480 = vrot.slane %v479, 2
      %v481 = vadd.f32 %v479, %v480
      %v482 = vrot.slane %v481, 1
      %v483 = vadd.f32 %v481, %v482
      %v484 = vmul.f32 %v483, 0.015625
      %v485 = vsub.f32 %v432, %v484
      %v486 = vsub.f32 %v435, %v484
      %v487 = vsub.f32 %v440, %v484
      %v488 = vsub.f32 %v443, %v484
      %v489 = vsub.f32 %v448, %v484
      %v490 = vsub.f32 %v451, %v484
      %v491 = vsub.f32 %v456, %v484
      %v492 = vsub.f32 %v459, %v484
      %v493 = vmul.f32 %v485, %v485
      %v494 = vmul.f32 %v486, %v486
      %v495 = vmul.f32 %v487, %v487
      %v496 = vmul.f32 %v488, %v488
      %v497 = vmul.f32 %v489, %v489
      %v498 = vmul.f32 %v490, %v490
      %v499 = vmul.f32 %v491, %v491
      %v500 = vmul.f32 %v492, %v492
      %v501 = vsel %vm462, %v493, 0.0
      %v502 = vsel %vm462, %v494, 0.0
      %v503 = vadd.f32 %v501, %v502
      %v504 = vsel %vm462, %v495, 0.0
      %v505 = vadd.f32 %v503, %v504
      %v506 = vsel %vm462, %v496, 0.0
      %v507 = vadd.f32 %v505, %v506
      %v508 = vsel %vm462, %v497, 0.0
      %v509 = vadd.f32 %v507, %v508
      %v510 = vsel %vm462, %v498, 0.0
      %v511 = vadd.f32 %v509, %v510
      %v512 = vsel %vm462, %v499, 0.0
      %v513 = vadd.f32 %v511, %v512
      %v514 = vsel %vm462, %v500, 0.0
      %v515 = vadd.f32 %v513, %v514
      %v516 = vrot.slane %v515, 4
      %v517 = vadd.f32 %v515, %v516
      %v518 = vrot.slane %v517, 2
      %v519 = vadd.f32 %v517, %v518
      %v520 = vrot.slane %v519, 1
      %v521 = vadd.f32 %v519, %v520
      %v522 = vmul.f32 %v521, 0.015625
      %v523 = vadd.f32 %v522, 1e-05
      %v524 = vrsqrt.pop %v523
      %v525 = vmul.f32 %v485, %v524
      %v526 = vmul.f32 %v486, %v524
      %v527 = vmul.f32 %v487, %v524
      %v528 = vmul.f32 %v488, %v524
      %v529 = vmul.f32 %v489, %v524
      %v530 = vmul.f32 %v490, %v524
      %v531 = vmul.f32 %v491, %v524
      %v532 = vmul.f32 %v492, %v524
      %v533 = vmax.f32 %v525, 0.0
      %v534 = vmax.f32 %v526, 0.0
      %v535 = vmax.f32 %v527, 0.0
      %v536 = vmax.f32 %v528, 0.0
      %v537 = vmax.f32 %v529, 0.0
      %v538 = vmax.f32 %v530, 0.0
      %v539 = vmax.f32 %v531, 0.0
      %v540 = vmax.f32 %v532, 0.0
      %v541 = vpack.c.bf16 %v534, %v533
      %v542 = vpack.c.bf16 %v536, %v535
      %v543 = vpack.c.bf16 %v538, %v537
      %v544 = vpack.c.bf16 %v540, %v539
      %v549 = vunpack.c.l.b16 %v541
      %v550 = vunpack.c.h.b16 %v541
      %v551 = vunpack.c.l.b16 %v542
      %v552 = vunpack.c.h.b16 %v542
      %v553 = vunpack.c.l.b16 %v543
      %v554 = vunpack.c.h.b16 %v543
      %v555 = vunpack.c.l.b16 %v544
      %v556 = vunpack.c.h.b16 %v544
      %v557 = vpack.c.b16 %v549, %v549
      %v558 = vpack.c.b16 %v550, %v550
      %v559 = vpack.c.b16 %v551, %v551
      %v560 = vpack.c.b16 %v552, %v552
      %v561 = vpack.c.b16 %v553, %v553
      %v562 = vpack.c.b16 %v554, %v554
      %v563 = vpack.c.b16 %v555, %v555
      %v564 = vpack.c.b16 %v556, %v556
      %vm573 = vcmask 257024
      %574 = vst.msk [vmem:[%s211] sm:$0xf] %vm573, %v557
      %575 = vst.msk [vmem:[%s211 + $0x4] sm:$0xf] %vm573, %v558
      %576 = vst.msk [vmem:[%s211 + $0x8] sm:$0xf] %vm573, %v559
      %577 = vst.msk [vmem:[%s211 + $0xc] sm:$0xf] %vm573, %v560
      %578 = vst.msk [vmem:[%s211 + $0x10] sm:$0xf] %vm573, %v561
      %579 = vst.msk [vmem:[%s211 + $0x14] sm:$0xf] %vm573, %v562
      %580 = vst.msk [vmem:[%s211 + $0x18] sm:$0xf] %vm573, %v563
      %581 = vst.msk [vmem:[%s211 + $0x1c] sm:$0xf] %vm573, %v564
      %s582 = smul.u32 8, %s19
      %p583 = scmp.lt.s32.totalorder %s18, 1
      %s584 = scalar_select %p583, %s18, 1
      %p585 = scmp.lt.s32.totalorder %s582, 7
      %s586 = scalar_select %p585, %s582, 7
      %s587 = smul.addr %s584, 8
      %s588 = sadd.s32 %s586, %s587
      %s589 = smul.addr %s588, 4
      %s590 = scalar_lea.vmem %s3, %s589
      // Predicated region
      $region33: #{styleless_gen_forward.17} parent=31 // pred_check
        %p591 = pneg %p116
      $region34: #{styleless_gen_forward.17} parent=31 // pred_check_branch
        %593 = sbr.rel (%p591) target = $region36
      $region35: #{styleless_gen_forward.17} parent=31 // pred_region
        %s594 = smul.u32 8, %s19
      $region36: #{styleless_gen_forward.17} parent=31 // pred_fallthru
        _
    $region32: #{styleless_gen_forward.17} parent=5 // pred_fallthru
      _
    %p595 = scmp.le.s32.totalorder 2, %s9
    // Predicated region
    $region37: #{styleless_gen_forward.17} parent=5 // pred_check
      %p596 = pneg %p595
    $region38: #{styleless_gen_forward.17} parent=5 // pred_check_branch
      %598 = sbr.rel (%p596) target = $region40
    $region39: #{styleless_gen_forward.17} parent=5 // pred_region
      %s599 = ssub.s32 %s9, 2
      // Predicated region
      $region41: #{styleless_gen_forward.17} parent=39 // pred_check
        %p600 = pneg %p122
      $region42: #{styleless_gen_forward.17} parent=39 // pred_check_branch
        %602 = sbr.rel (%p600) target = $region44
      $region43: #{styleless_gen_forward.17} parent=39 // pred_region
        %s603 = smul.u32 8, %s21
        %p604 = scmp.lt.s32.totalorder %s20, 1
        %s605 = scalar_select %p604, %s20, 1
        %p606 = scmp.lt.s32.totalorder %s603, 7
        %s607 = scalar_select %p606, %s603, 7
        %s608 = smul.addr %s605, 8
        %s609 = sadd.s32 %s607, %s608
        %s610 = smul.addr %s609, 4
        %s611 = scalar_lea.vmem %s3, %s610
      $region44: #{styleless_gen_forward.17} parent=39 // pred_fallthru
        _
    $region40: #{styleless_gen_forward.17} parent=5 // pred_fallthru
      _
  $region6: #{styleless_gen_forward.17} parent=0 // loop_footer
    %s13 = sadd.s32 1, %s9
  $region7: #{styleless_gen_forward.17} parent=0 // loop_footer_branch
    %8 = sbr.rel target = $region3
  $region8: #{styleless_gen_forward.17} parent=0 // loop_exit
    _

// kernel: styleless_gen_forward.16
$region0: #{styleless_gen_forward.16}
  #allocation0 [shape = 'u32[]', space=smem, size = 0x4, offset = 0x4, fixed_abs, tag = 'smem constant byte address 0x4 - core index']
  #allocation1 [shape = 'u32[144,128]{1,0:T(1,128)}', space=vmem, size = 0x12000, scoped, tag = 'internal scratch']
  %s0 = inlined_call_operand.vmem [shape: bf16[2,256,147], index: 0, kind: input, shape index: {}]
  %s1 = inlined_call_operand.vmem [shape: bf16[147,16], index: 1, kind: input, shape index: {}]
  %s2 = inlined_call_operand.vmem [shape: f32[1,16], index: 2, kind: input, shape index: {}]
  %s3 = inlined_call_operand.vmem [shape: bf16[2,256,16], index: 3, kind: output, shape index: {}]
  %s4 = sld [smem:[#allocation0]]
  $region45: #{styleless_gen_forward.16} parent=0
    _
  %s6 = ssub.s32 1, %s4
  %s7 = scalar_select 0, %s6, %s4
  loop: start=0, step=1, limit=4
  $region2: #{styleless_gen_forward.16} parent=0 // loop_pre_header
    _
  $region3: #{styleless_gen_forward.16} parent=0 // loop_header
    %s9 = sphi 0, %s13
    %p10 = scmp.ge.s32.totalorder %s9, 4
    %s16 = sphi 0, %s28
    %s17 = sphi 0, %s24
    %s18 = sphi 0, %s16
    %s19 = sphi 0, %s17
    %s20 = sphi 0, %s18
    %s21 = sphi 0, %s19
    %s33 = sphi 0, %s35
    %s36 = sphi 0, %s33
    %s37 = sphi 0, %s36
    %s53 = sphi 0, %s37
    %s57 = sphi 0, %s57
    %s59 = sphi 0, %s57
    %s60 = sphi 0, %s59
    %s74 = sphi 0, %s60
    %s78 = sphi 0, %s78
    %s80 = sphi 0, %s78
    %s81 = sphi 0, %s80
    %s95 = sphi 0, %s81
    %s103 = sphi 0, %s105
    %s106 = sphi 0, %s103
    %s107 = sphi 0, %s106
    %s123 = sphi 0, %s107
  $region4: #{styleless_gen_forward.16} parent=0 // loop_header_branch
    %12 = sbr.rel (%p10) target = $region8
  $region5: #{styleless_gen_forward.16} parent=0 // loop_body
    %s14 = ssub.s32 %s9, 1
    %s15 = ssub.s32 %s9, 2
    %s22 = sadd.s32 1, %s17
    %p23 = scmp.ge.s32.totalorder %s22, 1
    %s24 = scalar_select %p23, 0, %s22
    %s25 = sadd.s32 1, %s16
    %s26 = scalar_select %p23, %s25, %s16
    %p27 = scmp.ge.s32.totalorder %s26, 2
    %s28 = scalar_select %p27, 0, %s26
    %s29 = ssub.s32 %s16, %s28
    %s30 = ssub.s32 %s17, %s24
    %s31 = sor.u32 %s29, %s30
    %p32 = scmp.eq.s32.totalorder %s31, 0
    %s34 = sadd.s32 %s33, 1
    %s35 = scalar_select %p32, %s33, %s34
    %p38 = pneg %p32
    %p39 = scmp.eq.s32.totalorder %s9, 1
    %p40 = por %p38, %p39
    %p41 = scmp.ne.s32.totalorder %s33, %s36
    %p42 = scmp.eq.s32.totalorder %s9, 0
    %p43 = por %p41, %p42
    %p44 = scmp.ne.s32.totalorder %s33, %s36
    %p45 = scmp.eq.s32.totalorder %s14, 1
    %p46 = por %p44, %p45
    %p47 = scmp.ne.s32.totalorder %s36, %s37
    %p48 = scmp.eq.s32.totalorder %s14, 0
    %p49 = por %p47, %p48
    %p50 = scmp.ne.s32.totalorder %s36, %s37
    %p51 = scmp.eq.s32.totalorder %s15, 1
    %p52 = por %p50, %p51
    %p54 = scmp.ne.s32.totalorder %s37, %s53
    %p55 = scmp.eq.s32.totalorder %s15, 0
    %p56 = por %p54, %p55
    %s58 = sadd.s32 %s57, 1
    %p61 = scmp.eq.s32.totalorder %s9, 1
    %p62 = scmp.ne.s32.totalorder %s57, %s59
    %p63 = scmp.eq.s32.totalorder %s9, 0
    %p64 = por %p62, %p63
    %p65 = scmp.ne.s32.totalorder %s57, %s59
    %p66 = scmp.eq.s32.totalorder %s14, 1
    %p67 = por %p65, %p66
    %p68 = scmp.ne.s32.totalorder %s59, %s60
    %p69 = scmp.eq.s32.totalorder %s14, 0
    %p70 = por %p68, %p69
    %p71 = scmp.ne.s32.totalorder %s59, %s60
    %p72 = scmp.eq.s32.totalorder %s15, 1
    %p73 = por %p71, %p72
    %p75 = scmp.ne.s32.totalorder %s60, %s74
    %p76 = scmp.eq.s32.totalorder %s15, 0
    %p77 = por %p75, %p76
    %s79 = sadd.s32 %s78, 1
    %p82 = scmp.eq.s32.totalorder %s9, 1
    %p83 = scmp.ne.s32.totalorder %s78, %s80
    %p84 = scmp.eq.s32.totalorder %s9, 0
    %p85 = por %p83, %p84
    %p86 = scmp.ne.s32.totalorder %s78, %s80
    %p87 = scmp.eq.s32.totalorder %s14, 1
    %p88 = por %p86, %p87
    %p89 = scmp.ne.s32.totalorder %s80, %s81
    %p90 = scmp.eq.s32.totalorder %s14, 0
    %p91 = por %p89, %p90
    %p92 = scmp.ne.s32.totalorder %s80, %s81
    %p93 = scmp.eq.s32.totalorder %s15, 1
    %p94 = por %p92, %p93
    %p96 = scmp.ne.s32.totalorder %s81, %s95
    %p97 = scmp.eq.s32.totalorder %s15, 0
    %p98 = por %p96, %p97
    %s99 = ssub.s32 %s16, %s28
    %s100 = ssub.s32 %s17, %s24
    %s101 = sor.u32 %s99, %s100
    %p102 = scmp.eq.s32.totalorder %s101, 0
    %s104 = sadd.s32 %s103, 1
    %s105 = scalar_select %p102, %s103, %s104
    %p108 = pneg %p102
    %p109 = scmp.eq.s32.totalorder %s9, 1
    %p110 = por %p108, %p109
    %p111 = scmp.ne.s32.totalorder %s103, %s106
    %p112 = scmp.eq.s32.totalorder %s9, 0
    %p113 = por %p111, %p112
    %p114 = scmp.ne.s32.totalorder %s103, %s106
    %p115 = scmp.eq.s32.totalorder %s14, 1
    %p116 = por %p114, %p115
    %p117 = scmp.ne.s32.totalorder %s106, %s107
    %p118 = scmp.eq.s32.totalorder %s14, 0
    %p119 = por %p117, %p118
    %p120 = scmp.ne.s32.totalorder %s106, %s107
    %p121 = scmp.eq.s32.totalorder %s15, 1
    %p122 = por %p120, %p121
    %p124 = scmp.ne.s32.totalorder %s107, %s123
    %p125 = scmp.eq.s32.totalorder %s15, 0
    %p126 = por %p124, %p125
    %p127 = scmp.le.s32.totalorder 1, %s9
    %p128 = scmp.lt.s32.totalorder %s9, 3
    %p129 = pnand %p127, %p128
    %p130 = pneg %p129
    // Predicated region
    $region9: #{styleless_gen_forward.16} parent=5 // pred_check
      _
    $region10: #{styleless_gen_forward.16} parent=5 // pred_check_branch
      %132 = sbr.rel (%p129) target = $region12
    $region11: #{styleless_gen_forward.16} parent=5 // pred_region
      %s133 = ssub.s32 %s9, 1
      // Predicated region
      $region13: #{styleless_gen_forward.16} parent=11 // pred_check
        %p134 = pneg %p70
      $region14: #{styleless_gen_forward.16} parent=11 // pred_check_branch
        %136 = sbr.rel (%p134) target = $region16
      $region15: #{styleless_gen_forward.16} parent=11 // pred_region
        _
      $region16: #{styleless_gen_forward.16} parent=11 // pred_fallthru
        _
      // Predicated region
      $region17: #{styleless_gen_forward.16} parent=11 // pred_check
        %p137 = pneg %p91
      $region18: #{styleless_gen_forward.16} parent=11 // pred_check_branch
        %139 = sbr.rel (%p137) target = $region20
      $region19: #{styleless_gen_forward.16} parent=11 // pred_region
        _
      $region20: #{styleless_gen_forward.16} parent=11 // pred_fallthru
        _
    $region12: #{styleless_gen_forward.16} parent=5 // pred_fallthru
      _
    %p140 = scmp.lt.s32.totalorder %s9, 2
    // Predicated region
    $region21: #{styleless_gen_forward.16} parent=5 // pred_check
      %p141 = pneg %p140
    $region22: #{styleless_gen_forward.16} parent=5 // pred_check_branch
      %143 = sbr.rel (%p141) target = $region24
    $region23: #{styleless_gen_forward.16} parent=5 // pred_region
      // Predicated region
      $region25: #{styleless_gen_forward.16} parent=23 // pred_check
        %p144 = pneg %p43
      $region26: #{styleless_gen_forward.16} parent=23 // pred_check_branch
        %146 = sbr.rel (%p144) target = $region28
      $region27: #{styleless_gen_forward.16} parent=23 // pred_region
        %s147 = smul.u32 32, %s17
        %p148 = scmp.lt.s32.totalorder %s16, 1
        %s149 = scalar_select %p148, %s16, 1
        %p150 = scmp.lt.s32.totalorder %s147, 31
        %s151 = scalar_select %p150, %s147, 31
        %s152 = smul.addr %s151, 2
        %s153 = smul.addr %s149, 64
        %s154 = sadd.s32 %s152, %s153
        %s155 = smul.addr %s154, 4
        %s156 = scalar_lea.vmem %s0, %s155
        %s157 = smul.u32 32, %s17
      $region28: #{styleless_gen_forward.16} parent=23 // pred_fallthru
        _
    $region24: #{styleless_gen_forward.16} parent=5 // pred_fallthru
      _
    %p158 = scmp.le.s32.totalorder 1, %s9
    %p159 = scmp.lt.s32.totalorder %s9, 3
    %p160 = pnand %p158, %p159
    %p161 = pneg %p160
    // Predicated region
    $region29: #{styleless_gen_forward.16} parent=5 // pred_check
      _
    $region30: #{styleless_gen_forward.16} parent=5 // pred_check_branch
      %163 = sbr.rel (%p160) target = $region32
    $region31: #{styleless_gen_forward.16} parent=5 // pred_region
      %s164 = ssub.s32 %s9, 1
      %s165 = smul.u32 32, %s19
      %p166 = scmp.lt.s32.totalorder %s18, 1
      %s167 = scalar_select %p166, %s18, 1
      %p168 = scmp.lt.s32.totalorder %s165, 31
      %s169 = scalar_select %p168, %s165, 31
      %s170 = smul.addr %s169, 2
      %s171 = smul.addr %s167, 64
      %s172 = sadd.s32 %s170, %s171
      %s173 = smul.addr %s172, 4
      %s174 = scalar_lea.vmem %s0, %s173
      %p175 = pneg %p49
      %p176 = pneg %p46
      %p177 = pneg %p70
      %p178 = pneg %p67
      %p179 = pneg %p91
      %p180 = pneg %p88
      %p181 = pneg %p119
      %p182 = pneg %p116
      %s183 = smul.u32 32, %s19
      %p184 = scmp.lt.s32.totalorder %s18, 1
      %s185 = scalar_select %p184, %s18, 1
      %p186 = scmp.lt.s32.totalorder %s183, 31
      %s187 = scalar_select %p186, %s183, 31
      %s188 = smul.addr %s185, 32
      %s189 = sadd.s32 %s187, %s188
      %s190 = smul.addr %s189, 4
      %s191 = scalar_lea.vmem %s3, %s190
      %s192 = smul.u32 32, %s19
      %p193 = scmp.lt.s32.totalorder %s18, 1
      %s194 = scalar_select %p193, %s18, 1
      %p195 = scmp.lt.s32.totalorder %s192, 31
      %s196 = scalar_select %p195, %s192, 31
      %s197 = smul.addr %s196, 2
      %s198 = smul.addr %s194, 64
      %s199 = sadd.s32 %s197, %s198
      %s200 = smul.addr %s199, 4
      %s201 = scalar_lea.vmem %s0, %s200
      %s202 = smul.u32 32, %s19
      %s203 = smul.u32 32, %s19
      %p204 = scmp.lt.s32.totalorder %s18, 1
      %s205 = scalar_select %p204, %s18, 1
      %p206 = scmp.lt.s32.totalorder %s203, 31
      %s207 = scalar_select %p206, %s203, 31
      %s208 = smul.addr %s205, 32
      %s209 = sadd.s32 %s207, %s208
      %s210 = smul.addr %s209, 4
      %s211 = scalar_lea.vmem %s3, %s210
      %s212 = smul.u32 32, %s19
      %v214 = vld [vmem:[%s201] sm:$0xff]
      %v215 = vld [vmem:[%s201 + $0x8] sm:$0xff]
      %v216 = vld [vmem:[%s201 + $0x10] sm:$0xff]
      %v217 = vld [vmem:[%s201 + $0x18] sm:$0xff]
      %v218 = vld [vmem:[%s201 + $0x20] sm:$0xff]
      %v219 = vld [vmem:[%s201 + $0x28] sm:$0xff]
      %v220 = vld [vmem:[%s201 + $0x30] sm:$0xff]
      %v221 = vld [vmem:[%s201 + $0x38] sm:$0xff]
      %v222 = vld [vmem:[%s201 + $0x40] sm:$0xff]
      %v223 = vld [vmem:[%s201 + $0x48] sm:$0xff]
      %v224 = vld [vmem:[%s201 + $0x50] sm:$0xff]
      %v225 = vld [vmem:[%s201 + $0x58] sm:$0xff]
      %v226 = vld [vmem:[%s201 + $0x60] sm:$0xff]
      %v227 = vld [vmem:[%s201 + $0x68] sm:$0xff]
      %v228 = vld [vmem:[%s201 + $0x70] sm:$0xff]
      %v229 = vld [vmem:[%s201 + $0x78] sm:$0xff]
      %v230 = vld [vmem:[%s201 + $0x80] sm:$0xff]
      %v231 = vld [vmem:[%s201 + $0x88] sm:$0xff]
      %v232 = vld [vmem:[%s201 + $0x90] sm:$0xff]
      %v233 = vld [vmem:[%s201 + $0x98] sm:$0xff]
      %v234 = vld [vmem:[%s201 + $0xa0] sm:$0xff]
      %v235 = vld [vmem:[%s201 + $0xa8] sm:$0xff]
      %v236 = vld [vmem:[%s201 + $0xb0] sm:$0xff]
      %v237 = vld [vmem:[%s201 + $0xb8] sm:$0xff]
      %v238 = vld [vmem:[%s201 + $0xc0] sm:$0xff]
      %v239 = vld [vmem:[%s201 + $0xc8] sm:$0xff]
      %v240 = vld [vmem:[%s201 + $0xd0] sm:$0xff]
      %v241 = vld [vmem:[%s201 + $0xd8] sm:$0xff]
      %v242 = vld [vmem:[%s201 + $0xe0] sm:$0xff]
      %v243 = vld [vmem:[%s201 + $0xe8] sm:$0xff]
      %v244 = vld [vmem:[%s201 + $0xf0] sm:$0xff]
      %v245 = vld [vmem:[%s201 + $0xf8] sm:$0xff]
      %v246 = vld [vmem:[%s1] sm:$0xf]
      %v247 = vld [vmem:[%s1 + $0x4] sm:$0xf]
      %v248 = vld [vmem:[%s1 + $0x8] sm:$0xf]
      %v249 = vld [vmem:[%s1 + $0xc] sm:$0xf]
      %v250 = vld [vmem:[%s1 + $0x10] sm:$0xf]
      %v251 = vld [vmem:[%s1 + $0x14] sm:$0xf]
      %v252 = vld [vmem:[%s1 + $0x18] sm:$0xf]
      %v253 = vld [vmem:[%s1 + $0x1c] sm:$0xf]
      %v254 = vld [vmem:[%s1 + $0x20] sm:$0xf]
      %v255 = vld [vmem:[%s1 + $0x24] sm:$0xf]
      %v256 = vld [vmem:[%s1 + $0x28] sm:$0xf]
      %v257 = vld [vmem:[%s1 + $0x2c] sm:$0xf]
      %v258 = vld [vmem:[%s1 + $0x30] sm:$0xf]
      %v259 = vld [vmem:[%s1 + $0x34] sm:$0xf]
      %v260 = vld [vmem:[%s1 + $0x38] sm:$0xf]
      %v261 = vld [vmem:[%s1 + $0x3c] sm:$0xf]
      %v262 = vld [vmem:[%s1 + $0x40] sm:$0xf]
      %v263 = vld [vmem:[%s1 + $0x44] sm:$0xf]
      %v264 = vld [vmem:[%s1 + $0x48] sm:$0x3]
      %v265 = vld [vmem:[%s2] sm:$0x1]
      %v267 = vlaneseq
      %v268 = vshrl.u32 %v267, 7
      %v269 = vsub.s32 0, %v268
      %v270 = vrot.slane %v265, %v269
      %v304 = vunpack.c.l.b16 %v214
      %v305 = vunpack.c.h.b16 %v214
      %v306 = vunpack.c.l.b16 %v215
      %v307 = vunpack.c.h.b16 %v215
      %v308 = vunpack.c.l.b16 %v216
      %v309 = vunpack.c.h.b16 %v216
      %v310 = vunpack.c.l.b16 %v217
      %v311 = vunpack.c.h.b16 %v217
      %v312 = vunpack.c.l.b16 %v218
      %v313 = vunpack.c.h.b16 %v218
      %v314 = vunpack.c.l.b16 %v219
      %v315 = vunpack.c.h.b16 %v219
      %v316 = vunpack.c.l.b16 %v220
      %v317 = vunpack.c.h.b16 %v220
      %v318 = vunpack.c.l.b16 %v221
      %v319 = vunpack.c.h.b16 %v221
      %v320 = vunpack.c.l.b16 %v222
      %v321 = vunpack.c.h.b16 %v222
      %v322 = vunpack.c.l.b16 %v223
      %v323 = vunpack.c.h.b16 %v223
      %v324 = vunpack.c.l.b16 %v224
      %v325 = vunpack.c.h.b16 %v224
      %v326 = vunpack.c.l.b16 %v225
      %v327 = vunpack.c.h.b16 %v225
      %v328 = vunpack.c.l.b16 %v226
      %v329 = vunpack.c.h.b16 %v226
      %v330 = vunpack.c.l.b16 %v227
      %v331 = vunpack.c.h.b16 %v227
      %v332 = vunpack.c.l.b16 %v228
      %v333 = vunpack.c.h.b16 %v228
      %v334 = vunpack.c.l.b16 %v229
      %v335 = vunpack.c.h.b16 %v229
      %v336 = vunpack.c.l.b16 %v230
      %v337 = vunpack.c.h.b16 %v230
      %v338 = vunpack.c.l.b16 %v231
      %v339 = vunpack.c.h.b16 %v231
      %v340 = vunpack.c.l.b16 %v232
      %v341 = vunpack.c.h.b16 %v232
      %v342 = vunpack.c.l.b16 %v233
      %v343 = vunpack.c.h.b16 %v233
      %v344 = vunpack.c.l.b16 %v234
      %v345 = vunpack.c.h.b16 %v234
      %v346 = vunpack.c.l.b16 %v235
      %v347 = vunpack.c.h.b16 %v235
      %v348 = vunpack.c.l.b16 %v236
      %v349 = vunpack.c.h.b16 %v236
      %v350 = vunpack.c.l.b16 %v237
      %v351 = vunpack.c.h.b16 %v237
      %v352 = vunpack.c.l.b16 %v238
      %v353 = vunpack.c.h.b16 %v238
      %v354 = vunpack.c.l.b16 %v239
      %v355 = vunpack.c.h.b16 %v239
      %v356 = vunpack.c.l.b16 %v240
      %v357 = vunpack.c.h.b16 %v240
      %v358 = vunpack.c.l.b16 %v241
      %v359 = vunpack.c.h.b16 %v241
      %v360 = vunpack.c.l.b16 %v242
      %v361 = vunpack.c.h.b16 %v242
      %v362 = vunpack.c.l.b16 %v243
      %v363 = vunpack.c.h.b16 %v243
      %v364 = vunpack.c.l.b16 %v244
      %v365 = vunpack.c.h.b16 %v244
      %v366 = vunpack.c.l.b16 %v245
      %v367 = vunpack.c.h.b16 %v245
      %v368 = vpack.c.b16 %v306, %v304
      %v369 = vpack.c.b16 %v307, %v305
      %v370 = vpack.c.b16 %v310, %v308
      %v371 = vpack.c.b16 %v311, %v309
      %v372 = vpack.c.b16 %v314, %v312
      %v373 = vpack.c.b16 %v315, %v313
      %v374 = vpack.c.b16 %v318, %v316
      %v375 = vpack.c.b16 %v319, %v317
      %v376 = vpack.c.b16 %v322, %v320
      %v377 = vpack.c.b16 %v323, %v321
      %v378 = vpack.c.b16 %v326, %v324
      %v379 = vpack.c.b16 %v327, %v325
      %v380 = vpack.c.b16 %v330, %v328
      %v381 = vpack.c.b16 %v331, %v329
      %v382 = vpack.c.b16 %v334, %v332
      %v383 = vpack.c.b16 %v335, %v333
      %v384 = vpack.c.b16 %v338, %v336
      %v385 = vpack.c.b16 %v339, %v337
      %v386 = vpack.c.b16 %v342, %v340
      %v387 = vpack.c.b16 %v343, %v341
      %v388 = vpack.c.b16 %v346, %v344
      %v389 = vpack.c.b16 %v347, %v345
      %v390 = vpack.c.b16 %v350, %v348
      %v391 = vpack.c.b16 %v351, %v349
      %v392 = vpack.c.b16 %v354, %v352
      %v393 = vpack.c.b16 %v355, %v353
      %v394 = vpack.c.b16 %v358, %v356
      %v395 = vpack.c.b16 %v359, %v357
      %v396 = vpack.c.b16 %v362, %v360
      %v397 = vpack.c.b16 %v363, %v361
      %v398 = vpack.c.b16 %v366, %v364
      %v399 = vpack.c.b16 %v367, %v365
      %v435 = vunpack.c.l.b16 %v246
      %v436 = vunpack.c.l.b16 %v247
      %v437 = vunpack.c.l.b16 %v248
      %v438 = vunpack.c.l.b16 %v249
      %v439 = vunpack.c.l.b16 %v250
      %v440 = vunpack.c.l.b16 %v251
      %v441 = vunpack.c.l.b16 %v252
      %v442 = vunpack.c.l.b16 %v253
      %v443 = vunpack.c.l.b16 %v254
      %v444 = vunpack.c.l.b16 %v255
      %v445 = vunpack.c.l.b16 %v256
      %v446 = vunpack.c.l.b16 %v257
      %v447 = vunpack.c.l.b16 %v258
      %v448 = vunpack.c.l.b16 %v259
      %v449 = vunpack.c.l.b16 %v260
      %v450 = vunpack.c.l.b16 %v261
      %v451 = vunpack.c.l.b16 %v262
      %v452 = vunpack.c.l.b16 %v263
      %v453 = vunpack.c.l.b16 %v264
      %v454 = vpack.c.b16 %v436, %v435
      %v455 = vpack.c.b16 %v438, %v437
      %v456 = vpack.c.b16 %v440, %v439
      %v457 = vpack.c.b16 %v442, %v441
      %v458 = vpack.c.b16 %v444, %v443
      %v459 = vpack.c.b16 %v446, %v445
      %v460 = vpack.c.b16 %v448, %v447
      %v461 = vpack.c.b16 %v450, %v449
      %v462 = vpack.c.b16 %v452, %v451
      %v463 = vpack.c.b16 %v453, %v453
      %vm473 = vcmask 154624
      %v475 = vsel %vm473, %v369, 0
      %v478 = vsel %vm473, %v371, 0
      %v481 = vsel %vm473, %v373, 0
      %v484 = vsel %vm473, %v375, 0
      %v487 = vsel %vm473, %v377, 0
      %v490 = vsel %vm473, %v379, 0
      %v493 = vsel %vm473, %v381, 0
      %v496 = vsel %vm473, %v383, 0
      %v499 = vsel %vm473, %v385, 0
      %v502 = vsel %vm473, %v387, 0
      %v505 = vsel %vm473, %v389, 0
      %v508 = vsel %vm473, %v391, 0
      %v511 = vsel %vm473, %v393, 0
      %v514 = vsel %vm473, %v395, 0
      %v517 = vsel %vm473, %v397, 0
      %v520 = vsel %vm473, %v399, 0
      %vm522 = vcmask 1040384
      %vm523 = vcmask 1041408
      %v524 = vsel %vm522, 4294967295, 65535
      %v525 = vsel %vm523, %v524, 0
      %v527 = vand.u32 %v463, %v525
      %529 = vmatprep.subr.bf16.mxu0 0
      %530 = vmatpush1.bf16.msra.mxu0 %v454
      %531 = vmatprep.subr.bf16.mxu0 0
      %532 = vmatpush1.bf16.msra.mxu0 %v455
      %533 = vmatprep.subr.bf16.mxu0 0
      %534 = vmatpush1.bf16.msra.mxu0 %v456
      %535 = vmatprep.subr.bf16.mxu0 0
      %536 = vmatpush1.bf16.msra.mxu0 %v457
      %537 = vmatprep.subr.bf16.mxu0 0
      %538 = vmatpush1.bf16.msra.mxu0 %v458
      %539 = vmatprep.subr.bf16.mxu0 0
      %540 = vmatpush1.bf16.msra.mxu0 %v459
      %541 = vmatprep.subr.bf16.mxu0 0
      %542 = vmatpush1.bf16.msra.mxu0 %v460
      %543 = vmatprep.subr.bf16.mxu0 0
      %544 = vmatpush1.bf16.msra.mxu0 %v461
      %545 = vmatprep.subr.bf16.mxu0 0
      %546 = vmatpush1.bf16.msra.mxu0 %v462
      %547 = vmatprep.subr.bf16.mxu0 0
      %548 = vmatpush1.bf16.msra.mxu0 %v527
      %549 = vmatprep.subr.bf16.mxu0 0
      %550 = vmatpush1.bf16.msra.mxu0 0
      %551 = vmatprep.subr.bf16.mxu0 0
      %552 = vmatpush1.bf16.msra.mxu0 0
      %553 = vmatprep.subr.bf16.mxu0 0
      %554 = vmatpush1.bf16.msra.mxu0 0
      %555 = vmatprep.subr.bf16.mxu0 0
      %556 = vmatpush1.bf16.msra.mxu0 0
      %557 = vmatprep.subr.bf16.mxu0 0
      %558 = vmatpush1.bf16.msra.mxu0 0
      %559 = vmatprep.subr.bf16.mxu0 0
      %560 = vmatpush1.bf16.msra.mxu0 0
      %561 = vmatprep.mubr.bf16.mxu0 %v475
      %562 = vmatmul.mubr.bf16.gmra.mrb[0].mxu0 %v368
      %v563 = vpop.f32.mrb[0].mxu0
      %v564 = vadd.f32 %v270, %v563
      %v565 = vpop.f32.mrb[0].mxu0
      %v566 = vpop.f32.mrb[0].mxu0
      %v567 = vadd.f32 %v270, %v566
      %v568 = vpop.f32.mrb[0].mxu0
      %569 = vmatprep.mubr.bf16.mxu0 %v478
      %570 = vmatmul.mubr.bf16.gmra.mrb[0].mxu0 %v370
      %v571 = vpop.f32.mrb[0].mxu0
      %v572 = vadd.f32 %v270, %v571
      %v573 = vpop.f32.mrb[0].mxu0
      %v574 = vpop.f32.mrb[0].mxu0
      %v575 = vadd.f32 %v270, %v574
      %v576 = vpop.f32.mrb[0].mxu0
      %577 = vmatprep.mubr.bf16.mxu0 %v481
      %578 = vmatmul.mubr.bf16.gmra.mrb[0].mxu0 %v372
      %v579 = vpop.f32.mrb[0].mxu0
      %v580 = vadd.f32 %v270, %v579
      %v581 = vpop.f32.mrb[0].mxu0
      %v582 = vpop.f32.mrb[0].mxu0
      %v583 = vadd.f32 %v270, %v582
      %v584 = vpop.f32.mrb[0].mxu0
      %585 = vmatprep.mubr.bf16.mxu0 %v484
      %586 = vmatmul.mubr.bf16.gmra.mrb[0].mxu0 %v374
      %v587 = vpop.f32.mrb[0].mxu0
      %v588 = vadd.f32 %v270, %v587
      %v589 = vpop.f32.mrb[0].mxu0
      %v590 = vpop.f32.mrb[0].mxu0
      %v591 = vadd.f32 %v270, %v590
      %v592 = vpop.f32.mrb[0].mxu0
      %593 = vmatprep.mubr.bf16.mxu0 %v487
      %594 = vmatmul.mubr.bf16.gmra.mrb[0].mxu0 %v376
      %v595 = vpop.f32.mrb[0].mxu0
      %v596 = vadd.f32 %v270, %v595
      %v597 = vpop.f32.mrb[0].mxu0
      %v598 = vpop.f32.mrb[0].mxu0
      %v599 = vadd.f32 %v270, %v598
      %v600 = vpop.f32.mrb[0].mxu0
      %601 = vmatprep.mubr.bf16.mxu0 %v490
      %602 = vmatmul.mubr.bf16.gmra.mrb[0].mxu0 %v378
      %v603 = vpop.f32.mrb[0].mxu0
      %v604 = vadd.f32 %v270, %v603
      %v605 = vpop.f32.mrb[0].mxu0
      %v606 = vpop.f32.mrb[0].mxu0
      %v607 = vadd.f32 %v270, %v606
      %v608 = vpop.f32.mrb[0].mxu0
      %609 = vmatprep.mubr.bf16.mxu0 %v493
      %610 = vmatmul.mubr.bf16.gmra.mrb[0].mxu0 %v380
      %v611 = vpop.f32.mrb[0].mxu0
      %v612 = vadd.f32 %v270, %v611
      %v613 = vpop.f32.mrb[0].mxu0
      %v614 = vpop.f32.mrb[0].mxu0
      %v615 = vadd.f32 %v270, %v614
      %v616 = vpop.f32.mrb[0].mxu0
      %617 = vmatprep.mubr.bf16.mxu0 %v496
      %618 = vmatmul.mubr.bf16.gmra.mrb[0].mxu0 %v382
      %v619 = vpop.f32.mrb[0].mxu0
      %v620 = vadd.f32 %v270, %v619
      %v621 = vpop.f32.mrb[0].mxu0
      %v622 = vpop.f32.mrb[0].mxu0
      %v623 = vadd.f32 %v270, %v622
      %v624 = vpop.f32.mrb[0].mxu0
      %625 = vmatprep.mubr.bf16.mxu0 %v499
      %626 = vmatmul.mubr.bf16.gmra.mrb[0].mxu0 %v384
      %v627 = vpop.f32.mrb[0].mxu0
      %v628 = vadd.f32 %v270, %v627
      %v629 = vpop.f32.mrb[0].mxu0
      %v630 = vpop.f32.mrb[0].mxu0
      %v631 = vadd.f32 %v270, %v630
      %v632 = vpop.f32.mrb[0].mxu0
      %633 = vmatprep.mubr.bf16.mxu0 %v502
      %634 = vmatmul.mubr.bf16.gmra.mrb[0].mxu0 %v386
      %v635 = vpop.f32.mrb[0].mxu0
      %v636 = vadd.f32 %v270, %v635
      %v637 = vpop.f32.mrb[0].mxu0
      %v638 = vpop.f32.mrb[0].mxu0
      %v639 = vadd.f32 %v270, %v638
      %v640 = vpop.f32.mrb[0].mxu0
      %641 = vmatprep.mubr.bf16.mxu0 %v505
      %642 = vmatmul.mubr.bf16.gmra.mrb[0].mxu0 %v388
      %v643 = vpop.f32.mrb[0].mxu0
      %v644 = vadd.f32 %v270, %v643
      %v645 = vpop.f32.mrb[0].mxu0
      %v646 = vpop.f32.mrb[0].mxu0
      %v647 = vadd.f32 %v270, %v646
      %v648 = vpop.f32.mrb[0].mxu0
      %649 = vmatprep.mubr.bf16.mxu0 %v508
      %650 = vmatmul.mubr.bf16.gmra.mrb[0].mxu0 %v390
      %v651 = vpop.f32.mrb[0].mxu0
      %v652 = vadd.f32 %v270, %v651
      %v653 = vpop.f32.mrb[0].mxu0
      %v654 = vpop.f32.mrb[0].mxu0
      %v655 = vadd.f32 %v270, %v654
      %v656 = vpop.f32.mrb[0].mxu0
      %657 = vmatprep.mubr.bf16.mxu0 %v511
      %658 = vmatmul.mubr.bf16.gmra.mrb[0].mxu0 %v392
      %v659 = vpop.f32.mrb[0].mxu0
      %v660 = vadd.f32 %v270, %v659
      %v661 = vpop.f32.mrb[0].mxu0
      %v662 = vpop.f32.mrb[0].mxu0
      %v663 = vadd.f32 %v270, %v662
      %v664 = vpop.f32.mrb[0].mxu0
      %665 = vmatprep.mubr.bf16.mxu0 %v514
      %666 = vmatmul.mubr.bf16.gmra.mrb[0].mxu0 %v394
      %v667 = vpop.f32.mrb[0].mxu0
      %v668 = vadd.f32 %v270, %v667
      %v669 = vpop.f32.mrb[0].mxu0
      %v670 = vpop.f32.mrb[0].mxu0
      %v671 = vadd.f32 %v270, %v670
      %v672 = vpop.f32.mrb[0].mxu0
      %673 = vmatprep.mubr.bf16.mxu0 %v517
      %674 = vmatmul.mubr.bf16.gmra.mrb[0].mxu0 %v396
      %v675 = vpop.f32.mrb[0].mxu0
      %v676 = vadd.f32 %v270, %v675
      %v677 = vpop.f32.mrb[0].mxu0
      %v678 = vpop.f32.mrb[0].mxu0
      %v679 = vadd.f32 %v270, %v678
      %v680 = vpop.f32.mrb[0].mxu0
      %681 = vmatprep.mubr.bf16.mxu0 %v520
      %682 = vmatmul.mubr.bf16.gmra.mrb[0].mxu0 %v398
      %v683 = vpop.f32.mrb[0].mxu0
      %v684 = vadd.f32 %v270, %v683
      %v685 = vpop.f32.mrb[0].mxu0
      %v686 = vpop.f32.mrb[0].mxu0
      %v687 = vadd.f32 %v270, %v686
      %v688 = vpop.f32.mrb[0].mxu0
      %689 = vdwg.mxu0
      %vm690 = vcmask 130048
      %v691 = vsel %vm690, %v564, 0.0
      %v692 = vsel %vm690, %v567, 0.0
      %v693 = vadd.f32 %v691, %v692
      %v694 = vsel %vm690, %v572, 0.0
      %v695 = vadd.f32 %v693, %v694
      %v696 = vsel %vm690, %v575, 0.0
      %v697 = vadd.f32 %v695, %v696
      %v698 = vsel %vm690, %v580, 0.0
      %v699 = vadd.f32 %v697, %v698
      %v700 = vsel %vm690, %v583, 0.0
      %v701 = vadd.f32 %v699, %v700
      %v702 = vsel %vm690, %v588, 0.0
      %v703 = vadd.f32 %v701, %v702
      %v704 = vsel %vm690, %v591, 0.0
      %v705 = vadd.f32 %v703, %v704
      %v706 = vsel %vm690, %v596, 0.0
      %v707 = vadd.f32 %v705, %v706
      %v708 = vsel %vm690, %v599, 0.0
      %v709 = vadd.f32 %v707, %v708
      %v710 = vsel %vm690, %v604, 0.0
      %v711 = vadd.f32 %v709, %v710
      %v712 = vsel %vm690, %v607, 0.0
      %v713 = vadd.f32 %v711, %v712
      %v714 = vsel %vm690, %v612, 0.0
      %v715 = vadd.f32 %v713, %v714
      %v716 = vsel %vm690, %v615, 0.0
      %v717 = vadd.f32 %v715, %v716
      %v718 = vsel %vm690, %v620, 0.0
      %v719 = vadd.f32 %v717, %v718
      %v720 = vsel %vm690, %v623, 0.0
      %v721 = vadd.f32 %v719, %v720
      %v722 = vsel %vm690, %v628, 0.0
      %v723 = vadd.f32 %v721, %v722
      %v724 = vsel %vm690, %v631, 0.0
      %v725 = vadd.f32 %v723, %v724
      %v726 = vsel %vm690, %v636, 0.0
      %v727 = vadd.f32 %v725, %v726
      %v728 = vsel %vm690, %v639, 0.0
      %v729 = vadd.f32 %v727, %v728
      %v730 = vsel %vm690, %v644, 0.0
      %v731 = vadd.f32 %v729, %v730
      %v732 = vsel %vm690, %v647, 0.0
      %v733 = vadd.f32 %v731, %v732
      %v734 = vsel %vm690, %v652, 0.0
      %v735 = vadd.f32 %v733, %v734
      %v736 = vsel %vm690, %v655, 0.0
      %v737 = vadd.f32 %v735, %v736
      %v738 = vsel %vm690, %v660, 0.0
      %v739 = vadd.f32 %v737, %v738
      %v740 = vsel %vm690, %v663, 0.0
      %v741 = vadd.f32 %v739, %v740
      %v742 = vsel %vm690, %v668, 0.0
      %v743 = vadd.f32 %v741, %v742
      %v744 = vsel %vm690, %v671, 0.0
      %v745 = vadd.f32 %v743, %v744
      %v746 = vsel %vm690, %v676, 0.0
      %v747 = vadd.f32 %v745, %v746
      %v748 = vsel %vm690, %v679, 0.0
      %v749 = vadd.f32 %v747, %v748
      %v750 = vsel %vm690, %v684, 0.0
      %v751 = vadd.f32 %v749, %v750
      %v752 = vsel %vm690, %v687, 0.0
      %v753 = vadd.f32 %v751, %v752
      %v754 = vrot.slane %v753, 4
      %v755 = vadd.f32 %v753, %v754
      %v756 = vrot.slane %v755, 2
      %v757 = vadd.f32 %v755, %v756
      %v758 = vrot.slane %v757, 1
      %v759 = vadd.f32 %v757, %v758
      %v760 = vmul.f32 %v759, 0.00390625
      %v761 = vsub.f32 %v564, %v760
      %v762 = vsub.f32 %v567, %v760
      %v763 = vsub.f32 %v572, %v760
      %v764 = vsub.f32 %v575, %v760
      %v765 = vsub.f32 %v580, %v760
      %v766 = vsub.f32 %v583, %v760
      %v767 = vsub.f32 %v588, %v760
      %v768 = vsub.f32 %v591, %v760
      %v769 = vsub.f32 %v596, %v760
      %v770 = vsub.f32 %v599, %v760
      %v771 = vsub.f32 %v604, %v760
      %v772 = vsub.f32 %v607, %v760
      %v773 = vsub.f32 %v612, %v760
      %v774 = vsub.f32 %v615, %v760
      %v775 = vsub.f32 %v620, %v760
      %v776 = vsub.f32 %v623, %v760
      %v777 = vsub.f32 %v628, %v760
      %v778 = vsub.f32 %v631, %v760
      %v779 = vsub.f32 %v636, %v760
      %v780 = vsub.f32 %v639, %v760
      %v781 = vsub.f32 %v644, %v760
      %v782 = vsub.f32 %v647, %v760
      %v783 = vsub.f32 %v652, %v760
      %v784 = vsub.f32 %v655, %v760
      %v785 = vsub.f32 %v660, %v760
      %v786 = vsub.f32 %v663, %v760
      %v787 = vsub.f32 %v668, %v760
      %v788 = vsub.f32 %v671, %v760
      %v789 = vsub.f32 %v676, %v760
      %v790 = vsub.f32 %v679, %v760
      %v791 = vsub.f32 %v684, %v760
      %v792 = vsub.f32 %v687, %v760
      %v793 = vmul.f32 %v761, %v761
      %v794 = vmul.f32 %v762, %v762
      %v795 = vmul.f32 %v763, %v763
      %v796 = vmul.f32 %v764, %v764
      %v797 = vmul.f32 %v765, %v765
      %v798 = vmul.f32 %v766, %v766
      %v799 = vmul.f32 %v767, %v767
      %v800 = vmul.f32 %v768, %v768
      %v801 = vmul.f32 %v769, %v769
      %v802 = vmul.f32 %v770, %v770
      %v803 = vmul.f32 %v771, %v771
      %v804 = vmul.f32 %v772, %v772
      %v805 = vmul.f32 %v773, %v773
      %v806 = vmul.f32 %v774, %v774
      %v807 = vmul.f32 %v775, %v775
      %v808 = vmul.f32 %v776, %v776
      %v809 = vmul.f32 %v777, %v777
      %v810 = vmul.f32 %v778, %v778
      %v811 = vmul.f32 %v779, %v779
      %v812 = vmul.f32 %v780, %v780
      %v813 = vmul.f32 %v781, %v781
      %v814 = vmul.f32 %v782, %v782
      %v815 = vmul.f32 %v783, %v783
      %v816 = vmul.f32 %v784, %v784
      %v817 = vmul.f32 %v785, %v785
      %v818 = vmul.f32 %v786, %v786
      %v819 = vmul.f32 %v787, %v787
      %v820 = vmul.f32 %v788, %v788
      %v821 = vmul.f32 %v789, %v789
      %v822 = vmul.f32 %v790, %v790
      %v823 = vmul.f32 %v791, %v791
      %v824 = vmul.f32 %v792, %v792
      %v825 = vsel %vm690, %v793, 0.0
      %v826 = vsel %vm690, %v794, 0.0
      %v827 = vadd.f32 %v825, %v826
      %v828 = vsel %vm690, %v795, 0.0
      %v829 = vadd.f32 %v827, %v828
      %v830 = vsel %vm690, %v796, 0.0
      %v831 = vadd.f32 %v829, %v830
      %v832 = vsel %vm690, %v797, 0.0
      %v833 = vadd.f32 %v831, %v832
      %v834 = vsel %vm690, %v798, 0.0
      %v835 = vadd.f32 %v833, %v834
      %v836 = vsel %vm690, %v799, 0.0
      %v837 = vadd.f32 %v835, %v836
      %v838 = vsel %vm690, %v800, 0.0
      %v839 = vadd.f32 %v837, %v838
      %v840 = vsel %vm690, %v801, 0.0
      %v841 = vadd.f32 %v839, %v840
      %v842 = vsel %vm690, %v802, 0.0
      %v843 = vadd.f32 %v841, %v842
      %v844 = vsel %vm690, %v803, 0.0
      %v845 = vadd.f32 %v843, %v844
      %v846 = vsel %vm690, %v804, 0.0
      %v847 = vadd.f32 %v845, %v846
      %v848 = vsel %vm690, %v805, 0.0
      %v849 = vadd.f32 %v847, %v848
      %v850 = vsel %vm690, %v806, 0.0
      %v851 = vadd.f32 %v849, %v850
      %v852 = vsel %vm690, %v807, 0.0
      %v853 = vadd.f32 %v851, %v852
      %v854 = vsel %vm690, %v808, 0.0
      %v855 = vadd.f32 %v853, %v854
      %v856 = vsel %vm690, %v809, 0.0
      %v857 = vadd.f32 %v855, %v856
      %v858 = vsel %vm690, %v810, 0.0
      %v859 = vadd.f32 %v857, %v858
      %v860 = vsel %vm690, %v811, 0.0
      %v861 = vadd.f32 %v859, %v860
      %v862 = vsel %vm690, %v812, 0.0
      %v863 = vadd.f32 %v861, %v862
      %v864 = vsel %vm690, %v813, 0.0
      %v865 = vadd.f32 %v863, %v864
      %v866 = vsel %vm690, %v814, 0.0
      %v867 = vadd.f32 %v865, %v866
      %v868 = vsel %vm690, %v815, 0.0
      %v869 = vadd.f32 %v867, %v868
      %v870 = vsel %vm690, %v816, 0.0
      %v871 = vadd.f32 %v869, %v870
      %v872 = vsel %vm690, %v817, 0.0
      %v873 = vadd.f32 %v871, %v872
      %v874 = vsel %vm690, %v818, 0.0
      %v875 = vadd.f32 %v873, %v874
      %v876 = vsel %vm690, %v819, 0.0
      %v877 = vadd.f32 %v875, %v876
      %v878 = vsel %vm690, %v820, 0.0
      %v879 = vadd.f32 %v877, %v878
      %v880 = vsel %vm690, %v821, 0.0
      %v881 = vadd.f32 %v879, %v880
      %v882 = vsel %vm690, %v822, 0.0
      %v883 = vadd.f32 %v881, %v882
      %v884 = vsel %vm690, %v823, 0.0
      %v885 = vadd.f32 %v883, %v884
      %v886 = vsel %vm690, %v824, 0.0
      %v887 = vadd.f32 %v885, %v886
      %v888 = vrot.slane %v887, 4
      %v889 = vadd.f32 %v887, %v888
      %v890 = vrot.slane %v889, 2
      %v891 = vadd.f32 %v889, %v890
      %v892 = vrot.slane %v891, 1
      %v893 = vadd.f32 %v891, %v892
      %v894 = vmul.f32 %v893, 0.00390625
      %v895 = vadd.f32 %v894, 1e-05
      %v896 = vrsqrt.pop %v895
      %v897 = vmul.f32 %v761, %v896
      %v898 = vmul.f32 %v762, %v896
      %v899 = vmul.f32 %v763, %v896
      %v900 = vmul.f32 %v764, %v896
      %v901 = vmul.f32 %v765, %v896
      %v902 = vmul.f32 %v766, %v896
      %v903 = vmul.f32 %v767, %v896
      %v904 = vmul.f32 %v768, %v896
      %v905 = vmul.f32 %v769, %v896
      %v906 = vmul.f32 %v770, %v896
      %v907 = vmul.f32 %v771, %v896
      %v908 = vmul.f32 %v772, %v896
      %v909 = vmul.f32 %v773, %v896
      %v910 = vmul.f32 %v774, %v896
      %v911 = vmul.f32 %v775, %v896
      %v912 = vmul.f32 %v776, %v896
      %v913 = vmul.f32 %v777, %v896
      %v914 = vmul.f32 %v778, %v896
      %v915 = vmul.f32 %v779, %v896
      %v916 = vmul.f32 %v780, %v896
      %v917 = vmul.f32 %v781, %v896
      %v918 = vmul.f32 %v782, %v896
      %v919 = vmul.f32 %v783, %v896
      %v920 = vmul.f32 %v784, %v896
      %v921 = vmul.f32 %v785, %v896
      %v922 = vmul.f32 %v786, %v896
      %v923 = vmul.f32 %v787, %v896
      %v924 = vmul.f32 %v788, %v896
      %v925 = vmul.f32 %v789, %v896
      %v926 = vmul.f32 %v790, %v896
      %v927 = vmul.f32 %v791, %v896
      %v928 = vmul.f32 %v792, %v896
      %v929 = vmax.f32 %v897, 0.0
      %v930 = vmax.f32 %v898, 0.0
      %v931 = vmax.f32 %v899, 0.0
      %v932 = vmax.f32 %v900, 0.0
      %v933 = vmax.f32 %v901, 0.0
      %v934 = vmax.f32 %v902, 0.0
      %v935 = vmax.f32 %v903, 0.0
      %v936 = vmax.f32 %v904, 0.0
      %v937 = vmax.f32 %v905, 0.0
      %v938 = vmax.f32 %v906, 0.0
      %v939 = vmax.f32 %v907, 0.0
      %v940 = vmax.f32 %v908, 0.0
      %v941 = vmax.f32 %v909, 0.0
      %v942 = vmax.f32 %v910, 0.0
      %v943 = vmax.f32 %v911, 0.0
      %v944 = vmax.f32 %v912, 0.0
      %v945 = vmax.f32 %v913, 0.0
      %v946 = vmax.f32 %v914, 0.0
      %v947 = vmax.f32 %v915, 0.0
      %v948 = vmax.f32 %v916, 0.0
      %v949 = vmax.f32 %v917, 0.0
      %v950 = vmax.f32 %v918, 0.0
      %v951 = vmax.f32 %v919, 0.0
      %v952 = vmax.f32 %v920, 0.0
      %v953 = vmax.f32 %v921, 0.0
      %v954 = vmax.f32 %v922, 0.0
      %v955 = vmax.f32 %v923, 0.0
      %v956 = vmax.f32 %v924, 0.0
      %v957 = vmax.f32 %v925, 0.0
      %v958 = vmax.f32 %v926, 0.0
      %v959 = vmax.f32 %v927, 0.0
      %v960 = vmax.f32 %v928, 0.0
      %v961 = vpack.c.bf16 %v930, %v929
      %v962 = vpack.c.bf16 %v932, %v931
      %v963 = vpack.c.bf16 %v934, %v933
      %v964 = vpack.c.bf16 %v936, %v935
      %v965 = vpack.c.bf16 %v938, %v937
      %v966 = vpack.c.bf16 %v940, %v939
      %v967 = vpack.c.bf16 %v942, %v941
      %v968 = vpack.c.bf16 %v944, %v943
      %v969 = vpack.c.bf16 %v946, %v945
      %v970 = vpack.c.bf16 %v948, %v947
      %v971 = vpack.c.bf16 %v950, %v949
      %v972 = vpack.c.bf16 %v952, %v951
      %v973 = vpack.c.bf16 %v954, %v953
      %v974 = vpack.c.bf16 %v956, %v955
      %v975 = vpack.c.bf16 %v958, %v957
      %v976 = vpack.c.bf16 %v960, %v959
      %v993 = vunpack.c.l.b16 %v961
      %v994 = vunpack.c.h.b16 %v961
      %v995 = vunpack.c.l.b16 %v962
      %v996 = vunpack.c.h.b16 %v962
      %v997 = vunpack.c.l.b16 %v963
      %v998 = vunpack.c.h.b16 %v963
      %v999 = vunpack.c.l.b16 %v964
      %v1000 = vunpack.c.h.b16 %v964
      %v1001 = vunpack.c.l.b16 %v965
      %v1002 = vunpack.c.h.b16 %v965
      %v1003 = vunpack.c.l.b16 %v966
      %v1004 = vunpack.c.h.b16 %v966
      %v1005 = vunpack.c.l.b16 %v967
      %v1006 = vunpack.c.h.b16 %v967
      %v1007 = vunpack.c.l.b16 %v968
      %v1008 = vunpack.c.h.b16 %v968
      %v1009 = vunpack.c.l.b16 %v969
      %v1010 = vunpack.c.h.b16 %v969
      %v1011 = vunpack.c.l.b16 %v970
      %v1012 = vunpack.c.h.b16 %v970
      %v1013 = vunpack.c.l.b16 %v971
      %v1014 = vunpack.c.h.b16 %v971
      %v1015 = vunpack.c.l.b16 %v972
      %v1016 = vunpack.c.h.b16 %v972
      %v1017 = vunpack.c.l.b16 %v973
      %v1018 = vunpack.c.h.b16 %v973
      %v1019 = vunpack.c.l.b16 %v974
      %v1020 = vunpack.c.h.b16 %v974
      %v1021 = vunpack.c.l.b16 %v975
      %v1022 = vunpack.c.h.b16 %v975
      %v1023 = vunpack.c.l.b16 %v976
      %v1024 = vunpack.c.h.b16 %v976
      %v1025 = vpack.c.b16 %v993, %v993
      %v1026 = vpack.c.b16 %v994, %v994
      %v1027 = vpack.c.b16 %v995, %v995
      %v1028 = vpack.c.b16 %v996, %v996
      %v1029 = vpack.c.b16 %v997, %v997
      %v1030 = vpack.c.b16 %v998, %v998
      %v1031 = vpack.c.b16 %v999, %v999
      %v1032 = vpack.c.b16 %v1000, %v1000
      %v1033 = vpack.c.b16 %v1001, %v1001
      %v1034 = vpack.c.b16 %v1002, %v1002
      %v1035 = vpack.c.b16 %v1003, %v1003
      %v1036 = vpack.c.b16 %v1004, %v1004
      %v1037 = vpack.c.b16 %v1005, %v1005
      %v1038 = vpack.c.b16 %v1006, %v1006
      %v1039 = vpack.c.b16 %v1007, %v1007
      %v1040 = vpack.c.b16 %v1008, %v1008
      %v1041 = vpack.c.b16 %v1009, %v1009
      %v1042 = vpack.c.b16 %v1010, %v1010
      %v1043 = vpack.c.b16 %v1011, %v1011
      %v1044 = vpack.c.b16 %v1012, %v1012
      %v1045 = vpack.c.b16 %v1013, %v1013
      %v1046 = vpack.c.b16 %v1014, %v1014
      %v1047 = vpack.c.b16 %v1015, %v1015
      %v1048 = vpack.c.b16 %v1016, %v1016
      %v1049 = vpack.c.b16 %v1017, %v1017
      %v1050 = vpack.c.b16 %v1018, %v1018
      %v1051 = vpack.c.b16 %v1019, %v1019
      %v1052 = vpack.c.b16 %v1020, %v1020
      %v1053 = vpack.c.b16 %v1021, %v1021
      %v1054 = vpack.c.b16 %v1022, %v1022
      %v1055 = vpack.c.b16 %v1023, %v1023
      %v1056 = vpack.c.b16 %v1024, %v1024
      %vm1089 = vcmask 125952
      %1090 = vst.msk [vmem:[%s211] sm:$0xf] %vm1089, %v1025
      %1091 = vst.msk [vmem:[%s211 + $0x4] sm:$0xf] %vm1089, %v1026
      %1092 = vst.msk [vmem:[%s211 + $0x8] sm:$0xf] %vm1089, %v1027
      %1093 = vst.msk [vmem:[%s211 + $0xc] sm:$0xf] %vm1089, %v1028
      %1094 = vst.msk [vmem:[%s211 + $0x10] sm:$0xf] %vm1089, %v1029
      %1095 = vst.msk [vmem:[%s211 + $0x14] sm:$0xf] %vm1089, %v1030
      %1096 = vst.msk [vmem:[%s211 + $0x18] sm:$0xf] %vm1089, %v1031
      %1097 = vst.msk [vmem:[%s211 + $0x1c] sm:$0xf] %vm1089, %v1032
      %1098 = vst.msk [vmem:[%s211 + $0x20] sm:$0xf] %vm1089, %v1033
      %1099 = vst.msk [vmem:[%s211 + $0x24] sm:$0xf] %vm1089, %v1034
      %1100 = vst.msk [vmem:[%s211 + $0x28] sm:$0xf] %vm1089, %v1035
      %1101 = vst.msk [vmem:[%s211 + $0x2c] sm:$0xf] %vm1089, %v1036
      %1102 = vst.msk [vmem:[%s211 + $0x30] sm:$0xf] %vm1089, %v1037
      %1103 = vst.msk [vmem:[%s211 + $0x34] sm:$0xf] %vm1089, %v1038
      %1104 = vst.msk [vmem:[%s211 + $0x38] sm:$0xf] %vm1089, %v1039
      %1105 = vst.msk [vmem:[%s211 + $0x3c] sm:$0xf] %vm1089, %v1040
      %1106 = vst.msk [vmem:[%s211 + $0x40] sm:$0xf] %vm1089, %v1041
      %1107 = vst.msk [vmem:[%s211 + $0x44] sm:$0xf] %vm1089, %v1042
      %1108 = vst.msk [vmem:[%s211 + $0x48] sm:$0xf] %vm1089, %v1043
      %1109 = vst.msk [vmem:[%s211 + $0x4c] sm:$0xf] %vm1089, %v1044
      %1110 = vst.msk [vmem:[%s211 + $0x50] sm:$0xf] %vm1089, %v1045
      %1111 = vst.msk [vmem:[%s211 + $0x54] sm:$0xf] %vm1089, %v1046
      %1112 = vst.msk [vmem:[%s211 + $0x58] sm:$0xf] %vm1089, %v1047
      %1113 = vst.msk [vmem:[%s211 + $0x5c] sm:$0xf] %vm1089, %v1048
      %1114 = vst.msk [vmem:[%s211 + $0x60] sm:$0xf] %vm1089, %v1049
      %1115 = vst.msk [vmem:[%s211 + $0x64] sm:$0xf] %vm1089, %v1050
      %1116 = vst.msk [vmem:[%s211 + $0x68] sm:$0xf] %vm1089, %v1051
      %1117 = vst.msk [vmem:[%s211 + $0x6c] sm:$0xf] %vm1089, %v1052
      %1118 = vst.msk [vmem:[%s211 + $0x70] sm:$0xf] %vm1089, %v1053
      %1119 = vst.msk [vmem:[%s211 + $0x74] sm:$0xf] %vm1089, %v1054
      %1120 = vst.msk [vmem:[%s211 + $0x78] sm:$0xf] %vm1089, %v1055
      %1121 = vst.msk [vmem:[%s211 + $0x7c] sm:$0xf] %vm1089, %v1056
      %s1122 = smul.u32 32, %s19
      %p1123 = scmp.lt.s32.totalorder %s18, 1
      %s1124 = scalar_select %p1123, %s18, 1
      %p1125 = scmp.lt.s32.totalorder %s1122, 31
      %s1126 = scalar_select %p1125, %s1122, 31
      %s1127 = smul.addr %s1124, 32
      %s1128 = sadd.s32 %s1126, %s1127
      %s1129 = smul.addr %s1128, 4
      %s1130 = scalar_lea.vmem %s3, %s1129
      // Predicated region
      $region33: #{styleless_gen_forward.16} parent=31 // pred_check
        %p1131 = pneg %p116
      $region34: #{styleless_gen_forward.16} parent=31 // pred_check_branch
        %1133 = sbr.rel (%p1131) target = $region36
      $region35: #{styleless_gen_forward.16} parent=31 // pred_region
        %s1134 = smul.u32 32, %s19
      $region36: #{styleless_gen_forward.16} parent=31 // pred_fallthru
        _
    $region32: #{styleless_gen_forward.16} parent=5 // pred_fallthru
      _
    %p1135 = scmp.le.s32.totalorder 2, %s9
    // Predicated region
    $region37: #{styleless_gen_forward.16} parent=5 // pred_check
      %p1136 = pneg %p1135
    $region38: #{styleless_gen_forward.16} parent=5 // pred_check_branch
      %1138 = sbr.rel (%p1136) target = $region40
    $region39: #{styleless_gen_forward.16} parent=5 // pred_region
      %s1139 = ssub.s32 %s9, 2
      // Predicated region
      $region41: #{styleless_gen_forward.16} parent=39 // pred_check
        %p1140 = pneg %p122
      $region42: #{styleless_gen_forward.16} parent=39 // pred_check_branch
        %1142 = sbr.rel (%p1140) target = $region44
      $region43: #{styleless_gen_forward.16} parent=39 // pred_region
        %s1143 = smul.u32 32, %s21
        %p1144 = scmp.lt.s32.totalorder %s20, 1
        %s1145 = scalar_select %p1144, %s20, 1
        %p1146 = scmp.lt.s32.totalorder %s1143, 31
        %s1147 = scalar_select %p1146, %s1143, 31
        %s1148 = smul.addr %s1145, 32
        %s1149 = sadd.s32 %s1147, %s1148
        %s1150 = smul.addr %s1149, 4
        %s1151 = scalar_lea.vmem %s3, %s1150
      $region44: #{styleless_gen_forward.16} parent=39 // pred_fallthru
        _
    $region40: #{styleless_gen_forward.16} parent=5 // pred_fallthru
      _
  $region6: #{styleless_gen_forward.16} parent=0 // loop_footer
    %s13 = sadd.s32 1, %s9
  $region7: #{styleless_gen_forward.16} parent=0 // loop_footer_branch
    %8 = sbr.rel target = $region3
  $region8: #{styleless_gen_forward.16} parent=0 // loop_exit
    _

// kernel: styleless_gen_forward.18
$region0: #{styleless_gen_forward.18}
  #allocation0 [shape = 'u32[]', space=smem, size = 0x4, offset = 0x4, fixed_abs, tag = 'smem constant byte address 0x4 - core index']
  #allocation1 [shape = 'u32[144,128]{1,0:T(1,128)}', space=vmem, size = 0x12000, scoped, tag = 'internal scratch']
  %s0 = inlined_call_operand.vmem [shape: bf16[2,16,512], index: 0, kind: input, shape index: {}]
  %s1 = inlined_call_operand.vmem [shape: bf16[512,64], index: 1, kind: input, shape index: {}]
  %s2 = inlined_call_operand.vmem [shape: f32[1,64], index: 2, kind: input, shape index: {}]
  %s3 = inlined_call_operand.vmem [shape: bf16[2,16,64], index: 3, kind: output, shape index: {}]
  %s4 = sld [smem:[#allocation0]]
  $region45: #{styleless_gen_forward.18} parent=0
    _
  %s6 = ssub.s32 1, %s4
  %s7 = scalar_select 0, %s6, %s4
  loop: start=0, step=1, limit=4
  $region2: #{styleless_gen_forward.18} parent=0 // loop_pre_header
    _
  $region3: #{styleless_gen_forward.18} parent=0 // loop_header
    %s9 = sphi 0, %s13
    %p10 = scmp.ge.s32.totalorder %s9, 4
    %s16 = sphi 0, %s28
    %s17 = sphi 0, %s24
    %s18 = sphi 0, %s16
    %s19 = sphi 0, %s17
    %s20 = sphi 0, %s18
    %s21 = sphi 0, %s19
    %s33 = sphi 0, %s35
    %s36 = sphi 0, %s33
    %s37 = sphi 0, %s36
    %s53 = sphi 0, %s37
    %s57 = sphi 0, %s57
    %s59 = sphi 0, %s57
    %s60 = sphi 0, %s59
    %s74 = sphi 0, %s60
    %s78 = sphi 0, %s78
    %s80 = sphi 0, %s78
    %s81 = sphi 0, %s80
    %s95 = sphi 0, %s81
    %s103 = sphi 0, %s105
    %s106 = sphi 0, %s103
    %s107 = sphi 0, %s106
    %s123 = sphi 0, %s107
  $region4: #{styleless_gen_forward.18} parent=0 // loop_header_branch
    %12 = sbr.rel (%p10) target = $region8
  $region5: #{styleless_gen_forward.18} parent=0 // loop_body
    %s14 = ssub.s32 %s9, 1
    %s15 = ssub.s32 %s9, 2
    %s22 = sadd.s32 1, %s17
    %p23 = scmp.ge.s32.totalorder %s22, 1
    %s24 = scalar_select %p23, 0, %s22
    %s25 = sadd.s32 1, %s16
    %s26 = scalar_select %p23, %s25, %s16
    %p27 = scmp.ge.s32.totalorder %s26, 2
    %s28 = scalar_select %p27, 0, %s26
    %s29 = ssub.s32 %s16, %s28
    %s30 = ssub.s32 %s17, %s24
    %s31 = sor.u32 %s29, %s30
    %p32 = scmp.eq.s32.totalorder %s31, 0
    %s34 = sadd.s32 %s33, 1
    %s35 = scalar_select %p32, %s33, %s34
    %p38 = pneg %p32
    %p39 = scmp.eq.s32.totalorder %s9, 1
    %p40 = por %p38, %p39
    %p41 = scmp.ne.s32.totalorder %s33, %s36
    %p42 = scmp.eq.s32.totalorder %s9, 0
    %p43 = por %p41, %p42
    %p44 = scmp.ne.s32.totalorder %s33, %s36
    %p45 = scmp.eq.s32.totalorder %s14, 1
    %p46 = por %p44, %p45
    %p47 = scmp.ne.s32.totalorder %s36, %s37
    %p48 = scmp.eq.s32.totalorder %s14, 0
    %p49 = por %p47, %p48
    %p50 = scmp.ne.s32.totalorder %s36, %s37
    %p51 = scmp.eq.s32.totalorder %s15, 1
    %p52 = por %p50, %p51
    %p54 = scmp.ne.s32.totalorder %s37, %s53
    %p55 = scmp.eq.s32.totalorder %s15, 0
    %p56 = por %p54, %p55
    %s58 = sadd.s32 %s57, 1
    %p61 = scmp.eq.s32.totalorder %s9, 1
    %p62 = scmp.ne.s32.totalorder %s57, %s59
    %p63 = scmp.eq.s32.totalorder %s9, 0
    %p64 = por %p62, %p63
    %p65 = scmp.ne.s32.totalorder %s57, %s59
    %p66 = scmp.eq.s32.totalorder %s14, 1
    %p67 = por %p65, %p66
    %p68 = scmp.ne.s32.totalorder %s59, %s60
    %p69 = scmp.eq.s32.totalorder %s14, 0
    %p70 = por %p68, %p69
    %p71 = scmp.ne.s32.totalorder %s59, %s60
    %p72 = scmp.eq.s32.totalorder %s15, 1
    %p73 = por %p71, %p72
    %p75 = scmp.ne.s32.totalorder %s60, %s74
    %p76 = scmp.eq.s32.totalorder %s15, 0
    %p77 = por %p75, %p76
    %s79 = sadd.s32 %s78, 1
    %p82 = scmp.eq.s32.totalorder %s9, 1
    %p83 = scmp.ne.s32.totalorder %s78, %s80
    %p84 = scmp.eq.s32.totalorder %s9, 0
    %p85 = por %p83, %p84
    %p86 = scmp.ne.s32.totalorder %s78, %s80
    %p87 = scmp.eq.s32.totalorder %s14, 1
    %p88 = por %p86, %p87
    %p89 = scmp.ne.s32.totalorder %s80, %s81
    %p90 = scmp.eq.s32.totalorder %s14, 0
    %p91 = por %p89, %p90
    %p92 = scmp.ne.s32.totalorder %s80, %s81
    %p93 = scmp.eq.s32.totalorder %s15, 1
    %p94 = por %p92, %p93
    %p96 = scmp.ne.s32.totalorder %s81, %s95
    %p97 = scmp.eq.s32.totalorder %s15, 0
    %p98 = por %p96, %p97
    %s99 = ssub.s32 %s16, %s28
    %s100 = ssub.s32 %s17, %s24
    %s101 = sor.u32 %s99, %s100
    %p102 = scmp.eq.s32.totalorder %s101, 0
    %s104 = sadd.s32 %s103, 1
    %s105 = scalar_select %p102, %s103, %s104
    %p108 = pneg %p102
    %p109 = scmp.eq.s32.totalorder %s9, 1
    %p110 = por %p108, %p109
    %p111 = scmp.ne.s32.totalorder %s103, %s106
    %p112 = scmp.eq.s32.totalorder %s9, 0
    %p113 = por %p111, %p112
    %p114 = scmp.ne.s32.totalorder %s103, %s106
    %p115 = scmp.eq.s32.totalorder %s14, 1
    %p116 = por %p114, %p115
    %p117 = scmp.ne.s32.totalorder %s106, %s107
    %p118 = scmp.eq.s32.totalorder %s14, 0
    %p119 = por %p117, %p118
    %p120 = scmp.ne.s32.totalorder %s106, %s107
    %p121 = scmp.eq.s32.totalorder %s15, 1
    %p122 = por %p120, %p121
    %p124 = scmp.ne.s32.totalorder %s107, %s123
    %p125 = scmp.eq.s32.totalorder %s15, 0
    %p126 = por %p124, %p125
    %p127 = scmp.le.s32.totalorder 1, %s9
    %p128 = scmp.lt.s32.totalorder %s9, 3
    %p129 = pnand %p127, %p128
    %p130 = pneg %p129
    // Predicated region
    $region9: #{styleless_gen_forward.18} parent=5 // pred_check
      _
    $region10: #{styleless_gen_forward.18} parent=5 // pred_check_branch
      %132 = sbr.rel (%p129) target = $region12
    $region11: #{styleless_gen_forward.18} parent=5 // pred_region
      %s133 = ssub.s32 %s9, 1
      // Predicated region
      $region13: #{styleless_gen_forward.18} parent=11 // pred_check
        %p134 = pneg %p70
      $region14: #{styleless_gen_forward.18} parent=11 // pred_check_branch
        %136 = sbr.rel (%p134) target = $region16
      $region15: #{styleless_gen_forward.18} parent=11 // pred_region
        _
      $region16: #{styleless_gen_forward.18} parent=11 // pred_fallthru
        _
      // Predicated region
      $region17: #{styleless_gen_forward.18} parent=11 // pred_check
        %p137 = pneg %p91
      $region18: #{styleless_gen_forward.18} parent=11 // pred_check_branch
        %139 = sbr.rel (%p137) target = $region20
      $region19: #{styleless_gen_forward.18} parent=11 // pred_region
        _
      $region20: #{styleless_gen_forward.18} parent=11 // pred_fallthru
        _
    $region12: #{styleless_gen_forward.18} parent=5 // pred_fallthru
      _
    %p140 = scmp.lt.s32.totalorder %s9, 2
    // Predicated region
    $region21: #{styleless_gen_forward.18} parent=5 // pred_check
      %p141 = pneg %p140
    $region22: #{styleless_gen_forward.18} parent=5 // pred_check_branch
      %143 = sbr.rel (%p141) target = $region24
    $region23: #{styleless_gen_forward.18} parent=5 // pred_region
      // Predicated region
      $region25: #{styleless_gen_forward.18} parent=23 // pred_check
        %p144 = pneg %p43
      $region26: #{styleless_gen_forward.18} parent=23 // pred_check_branch
        %146 = sbr.rel (%p144) target = $region28
      $region27: #{styleless_gen_forward.18} parent=23 // pred_region
        %s147 = smul.u32 2, %s17
        %p148 = scmp.lt.s32.totalorder %s16, 1
        %s149 = scalar_select %p148, %s16, 1
        %p150 = scmp.lt.s32.totalorder %s147, 1
        %s151 = scalar_select %p150, %s147, 1
        %s152 = smul.addr %s151, 4
        %s153 = smul.addr %s149, 8
        %s154 = sadd.s32 %s152, %s153
        %s155 = smul.addr %s154, 4
        %s156 = scalar_lea.vmem %s0, %s155
        %s157 = smul.u32 2, %s17
      $region28: #{styleless_gen_forward.18} parent=23 // pred_fallthru
        _
    $region24: #{styleless_gen_forward.18} parent=5 // pred_fallthru
      _
    %p158 = scmp.le.s32.totalorder 1, %s9
    %p159 = scmp.lt.s32.totalorder %s9, 3
    %p160 = pnand %p158, %p159
    %p161 = pneg %p160
    // Predicated region
    $region29: #{styleless_gen_forward.18} parent=5 // pred_check
      _
    $region30: #{styleless_gen_forward.18} parent=5 // pred_check_branch
      %163 = sbr.rel (%p160) target = $region32
    $region31: #{styleless_gen_forward.18} parent=5 // pred_region
      %s164 = ssub.s32 %s9, 1
      %s165 = smul.u32 2, %s19
      %p166 = scmp.lt.s32.totalorder %s18, 1
      %s167 = scalar_select %p166, %s18, 1
      %p168 = scmp.lt.s32.totalorder %s165, 1
      %s169 = scalar_select %p168, %s165, 1
      %s170 = smul.addr %s169, 4
      %s171 = smul.addr %s167, 8
      %s172 = sadd.s32 %s170, %s171
      %s173 = smul.addr %s172, 4
      %s174 = scalar_lea.vmem %s0, %s173
      %p175 = pneg %p49
      %p176 = pneg %p46
      %p177 = pneg %p70
      %p178 = pneg %p67
      %p179 = pneg %p91
      %p180 = pneg %p88
      %p181 = pneg %p119
      %p182 = pneg %p116
      %s183 = smul.u32 2, %s19
      %p184 = scmp.lt.s32.totalorder %s18, 1
      %s185 = scalar_select %p184, %s18, 1
      %p186 = scmp.lt.s32.totalorder %s183, 1
      %s187 = scalar_select %p186, %s183, 1
      %s188 = smul.addr %s185, 2
      %s189 = sadd.s32 %s187, %s188
      %s190 = smul.addr %s189, 4
      %s191 = scalar_lea.vmem %s3, %s190
      %s192 = smul.u32 2, %s19
      %p193 = scmp.lt.s32.totalorder %s18, 1
      %s194 = scalar_select %p193, %s18, 1
      %p195 = scmp.lt.s32.totalorder %s192, 1
      %s196 = scalar_select %p195, %s192, 1
      %s197 = smul.addr %s196, 4
      %s198 = smul.addr %s194, 8
      %s199 = sadd.s32 %s197, %s198
      %s200 = smul.addr %s199, 4
      %s201 = scalar_lea.vmem %s0, %s200
      %s202 = smul.u32 2, %s19
      %s203 = smul.u32 2, %s19
      %p204 = scmp.lt.s32.totalorder %s18, 1
      %s205 = scalar_select %p204, %s18, 1
      %p206 = scmp.lt.s32.totalorder %s203, 1
      %s207 = scalar_select %p206, %s203, 1
      %s208 = smul.addr %s205, 2
      %s209 = sadd.s32 %s207, %s208
      %s210 = smul.addr %s209, 4
      %s211 = scalar_lea.vmem %s3, %s210
      %s212 = smul.u32 2, %s19
      %v214 = vld [vmem:[%s201] sm:$0xff]
      %v215 = vld [vmem:[%s201 + $0x8] sm:$0xff]
      %v216 = vld [vmem:[%s201 + $0x10] sm:$0xff]
      %v217 = vld [vmem:[%s201 + $0x18] sm:$0xff]
      %v218 = vld [vmem:[%s1] sm:$0xf]
      %v219 = vld [vmem:[%s1 + $0x4] sm:$0xf]
      %v220 = vld [vmem:[%s1 + $0x8] sm:$0xf]
      %v221 = vld [vmem:[%s1 + $0xc] sm:$0xf]
      %v222 = vld [vmem:[%s1 + $0x10] sm:$0xf]
      %v223 = vld [vmem:[%s1 + $0x14] sm:$0xf]
      %v224 = vld [vmem:[%s1 + $0x18] sm:$0xf]
      %v225 = vld [vmem:[%s1 + $0x1c] sm:$0xf]
      %v226 = vld [vmem:[%s1 + $0x20] sm:$0xf]
      %v227 = vld [vmem:[%s1 + $0x24] sm:$0xf]
      %v228 = vld [vmem:[%s1 + $0x28] sm:$0xf]
      %v229 = vld [vmem:[%s1 + $0x2c] sm:$0xf]
      %v230 = vld [vmem:[%s1 + $0x30] sm:$0xf]
      %v231 = vld [vmem:[%s1 + $0x34] sm:$0xf]
      %v232 = vld [vmem:[%s1 + $0x38] sm:$0xf]
      %v233 = vld [vmem:[%s1 + $0x3c] sm:$0xf]
      %v234 = vld [vmem:[%s1 + $0x40] sm:$0xf]
      %v235 = vld [vmem:[%s1 + $0x44] sm:$0xf]
      %v236 = vld [vmem:[%s1 + $0x48] sm:$0xf]
      %v237 = vld [vmem:[%s1 + $0x4c] sm:$0xf]
      %v238 = vld [vmem:[%s1 + $0x50] sm:$0xf]
      %v239 = vld [vmem:[%s1 + $0x54] sm:$0xf]
      %v240 = vld [vmem:[%s1 + $0x58] sm:$0xf]
      %v241 = vld [vmem:[%s1 + $0x5c] sm:$0xf]
      %v242 = vld [vmem:[%s1 + $0x60] sm:$0xf]
      %v243 = vld [vmem:[%s1 + $0x64] sm:$0xf]
      %v244 = vld [vmem:[%s1 + $0x68] sm:$0xf]
      %v245 = vld [vmem:[%s1 + $0x6c] sm:$0xf]
      %v246 = vld [vmem:[%s1 + $0x70] sm:$0xf]
      %v247 = vld [vmem:[%s1 + $0x74] sm:$0xf]
      %v248 = vld [vmem:[%s1 + $0x78] sm:$0xf]
      %v249 = vld [vmem:[%s1 + $0x7c] sm:$0xf]
      %v250 = vld [vmem:[%s1 + $0x80] sm:$0xf]
      %v251 = vld [vmem:[%s1 + $0x84] sm:$0xf]
      %v252 = vld [vmem:[%s1 + $0x88] sm:$0xf]
      %v253 = vld [vmem:[%s1 + $0x8c] sm:$0xf]
      %v254 = vld [vmem:[%s1 + $0x90] sm:$0xf]
      %v255 = vld [vmem:[%s1 + $0x94] sm:$0xf]
      %v256 = vld [vmem:[%s1 + $0x98] sm:$0xf]
      %v257 = vld [vmem:[%s1 + $0x9c] sm:$0xf]
      %v258 = vld [vmem:[%s1 + $0xa0] sm:$0xf]
      %v259 = vld [vmem:[%s1 + $0xa4] sm:$0xf]
      %v260 = vld [vmem:[%s1 + $0xa8] sm:$0xf]
      %v261 = vld [vmem:[%s1 + $0xac] sm:$0xf]
      %v262 = vld [vmem:[%s1 + $0xb0] sm:$0xf]
      %v263 = vld [vmem:[%s1 + $0xb4] sm:$0xf]
      %v264 = vld [vmem:[%s1 + $0xb8] sm:$0xf]
      %v265 = vld [vmem:[%s1 + $0xbc] sm:$0xf]
      %v266 = vld [vmem:[%s1 + $0xc0] sm:$0xf]
      %v267 = vld [vmem:[%s1 + $0xc4] sm:$0xf]
      %v268 = vld [vmem:[%s1 + $0xc8] sm:$0xf]
      %v269 = vld [vmem:[%s1 + $0xcc] sm:$0xf]
      %v270 = vld [vmem:[%s1 + $0xd0] sm:$0xf]
      %v271 = vld [vmem:[%s1 + $0xd4] sm:$0xf]
      %v272 = vld [vmem:[%s1 + $0xd8] sm:$0xf]
      %v273 = vld [vmem:[%s1 + $0xdc] sm:$0xf]
      %v274 = vld [vmem:[%s1 + $0xe0] sm:$0xf]
      %v275 = vld [vmem:[%s1 + $0xe4] sm:$0xf]
      %v276 = vld [vmem:[%s1 + $0xe8] sm:$0xf]
      %v277 = vld [vmem:[%s1 + $0xec] sm:$0xf]
      %v278 = vld [vmem:[%s1 + $0xf0] sm:$0xf]
      %v279 = vld [vmem:[%s1 + $0xf4] sm:$0xf]
      %v280 = vld [vmem:[%s1 + $0xf8] sm:$0xf]
      %v281 = vld [vmem:[%s1 + $0xfc] sm:$0xf]
      %v282 = vld [vmem:[%s2] sm:$0x1]
      %v284 = vlaneseq
      %v285 = vshrl.u32 %v284, 7
      %v286 = vsub.s32 0, %v285
      %v287 = vrot.slane %v282, %v286
      %v293 = vunpack.c.l.b16 %v214
      %v294 = vunpack.c.h.b16 %v214
      %v295 = vunpack.c.l.b16 %v215
      %v296 = vunpack.c.h.b16 %v215
      %v297 = vunpack.c.l.b16 %v216
      %v298 = vunpack.c.h.b16 %v216
      %v299 = vunpack.c.l.b16 %v217
      %v300 = vunpack.c.h.b16 %v217
      %v301 = vpack.c.b16 %v297, %v293
      %v302 = vpack.c.b16 %v298, %v294
      %v303 = vpack.c.b16 %v299, %v295
      %v304 = vpack.c.b16 %v300, %v296
      %v373 = vunpack.c.l.b16 %v218
      %v374 = vunpack.c.l.b16 %v219
      %v375 = vunpack.c.l.b16 %v220
      %v376 = vunpack.c.l.b16 %v221
      %v377 = vunpack.c.l.b16 %v222
      %v378 = vunpack.c.l.b16 %v223
      %v379 = vunpack.c.l.b16 %v224
      %v380 = vunpack.c.l.b16 %v225
      %v381 = vunpack.c.l.b16 %v226
      %v382 = vunpack.c.l.b16 %v227
      %v383 = vunpack.c.l.b16 %v228
      %v384 = vunpack.c.l.b16 %v229
      %v385 = vunpack.c.l.b16 %v230
      %v386 = vunpack.c.l.b16 %v231
      %v387 = vunpack.c.l.b16 %v232
      %v388 = vunpack.c.l.b16 %v233
      %v389 = vunpack.c.l.b16 %v234
      %v390 = vunpack.c.l.b16 %v235
      %v391 = vunpack.c.l.b16 %v236
      %v392 = vunpack.c.l.b16 %v237
      %v393 = vunpack.c.l.b16 %v238
      %v394 = vunpack.c.l.b16 %v239
      %v395 = vunpack.c.l.b16 %v240
      %v396 = vunpack.c.l.b16 %v241
      %v397 = vunpack.c.l.b16 %v242
      %v398 = vunpack.c.l.b16 %v243
      %v399 = vunpack.c.l.b16 %v244
      %v400 = vunpack.c.l.b16 %v245
      %v401 = vunpack.c.l.b16 %v246
      %v402 = vunpack.c.l.b16 %v247
      %v403 = vunpack.c.l.b16 %v248
      %v404 = vunpack.c.l.b16 %v249
      %v405 = vunpack.c.l.b16 %v250
      %v406 = vunpack.c.l.b16 %v251
      %v407 = vunpack.c.l.b16 %v252
      %v408 = vunpack.c.l.b16 %v253
      %v409 = vunpack.c.l.b16 %v254
      %v410 = vunpack.c.l.b16 %v255
      %v411 = vunpack.c.l.b16 %v256
      %v412 = vunpack.c.l.b16 %v257
      %v413 = vunpack.c.l.b16 %v258
      %v414 = vunpack.c.l.b16 %v259
      %v415 = vunpack.c.l.b16 %v260
      %v416 = vunpack.c.l.b16 %v261
      %v417 = vunpack.c.l.b16 %v262
      %v418 = vunpack.c.l.b16 %v263
      %v419 = vunpack.c.l.b16 %v264
      %v420 = vunpack.c.l.b16 %v265
      %v421 = vunpack.c.l.b16 %v266
      %v422 = vunpack.c.l.b16 %v267
      %v423 = vunpack.c.l.b16 %v268
      %v424 = vunpack.c.l.b16 %v269
      %v425 = vunpack.c.l.b16 %v270
      %v426 = vunpack.c.l.b16 %v271
      %v427 = vunpack.c.l.b16 %v272
      %v428 = vunpack.c.l.b16 %v273
      %v429 = vunpack.c.l.b16 %v274
      %v430 = vunpack.c.l.b16 %v275
      %v431 = vunpack.c.l.b16 %v276
      %v432 = vunpack.c.l.b16 %v277
      %v433 = vunpack.c.l.b16 %v278
      %v434 = vunpack.c.l.b16 %v279
      %v435 = vunpack.c.l.b16 %v280
      %v436 = vunpack.c.l.b16 %v281
      %v437 = vpack.c.b16 %v374, %v373
      %v438 = vpack.c.b16 %v376, %v375
      %v439 = vpack.c.b16 %v378, %v377
      %v440 = vpack.c.b16 %v380, %v379
      %v441 = vpack.c.b16 %v382, %v381
      %v442 = vpack.c.b16 %v384, %v383
      %v443 = vpack.c.b16 %v386, %v385
      %v444 = vpack.c.b16 %v388, %v387
      %v445 = vpack.c.b16 %v390, %v389
      %v446 = vpack.c.b16 %v392, %v391
      %v447 = vpack.c.b16 %v394, %v393
      %v448 = vpack.c.b16 %v396, %v395
      %v449 = vpack.c.b16 %v398, %v397
      %v450 = vpack.c.b16 %v400, %v399
      %v451 = vpack.c.b16 %v402, %v401
      %v452 = vpack.c.b16 %v404, %v403
      %v453 = vpack.c.b16 %v406, %v405
      %v454 = vpack.c.b16 %v408, %v407
      %v455 = vpack.c.b16 %v410, %v409
      %v456 = vpack.c.b16 %v412, %v411
      %v457 = vpack.c.b16 %v414, %v413
      %v458 = vpack.c.b16 %v416, %v415
      %v459 = vpack.c.b16 %v418, %v417
      %v460 = vpack.c.b16 %v420, %v419
      %v461 = vpack.c.b16 %v422, %v421
      %v462 = vpack.c.b16 %v424, %v423
      %v463 = vpack.c.b16 %v426, %v425
      %v464 = vpack.c.b16 %v428, %v427
      %v465 = vpack.c.b16 %v430, %v429
      %v466 = vpack.c.b16 %v432, %v431
      %v467 = vpack.c.b16 %v434, %v433
      %v468 = vpack.c.b16 %v436, %v435
      %501 = vmatprep.subr.bf16.mxu0 0
      %502 = vmatpush1.bf16.msra.mxu0 %v437
      %503 = vmatprep.subr.bf16.mxu0 0
      %504 = vmatpush1.bf16.msra.mxu0 %v438
      %505 = vmatprep.subr.bf16.mxu0 0
      %506 = vmatpush1.bf16.msra.mxu0 %v439
      %507 = vmatprep.subr.bf16.mxu0 0
      %508 = vmatpush1.bf16.msra.mxu0 %v440
      %509 = vmatprep.subr.bf16.mxu0 0
      %510 = vmatpush1.bf16.msra.mxu0 %v441
      %511 = vmatprep.subr.bf16.mxu0 0
      %512 = vmatpush1.bf16.msra.mxu0 %v442
      %513 = vmatprep.subr.bf16.mxu0 0
      %514 = vmatpush1.bf16.msra.mxu0 %v443
      %515 = vmatprep.subr.bf16.mxu0 0
      %516 = vmatpush1.bf16.msra.mxu0 %v444
      %517 = vmatprep.subr.bf16.mxu0 0
      %518 = vmatpush1.bf16.msra.mxu0 %v445
      %519 = vmatprep.subr.bf16.mxu0 0
      %520 = vmatpush1.bf16.msra.mxu0 %v446
      %521 = vmatprep.subr.bf16.mxu0 0
      %522 = vmatpush1.bf16.msra.mxu0 %v447
      %523 = vmatprep.subr.bf16.mxu0 0
      %524 = vmatpush1.bf16.msra.mxu0 %v448
      %525 = vmatprep.subr.bf16.mxu0 0
      %526 = vmatpush1.bf16.msra.mxu0 %v449
      %527 = vmatprep.subr.bf16.mxu0 0
      %528 = vmatpush1.bf16.msra.mxu0 %v450
      %529 = vmatprep.subr.bf16.mxu0 0
      %530 = vmatpush1.bf16.msra.mxu0 %v451
      %531 = vmatprep.subr.bf16.mxu0 0
      %532 = vmatpush1.bf16.msra.mxu0 %v452
      %533 = vmatprep.mubr.bf16.mxu0 %v302
      %534 = vmatmul.mubr.bf16.gmra.mrb[0].mxu0 %v301
      %v535 = vpop.f32.mrb[0].mxu0
      %v536 = vadd.f32 %v287, %v535
      %v537 = vpop.f32.mrb[0].mxu0
      %v538 = vpop.f32.mrb[0].mxu0
      %v539 = vadd.f32 %v287, %v538
      %v540 = vpop.f32.mrb[0].mxu0
      %541 = vdwg.mxu0
      %542 = vmatprep.subr.bf16.mxu0 0
      %543 = vmatpush1.bf16.msra.mxu0 %v453
      %544 = vmatprep.subr.bf16.mxu0 0
      %545 = vmatpush1.bf16.msra.mxu0 %v454
      %546 = vmatprep.subr.bf16.mxu0 0
      %547 = vmatpush1.bf16.msra.mxu0 %v455
      %548 = vmatprep.subr.bf16.mxu0 0
      %549 = vmatpush1.bf16.msra.mxu0 %v456
      %550 = vmatprep.subr.bf16.mxu0 0
      %551 = vmatpush1.bf16.msra.mxu0 %v457
      %552 = vmatprep.subr.bf16.mxu0 0
      %553 = vmatpush1.bf16.msra.mxu0 %v458
      %554 = vmatprep.subr.bf16.mxu0 0
      %555 = vmatpush1.bf16.msra.mxu0 %v459
      %556 = vmatprep.subr.bf16.mxu0 0
      %557 = vmatpush1.bf16.msra.mxu0 %v460
      %558 = vmatprep.subr.bf16.mxu0 0
      %559 = vmatpush1.bf16.msra.mxu0 %v461
      %560 = vmatprep.subr.bf16.mxu0 0
      %561 = vmatpush1.bf16.msra.mxu0 %v462
      %562 = vmatprep.subr.bf16.mxu0 0
      %563 = vmatpush1.bf16.msra.mxu0 %v463
      %564 = vmatprep.subr.bf16.mxu0 0
      %565 = vmatpush1.bf16.msra.mxu0 %v464
      %566 = vmatprep.subr.bf16.mxu0 0
      %567 = vmatpush1.bf16.msra.mxu0 %v465
      %568 = vmatprep.subr.bf16.mxu0 0
      %569 = vmatpush1.bf16.msra.mxu0 %v466
      %570 = vmatprep.subr.bf16.mxu0 0
      %571 = vmatpush1.bf16.msra.mxu0 %v467
      %572 = vmatprep.subr.bf16.mxu0 0
      %573 = vmatpush1.bf16.msra.mxu0 %v468
      %574 = vmatprep.mubr.bf16.mxu0 %v304
      %575 = vmatmul.mubr.bf16.gmra.mrb[0].mxu0 %v303
      %v576 = vpop.f32.mrb[0].mxu0
      %v577 = vadd.f32 %v536, %v576
      %v578 = vpop.f32.mrb[0].mxu0
      %v579 = vpop.f32.mrb[0].mxu0
      %v580 = vadd.f32 %v539, %v579
      %v581 = vpop.f32.mrb[0].mxu0
      %582 = vdwg.mxu0
      %vm583 = vcmask 523264
      %v584 = vsel %vm583, %v577, 0.0
      %v585 = vsel %vm583, %v580, 0.0
      %v586 = vadd.f32 %v584, %v585
      %v587 = vrot.slane %v586, 4
      %v588 = vadd.f32 %v586, %v587
      %v589 = vrot.slane %v588, 2
      %v590 = vadd.f32 %v588, %v589
      %v591 = vrot.slane %v590, 1
      %v592 = vadd.f32 %v590, %v591
      %v593 = vmul.f32 %v592, 0.0625
      %v594 = vsub.f32 %v577, %v593
      %v595 = vsub.f32 %v580, %v593
      %v596 = vmul.f32 %v594, %v594
      %v597 = vmul.f32 %v595, %v595
      %v598 = vsel %vm583, %v596, 0.0
      %v599 = vsel %vm583, %v597, 0.0
      %v600 = vadd.f32 %v598, %v599
      %v601 = vrot.slane %v600, 4
      %v602 = vadd.f32 %v600, %v601
      %v603 = vrot.slane %v602, 2
      %v604 = vadd.f32 %v602, %v603
      %v605 = vrot.slane %v604, 1
      %v606 = vadd.f32 %v604, %v605
      %v607 = vmul.f32 %v606, 0.0625
      %v608 = vadd.f32 %v607, 1e-05
      %v609 = vrsqrt.pop %v608
      %v610 = vmul.f32 %v594, %v609
      %v611 = vmul.f32 %v595, %v609
      %v612 = vmax.f32 %v610, 0.0
      %v613 = vmax.f32 %v611, 0.0
      %v614 = vpack.c.bf16 %v613, %v612
      %v616 = vunpack.c.l.b16 %v614
      %v617 = vunpack.c.h.b16 %v614
      %v618 = vpack.c.b16 %v616, %v616
      %v619 = vpack.c.b16 %v617, %v617
      %vm622 = vcmask 519168
      %623 = vst.msk [vmem:[%s211] sm:$0xf] %vm622, %v618
      %624 = vst.msk [vmem:[%s211 + $0x4] sm:$0xf] %vm622, %v619
      %s625 = smul.u32 2, %s19
      %p626 = scmp.lt.s32.totalorder %s18, 1
      %s627 = scalar_select %p626, %s18, 1
      %p628 = scmp.lt.s32.totalorder %s625, 1
      %s629 = scalar_select %p628, %s625, 1
      %s630 = smul.addr %s627, 2
      %s631 = sadd.s32 %s629, %s630
      %s632 = smul.addr %s631, 4
      %s633 = scalar_lea.vmem %s3, %s632
      // Predicated region
      $region33: #{styleless_gen_forward.18} parent=31 // pred_check
        %p634 = pneg %p116
      $region34: #{styleless_gen_forward.18} parent=31 // pred_check_branch
        %636 = sbr.rel (%p634) target = $region36
      $region35: #{styleless_gen_forward.18} parent=31 // pred_region
        %s637 = smul.u32 2, %s19
      $region36: #{styleless_gen_forward.18} parent=31 // pred_fallthru
        _
    $region32: #{styleless_gen_forward.18} parent=5 // pred_fallthru
      _
    %p638 = scmp.le.s32.totalorder 2, %s9
    // Predicated region
    $region37: #{styleless_gen_forward.18} parent=5 // pred_check
      %p639 = pneg %p638
    $region38: #{styleless_gen_forward.18} parent=5 // pred_check_branch
      %641 = sbr.rel (%p639) target = $region40
    $region39: #{styleless_gen_forward.18} parent=5 // pred_region
      %s642 = ssub.s32 %s9, 2
      // Predicated region
      $region41: #{styleless_gen_forward.18} parent=39 // pred_check
        %p643 = pneg %p122
      $region42: #{styleless_gen_forward.18} parent=39 // pred_check_branch
        %645 = sbr.rel (%p643) target = $region44
      $region43: #{styleless_gen_forward.18} parent=39 // pred_region
        %s646 = smul.u32 2, %s21
        %p647 = scmp.lt.s32.totalorder %s20, 1
        %s648 = scalar_select %p647, %s20, 1
        %p649 = scmp.lt.s32.totalorder %s646, 1
        %s650 = scalar_select %p649, %s646, 1
        %s651 = smul.addr %s648, 2
        %s652 = sadd.s32 %s650, %s651
        %s653 = smul.addr %s652, 4
        %s654 = scalar_lea.vmem %s3, %s653
      $region44: #{styleless_gen_forward.18} parent=39 // pred_fallthru
        _
    $region40: #{styleless_gen_forward.18} parent=5 // pred_fallthru
      _
  $region6: #{styleless_gen_forward.18} parent=0 // loop_footer
    %s13 = sadd.s32 1, %s9
  $region7: #{styleless_gen_forward.18} parent=0 // loop_footer_branch
    %8 = sbr.rel target = $region3
  $region8: #{styleless_gen_forward.18} parent=0 // loop_exit
    _

// kernel: styleless_gen_forward.19
$region0: #{styleless_gen_forward.19}
  #allocation0 [shape = 'u32[]', space=smem, size = 0x4, offset = 0x4, fixed_abs, tag = 'smem constant byte address 0x4 - core index']
  #allocation1 [shape = 'u32[144,128]{1,0:T(1,128)}', space=vmem, size = 0x12000, scoped, tag = 'internal scratch']
  %s0 = inlined_call_operand.vmem [shape: bf16[2,16,576], index: 0, kind: input, shape index: {}]
  %s1 = inlined_call_operand.vmem [shape: bf16[576,64], index: 1, kind: input, shape index: {}]
  %s2 = inlined_call_operand.vmem [shape: f32[1,64], index: 2, kind: input, shape index: {}]
  %s3 = inlined_call_operand.vmem [shape: bf16[2,16,64], index: 3, kind: output, shape index: {}]
  %s4 = sld [smem:[#allocation0]]
  $region45: #{styleless_gen_forward.19} parent=0
    _
  %s6 = ssub.s32 1, %s4
  %s7 = scalar_select 0, %s6, %s4
  loop: start=0, step=1, limit=4
  $region2: #{styleless_gen_forward.19} parent=0 // loop_pre_header
    _
  $region3: #{styleless_gen_forward.19} parent=0 // loop_header
    %s9 = sphi 0, %s13
    %p10 = scmp.ge.s32.totalorder %s9, 4
    %s16 = sphi 0, %s28
    %s17 = sphi 0, %s24
    %s18 = sphi 0, %s16
    %s19 = sphi 0, %s17
    %s20 = sphi 0, %s18
    %s21 = sphi 0, %s19
    %s33 = sphi 0, %s35
    %s36 = sphi 0, %s33
    %s37 = sphi 0, %s36
    %s53 = sphi 0, %s37
    %s57 = sphi 0, %s57
    %s59 = sphi 0, %s57
    %s60 = sphi 0, %s59
    %s74 = sphi 0, %s60
    %s78 = sphi 0, %s78
    %s80 = sphi 0, %s78
    %s81 = sphi 0, %s80
    %s95 = sphi 0, %s81
    %s103 = sphi 0, %s105
    %s106 = sphi 0, %s103
    %s107 = sphi 0, %s106
    %s123 = sphi 0, %s107
  $region4: #{styleless_gen_forward.19} parent=0 // loop_header_branch
    %12 = sbr.rel (%p10) target = $region8
  $region5: #{styleless_gen_forward.19} parent=0 // loop_body
    %s14 = ssub.s32 %s9, 1
    %s15 = ssub.s32 %s9, 2
    %s22 = sadd.s32 1, %s17
    %p23 = scmp.ge.s32.totalorder %s22, 1
    %s24 = scalar_select %p23, 0, %s22
    %s25 = sadd.s32 1, %s16
    %s26 = scalar_select %p23, %s25, %s16
    %p27 = scmp.ge.s32.totalorder %s26, 2
    %s28 = scalar_select %p27, 0, %s26
    %s29 = ssub.s32 %s16, %s28
    %s30 = ssub.s32 %s17, %s24
    %s31 = sor.u32 %s29, %s30
    %p32 = scmp.eq.s32.totalorder %s31, 0
    %s34 = sadd.s32 %s33, 1
    %s35 = scalar_select %p32, %s33, %s34
    %p38 = pneg %p32
    %p39 = scmp.eq.s32.totalorder %s9, 1
    %p40 = por %p38, %p39
    %p41 = scmp.ne.s32.totalorder %s33, %s36
    %p42 = scmp.eq.s32.totalorder %s9, 0
    %p43 = por %p41, %p42
    %p44 = scmp.ne.s32.totalorder %s33, %s36
    %p45 = scmp.eq.s32.totalorder %s14, 1
    %p46 = por %p44, %p45
    %p47 = scmp.ne.s32.totalorder %s36, %s37
    %p48 = scmp.eq.s32.totalorder %s14, 0
    %p49 = por %p47, %p48
    %p50 = scmp.ne.s32.totalorder %s36, %s37
    %p51 = scmp.eq.s32.totalorder %s15, 1
    %p52 = por %p50, %p51
    %p54 = scmp.ne.s32.totalorder %s37, %s53
    %p55 = scmp.eq.s32.totalorder %s15, 0
    %p56 = por %p54, %p55
    %s58 = sadd.s32 %s57, 1
    %p61 = scmp.eq.s32.totalorder %s9, 1
    %p62 = scmp.ne.s32.totalorder %s57, %s59
    %p63 = scmp.eq.s32.totalorder %s9, 0
    %p64 = por %p62, %p63
    %p65 = scmp.ne.s32.totalorder %s57, %s59
    %p66 = scmp.eq.s32.totalorder %s14, 1
    %p67 = por %p65, %p66
    %p68 = scmp.ne.s32.totalorder %s59, %s60
    %p69 = scmp.eq.s32.totalorder %s14, 0
    %p70 = por %p68, %p69
    %p71 = scmp.ne.s32.totalorder %s59, %s60
    %p72 = scmp.eq.s32.totalorder %s15, 1
    %p73 = por %p71, %p72
    %p75 = scmp.ne.s32.totalorder %s60, %s74
    %p76 = scmp.eq.s32.totalorder %s15, 0
    %p77 = por %p75, %p76
    %s79 = sadd.s32 %s78, 1
    %p82 = scmp.eq.s32.totalorder %s9, 1
    %p83 = scmp.ne.s32.totalorder %s78, %s80
    %p84 = scmp.eq.s32.totalorder %s9, 0
    %p85 = por %p83, %p84
    %p86 = scmp.ne.s32.totalorder %s78, %s80
    %p87 = scmp.eq.s32.totalorder %s14, 1
    %p88 = por %p86, %p87
    %p89 = scmp.ne.s32.totalorder %s80, %s81
    %p90 = scmp.eq.s32.totalorder %s14, 0
    %p91 = por %p89, %p90
    %p92 = scmp.ne.s32.totalorder %s80, %s81
    %p93 = scmp.eq.s32.totalorder %s15, 1
    %p94 = por %p92, %p93
    %p96 = scmp.ne.s32.totalorder %s81, %s95
    %p97 = scmp.eq.s32.totalorder %s15, 0
    %p98 = por %p96, %p97
    %s99 = ssub.s32 %s16, %s28
    %s100 = ssub.s32 %s17, %s24
    %s101 = sor.u32 %s99, %s100
    %p102 = scmp.eq.s32.totalorder %s101, 0
    %s104 = sadd.s32 %s103, 1
    %s105 = scalar_select %p102, %s103, %s104
    %p108 = pneg %p102
    %p109 = scmp.eq.s32.totalorder %s9, 1
    %p110 = por %p108, %p109
    %p111 = scmp.ne.s32.totalorder %s103, %s106
    %p112 = scmp.eq.s32.totalorder %s9, 0
    %p113 = por %p111, %p112
    %p114 = scmp.ne.s32.totalorder %s103, %s106
    %p115 = scmp.eq.s32.totalorder %s14, 1
    %p116 = por %p114, %p115
    %p117 = scmp.ne.s32.totalorder %s106, %s107
    %p118 = scmp.eq.s32.totalorder %s14, 0
    %p119 = por %p117, %p118
    %p120 = scmp.ne.s32.totalorder %s106, %s107
    %p121 = scmp.eq.s32.totalorder %s15, 1
    %p122 = por %p120, %p121
    %p124 = scmp.ne.s32.totalorder %s107, %s123
    %p125 = scmp.eq.s32.totalorder %s15, 0
    %p126 = por %p124, %p125
    %p127 = scmp.le.s32.totalorder 1, %s9
    %p128 = scmp.lt.s32.totalorder %s9, 3
    %p129 = pnand %p127, %p128
    %p130 = pneg %p129
    // Predicated region
    $region9: #{styleless_gen_forward.19} parent=5 // pred_check
      _
    $region10: #{styleless_gen_forward.19} parent=5 // pred_check_branch
      %132 = sbr.rel (%p129) target = $region12
    $region11: #{styleless_gen_forward.19} parent=5 // pred_region
      %s133 = ssub.s32 %s9, 1
      // Predicated region
      $region13: #{styleless_gen_forward.19} parent=11 // pred_check
        %p134 = pneg %p70
      $region14: #{styleless_gen_forward.19} parent=11 // pred_check_branch
        %136 = sbr.rel (%p134) target = $region16
      $region15: #{styleless_gen_forward.19} parent=11 // pred_region
        _
      $region16: #{styleless_gen_forward.19} parent=11 // pred_fallthru
        _
      // Predicated region
      $region17: #{styleless_gen_forward.19} parent=11 // pred_check
        %p137 = pneg %p91
      $region18: #{styleless_gen_forward.19} parent=11 // pred_check_branch
        %139 = sbr.rel (%p137) target = $region20
      $region19: #{styleless_gen_forward.19} parent=11 // pred_region
        _
      $region20: #{styleless_gen_forward.19} parent=11 // pred_fallthru
        _
    $region12: #{styleless_gen_forward.19} parent=5 // pred_fallthru
      _
    %p140 = scmp.lt.s32.totalorder %s9, 2
    // Predicated region
    $region21: #{styleless_gen_forward.19} parent=5 // pred_check
      %p141 = pneg %p140
    $region22: #{styleless_gen_forward.19} parent=5 // pred_check_branch
      %143 = sbr.rel (%p141) target = $region24
    $region23: #{styleless_gen_forward.19} parent=5 // pred_region
      // Predicated region
      $region25: #{styleless_gen_forward.19} parent=23 // pred_check
        %p144 = pneg %p43
      $region26: #{styleless_gen_forward.19} parent=23 // pred_check_branch
        %146 = sbr.rel (%p144) target = $region28
      $region27: #{styleless_gen_forward.19} parent=23 // pred_region
        %s147 = smul.u32 2, %s17
        %p148 = scmp.lt.s32.totalorder %s16, 1
        %s149 = scalar_select %p148, %s16, 1
        %p150 = scmp.lt.s32.totalorder %s147, 1
        %s151 = scalar_select %p150, %s147, 1
        %s152 = smul.addr %s151, 5
        %s153 = smul.addr %s149, 10
        %s154 = sadd.s32 %s152, %s153
        %s155 = smul.addr %s154, 4
        %s156 = scalar_lea.vmem %s0, %s155
        %s157 = smul.u32 2, %s17
      $region28: #{styleless_gen_forward.19} parent=23 // pred_fallthru
        _
    $region24: #{styleless_gen_forward.19} parent=5 // pred_fallthru
      _
    %p158 = scmp.le.s32.totalorder 1, %s9
    %p159 = scmp.lt.s32.totalorder %s9, 3
    %p160 = pnand %p158, %p159
    %p161 = pneg %p160
    // Predicated region
    $region29: #{styleless_gen_forward.19} parent=5 // pred_check
      _
    $region30: #{styleless_gen_forward.19} parent=5 // pred_check_branch
      %163 = sbr.rel (%p160) target = $region32
    $region31: #{styleless_gen_forward.19} parent=5 // pred_region
      %s164 = ssub.s32 %s9, 1
      %s165 = smul.u32 2, %s19
      %p166 = scmp.lt.s32.totalorder %s18, 1
      %s167 = scalar_select %p166, %s18, 1
      %p168 = scmp.lt.s32.totalorder %s165, 1
      %s169 = scalar_select %p168, %s165, 1
      %s170 = smul.addr %s169, 5
      %s171 = smul.addr %s167, 10
      %s172 = sadd.s32 %s170, %s171
      %s173 = smul.addr %s172, 4
      %s174 = scalar_lea.vmem %s0, %s173
      %p175 = pneg %p49
      %p176 = pneg %p46
      %p177 = pneg %p70
      %p178 = pneg %p67
      %p179 = pneg %p91
      %p180 = pneg %p88
      %p181 = pneg %p119
      %p182 = pneg %p116
      %s183 = smul.u32 2, %s19
      %p184 = scmp.lt.s32.totalorder %s18, 1
      %s185 = scalar_select %p184, %s18, 1
      %p186 = scmp.lt.s32.totalorder %s183, 1
      %s187 = scalar_select %p186, %s183, 1
      %s188 = smul.addr %s185, 2
      %s189 = sadd.s32 %s187, %s188
      %s190 = smul.addr %s189, 4
      %s191 = scalar_lea.vmem %s3, %s190
      %s192 = smul.u32 2, %s19
      %p193 = scmp.lt.s32.totalorder %s18, 1
      %s194 = scalar_select %p193, %s18, 1
      %p195 = scmp.lt.s32.totalorder %s192, 1
      %s196 = scalar_select %p195, %s192, 1
      %s197 = smul.addr %s196, 5
      %s198 = smul.addr %s194, 10
      %s199 = sadd.s32 %s197, %s198
      %s200 = smul.addr %s199, 4
      %s201 = scalar_lea.vmem %s0, %s200
      %s202 = smul.u32 2, %s19
      %s203 = smul.u32 2, %s19
      %p204 = scmp.lt.s32.totalorder %s18, 1
      %s205 = scalar_select %p204, %s18, 1
      %p206 = scmp.lt.s32.totalorder %s203, 1
      %s207 = scalar_select %p206, %s203, 1
      %s208 = smul.addr %s205, 2
      %s209 = sadd.s32 %s207, %s208
      %s210 = smul.addr %s209, 4
      %s211 = scalar_lea.vmem %s3, %s210
      %s212 = smul.u32 2, %s19
      %v214 = vld [vmem:[%s201] sm:$0xff]
      %v215 = vld [vmem:[%s201 + $0x8] sm:$0xff]
      %v216 = vld [vmem:[%s201 + $0x10] sm:$0xf]
      %v217 = vld [vmem:[%s201 + $0x14] sm:$0xff]
      %v218 = vld [vmem:[%s201 + $0x1c] sm:$0xff]
      %v219 = vld [vmem:[%s201 + $0x24] sm:$0xf]
      %v220 = vld [vmem:[%s1] sm:$0xf]
      %v221 = vld [vmem:[%s1 + $0x4] sm:$0xf]
      %v222 = vld [vmem:[%s1 + $0x8] sm:$0xf]
      %v223 = vld [vmem:[%s1 + $0xc] sm:$0xf]
      %v224 = vld [vmem:[%s1 + $0x10] sm:$0xf]
      %v225 = vld [vmem:[%s1 + $0x14] sm:$0xf]
      %v226 = vld [vmem:[%s1 + $0x18] sm:$0xf]
      %v227 = vld [vmem:[%s1 + $0x1c] sm:$0xf]
      %v228 = vld [vmem:[%s1 + $0x20] sm:$0xf]
      %v229 = vld [vmem:[%s1 + $0x24] sm:$0xf]
      %v230 = vld [vmem:[%s1 + $0x28] sm:$0xf]
      %v231 = vld [vmem:[%s1 + $0x2c] sm:$0xf]
      %v232 = vld [vmem:[%s1 + $0x30] sm:$0xf]
      %v233 = vld [vmem:[%s1 + $0x34] sm:$0xf]
      %v234 = vld [vmem:[%s1 + $0x38] sm:$0xf]
      %v235 = vld [vmem:[%s1 + $0x3c] sm:$0xf]
      %v236 = vld [vmem:[%s1 + $0x40] sm:$0xf]
      %v237 = vld [vmem:[%s1 + $0x44] sm:$0xf]
      %v238 = vld [vmem:[%s1 + $0x48] sm:$0xf]
      %v239 = vld [vmem:[%s1 + $0x4c] sm:$0xf]
      %v240 = vld [vmem:[%s1 + $0x50] sm:$0xf]
      %v241 = vld [vmem:[%s1 + $0x54] sm:$0xf]
      %v242 = vld [vmem:[%s1 + $0x58] sm:$0xf]
      %v243 = vld [vmem:[%s1 + $0x5c] sm:$0xf]
      %v244 = vld [vmem:[%s1 + $0x60] sm:$0xf]
      %v245 = vld [vmem:[%s1 + $0x64] sm:$0xf]
      %v246 = vld [vmem:[%s1 + $0x68] sm:$0xf]
      %v247 = vld [vmem:[%s1 + $0x6c] sm:$0xf]
      %v248 = vld [vmem:[%s1 + $0x70] sm:$0xf]
      %v249 = vld [vmem:[%s1 + $0x74] sm:$0xf]
      %v250 = vld [vmem:[%s1 + $0x78] sm:$0xf]
      %v251 = vld [vmem:[%s1 + $0x7c] sm:$0xf]
      %v252 = vld [vmem:[%s1 + $0x80] sm:$0xf]
      %v253 = vld [vmem:[%s1 + $0x84] sm:$0xf]
      %v254 = vld [vmem:[%s1 + $0x88] sm:$0xf]
      %v255 = vld [vmem:[%s1 + $0x8c] sm:$0xf]
      %v256 = vld [vmem:[%s1 + $0x90] sm:$0xf]
      %v257 = vld [vmem:[%s1 + $0x94] sm:$0xf]
      %v258 = vld [vmem:[%s1 + $0x98] sm:$0xf]
      %v259 = vld [vmem:[%s1 + $0x9c] sm:$0xf]
      %v260 = vld [vmem:[%s1 + $0xa0] sm:$0xf]
      %v261 = vld [vmem:[%s1 + $0xa4] sm:$0xf]
      %v262 = vld [vmem:[%s1 + $0xa8] sm:$0xf]
      %v263 = vld [vmem:[%s1 + $0xac] sm:$0xf]
      %v264 = vld [vmem:[%s1 + $0xb0] sm:$0xf]
      %v265 = vld [vmem:[%s1 + $0xb4] sm:$0xf]
      %v266 = vld [vmem:[%s1 + $0xb8] sm:$0xf]
      %v267 = vld [vmem:[%s1 + $0xbc] sm:$0xf]
      %v268 = vld [vmem:[%s1 + $0xc0] sm:$0xf]
      %v269 = vld [vmem:[%s1 + $0xc4] sm:$0xf]
      %v270 = vld [vmem:[%s1 + $0xc8] sm:$0xf]
      %v271 = vld [vmem:[%s1 + $0xcc] sm:$0xf]
      %v272 = vld [vmem:[%s1 + $0xd0] sm:$0xf]
      %v273 = vld [vmem:[%s1 + $0xd4] sm:$0xf]
      %v274 = vld [vmem:[%s1 + $0xd8] sm:$0xf]
      %v275 = vld [vmem:[%s1 + $0xdc] sm:$0xf]
      %v276 = vld [vmem:[%s1 + $0xe0] sm:$0xf]
      %v277 = vld [vmem:[%s1 + $0xe4] sm:$0xf]
      %v278 = vld [vmem:[%s1 + $0xe8] sm:$0xf]
      %v279 = vld [vmem:[%s1 + $0xec] sm:$0xf]
      %v280 = vld [vmem:[%s1 + $0xf0] sm:$0xf]
      %v281 = vld [vmem:[%s1 + $0xf4] sm:$0xf]
      %v282 = vld [vmem:[%s1 + $0xf8] sm:$0xf]
      %v283 = vld [vmem:[%s1 + $0xfc] sm:$0xf]
      %v284 = vld [vmem:[%s1 + $0x100] sm:$0xf]
      %v285 = vld [vmem:[%s1 + $0x104] sm:$0xf]
      %v286 = vld [vmem:[%s1 + $0x108] sm:$0xf]
      %v287 = vld [vmem:[%s1 + $0x10c] sm:$0xf]
      %v288 = vld [vmem:[%s1 + $0x110] sm:$0xf]
      %v289 = vld [vmem:[%s1 + $0x114] sm:$0xf]
      %v290 = vld [vmem:[%s1 + $0x118] sm:$0xf]
      %v291 = vld [vmem:[%s1 + $0x11c] sm:$0xf]
      %v292 = vld [vmem:[%s2] sm:$0x1]
      %v294 = vlaneseq
      %v295 = vshrl.u32 %v294, 7
      %v296 = vsub.s32 0, %v295
      %v297 = vrot.slane %v292, %v296
      %v305 = vunpack.c.l.b16 %v214
      %v306 = vunpack.c.h.b16 %v214
      %v307 = vunpack.c.l.b16 %v215
      %v308 = vunpack.c.h.b16 %v215
      %v309 = vunpack.c.l.b16 %v216
      %v310 = vunpack.c.l.b16 %v217
      %v311 = vunpack.c.h.b16 %v217
      %v312 = vunpack.c.l.b16 %v218
      %v313 = vunpack.c.h.b16 %v218
      %v314 = vunpack.c.l.b16 %v219
      %v315 = vpack.c.b16 %v310, %v305
      %v316 = vpack.c.b16 %v311, %v306
      %v317 = vpack.c.b16 %v312, %v307
      %v318 = vpack.c.b16 %v313, %v308
      %v319 = vpack.c.b16 %v314, %v309
      %v396 = vunpack.c.l.b16 %v220
      %v397 = vunpack.c.l.b16 %v221
      %v398 = vunpack.c.l.b16 %v222
      %v399 = vunpack.c.l.b16 %v223
      %v400 = vunpack.c.l.b16 %v224
      %v401 = vunpack.c.l.b16 %v225
      %v402 = vunpack.c.l.b16 %v226
      %v403 = vunpack.c.l.b16 %v227
      %v404 = vunpack.c.l.b16 %v228
      %v405 = vunpack.c.l.b16 %v229
      %v406 = vunpack.c.l.b16 %v230
      %v407 = vunpack.c.l.b16 %v231
      %v408 = vunpack.c.l.b16 %v232
      %v409 = vunpack.c.l.b16 %v233
      %v410 = vunpack.c.l.b16 %v234
      %v411 = vunpack.c.l.b16 %v235
      %v412 = vunpack.c.l.b16 %v236
      %v413 = vunpack.c.l.b16 %v237
      %v414 = vunpack.c.l.b16 %v238
      %v415 = vunpack.c.l.b16 %v239
      %v416 = vunpack.c.l.b16 %v240
      %v417 = vunpack.c.l.b16 %v241
      %v418 = vunpack.c.l.b16 %v242
      %v419 = vunpack.c.l.b16 %v243
      %v420 = vunpack.c.l.b16 %v244
      %v421 = vunpack.c.l.b16 %v245
      %v422 = vunpack.c.l.b16 %v246
      %v423 = vunpack.c.l.b16 %v247
      %v424 = vunpack.c.l.b16 %v248
      %v425 = vunpack.c.l.b16 %v249
      %v426 = vunpack.c.l.b16 %v250
      %v427 = vunpack.c.l.b16 %v251
      %v428 = vunpack.c.l.b16 %v252
      %v429 = vunpack.c.l.b16 %v253
      %v430 = vunpack.c.l.b16 %v254
      %v431 = vunpack.c.l.b16 %v255
      %v432 = vunpack.c.l.b16 %v256
      %v433 = vunpack.c.l.b16 %v257
      %v434 = vunpack.c.l.b16 %v258
      %v435 = vunpack.c.l.b16 %v259
      %v436 = vunpack.c.l.b16 %v260
      %v437 = vunpack.c.l.b16 %v261
      %v438 = vunpack.c.l.b16 %v262
      %v439 = vunpack.c.l.b16 %v263
      %v440 = vunpack.c.l.b16 %v264
      %v441 = vunpack.c.l.b16 %v265
      %v442 = vunpack.c.l.b16 %v266
      %v443 = vunpack.c.l.b16 %v267
      %v444 = vunpack.c.l.b16 %v268
      %v445 = vunpack.c.l.b16 %v269
      %v446 = vunpack.c.l.b16 %v270
      %v447 = vunpack.c.l.b16 %v271
      %v448 = vunpack.c.l.b16 %v272
      %v449 = vunpack.c.l.b16 %v273
      %v450 = vunpack.c.l.b16 %v274
      %v451 = vunpack.c.l.b16 %v275
      %v452 = vunpack.c.l.b16 %v276
      %v453 = vunpack.c.l.b16 %v277
      %v454 = vunpack.c.l.b16 %v278
      %v455 = vunpack.c.l.b16 %v279
      %v456 = vunpack.c.l.b16 %v280
      %v457 = vunpack.c.l.b16 %v281
      %v458 = vunpack.c.l.b16 %v282
      %v459 = vunpack.c.l.b16 %v283
      %v460 = vunpack.c.l.b16 %v284
      %v461 = vunpack.c.l.b16 %v285
      %v462 = vunpack.c.l.b16 %v286
      %v463 = vunpack.c.l.b16 %v287
      %v464 = vunpack.c.l.b16 %v288
      %v465 = vunpack.c.l.b16 %v289
      %v466 = vunpack.c.l.b16 %v290
      %v467 = vunpack.c.l.b16 %v291
      %v468 = vpack.c.b16 %v397, %v396
      %v469 = vpack.c.b16 %v399, %v398
      %v470 = vpack.c.b16 %v401, %v400
      %v471 = vpack.c.b16 %v403, %v402
      %v472 = vpack.c.b16 %v405, %v404
      %v473 = vpack.c.b16 %v407, %v406
      %v474 = vpack.c.b16 %v409, %v408
      %v475 = vpack.c.b16 %v411, %v410
      %v476 = vpack.c.b16 %v413, %v412
      %v477 = vpack.c.b16 %v415, %v414
      %v478 = vpack.c.b16 %v417, %v416
      %v479 = vpack.c.b16 %v419, %v418
      %v480 = vpack.c.b16 %v421, %v420
      %v481 = vpack.c.b16 %v423, %v422
      %v482 = vpack.c.b16 %v425, %v424
      %v483 = vpack.c.b16 %v427, %v426
      %v484 = vpack.c.b16 %v429, %v428
      %v485 = vpack.c.b16 %v431, %v430
      %v486 = vpack.c.b16 %v433, %v432
      %v487 = vpack.c.b16 %v435, %v434
      %v488 = vpack.c.b16 %v437, %v436
      %v489 = vpack.c.b16 %v439, %v438
      %v490 = vpack.c.b16 %v441, %v440
      %v491 = vpack.c.b16 %v443, %v442
      %v492 = vpack.c.b16 %v445, %v444
      %v493 = vpack.c.b16 %v447, %v446
      %v494 = vpack.c.b16 %v449, %v448
      %v495 = vpack.c.b16 %v451, %v450
      %v496 = vpack.c.b16 %v453, %v452
      %v497 = vpack.c.b16 %v455, %v454
      %v498 = vpack.c.b16 %v457, %v456
      %v499 = vpack.c.b16 %v459, %v458
      %v500 = vpack.c.b16 %v461, %v460
      %v501 = vpack.c.b16 %v463, %v462
      %v502 = vpack.c.b16 %v465, %v464
      %v503 = vpack.c.b16 %v467, %v466
      %vm540 = vcmask 523264
      %v542 = vsel %vm540, %v319, 0
      %544 = vmatprep.subr.bf16.mxu0 0
      %545 = vmatpush1.bf16.msra.mxu0 %v468
      %546 = vmatprep.subr.bf16.mxu0 0
      %547 = vmatpush1.bf16.msra.mxu0 %v469
      %548 = vmatprep.subr.bf16.mxu0 0
      %549 = vmatpush1.bf16.msra.mxu0 %v470
      %550 = vmatprep.subr.bf16.mxu0 0
      %551 = vmatpush1.bf16.msra.mxu0 %v471
      %552 = vmatprep.subr.bf16.mxu0 0
      %553 = vmatpush1.bf16.msra.mxu0 %v472
      %554 = vmatprep.subr.bf16.mxu0 0
      %555 = vmatpush1.bf16.msra.mxu0 %v473
      %556 = vmatprep.subr.bf16.mxu0 0
      %557 = vmatpush1.bf16.msra.mxu0 %v474
      %558 = vmatprep.subr.bf16.mxu0 0
      %559 = vmatpush1.bf16.msra.mxu0 %v475
      %560 = vmatprep.subr.bf16.mxu0 0
      %561 = vmatpush1.bf16.msra.mxu0 %v476
      %562 = vmatprep.subr.bf16.mxu0 0
      %563 = vmatpush1.bf16.msra.mxu0 %v477
      %564 = vmatprep.subr.bf16.mxu0 0
      %565 = vmatpush1.bf16.msra.mxu0 %v478
      %566 = vmatprep.subr.bf16.mxu0 0
      %567 = vmatpush1.bf16.msra.mxu0 %v479
      %568 = vmatprep.subr.bf16.mxu0 0
      %569 = vmatpush1.bf16.msra.mxu0 %v480
      %570 = vmatprep.subr.bf16.mxu0 0
      %571 = vmatpush1.bf16.msra.mxu0 %v481
      %572 = vmatprep.subr.bf16.mxu0 0
      %573 = vmatpush1.bf16.msra.mxu0 %v482
      %574 = vmatprep.subr.bf16.mxu0 0
      %575 = vmatpush1.bf16.msra.mxu0 %v483
      %576 = vmatprep.mubr.bf16.mxu0 %v316
      %577 = vmatmul.mubr.bf16.gmra.mrb[0].mxu0 %v315
      %v578 = vpop.f32.mrb[0].mxu0
      %v579 = vadd.f32 %v297, %v578
      %v580 = vpop.f32.mrb[0].mxu0
      %v581 = vpop.f32.mrb[0].mxu0
      %v582 = vadd.f32 %v297, %v581
      %v583 = vpop.f32.mrb[0].mxu0
      %584 = vdwg.mxu0
      %585 = vmatprep.subr.bf16.mxu0 0
      %586 = vmatpush1.bf16.msra.mxu0 %v484
      %587 = vmatprep.subr.bf16.mxu0 0
      %588 = vmatpush1.bf16.msra.mxu0 %v485
      %589 = vmatprep.subr.bf16.mxu0 0
      %590 = vmatpush1.bf16.msra.mxu0 %v486
      %591 = vmatprep.subr.bf16.mxu0 0
      %592 = vmatpush1.bf16.msra.mxu0 %v487
      %593 = vmatprep.subr.bf16.mxu0 0
      %594 = vmatpush1.bf16.msra.mxu0 %v488
      %595 = vmatprep.subr.bf16.mxu0 0
      %596 = vmatpush1.bf16.msra.mxu0 %v489
      %597 = vmatprep.subr.bf16.mxu0 0
      %598 = vmatpush1.bf16.msra.mxu0 %v490
      %599 = vmatprep.subr.bf16.mxu0 0
      %600 = vmatpush1.bf16.msra.mxu0 %v491
      %601 = vmatprep.subr.bf16.mxu0 0
      %602 = vmatpush1.bf16.msra.mxu0 %v492
      %603 = vmatprep.subr.bf16.mxu0 0
      %604 = vmatpush1.bf16.msra.mxu0 %v493
      %605 = vmatprep.subr.bf16.mxu0 0
      %606 = vmatpush1.bf16.msra.mxu0 %v494
      %607 = vmatprep.subr.bf16.mxu0 0
      %608 = vmatpush1.bf16.msra.mxu0 %v495
      %609 = vmatprep.subr.bf16.mxu0 0
      %610 = vmatpush1.bf16.msra.mxu0 %v496
      %611 = vmatprep.subr.bf16.mxu0 0
      %612 = vmatpush1.bf16.msra.mxu0 %v497
      %613 = vmatprep.subr.bf16.mxu0 0
      %614 = vmatpush1.bf16.msra.mxu0 %v498
      %615 = vmatprep.subr.bf16.mxu0 0
      %616 = vmatpush1.bf16.msra.mxu0 %v499
      %617 = vmatprep.mubr.bf16.mxu0 %v318
      %618 = vmatmul.mubr.bf16.gmra.mrb[0].mxu0 %v317
      %v619 = vpop.f32.mrb[0].mxu0
      %v620 = vadd.f32 %v579, %v619
      %v621 = vpop.f32.mrb[0].mxu0
      %v622 = vpop.f32.mrb[0].mxu0
      %v623 = vadd.f32 %v582, %v622
      %v624 = vpop.f32.mrb[0].mxu0
      %625 = vdwg.mxu0
      %626 = vmatprep.subr.bf16.mxu0 0
      %627 = vmatpush1.bf16.msra.mxu0 %v500
      %628 = vmatprep.subr.bf16.mxu0 0
      %629 = vmatpush1.bf16.msra.mxu0 %v501
      %630 = vmatprep.subr.bf16.mxu0 0
      %631 = vmatpush1.bf16.msra.mxu0 %v502
      %632 = vmatprep.subr.bf16.mxu0 0
      %633 = vmatpush1.bf16.msra.mxu0 %v503
      %634 = vmatprep.subr.bf16.mxu0 0
      %635 = vmatpush1.bf16.msra.mxu0 0
      %636 = vmatprep.subr.bf16.mxu0 0
      %637 = vmatpush1.bf16.msra.mxu0 0
      %638 = vmatprep.subr.bf16.mxu0 0
      %639 = vmatpush1.bf16.msra.mxu0 0
      %640 = vmatprep.subr.bf16.mxu0 0
      %641 = vmatpush1.bf16.msra.mxu0 0
      %642 = vmatprep.subr.bf16.mxu0 0
      %643 = vmatpush1.bf16.msra.mxu0 0
      %644 = vmatprep.subr.bf16.mxu0 0
      %645 = vmatpush1.bf16.msra.mxu0 0
      %646 = vmatprep.subr.bf16.mxu0 0
      %647 = vmatpush1.bf16.msra.mxu0 0
      %648 = vmatprep.subr.bf16.mxu0 0
      %649 = vmatpush1.bf16.msra.mxu0 0
      %650 = vmatprep.subr.bf16.mxu0 0
      %651 = vmatpush1.bf16.msra.mxu0 0
      %652 = vmatprep.subr.bf16.mxu0 0
      %653 = vmatpush1.bf16.msra.mxu0 0
      %654 = vmatprep.subr.bf16.mxu0 0
      %655 = vmatpush1.bf16.msra.mxu0 0
      %656 = vmatprep.subr.bf16.mxu0 0
      %657 = vmatpush1.bf16.msra.mxu0 0
      %658 = vmatprep.mubr.bf16.mxu0 0
      %659 = vmatmul.mubr.bf16.gmra.mrb[0].mxu0 %v542
      %v660 = vpop.f32.mrb[0].mxu0
      %v661 = vadd.f32 %v620, %v660
      %v662 = vpop.f32.mrb[0].mxu0
      %v663 = vpop.f32.mrb[0].mxu0
      %v664 = vadd.f32 %v623, %v663
      %v665 = vpop.f32.mrb[0].mxu0
      %666 = vdwg.mxu0
      %v667 = vsel %vm540, %v661, 0.0
      %v668 = vsel %vm540, %v664, 0.0
      %v669 = vadd.f32 %v667, %v668
      %v670 = vrot.slane %v669, 4
      %v671 = vadd.f32 %v669, %v670
      %v672 = vrot.slane %v671, 2
      %v673 = vadd.f32 %v671, %v672
      %v674 = vrot.slane %v673, 1
      %v675 = vadd.f32 %v673, %v674
      %v676 = vmul.f32 %v675, 0.0625
      %v677 = vsub.f32 %v661, %v676
      %v678 = vsub.f32 %v664, %v676
      %v679 = vmul.f32 %v677, %v677
      %v680 = vmul.f32 %v678, %v678
      %v681 = vsel %vm540, %v679, 0.0
      %v682 = vsel %vm540, %v680, 0.0
      %v683 = vadd.f32 %v681, %v682
      %v684 = vrot.slane %v683, 4
      %v685 = vadd.f32 %v683, %v684
      %v686 = vrot.slane %v685, 2
      %v687 = vadd.f32 %v685, %v686
      %v688 = vrot.slane %v687, 1
      %v689 = vadd.f32 %v687, %v688
      %v690 = vmul.f32 %v689, 0.0625
      %v691 = vadd.f32 %v690, 1e-05
      %v692 = vrsqrt.pop %v691
      %v693 = vmul.f32 %v677, %v692
      %v694 = vmul.f32 %v678, %v692
      %v695 = vmax.f32 %v693, 0.0
      %v696 = vmax.f32 %v694, 0.0
      %v697 = vpack.c.bf16 %v696, %v695
      %v699 = vunpack.c.l.b16 %v697
      %v700 = vunpack.c.h.b16 %v697
      %v701 = vpack.c.b16 %v699, %v699
      %v702 = vpack.c.b16 %v700, %v700
      %vm705 = vcmask 519168
      %706 = vst.msk [vmem:[%s211] sm:$0xf] %vm705, %v701
      %707 = vst.msk [vmem:[%s211 + $0x4] sm:$0xf] %vm705, %v702
      %s708 = smul.u32 2, %s19
      %p709 = scmp.lt.s32.totalorder %s18, 1
      %s710 = scalar_select %p709, %s18, 1
      %p711 = scmp.lt.s32.totalorder %s708, 1
      %s712 = scalar_select %p711, %s708, 1
      %s713 = smul.addr %s710, 2
      %s714 = sadd.s32 %s712, %s713
      %s715 = smul.addr %s714, 4
      %s716 = scalar_lea.vmem %s3, %s715
      // Predicated region
      $region33: #{styleless_gen_forward.19} parent=31 // pred_check
        %p717 = pneg %p116
      $region34: #{styleless_gen_forward.19} parent=31 // pred_check_branch
        %719 = sbr.rel (%p717) target = $region36
      $region35: #{styleless_gen_forward.19} parent=31 // pred_region
        %s720 = smul.u32 2, %s19
      $region36: #{styleless_gen_forward.19} parent=31 // pred_fallthru
        _
    $region32: #{styleless_gen_forward.19} parent=5 // pred_fallthru
      _
    %p721 = scmp.le.s32.totalorder 2, %s9
    // Predicated region
    $region37: #{styleless_gen_forward.19} parent=5 // pred_check
      %p722 = pneg %p721
    $region38: #{styleless_gen_forward.19} parent=5 // pred_check_branch
      %724 = sbr.rel (%p722) target = $region40
    $region39: #{styleless_gen_forward.19} parent=5 // pred_region
      %s725 = ssub.s32 %s9, 2
      // Predicated region
      $region41: #{styleless_gen_forward.19} parent=39 // pred_check
        %p726 = pneg %p122
      $region42: #{styleless_gen_forward.19} parent=39 // pred_check_branch
        %728 = sbr.rel (%p726) target = $region44
      $region43: #{styleless_gen_forward.19} parent=39 // pred_region
        %s729 = smul.u32 2, %s21
        %p730 = scmp.lt.s32.totalorder %s20, 1
        %s731 = scalar_select %p730, %s20, 1
        %p732 = scmp.lt.s32.totalorder %s729, 1
        %s733 = scalar_select %p732, %s729, 1
        %s734 = smul.addr %s731, 2
        %s735 = sadd.s32 %s733, %s734
        %s736 = smul.addr %s735, 4
        %s737 = scalar_lea.vmem %s3, %s736
      $region44: #{styleless_gen_forward.19} parent=39 // pred_fallthru
        _
    $region40: #{styleless_gen_forward.19} parent=5 // pred_fallthru
      _
  $region6: #{styleless_gen_forward.19} parent=0 // loop_footer
    %s13 = sadd.s32 1, %s9
  $region7: #{styleless_gen_forward.19} parent=0 // loop_footer_branch
    %8 = sbr.rel target = $region3
  $region8: #{styleless_gen_forward.19} parent=0 // loop_exit
    _

// kernel: styleless_gen_forward.20
$region0: #{styleless_gen_forward.20}
  #allocation0 [shape = 'u32[]', space=smem, size = 0x4, offset = 0x4, fixed_abs, tag = 'smem constant byte address 0x4 - core index']
  #allocation1 [shape = 'u32[144,128]{1,0:T(1,128)}', space=vmem, size = 0x12000, scoped, tag = 'internal scratch']
  %s0 = inlined_call_operand.vmem [shape: bf16[2,16,576], index: 0, kind: input, shape index: {}]
  %s1 = inlined_call_operand.vmem [shape: bf16[576,64], index: 1, kind: input, shape index: {}]
  %s2 = inlined_call_operand.vmem [shape: f32[1,64], index: 2, kind: input, shape index: {}]
  %s3 = inlined_call_operand.vmem [shape: bf16[2,16,64], index: 3, kind: input, shape index: {}]
  %s4 = inlined_call_operand.vmem [shape: bf16[2,16,64], index: 4, kind: output, shape index: {}]
  %s5 = sld [smem:[#allocation0]]
  $region49: #{styleless_gen_forward.20} parent=0
    _
  %s7 = ssub.s32 1, %s5
  %s8 = scalar_select 0, %s7, %s5
  loop: start=0, step=1, limit=4
  $region2: #{styleless_gen_forward.20} parent=0 // loop_pre_header
    _
  $region3: #{styleless_gen_forward.20} parent=0 // loop_header
    %s10 = sphi 0, %s14
    %p11 = scmp.ge.s32.totalorder %s10, 4
    %s17 = sphi 0, %s29
    %s18 = sphi 0, %s25
    %s19 = sphi 0, %s17
    %s20 = sphi 0, %s18
    %s21 = sphi 0, %s19
    %s22 = sphi 0, %s20
    %s34 = sphi 0, %s36
    %s37 = sphi 0, %s34
    %s38 = sphi 0, %s37
    %s54 = sphi 0, %s38
    %s58 = sphi 0, %s58
    %s60 = sphi 0, %s58
    %s61 = sphi 0, %s60
    %s75 = sphi 0, %s61
    %s79 = sphi 0, %s79
    %s81 = sphi 0, %s79
    %s82 = sphi 0, %s81
    %s96 = sphi 0, %s82
    %s104 = sphi 0, %s106
    %s107 = sphi 0, %s104
    %s108 = sphi 0, %s107
    %s124 = sphi 0, %s108
    %s132 = sphi 0, %s134
    %s135 = sphi 0, %s132
    %s136 = sphi 0, %s135
    %s152 = sphi 0, %s136
  $region4: #{styleless_gen_forward.20} parent=0 // loop_header_branch
    %13 = sbr.rel (%p11) target = $region8
  $region5: #{styleless_gen_forward.20} parent=0 // loop_body
    %s15 = ssub.s32 %s10, 1
    %s16 = ssub.s32 %s10, 2
    %s23 = sadd.s32 1, %s18
    %p24 = scmp.ge.s32.totalorder %s23, 1
    %s25 = scalar_select %p24, 0, %s23
    %s26 = sadd.s32 1, %s17
    %s27 = scalar_select %p24, %s26, %s17
    %p28 = scmp.ge.s32.totalorder %s27, 2
    %s29 = scalar_select %p28, 0, %s27
    %s30 = ssub.s32 %s17, %s29
    %s31 = ssub.s32 %s18, %s25
    %s32 = sor.u32 %s30, %s31
    %p33 = scmp.eq.s32.totalorder %s32, 0
    %s35 = sadd.s32 %s34, 1
    %s36 = scalar_select %p33, %s34, %s35
    %p39 = pneg %p33
    %p40 = scmp.eq.s32.totalorder %s10, 1
    %p41 = por %p39, %p40
    %p42 = scmp.ne.s32.totalorder %s34, %s37
    %p43 = scmp.eq.s32.totalorder %s10, 0
    %p44 = por %p42, %p43
    %p45 = scmp.ne.s32.totalorder %s34, %s37
    %p46 = scmp.eq.s32.totalorder %s15, 1
    %p47 = por %p45, %p46
    %p48 = scmp.ne.s32.totalorder %s37, %s38
    %p49 = scmp.eq.s32.totalorder %s15, 0
    %p50 = por %p48, %p49
    %p51 = scmp.ne.s32.totalorder %s37, %s38
    %p52 = scmp.eq.s32.totalorder %s16, 1
    %p53 = por %p51, %p52
    %p55 = scmp.ne.s32.totalorder %s38, %s54
    %p56 = scmp.eq.s32.totalorder %s16, 0
    %p57 = por %p55, %p56
    %s59 = sadd.s32 %s58, 1
    %p62 = scmp.eq.s32.totalorder %s10, 1
    %p63 = scmp.ne.s32.totalorder %s58, %s60
    %p64 = scmp.eq.s32.totalorder %s10, 0
    %p65 = por %p63, %p64
    %p66 = scmp.ne.s32.totalorder %s58, %s60
    %p67 = scmp.eq.s32.totalorder %s15, 1
    %p68 = por %p66, %p67
    %p69 = scmp.ne.s32.totalorder %s60, %s61
    %p70 = scmp.eq.s32.totalorder %s15, 0
    %p71 = por %p69, %p70
    %p72 = scmp.ne.s32.totalorder %s60, %s61
    %p73 = scmp.eq.s32.totalorder %s16, 1
    %p74 = por %p72, %p73
    %p76 = scmp.ne.s32.totalorder %s61, %s75
    %p77 = scmp.eq.s32.totalorder %s16, 0
    %p78 = por %p76, %p77
    %s80 = sadd.s32 %s79, 1
    %p83 = scmp.eq.s32.totalorder %s10, 1
    %p84 = scmp.ne.s32.totalorder %s79, %s81
    %p85 = scmp.eq.s32.totalorder %s10, 0
    %p86 = por %p84, %p85
    %p87 = scmp.ne.s32.totalorder %s79, %s81
    %p88 = scmp.eq.s32.totalorder %s15, 1
    %p89 = por %p87, %p88
    %p90 = scmp.ne.s32.totalorder %s81, %s82
    %p91 = scmp.eq.s32.totalorder %s15, 0
    %p92 = por %p90, %p91
    %p93 = scmp.ne.s32.totalorder %s81, %s82
    %p94 = scmp.eq.s32.totalorder %s16, 1
    %p95 = por %p93, %p94
    %p97 = scmp.ne.s32.totalorder %s82, %s96
    %p98 = scmp.eq.s32.totalorder %s16, 0
    %p99 = por %p97, %p98
    %s100 = ssub.s32 %s17, %s29
    %s101 = ssub.s32 %s18, %s25
    %s102 = sor.u32 %s100, %s101
    %p103 = scmp.eq.s32.totalorder %s102, 0
    %s105 = sadd.s32 %s104, 1
    %s106 = scalar_select %p103, %s104, %s105
    %p109 = pneg %p103
    %p110 = scmp.eq.s32.totalorder %s10, 1
    %p111 = por %p109, %p110
    %p112 = scmp.ne.s32.totalorder %s104, %s107
    %p113 = scmp.eq.s32.totalorder %s10, 0
    %p114 = por %p112, %p113
    %p115 = scmp.ne.s32.totalorder %s104, %s107
    %p116 = scmp.eq.s32.totalorder %s15, 1
    %p117 = por %p115, %p116
    %p118 = scmp.ne.s32.totalorder %s107, %s108
    %p119 = scmp.eq.s32.totalorder %s15, 0
    %p120 = por %p118, %p119
    %p121 = scmp.ne.s32.totalorder %s107, %s108
    %p122 = scmp.eq.s32.totalorder %s16, 1
    %p123 = por %p121, %p122
    %p125 = scmp.ne.s32.totalorder %s108, %s124
    %p126 = scmp.eq.s32.totalorder %s16, 0
    %p127 = por %p125, %p126
    %s128 = ssub.s32 %s17, %s29
    %s129 = ssub.s32 %s18, %s25
    %s130 = sor.u32 %s128, %s129
    %p131 = scmp.eq.s32.totalorder %s130, 0
    %s133 = sadd.s32 %s132, 1
    %s134 = scalar_select %p131, %s132, %s133
    %p137 = pneg %p131
    %p138 = scmp.eq.s32.totalorder %s10, 1
    %p139 = por %p137, %p138
    %p140 = scmp.ne.s32.totalorder %s132, %s135
    %p141 = scmp.eq.s32.totalorder %s10, 0
    %p142 = por %p140, %p141
    %p143 = scmp.ne.s32.totalorder %s132, %s135
    %p144 = scmp.eq.s32.totalorder %s15, 1
    %p145 = por %p143, %p144
    %p146 = scmp.ne.s32.totalorder %s135, %s136
    %p147 = scmp.eq.s32.totalorder %s15, 0
    %p148 = por %p146, %p147
    %p149 = scmp.ne.s32.totalorder %s135, %s136
    %p150 = scmp.eq.s32.totalorder %s16, 1
    %p151 = por %p149, %p150
    %p153 = scmp.ne.s32.totalorder %s136, %s152
    %p154 = scmp.eq.s32.totalorder %s16, 0
    %p155 = por %p153, %p154
    %p156 = scmp.le.s32.totalorder 1, %s10
    %p157 = scmp.lt.s32.totalorder %s10, 3
    %p158 = pnand %p156, %p157
    %p159 = pneg %p158
    // Predicated region
    $region9: #{styleless_gen_forward.20} parent=5 // pred_check
      _
    $region10: #{styleless_gen_forward.20} parent=5 // pred_check_branch
      %161 = sbr.rel (%p158) target = $region12
    $region11: #{styleless_gen_forward.20} parent=5 // pred_region
      %s162 = ssub.s32 %s10, 1
      // Predicated region
      $region13: #{styleless_gen_forward.20} parent=11 // pred_check
        %p163 = pneg %p71
      $region14: #{styleless_gen_forward.20} parent=11 // pred_check_branch
        %165 = sbr.rel (%p163) target = $region16
      $region15: #{styleless_gen_forward.20} parent=11 // pred_region
        _
      $region16: #{styleless_gen_forward.20} parent=11 // pred_fallthru
        _
      // Predicated region
      $region17: #{styleless_gen_forward.20} parent=11 // pred_check
        %p166 = pneg %p92
      $region18: #{styleless_gen_forward.20} parent=11 // pred_check_branch
        %168 = sbr.rel (%p166) target = $region20
      $region19: #{styleless_gen_forward.20} parent=11 // pred_region
        _
      $region20: #{styleless_gen_forward.20} parent=11 // pred_fallthru
        _
    $region12: #{styleless_gen_forward.20} parent=5 // pred_fallthru
      _
    %p169 = scmp.lt.s32.totalorder %s10, 2
    // Predicated region
    $region21: #{styleless_gen_forward.20} parent=5 // pred_check
      %p170 = pneg %p169
    $region22: #{styleless_gen_forward.20} parent=5 // pred_check_branch
      %172 = sbr.rel (%p170) target = $region24
    $region23: #{styleless_gen_forward.20} parent=5 // pred_region
      // Predicated region
      $region25: #{styleless_gen_forward.20} parent=23 // pred_check
        %p173 = pneg %p44
      $region26: #{styleless_gen_forward.20} parent=23 // pred_check_branch
        %175 = sbr.rel (%p173) target = $region28
      $region27: #{styleless_gen_forward.20} parent=23 // pred_region
        %s176 = smul.u32 2, %s18
        %p177 = scmp.lt.s32.totalorder %s17, 1
        %s178 = scalar_select %p177, %s17, 1
        %p179 = scmp.lt.s32.totalorder %s176, 1
        %s180 = scalar_select %p179, %s176, 1
        %s181 = smul.addr %s180, 5
        %s182 = smul.addr %s178, 10
        %s183 = sadd.s32 %s181, %s182
        %s184 = smul.addr %s183, 4
        %s185 = scalar_lea.vmem %s0, %s184
        %s186 = smul.u32 2, %s18
      $region28: #{styleless_gen_forward.20} parent=23 // pred_fallthru
        _
      // Predicated region
      $region29: #{styleless_gen_forward.20} parent=23 // pred_check
        %p187 = pneg %p114
      $region30: #{styleless_gen_forward.20} parent=23 // pred_check_branch
        %189 = sbr.rel (%p187) target = $region32
      $region31: #{styleless_gen_forward.20} parent=23 // pred_region
        %s190 = smul.u32 2, %s18
        %p191 = scmp.lt.s32.totalorder %s17, 1
        %s192 = scalar_select %p191, %s17, 1
        %p193 = scmp.lt.s32.totalorder %s190, 1
        %s194 = scalar_select %p193, %s190, 1
        %s195 = smul.addr %s192, 2
        %s196 = sadd.s32 %s194, %s195
        %s197 = smul.addr %s196, 4
        %s198 = scalar_lea.vmem %s3, %s197
        %s199 = smul.u32 2, %s18
      $region32: #{styleless_gen_forward.20} parent=23 // pred_fallthru
        _
    $region24: #{styleless_gen_forward.20} parent=5 // pred_fallthru
      _
    %p200 = scmp.le.s32.totalorder 1, %s10
    %p201 = scmp.lt.s32.totalorder %s10, 3
    %p202 = pnand %p200, %p201
    %p203 = pneg %p202
    // Predicated region
    $region33: #{styleless_gen_forward.20} parent=5 // pred_check
      _
    $region34: #{styleless_gen_forward.20} parent=5 // pred_check_branch
      %205 = sbr.rel (%p202) target = $region36
    $region35: #{styleless_gen_forward.20} parent=5 // pred_region
      %s206 = ssub.s32 %s10, 1
      %s207 = smul.u32 2, %s20
      %p208 = scmp.lt.s32.totalorder %s19, 1
      %s209 = scalar_select %p208, %s19, 1
      %p210 = scmp.lt.s32.totalorder %s207, 1
      %s211 = scalar_select %p210, %s207, 1
      %s212 = smul.addr %s211, 5
      %s213 = smul.addr %s209, 10
      %s214 = sadd.s32 %s212, %s213
      %s215 = smul.addr %s214, 4
      %s216 = scalar_lea.vmem %s0, %s215
      %p217 = pneg %p50
      %p218 = pneg %p47
      %p219 = pneg %p71
      %p220 = pneg %p68
      %p221 = pneg %p92
      %p222 = pneg %p89
      %s223 = smul.u32 2, %s20
      %p224 = scmp.lt.s32.totalorder %s19, 1
      %s225 = scalar_select %p224, %s19, 1
      %p226 = scmp.lt.s32.totalorder %s223, 1
      %s227 = scalar_select %p226, %s223, 1
      %s228 = smul.addr %s225, 2
      %s229 = sadd.s32 %s227, %s228
      %s230 = smul.addr %s229, 4
      %s231 = scalar_lea.vmem %s3, %s230
      %p232 = pneg %p120
      %p233 = pneg %p117
      %p234 = pneg %p148
      %p235 = pneg %p145
      %s236 = smul.u32 2, %s20
      %p237 = scmp.lt.s32.totalorder %s19, 1
      %s238 = scalar_select %p237, %s19, 1
      %p239 = scmp.lt.s32.totalorder %s236, 1
      %s240 = scalar_select %p239, %s236, 1
      %s241 = smul.addr %s238, 2
      %s242 = sadd.s32 %s240, %s241
      %s243 = smul.addr %s242, 4
      %s244 = scalar_lea.vmem %s4, %s243
      %s245 = smul.u32 2, %s20
      %p246 = scmp.lt.s32.totalorder %s19, 1
      %s247 = scalar_select %p246, %s19, 1
      %p248 = scmp.lt.s32.totalorder %s245, 1
      %s249 = scalar_select %p248, %s245, 1
      %s250 = smul.addr %s249, 5
      %s251 = smul.addr %s247, 10
      %s252 = sadd.s32 %s250, %s251
      %s253 = smul.addr %s252, 4
      %s254 = scalar_lea.vmem %s0, %s253
      %s255 = smul.u32 2, %s20
      %s256 = smul.u32 2, %s20
      %p257 = scmp.lt.s32.totalorder %s19, 1
      %s258 = scalar_select %p257, %s19, 1
      %p259 = scmp.lt.s32.totalorder %s256, 1
      %s260 = scalar_select %p259, %s256, 1
      %s261 = smul.addr %s258, 2
      %s262 = sadd.s32 %s260, %s261
      %s263 = smul.addr %s262, 4
      %s264 = scalar_lea.vmem %s3, %s263
      %s265 = smul.u32 2, %s20
      %s266 = smul.u32 2, %s20
      %p267 = scmp.lt.s32.totalorder %s19, 1
      %s268 = scalar_select %p267, %s19, 1
      %p269 = scmp.lt.s32.totalorder %s266, 1
      %s270 = scalar_select %p269, %s266, 1
      %s271 = smul.addr %s268, 2
      %s272 = sadd.s32 %s270, %s271
      %s273 = smul.addr %s272, 4
      %s274 = scalar_lea.vmem %s4, %s273
      %s275 = smul.u32 2, %s20
      %v277 = vld [vmem:[%s254] sm:$0xff]
      %v278 = vld [vmem:[%s254 + $0x8] sm:$0xff]
      %v279 = vld [vmem:[%s254 + $0x10] sm:$0xf]
      %v280 = vld [vmem:[%s254 + $0x14] sm:$0xff]
      %v281 = vld [vmem:[%s254 + $0x1c] sm:$0xff]
      %v282 = vld [vmem:[%s254 + $0x24] sm:$0xf]
      %v283 = vld [vmem:[%s1] sm:$0xf]
      %v284 = vld [vmem:[%s1 + $0x4] sm:$0xf]
      %v285 = vld [vmem:[%s1 + $0x8] sm:$0xf]
      %v286 = vld [vmem:[%s1 + $0xc] sm:$0xf]
      %v287 = vld [vmem:[%s1 + $0x10] sm:$0xf]
      %v288 = vld [vmem:[%s1 + $0x14] sm:$0xf]
      %v289 = vld [vmem:[%s1 + $0x18] sm:$0xf]
      %v290 = vld [vmem:[%s1 + $0x1c] sm:$0xf]
      %v291 = vld [vmem:[%s1 + $0x20] sm:$0xf]
      %v292 = vld [vmem:[%s1 + $0x24] sm:$0xf]
      %v293 = vld [vmem:[%s1 + $0x28] sm:$0xf]
      %v294 = vld [vmem:[%s1 + $0x2c] sm:$0xf]
      %v295 = vld [vmem:[%s1 + $0x30] sm:$0xf]
      %v296 = vld [vmem:[%s1 + $0x34] sm:$0xf]
      %v297 = vld [vmem:[%s1 + $0x38] sm:$0xf]
      %v298 = vld [vmem:[%s1 + $0x3c] sm:$0xf]
      %v299 = vld [vmem:[%s1 + $0x40] sm:$0xf]
      %v300 = vld [vmem:[%s1 + $0x44] sm:$0xf]
      %v301 = vld [vmem:[%s1 + $0x48] sm:$0xf]
      %v302 = vld [vmem:[%s1 + $0x4c] sm:$0xf]
      %v303 = vld [vmem:[%s1 + $0x50] sm:$0xf]
      %v304 = vld [vmem:[%s1 + $0x54] sm:$0xf]
      %v305 = vld [vmem:[%s1 + $0x58] sm:$0xf]
      %v306 = vld [vmem:[%s1 + $0x5c] sm:$0xf]
      %v307 = vld [vmem:[%s1 + $0x60] sm:$0xf]
      %v308 = vld [vmem:[%s1 + $0x64] sm:$0xf]
      %v309 = vld [vmem:[%s1 + $0x68] sm:$0xf]
      %v310 = vld [vmem:[%s1 + $0x6c] sm:$0xf]
      %v311 = vld [vmem:[%s1 + $0x70] sm:$0xf]
      %v312 = vld [vmem:[%s1 + $0x74] sm:$0xf]
      %v313 = vld [vmem:[%s1 + $0x78] sm:$0xf]
      %v314 = vld [vmem:[%s1 + $0x7c] sm:$0xf]
      %v315 = vld [vmem:[%s1 + $0x80] sm:$0xf]
      %v316 = vld [vmem:[%s1 + $0x84] sm:$0xf]
      %v317 = vld [vmem:[%s1 + $0x88] sm:$0xf]
      %v318 = vld [vmem:[%s1 + $0x8c] sm:$0xf]
      %v319 = vld [vmem:[%s1 + $0x90] sm:$0xf]
      %v320 = vld [vmem:[%s1 + $0x94] sm:$0xf]
      %v321 = vld [vmem:[%s1 + $0x98] sm:$0xf]
      %v322 = vld [vmem:[%s1 + $0x9c] sm:$0xf]
      %v323 = vld [vmem:[%s1 + $0xa0] sm:$0xf]
      %v324 = vld [vmem:[%s1 + $0xa4] sm:$0xf]
      %v325 = vld [vmem:[%s1 + $0xa8] sm:$0xf]
      %v326 = vld [vmem:[%s1 + $0xac] sm:$0xf]
      %v327 = vld [vmem:[%s1 + $0xb0] sm:$0xf]
      %v328 = vld [vmem:[%s1 + $0xb4] sm:$0xf]
      %v329 = vld [vmem:[%s1 + $0xb8] sm:$0xf]
      %v330 = vld [vmem:[%s1 + $0xbc] sm:$0xf]
      %v331 = vld [vmem:[%s1 + $0xc0] sm:$0xf]
      %v332 = vld [vmem:[%s1 + $0xc4] sm:$0xf]
      %v333 = vld [vmem:[%s1 + $0xc8] sm:$0xf]
      %v334 = vld [vmem:[%s1 + $0xcc] sm:$0xf]
      %v335 = vld [vmem:[%s1 + $0xd0] sm:$0xf]
      %v336 = vld [vmem:[%s1 + $0xd4] sm:$0xf]
      %v337 = vld [vmem:[%s1 + $0xd8] sm:$0xf]
      %v338 = vld [vmem:[%s1 + $0xdc] sm:$0xf]
      %v339 = vld [vmem:[%s1 + $0xe0] sm:$0xf]
      %v340 = vld [vmem:[%s1 + $0xe4] sm:$0xf]
      %v341 = vld [vmem:[%s1 + $0xe8] sm:$0xf]
      %v342 = vld [vmem:[%s1 + $0xec] sm:$0xf]
      %v343 = vld [vmem:[%s1 + $0xf0] sm:$0xf]
      %v344 = vld [vmem:[%s1 + $0xf4] sm:$0xf]
      %v345 = vld [vmem:[%s1 + $0xf8] sm:$0xf]
      %v346 = vld [vmem:[%s1 + $0xfc] sm:$0xf]
      %v347 = vld [vmem:[%s1 + $0x100] sm:$0xf]
      %v348 = vld [vmem:[%s1 + $0x104] sm:$0xf]
      %v349 = vld [vmem:[%s1 + $0x108] sm:$0xf]
      %v350 = vld [vmem:[%s1 + $0x10c] sm:$0xf]
      %v351 = vld [vmem:[%s1 + $0x110] sm:$0xf]
      %v352 = vld [vmem:[%s1 + $0x114] sm:$0xf]
      %v353 = vld [vmem:[%s1 + $0x118] sm:$0xf]
      %v354 = vld [vmem:[%s1 + $0x11c] sm:$0xf]
      %v355 = vld [vmem:[%s2] sm:$0x1]
      %v357 = vlaneseq
      %v358 = vshrl.u32 %v357, 7
      %v359 = vsub.s32 0, %v358
      %v360 = vrot.slane %v355, %v359
      %v368 = vunpack.c.l.b16 %v277
      %v369 = vunpack.c.h.b16 %v277
      %v370 = vunpack.c.l.b16 %v278
      %v371 = vunpack.c.h.b16 %v278
      %v372 = vunpack.c.l.b16 %v279
      %v373 = vunpack.c.l.b16 %v280
      %v374 = vunpack.c.h.b16 %v280
      %v375 = vunpack.c.l.b16 %v281
      %v376 = vunpack.c.h.b16 %v281
      %v377 = vunpack.c.l.b16 %v282
      %v378 = vpack.c.b16 %v373, %v368
      %v379 = vpack.c.b16 %v374, %v369
      %v380 = vpack.c.b16 %v375, %v370
      %v381 = vpack.c.b16 %v376, %v371
      %v382 = vpack.c.b16 %v377, %v372
      %v459 = vunpack.c.l.b16 %v283
      %v460 = vunpack.c.l.b16 %v284
      %v461 = vunpack.c.l.b16 %v285
      %v462 = vunpack.c.l.b16 %v286
      %v463 = vunpack.c.l.b16 %v287
      %v464 = vunpack.c.l.b16 %v288
      %v465 = vunpack.c.l.b16 %v289
      %v466 = vunpack.c.l.b16 %v290
      %v467 = vunpack.c.l.b16 %v291
      %v468 = vunpack.c.l.b16 %v292
      %v469 = vunpack.c.l.b16 %v293
      %v470 = vunpack.c.l.b16 %v294
      %v471 = vunpack.c.l.b16 %v295
      %v472 = vunpack.c.l.b16 %v296
      %v473 = vunpack.c.l.b16 %v297
      %v474 = vunpack.c.l.b16 %v298
      %v475 = vunpack.c.l.b16 %v299
      %v476 = vunpack.c.l.b16 %v300
      %v477 = vunpack.c.l.b16 %v301
      %v478 = vunpack.c.l.b16 %v302
      %v479 = vunpack.c.l.b16 %v303
      %v480 = vunpack.c.l.b16 %v304
      %v481 = vunpack.c.l.b16 %v305
      %v482 = vunpack.c.l.b16 %v306
      %v483 = vunpack.c.l.b16 %v307
      %v484 = vunpack.c.l.b16 %v308
      %v485 = vunpack.c.l.b16 %v309
      %v486 = vunpack.c.l.b16 %v310
      %v487 = vunpack.c.l.b16 %v311
      %v488 = vunpack.c.l.b16 %v312
      %v489 = vunpack.c.l.b16 %v313
      %v490 = vunpack.c.l.b16 %v314
      %v491 = vunpack.c.l.b16 %v315
      %v492 = vunpack.c.l.b16 %v316
      %v493 = vunpack.c.l.b16 %v317
      %v494 = vunpack.c.l.b16 %v318
      %v495 = vunpack.c.l.b16 %v319
      %v496 = vunpack.c.l.b16 %v320
      %v497 = vunpack.c.l.b16 %v321
      %v498 = vunpack.c.l.b16 %v322
      %v499 = vunpack.c.l.b16 %v323
      %v500 = vunpack.c.l.b16 %v324
      %v501 = vunpack.c.l.b16 %v325
      %v502 = vunpack.c.l.b16 %v326
      %v503 = vunpack.c.l.b16 %v327
      %v504 = vunpack.c.l.b16 %v328
      %v505 = vunpack.c.l.b16 %v329
      %v506 = vunpack.c.l.b16 %v330
      %v507 = vunpack.c.l.b16 %v331
      %v508 = vunpack.c.l.b16 %v332
      %v509 = vunpack.c.l.b16 %v333
      %v510 = vunpack.c.l.b16 %v334
      %v511 = vunpack.c.l.b16 %v335
      %v512 = vunpack.c.l.b16 %v336
      %v513 = vunpack.c.l.b16 %v337
      %v514 = vunpack.c.l.b16 %v338
      %v515 = vunpack.c.l.b16 %v339
      %v516 = vunpack.c.l.b16 %v340
      %v517 = vunpack.c.l.b16 %v341
      %v518 = vunpack.c.l.b16 %v342
      %v519 = vunpack.c.l.b16 %v343
      %v520 = vunpack.c.l.b16 %v344
      %v521 = vunpack.c.l.b16 %v345
      %v522 = vunpack.c.l.b16 %v346
      %v523 = vunpack.c.l.b16 %v347
      %v524 = vunpack.c.l.b16 %v348
      %v525 = vunpack.c.l.b16 %v349
      %v526 = vunpack.c.l.b16 %v350
      %v527 = vunpack.c.l.b16 %v351
      %v528 = vunpack.c.l.b16 %v352
      %v529 = vunpack.c.l.b16 %v353
      %v530 = vunpack.c.l.b16 %v354
      %v531 = vpack.c.b16 %v460, %v459
      %v532 = vpack.c.b16 %v462, %v461
      %v533 = vpack.c.b16 %v464, %v463
      %v534 = vpack.c.b16 %v466, %v465
      %v535 = vpack.c.b16 %v468, %v467
      %v536 = vpack.c.b16 %v470, %v469
      %v537 = vpack.c.b16 %v472, %v471
      %v538 = vpack.c.b16 %v474, %v473
      %v539 = vpack.c.b16 %v476, %v475
      %v540 = vpack.c.b16 %v478, %v477
      %v541 = vpack.c.b16 %v480, %v479
      %v542 = vpack.c.b16 %v482, %v481
      %v543 = vpack.c.b16 %v484, %v483
      %v544 = vpack.c.b16 %v486, %v485
      %v545 = vpack.c.b16 %v488, %v487
      %v546 = vpack.c.b16 %v490, %v489
      %v547 = vpack.c.b16 %v492, %v491
      %v548 = vpack.c.b16 %v494, %v493
      %v549 = vpack.c.b16 %v496, %v495
      %v550 = vpack.c.b16 %v498, %v497
      %v551 = vpack.c.b16 %v500, %v499
      %v552 = vpack.c.b16 %v502, %v501
      %v553 = vpack.c.b16 %v504, %v503
      %v554 = vpack.c.b16 %v506, %v505
      %v555 = vpack.c.b16 %v508, %v507
      %v556 = vpack.c.b16 %v510, %v509
      %v557 = vpack.c.b16 %v512, %v511
      %v558 = vpack.c.b16 %v514, %v513
      %v559 = vpack.c.b16 %v516, %v515
      %v560 = vpack.c.b16 %v518, %v517
      %v561 = vpack.c.b16 %v520, %v519
      %v562 = vpack.c.b16 %v522, %v521
      %v563 = vpack.c.b16 %v524, %v523
      %v564 = vpack.c.b16 %v526, %v525
      %v565 = vpack.c.b16 %v528, %v527
      %v566 = vpack.c.b16 %v530, %v529
      %vm603 = vcmask 523264
      %v605 = vsel %vm603, %v382, 0
      %607 = vmatprep.subr.bf16.mxu0 0
      %608 = vmatpush1.bf16.msra.mxu0 %v531
      %609 = vmatprep.subr.bf16.mxu0 0
      %610 = vmatpush1.bf16.msra.mxu0 %v532
      %611 = vmatprep.subr.bf16.mxu0 0
      %612 = vmatpush1.bf16.msra.mxu0 %v533
      %613 = vmatprep.subr.bf16.mxu0 0
      %614 = vmatpush1.bf16.msra.mxu0 %v534
      %615 = vmatprep.subr.bf16.mxu0 0
      %616 = vmatpush1.bf16.msra.mxu0 %v535
      %617 = vmatprep.subr.bf16.mxu0 0
      %618 = vmatpush1.bf16.msra.mxu0 %v536
      %619 = vmatprep.subr.bf16.mxu0 0
      %620 = vmatpush1.bf16.msra.mxu0 %v537
      %621 = vmatprep.subr.bf16.mxu0 0
      %622 = vmatpush1.bf16.msra.mxu0 %v538
      %623 = vmatprep.subr.bf16.mxu0 0
      %624 = vmatpush1.bf16.msra.mxu0 %v539
      %625 = vmatprep.subr.bf16.mxu0 0
      %626 = vmatpush1.bf16.msra.mxu0 %v540
      %627 = vmatprep.subr.bf16.mxu0 0
      %628 = vmatpush1.bf16.msra.mxu0 %v541
      %629 = vmatprep.subr.bf16.mxu0 0
      %630 = vmatpush1.bf16.msra.mxu0 %v542
      %631 = vmatprep.subr.bf16.mxu0 0
      %632 = vmatpush1.bf16.msra.mxu0 %v543
      %633 = vmatprep.subr.bf16.mxu0 0
      %634 = vmatpush1.bf16.msra.mxu0 %v544
      %635 = vmatprep.subr.bf16.mxu0 0
      %636 = vmatpush1.bf16.msra.mxu0 %v545
      %637 = vmatprep.subr.bf16.mxu0 0
      %638 = vmatpush1.bf16.msra.mxu0 %v546
      %639 = vmatprep.mubr.bf16.mxu0 %v379
      %640 = vmatmul.mubr.bf16.gmra.mrb[0].mxu0 %v378
      %v641 = vpop.f32.mrb[0].mxu0
      %v642 = vadd.f32 %v360, %v641
      %v643 = vpop.f32.mrb[0].mxu0
      %v644 = vpop.f32.mrb[0].mxu0
      %v645 = vadd.f32 %v360, %v644
      %v646 = vpop.f32.mrb[0].mxu0
      %647 = vdwg.mxu0
      %648 = vmatprep.subr.bf16.mxu0 0
      %649 = vmatpush1.bf16.msra.mxu0 %v547
      %650 = vmatprep.subr.bf16.mxu0 0
      %651 = vmatpush1.bf16.msra.mxu0 %v548
      %652 = vmatprep.subr.bf16.mxu0 0
      %653 = vmatpush1.bf16.msra.mxu0 %v549
      %654 = vmatprep.subr.bf16.mxu0 0
      %655 = vmatpush1.bf16.msra.mxu0 %v550
      %656 = vmatprep.subr.bf16.mxu0 0
      %657 = vmatpush1.bf16.msra.mxu0 %v551
      %658 = vmatprep.subr.bf16.mxu0 0
      %659 = vmatpush1.bf16.msra.mxu0 %v552
      %660 = vmatprep.subr.bf16.mxu0 0
      %661 = vmatpush1.bf16.msra.mxu0 %v553
      %662 = vmatprep.subr.bf16.mxu0 0
      %663 = vmatpush1.bf16.msra.mxu0 %v554
      %664 = vmatprep.subr.bf16.mxu0 0
      %665 = vmatpush1.bf16.msra.mxu0 %v555
      %666 = vmatprep.subr.bf16.mxu0 0
      %667 = vmatpush1.bf16.msra.mxu0 %v556
      %668 = vmatprep.subr.bf16.mxu0 0
      %669 = vmatpush1.bf16.msra.mxu0 %v557
      %670 = vmatprep.subr.bf16.mxu0 0
      %671 = vmatpush1.bf16.msra.mxu0 %v558
      %672 = vmatprep.subr.bf16.mxu0 0
      %673 = vmatpush1.bf16.msra.mxu0 %v559
      %674 = vmatprep.subr.bf16.mxu0 0
      %675 = vmatpush1.bf16.msra.mxu0 %v560
      %676 = vmatprep.subr.bf16.mxu0 0
      %677 = vmatpush1.bf16.msra.mxu0 %v561
      %678 = vmatprep.subr.bf16.mxu0 0
      %679 = vmatpush1.bf16.msra.mxu0 %v562
      %680 = vmatprep.mubr.bf16.mxu0 %v381
      %681 = vmatmul.mubr.bf16.gmra.mrb[0].mxu0 %v380
      %v682 = vpop.f32.mrb[0].mxu0
      %v683 = vadd.f32 %v642, %v682
      %v684 = vpop.f32.mrb[0].mxu0
      %v685 = vpop.f32.mrb[0].mxu0
      %v686 = vadd.f32 %v645, %v685
      %v687 = vpop.f32.mrb[0].mxu0
      %688 = vdwg.mxu0
      %689 = vmatprep.subr.bf16.mxu0 0
      %690 = vmatpush1.bf16.msra.mxu0 %v563
      %691 = vmatprep.subr.bf16.mxu0 0
      %692 = vmatpush1.bf16.msra.mxu0 %v564
      %693 = vmatprep.subr.bf16.mxu0 0
      %694 = vmatpush1.bf16.msra.mxu0 %v565
      %695 = vmatprep.subr.bf16.mxu0 0
      %696 = vmatpush1.bf16.msra.mxu0 %v566
      %697 = vmatprep.subr.bf16.mxu0 0
      %698 = vmatpush1.bf16.msra.mxu0 0
      %699 = vmatprep.subr.bf16.mxu0 0
      %700 = vmatpush1.bf16.msra.mxu0 0
      %701 = vmatprep.subr.bf16.mxu0 0
      %702 = vmatpush1.bf16.msra.mxu0 0
      %703 = vmatprep.subr.bf16.mxu0 0
      %704 = vmatpush1.bf16.msra.mxu0 0
      %705 = vmatprep.subr.bf16.mxu0 0
      %706 = vmatpush1.bf16.msra.mxu0 0
      %707 = vmatprep.subr.bf16.mxu0 0
      %708 = vmatpush1.bf16.msra.mxu0 0
      %709 = vmatprep.subr.bf16.mxu0 0
      %710 = vmatpush1.bf16.msra.mxu0 0
      %711 = vmatprep.subr.bf16.mxu0 0
      %712 = vmatpush1.bf16.msra.mxu0 0
      %713 = vmatprep.subr.bf16.mxu0 0
      %714 = vmatpush1.bf16.msra.mxu0 0
      %715 = vmatprep.subr.bf16.mxu0 0
      %716 = vmatpush1.bf16.msra.mxu0 0
      %717 = vmatprep.subr.bf16.mxu0 0
      %718 = vmatpush1.bf16.msra.mxu0 0
      %719 = vmatprep.subr.bf16.mxu0 0
      %720 = vmatpush1.bf16.msra.mxu0 0
      %721 = vmatprep.mubr.bf16.mxu0 0
      %722 = vmatmul.mubr.bf16.gmra.mrb[0].mxu0 %v605
      %v723 = vpop.f32.mrb[0].mxu0
      %v724 = vadd.f32 %v683, %v723
      %v725 = vpop.f32.mrb[0].mxu0
      %v726 = vpop.f32.mrb[0].mxu0
      %v727 = vadd.f32 %v686, %v726
      %v728 = vpop.f32.mrb[0].mxu0
      %729 = vdwg.mxu0
      %v730 = vsel %vm603, %v724, 0.0
      %v731 = vsel %vm603, %v727, 0.0
      %v732 = vadd.f32 %v730, %v731
      %v733 = vrot.slane %v732, 4
      %v734 = vadd.f32 %v732, %v733
      %v735 = vrot.slane %v734, 2
      %v736 = vadd.f32 %v734, %v735
      %v737 = vrot.slane %v736, 1
      %v738 = vadd.f32 %v736, %v737
      %v739 = vmul.f32 %v738, 0.0625
      %v740 = vsub.f32 %v724, %v739
      %v741 = vsub.f32 %v727, %v739
      %v742 = vmul.f32 %v740, %v740
      %v743 = vmul.f32 %v741, %v741
      %v744 = vsel %vm603, %v742, 0.0
      %v745 = vsel %vm603, %v743, 0.0
      %v746 = vadd.f32 %v744, %v745
      %v747 = vrot.slane %v746, 4
      %v748 = vadd.f32 %v746, %v747
      %v749 = vrot.slane %v748, 2
      %v750 = vadd.f32 %v748, %v749
      %v751 = vrot.slane %v750, 1
      %v752 = vadd.f32 %v750, %v751
      %v753 = vmul.f32 %v752, 0.0625
      %v754 = vadd.f32 %v753, 1e-05
      %v755 = vrsqrt.pop %v754
      %v756 = vmul.f32 %v740, %v755
      %v757 = vmul.f32 %v741, %v755
      %v758 = vld [vmem:[%s264] sm:$0xf]
      %v759 = vld [vmem:[%s264 + $0x4] sm:$0xf]
      %v760 = vunpack.c.l.bf16 %v758
      %v761 = vunpack.c.l.bf16 %v759
      %v762 = vadd.f32 %v756, %v760
      %v763 = vadd.f32 %v757, %v761
      %v764 = vpack.c.bf16 %v763, %v762
      %v766 = vunpack.c.l.b16 %v764
      %v767 = vunpack.c.h.b16 %v764
      %v768 = vpack.c.b16 %v766, %v766
      %v769 = vpack.c.b16 %v767, %v767
      %vm772 = vcmask 519168
      %773 = vst.msk [vmem:[%s274] sm:$0xf] %vm772, %v768
      %774 = vst.msk [vmem:[%s274 + $0x4] sm:$0xf] %vm772, %v769
      %s775 = smul.u32 2, %s20
      %p776 = scmp.lt.s32.totalorder %s19, 1
      %s777 = scalar_select %p776, %s19, 1
      %p778 = scmp.lt.s32.totalorder %s775, 1
      %s779 = scalar_select %p778, %s775, 1
      %s780 = smul.addr %s777, 2
      %s781 = sadd.s32 %s779, %s780
      %s782 = smul.addr %s781, 4
      %s783 = scalar_lea.vmem %s4, %s782
      // Predicated region
      $region37: #{styleless_gen_forward.20} parent=35 // pred_check
        %p784 = pneg %p145
      $region38: #{styleless_gen_forward.20} parent=35 // pred_check_branch
        %786 = sbr.rel (%p784) target = $region40
      $region39: #{styleless_gen_forward.20} parent=35 // pred_region
        %s787 = smul.u32 2, %s20
      $region40: #{styleless_gen_forward.20} parent=35 // pred_fallthru
        _
    $region36: #{styleless_gen_forward.20} parent=5 // pred_fallthru
      _
    %p788 = scmp.le.s32.totalorder 2, %s10
    // Predicated region
    $region41: #{styleless_gen_forward.20} parent=5 // pred_check
      %p789 = pneg %p788
    $region42: #{styleless_gen_forward.20} parent=5 // pred_check_branch
      %791 = sbr.rel (%p789) target = $region44
    $region43: #{styleless_gen_forward.20} parent=5 // pred_region
      %s792 = ssub.s32 %s10, 2
      // Predicated region
      $region45: #{styleless_gen_forward.20} parent=43 // pred_check
        %p793 = pneg %p151
      $region46: #{styleless_gen_forward.20} parent=43 // pred_check_branch
        %795 = sbr.rel (%p793) target = $region48
      $region47: #{styleless_gen_forward.20} parent=43 // pred_region
        %s796 = smul.u32 2, %s22
        %p797 = scmp.lt.s32.totalorder %s21, 1
        %s798 = scalar_select %p797, %s21, 1
        %p799 = scmp.lt.s32.totalorder %s796, 1
        %s800 = scalar_select %p799, %s796, 1
        %s801 = smul.addr %s798, 2
        %s802 = sadd.s32 %s800, %s801
        %s803 = smul.addr %s802, 4
        %s804 = scalar_lea.vmem %s4, %s803
      $region48: #{styleless_gen_forward.20} parent=43 // pred_fallthru
        _
    $region44: #{styleless_gen_forward.20} parent=5 // pred_fallthru
      _
  $region6: #{styleless_gen_forward.20} parent=0 // loop_footer
    %s14 = sadd.s32 1, %s10
  $region7: #{styleless_gen_forward.20} parent=0 // loop_footer_branch
    %9 = sbr.rel target = $region3
  $region8: #{styleless_gen_forward.20} parent=0 // loop_exit
    _

// kernel: styleless_gen_forward.23
$region0: #{styleless_gen_forward.23}
  #allocation0 [shape = 'u32[]', space=smem, size = 0x4, offset = 0x4, fixed_abs, tag = 'smem constant byte address 0x4 - core index']
  #allocation1 [shape = 'u32[144,128]{1,0:T(1,128)}', space=vmem, size = 0x12000, scoped, tag = 'internal scratch']
  %s0 = inlined_call_operand.vmem [shape: bf16[2,16,576], index: 0, kind: input, shape index: {}]
  %s1 = inlined_call_operand.vmem [shape: bf16[576,8], index: 1, kind: input, shape index: {}]
  %s2 = inlined_call_operand.vmem [shape: f32[1,8], index: 2, kind: input, shape index: {}]
  %s3 = inlined_call_operand.vmem [shape: bf16[2,16,8], index: 3, kind: output, shape index: {}]
  %s4 = sld [smem:[#allocation0]]
  $region45: #{styleless_gen_forward.23} parent=0
    _
  %s6 = ssub.s32 1, %s4
  %s7 = scalar_select 0, %s6, %s4
  loop: start=0, step=1, limit=4
  $region2: #{styleless_gen_forward.23} parent=0 // loop_pre_header
    _
  $region3: #{styleless_gen_forward.23} parent=0 // loop_header
    %s9 = sphi 0, %s13
    %p10 = scmp.ge.s32.totalorder %s9, 4
    %s16 = sphi 0, %s28
    %s17 = sphi 0, %s24
    %s18 = sphi 0, %s16
    %s19 = sphi 0, %s17
    %s20 = sphi 0, %s18
    %s21 = sphi 0, %s19
    %s33 = sphi 0, %s35
    %s36 = sphi 0, %s33
    %s37 = sphi 0, %s36
    %s53 = sphi 0, %s37
    %s57 = sphi 0, %s57
    %s59 = sphi 0, %s57
    %s60 = sphi 0, %s59
    %s74 = sphi 0, %s60
    %s78 = sphi 0, %s78
    %s80 = sphi 0, %s78
    %s81 = sphi 0, %s80
    %s95 = sphi 0, %s81
    %s103 = sphi 0, %s105
    %s106 = sphi 0, %s103
    %s107 = sphi 0, %s106
    %s123 = sphi 0, %s107
  $region4: #{styleless_gen_forward.23} parent=0 // loop_header_branch
    %12 = sbr.rel (%p10) target = $region8
  $region5: #{styleless_gen_forward.23} parent=0 // loop_body
    %s14 = ssub.s32 %s9, 1
    %s15 = ssub.s32 %s9, 2
    %s22 = sadd.s32 1, %s17
    %p23 = scmp.ge.s32.totalorder %s22, 1
    %s24 = scalar_select %p23, 0, %s22
    %s25 = sadd.s32 1, %s16
    %s26 = scalar_select %p23, %s25, %s16
    %p27 = scmp.ge.s32.totalorder %s26, 2
    %s28 = scalar_select %p27, 0, %s26
    %s29 = ssub.s32 %s16, %s28
    %s30 = ssub.s32 %s17, %s24
    %s31 = sor.u32 %s29, %s30
    %p32 = scmp.eq.s32.totalorder %s31, 0
    %s34 = sadd.s32 %s33, 1
    %s35 = scalar_select %p32, %s33, %s34
    %p38 = pneg %p32
    %p39 = scmp.eq.s32.totalorder %s9, 1
    %p40 = por %p38, %p39
    %p41 = scmp.ne.s32.totalorder %s33, %s36
    %p42 = scmp.eq.s32.totalorder %s9, 0
    %p43 = por %p41, %p42
    %p44 = scmp.ne.s32.totalorder %s33, %s36
    %p45 = scmp.eq.s32.totalorder %s14, 1
    %p46 = por %p44, %p45
    %p47 = scmp.ne.s32.totalorder %s36, %s37
    %p48 = scmp.eq.s32.totalorder %s14, 0
    %p49 = por %p47, %p48
    %p50 = scmp.ne.s32.totalorder %s36, %s37
    %p51 = scmp.eq.s32.totalorder %s15, 1
    %p52 = por %p50, %p51
    %p54 = scmp.ne.s32.totalorder %s37, %s53
    %p55 = scmp.eq.s32.totalorder %s15, 0
    %p56 = por %p54, %p55
    %s58 = sadd.s32 %s57, 1
    %p61 = scmp.eq.s32.totalorder %s9, 1
    %p62 = scmp.ne.s32.totalorder %s57, %s59
    %p63 = scmp.eq.s32.totalorder %s9, 0
    %p64 = por %p62, %p63
    %p65 = scmp.ne.s32.totalorder %s57, %s59
    %p66 = scmp.eq.s32.totalorder %s14, 1
    %p67 = por %p65, %p66
    %p68 = scmp.ne.s32.totalorder %s59, %s60
    %p69 = scmp.eq.s32.totalorder %s14, 0
    %p70 = por %p68, %p69
    %p71 = scmp.ne.s32.totalorder %s59, %s60
    %p72 = scmp.eq.s32.totalorder %s15, 1
    %p73 = por %p71, %p72
    %p75 = scmp.ne.s32.totalorder %s60, %s74
    %p76 = scmp.eq.s32.totalorder %s15, 0
    %p77 = por %p75, %p76
    %s79 = sadd.s32 %s78, 1
    %p82 = scmp.eq.s32.totalorder %s9, 1
    %p83 = scmp.ne.s32.totalorder %s78, %s80
    %p84 = scmp.eq.s32.totalorder %s9, 0
    %p85 = por %p83, %p84
    %p86 = scmp.ne.s32.totalorder %s78, %s80
    %p87 = scmp.eq.s32.totalorder %s14, 1
    %p88 = por %p86, %p87
    %p89 = scmp.ne.s32.totalorder %s80, %s81
    %p90 = scmp.eq.s32.totalorder %s14, 0
    %p91 = por %p89, %p90
    %p92 = scmp.ne.s32.totalorder %s80, %s81
    %p93 = scmp.eq.s32.totalorder %s15, 1
    %p94 = por %p92, %p93
    %p96 = scmp.ne.s32.totalorder %s81, %s95
    %p97 = scmp.eq.s32.totalorder %s15, 0
    %p98 = por %p96, %p97
    %s99 = ssub.s32 %s16, %s28
    %s100 = ssub.s32 %s17, %s24
    %s101 = sor.u32 %s99, %s100
    %p102 = scmp.eq.s32.totalorder %s101, 0
    %s104 = sadd.s32 %s103, 1
    %s105 = scalar_select %p102, %s103, %s104
    %p108 = pneg %p102
    %p109 = scmp.eq.s32.totalorder %s9, 1
    %p110 = por %p108, %p109
    %p111 = scmp.ne.s32.totalorder %s103, %s106
    %p112 = scmp.eq.s32.totalorder %s9, 0
    %p113 = por %p111, %p112
    %p114 = scmp.ne.s32.totalorder %s103, %s106
    %p115 = scmp.eq.s32.totalorder %s14, 1
    %p116 = por %p114, %p115
    %p117 = scmp.ne.s32.totalorder %s106, %s107
    %p118 = scmp.eq.s32.totalorder %s14, 0
    %p119 = por %p117, %p118
    %p120 = scmp.ne.s32.totalorder %s106, %s107
    %p121 = scmp.eq.s32.totalorder %s15, 1
    %p122 = por %p120, %p121
    %p124 = scmp.ne.s32.totalorder %s107, %s123
    %p125 = scmp.eq.s32.totalorder %s15, 0
    %p126 = por %p124, %p125
    %p127 = scmp.le.s32.totalorder 1, %s9
    %p128 = scmp.lt.s32.totalorder %s9, 3
    %p129 = pnand %p127, %p128
    %p130 = pneg %p129
    // Predicated region
    $region9: #{styleless_gen_forward.23} parent=5 // pred_check
      _
    $region10: #{styleless_gen_forward.23} parent=5 // pred_check_branch
      %132 = sbr.rel (%p129) target = $region12
    $region11: #{styleless_gen_forward.23} parent=5 // pred_region
      %s133 = ssub.s32 %s9, 1
      // Predicated region
      $region13: #{styleless_gen_forward.23} parent=11 // pred_check
        %p134 = pneg %p70
      $region14: #{styleless_gen_forward.23} parent=11 // pred_check_branch
        %136 = sbr.rel (%p134) target = $region16
      $region15: #{styleless_gen_forward.23} parent=11 // pred_region
        _
      $region16: #{styleless_gen_forward.23} parent=11 // pred_fallthru
        _
      // Predicated region
      $region17: #{styleless_gen_forward.23} parent=11 // pred_check
        %p137 = pneg %p91
      $region18: #{styleless_gen_forward.23} parent=11 // pred_check_branch
        %139 = sbr.rel (%p137) target = $region20
      $region19: #{styleless_gen_forward.23} parent=11 // pred_region
        _
      $region20: #{styleless_gen_forward.23} parent=11 // pred_fallthru
        _
    $region12: #{styleless_gen_forward.23} parent=5 // pred_fallthru
      _
    %p140 = scmp.lt.s32.totalorder %s9, 2
    // Predicated region
    $region21: #{styleless_gen_forward.23} parent=5 // pred_check
      %p141 = pneg %p140
    $region22: #{styleless_gen_forward.23} parent=5 // pred_check_branch
      %143 = sbr.rel (%p141) target = $region24
    $region23: #{styleless_gen_forward.23} parent=5 // pred_region
      // Predicated region
      $region25: #{styleless_gen_forward.23} parent=23 // pred_check
        %p144 = pneg %p43
      $region26: #{styleless_gen_forward.23} parent=23 // pred_check_branch
        %146 = sbr.rel (%p144) target = $region28
      $region27: #{styleless_gen_forward.23} parent=23 // pred_region
        %s147 = smul.u32 2, %s17
        %p148 = scmp.lt.s32.totalorder %s16, 1
        %s149 = scalar_select %p148, %s16, 1
        %p150 = scmp.lt.s32.totalorder %s147, 1
        %s151 = scalar_select %p150, %s147, 1
        %s152 = smul.addr %s151, 5
        %s153 = smul.addr %s149, 10
        %s154 = sadd.s32 %s152, %s153
        %s155 = smul.addr %s154, 4
        %s156 = scalar_lea.vmem %s0, %s155
        %s157 = smul.u32 2, %s17
      $region28: #{styleless_gen_forward.23} parent=23 // pred_fallthru
        _
    $region24: #{styleless_gen_forward.23} parent=5 // pred_fallthru
      _
    %p158 = scmp.le.s32.totalorder 1, %s9
    %p159 = scmp.lt.s32.totalorder %s9, 3
    %p160 = pnand %p158, %p159
    %p161 = pneg %p160
    // Predicated region
    $region29: #{styleless_gen_forward.23} parent=5 // pred_check
      _
    $region30: #{styleless_gen_forward.23} parent=5 // pred_check_branch
      %163 = sbr.rel (%p160) target = $region32
    $region31: #{styleless_gen_forward.23} parent=5 // pred_region
      %s164 = ssub.s32 %s9, 1
      %s165 = smul.u32 2, %s19
      %p166 = scmp.lt.s32.totalorder %s18, 1
      %s167 = scalar_select %p166, %s18, 1
      %p168 = scmp.lt.s32.totalorder %s165, 1
      %s169 = scalar_select %p168, %s165, 1
      %s170 = smul.addr %s169, 5
      %s171 = smul.addr %s167, 10
      %s172 = sadd.s32 %s170, %s171
      %s173 = smul.addr %s172, 4
      %s174 = scalar_lea.vmem %s0, %s173
      %p175 = pneg %p49
      %p176 = pneg %p46
      %p177 = pneg %p70
      %p178 = pneg %p67
      %p179 = pneg %p91
      %p180 = pneg %p88
      %p181 = pneg %p119
      %p182 = pneg %p116
      %s183 = smul.u32 2, %s19
      %p184 = scmp.lt.s32.totalorder %s18, 1
      %s185 = scalar_select %p184, %s18, 1
      %p186 = scmp.lt.s32.totalorder %s183, 1
      %s187 = scalar_select %p186, %s183, 1
      %s188 = smul.addr %s185, 2
      %s189 = sadd.s32 %s187, %s188
      %s190 = smul.addr %s189, 4
      %s191 = scalar_lea.vmem %s3, %s190
      %s192 = smul.u32 2, %s19
      %p193 = scmp.lt.s32.totalorder %s18, 1
      %s194 = scalar_select %p193, %s18, 1
      %p195 = scmp.lt.s32.totalorder %s192, 1
      %s196 = scalar_select %p195, %s192, 1
      %s197 = smul.addr %s196, 5
      %s198 = smul.addr %s194, 10
      %s199 = sadd.s32 %s197, %s198
      %s200 = smul.addr %s199, 4
      %s201 = scalar_lea.vmem %s0, %s200
      %s202 = smul.u32 2, %s19
      %s203 = smul.u32 2, %s19
      %p204 = scmp.lt.s32.totalorder %s18, 1
      %s205 = scalar_select %p204, %s18, 1
      %p206 = scmp.lt.s32.totalorder %s203, 1
      %s207 = scalar_select %p206, %s203, 1
      %s208 = smul.addr %s205, 2
      %s209 = sadd.s32 %s207, %s208
      %s210 = smul.addr %s209, 4
      %s211 = scalar_lea.vmem %s3, %s210
      %s212 = smul.u32 2, %s19
      %v214 = vld [vmem:[%s201] sm:$0xff]
      %v215 = vld [vmem:[%s201 + $0x8] sm:$0xff]
      %v216 = vld [vmem:[%s201 + $0x10] sm:$0xf]
      %v217 = vld [vmem:[%s201 + $0x14] sm:$0xff]
      %v218 = vld [vmem:[%s201 + $0x1c] sm:$0xff]
      %v219 = vld [vmem:[%s201 + $0x24] sm:$0xf]
      %v220 = vld [vmem:[%s1] sm:$0xf]
      %v221 = vld [vmem:[%s1 + $0x4] sm:$0xf]
      %v222 = vld [vmem:[%s1 + $0x8] sm:$0xf]
      %v223 = vld [vmem:[%s1 + $0xc] sm:$0xf]
      %v224 = vld [vmem:[%s1 + $0x10] sm:$0xf]
      %v225 = vld [vmem:[%s1 + $0x14] sm:$0xf]
      %v226 = vld [vmem:[%s1 + $0x18] sm:$0xf]
      %v227 = vld [vmem:[%s1 + $0x1c] sm:$0xf]
      %v228 = vld [vmem:[%s1 + $0x20] sm:$0xf]
      %v229 = vld [vmem:[%s1 + $0x24] sm:$0xf]
      %v230 = vld [vmem:[%s1 + $0x28] sm:$0xf]
      %v231 = vld [vmem:[%s1 + $0x2c] sm:$0xf]
      %v232 = vld [vmem:[%s1 + $0x30] sm:$0xf]
      %v233 = vld [vmem:[%s1 + $0x34] sm:$0xf]
      %v234 = vld [vmem:[%s1 + $0x38] sm:$0xf]
      %v235 = vld [vmem:[%s1 + $0x3c] sm:$0xf]
      %v236 = vld [vmem:[%s1 + $0x40] sm:$0xf]
      %v237 = vld [vmem:[%s1 + $0x44] sm:$0xf]
      %v238 = vld [vmem:[%s1 + $0x48] sm:$0xf]
      %v239 = vld [vmem:[%s1 + $0x4c] sm:$0xf]
      %v240 = vld [vmem:[%s1 + $0x50] sm:$0xf]
      %v241 = vld [vmem:[%s1 + $0x54] sm:$0xf]
      %v242 = vld [vmem:[%s1 + $0x58] sm:$0xf]
      %v243 = vld [vmem:[%s1 + $0x5c] sm:$0xf]
      %v244 = vld [vmem:[%s1 + $0x60] sm:$0xf]
      %v245 = vld [vmem:[%s1 + $0x64] sm:$0xf]
      %v246 = vld [vmem:[%s1 + $0x68] sm:$0xf]
      %v247 = vld [vmem:[%s1 + $0x6c] sm:$0xf]
      %v248 = vld [vmem:[%s1 + $0x70] sm:$0xf]
      %v249 = vld [vmem:[%s1 + $0x74] sm:$0xf]
      %v250 = vld [vmem:[%s1 + $0x78] sm:$0xf]
      %v251 = vld [vmem:[%s1 + $0x7c] sm:$0xf]
      %v252 = vld [vmem:[%s1 + $0x80] sm:$0xf]
      %v253 = vld [vmem:[%s1 + $0x84] sm:$0xf]
      %v254 = vld [vmem:[%s1 + $0x88] sm:$0xf]
      %v255 = vld [vmem:[%s1 + $0x8c] sm:$0xf]
      %v256 = vld [vmem:[%s1 + $0x90] sm:$0xf]
      %v257 = vld [vmem:[%s1 + $0x94] sm:$0xf]
      %v258 = vld [vmem:[%s1 + $0x98] sm:$0xf]
      %v259 = vld [vmem:[%s1 + $0x9c] sm:$0xf]
      %v260 = vld [vmem:[%s1 + $0xa0] sm:$0xf]
      %v261 = vld [vmem:[%s1 + $0xa4] sm:$0xf]
      %v262 = vld [vmem:[%s1 + $0xa8] sm:$0xf]
      %v263 = vld [vmem:[%s1 + $0xac] sm:$0xf]
      %v264 = vld [vmem:[%s1 + $0xb0] sm:$0xf]
      %v265 = vld [vmem:[%s1 + $0xb4] sm:$0xf]
      %v266 = vld [vmem:[%s1 + $0xb8] sm:$0xf]
      %v267 = vld [vmem:[%s1 + $0xbc] sm:$0xf]
      %v268 = vld [vmem:[%s1 + $0xc0] sm:$0xf]
      %v269 = vld [vmem:[%s1 + $0xc4] sm:$0xf]
      %v270 = vld [vmem:[%s1 + $0xc8] sm:$0xf]
      %v271 = vld [vmem:[%s1 + $0xcc] sm:$0xf]
      %v272 = vld [vmem:[%s1 + $0xd0] sm:$0xf]
      %v273 = vld [vmem:[%s1 + $0xd4] sm:$0xf]
      %v274 = vld [vmem:[%s1 + $0xd8] sm:$0xf]
      %v275 = vld [vmem:[%s1 + $0xdc] sm:$0xf]
      %v276 = vld [vmem:[%s1 + $0xe0] sm:$0xf]
      %v277 = vld [vmem:[%s1 + $0xe4] sm:$0xf]
      %v278 = vld [vmem:[%s1 + $0xe8] sm:$0xf]
      %v279 = vld [vmem:[%s1 + $0xec] sm:$0xf]
      %v280 = vld [vmem:[%s1 + $0xf0] sm:$0xf]
      %v281 = vld [vmem:[%s1 + $0xf4] sm:$0xf]
      %v282 = vld [vmem:[%s1 + $0xf8] sm:$0xf]
      %v283 = vld [vmem:[%s1 + $0xfc] sm:$0xf]
      %v284 = vld [vmem:[%s1 + $0x100] sm:$0xf]
      %v285 = vld [vmem:[%s1 + $0x104] sm:$0xf]
      %v286 = vld [vmem:[%s1 + $0x108] sm:$0xf]
      %v287 = vld [vmem:[%s1 + $0x10c] sm:$0xf]
      %v288 = vld [vmem:[%s1 + $0x110] sm:$0xf]
      %v289 = vld [vmem:[%s1 + $0x114] sm:$0xf]
      %v290 = vld [vmem:[%s1 + $0x118] sm:$0xf]
      %v291 = vld [vmem:[%s1 + $0x11c] sm:$0xf]
      %v292 = vld [vmem:[%s2] sm:$0x1]
      %v294 = vlaneseq
      %v295 = vshrl.u32 %v294, 7
      %v296 = vsub.s32 0, %v295
      %v297 = vrot.slane %v292, %v296
      %v305 = vunpack.c.l.b16 %v214
      %v306 = vunpack.c.h.b16 %v214
      %v307 = vunpack.c.l.b16 %v215
      %v308 = vunpack.c.h.b16 %v215
      %v309 = vunpack.c.l.b16 %v216
      %v310 = vunpack.c.l.b16 %v217
      %v311 = vunpack.c.h.b16 %v217
      %v312 = vunpack.c.l.b16 %v218
      %v313 = vunpack.c.h.b16 %v218
      %v314 = vunpack.c.l.b16 %v219
      %v315 = vpack.c.b16 %v310, %v305
      %v316 = vpack.c.b16 %v311, %v306
      %v317 = vpack.c.b16 %v312, %v307
      %v318 = vpack.c.b16 %v313, %v308
      %v319 = vpack.c.b16 %v314, %v309
      %v396 = vunpack.c.l.b16 %v220
      %v397 = vunpack.c.l.b16 %v221
      %v398 = vunpack.c.l.b16 %v222
      %v399 = vunpack.c.l.b16 %v223
      %v400 = vunpack.c.l.b16 %v224
      %v401 = vunpack.c.l.b16 %v225
      %v402 = vunpack.c.l.b16 %v226
      %v403 = vunpack.c.l.b16 %v227
      %v404 = vunpack.c.l.b16 %v228
      %v405 = vunpack.c.l.b16 %v229
      %v406 = vunpack.c.l.b16 %v230
      %v407 = vunpack.c.l.b16 %v231
      %v408 = vunpack.c.l.b16 %v232
      %v409 = vunpack.c.l.b16 %v233
      %v410 = vunpack.c.l.b16 %v234
      %v411 = vunpack.c.l.b16 %v235
      %v412 = vunpack.c.l.b16 %v236
      %v413 = vunpack.c.l.b16 %v237
      %v414 = vunpack.c.l.b16 %v238
      %v415 = vunpack.c.l.b16 %v239
      %v416 = vunpack.c.l.b16 %v240
      %v417 = vunpack.c.l.b16 %v241
      %v418 = vunpack.c.l.b16 %v242
      %v419 = vunpack.c.l.b16 %v243
      %v420 = vunpack.c.l.b16 %v244
      %v421 = vunpack.c.l.b16 %v245
      %v422 = vunpack.c.l.b16 %v246
      %v423 = vunpack.c.l.b16 %v247
      %v424 = vunpack.c.l.b16 %v248
      %v425 = vunpack.c.l.b16 %v249
      %v426 = vunpack.c.l.b16 %v250
      %v427 = vunpack.c.l.b16 %v251
      %v428 = vunpack.c.l.b16 %v252
      %v429 = vunpack.c.l.b16 %v253
      %v430 = vunpack.c.l.b16 %v254
      %v431 = vunpack.c.l.b16 %v255
      %v432 = vunpack.c.l.b16 %v256
      %v433 = vunpack.c.l.b16 %v257
      %v434 = vunpack.c.l.b16 %v258
      %v435 = vunpack.c.l.b16 %v259
      %v436 = vunpack.c.l.b16 %v260
      %v437 = vunpack.c.l.b16 %v261
      %v438 = vunpack.c.l.b16 %v262
      %v439 = vunpack.c.l.b16 %v263
      %v440 = vunpack.c.l.b16 %v264
      %v441 = vunpack.c.l.b16 %v265
      %v442 = vunpack.c.l.b16 %v266
      %v443 = vunpack.c.l.b16 %v267
      %v444 = vunpack.c.l.b16 %v268
      %v445 = vunpack.c.l.b16 %v269
      %v446 = vunpack.c.l.b16 %v270
      %v447 = vunpack.c.l.b16 %v271
      %v448 = vunpack.c.l.b16 %v272
      %v449 = vunpack.c.l.b16 %v273
      %v450 = vunpack.c.l.b16 %v274
      %v451 = vunpack.c.l.b16 %v275
      %v452 = vunpack.c.l.b16 %v276
      %v453 = vunpack.c.l.b16 %v277
      %v454 = vunpack.c.l.b16 %v278
      %v455 = vunpack.c.l.b16 %v279
      %v456 = vunpack.c.l.b16 %v280
      %v457 = vunpack.c.l.b16 %v281
      %v458 = vunpack.c.l.b16 %v282
      %v459 = vunpack.c.l.b16 %v283
      %v460 = vunpack.c.l.b16 %v284
      %v461 = vunpack.c.l.b16 %v285
      %v462 = vunpack.c.l.b16 %v286
      %v463 = vunpack.c.l.b16 %v287
      %v464 = vunpack.c.l.b16 %v288
      %v465 = vunpack.c.l.b16 %v289
      %v466 = vunpack.c.l.b16 %v290
      %v467 = vunpack.c.l.b16 %v291
      %v468 = vpack.c.b16 %v397, %v396
      %v469 = vpack.c.b16 %v399, %v398
      %v470 = vpack.c.b16 %v401, %v400
      %v471 = vpack.c.b16 %v403, %v402
      %v472 = vpack.c.b16 %v405, %v404
      %v473 = vpack.c.b16 %v407, %v406
      %v474 = vpack.c.b16 %v409, %v408
      %v475 = vpack.c.b16 %v411, %v410
      %v476 = vpack.c.b16 %v413, %v412
      %v477 = vpack.c.b16 %v415, %v414
      %v478 = vpack.c.b16 %v417, %v416
      %v479 = vpack.c.b16 %v419, %v418
      %v480 = vpack.c.b16 %v421, %v420
      %v481 = vpack.c.b16 %v423, %v422
      %v482 = vpack.c.b16 %v425, %v424
      %v483 = vpack.c.b16 %v427, %v426
      %v484 = vpack.c.b16 %v429, %v428
      %v485 = vpack.c.b16 %v431, %v430
      %v486 = vpack.c.b16 %v433, %v432
      %v487 = vpack.c.b16 %v435, %v434
      %v488 = vpack.c.b16 %v437, %v436
      %v489 = vpack.c.b16 %v439, %v438
      %v490 = vpack.c.b16 %v441, %v440
      %v491 = vpack.c.b16 %v443, %v442
      %v492 = vpack.c.b16 %v445, %v444
      %v493 = vpack.c.b16 %v447, %v446
      %v494 = vpack.c.b16 %v449, %v448
      %v495 = vpack.c.b16 %v451, %v450
      %v496 = vpack.c.b16 %v453, %v452
      %v497 = vpack.c.b16 %v455, %v454
      %v498 = vpack.c.b16 %v457, %v456
      %v499 = vpack.c.b16 %v459, %v458
      %v500 = vpack.c.b16 %v461, %v460
      %v501 = vpack.c.b16 %v463, %v462
      %v502 = vpack.c.b16 %v465, %v464
      %v503 = vpack.c.b16 %v467, %v466
      %vm540 = vcmask 523264
      %v542 = vsel %vm540, %v319, 0
      %544 = vmatprep.subr.bf16.mxu0 0
      %545 = vmatpush1.bf16.msra.mxu0 %v468
      %546 = vmatprep.subr.bf16.mxu0 0
      %547 = vmatpush1.bf16.msra.mxu0 %v469
      %548 = vmatprep.subr.bf16.mxu0 0
      %549 = vmatpush1.bf16.msra.mxu0 %v470
      %550 = vmatprep.subr.bf16.mxu0 0
      %551 = vmatpush1.bf16.msra.mxu0 %v471
      %552 = vmatprep.subr.bf16.mxu0 0
      %553 = vmatpush1.bf16.msra.mxu0 %v472
      %554 = vmatprep.subr.bf16.mxu0 0
      %555 = vmatpush1.bf16.msra.mxu0 %v473
      %556 = vmatprep.subr.bf16.mxu0 0
      %557 = vmatpush1.bf16.msra.mxu0 %v474
      %558 = vmatprep.subr.bf16.mxu0 0
      %559 = vmatpush1.bf16.msra.mxu0 %v475
      %560 = vmatprep.subr.bf16.mxu0 0
      %561 = vmatpush1.bf16.msra.mxu0 %v476
      %562 = vmatprep.subr.bf16.mxu0 0
      %563 = vmatpush1.bf16.msra.mxu0 %v477
      %564 = vmatprep.subr.bf16.mxu0 0
      %565 = vmatpush1.bf16.msra.mxu0 %v478
      %566 = vmatprep.subr.bf16.mxu0 0
      %567 = vmatpush1.bf16.msra.mxu0 %v479
      %568 = vmatprep.subr.bf16.mxu0 0
      %569 = vmatpush1.bf16.msra.mxu0 %v480
      %570 = vmatprep.subr.bf16.mxu0 0
      %571 = vmatpush1.bf16.msra.mxu0 %v481
      %572 = vmatprep.subr.bf16.mxu0 0
      %573 = vmatpush1.bf16.msra.mxu0 %v482
      %574 = vmatprep.subr.bf16.mxu0 0
      %575 = vmatpush1.bf16.msra.mxu0 %v483
      %576 = vmatprep.mubr.bf16.mxu0 %v316
      %577 = vmatmul.mubr.bf16.gmra.mrb[0].mxu0 %v315
      %v578 = vpop.f32.mrb[0].mxu0
      %v579 = vadd.f32 %v297, %v578
      %v580 = vpop.f32.mrb[0].mxu0
      %v581 = vpop.f32.mrb[0].mxu0
      %v582 = vadd.f32 %v297, %v581
      %v583 = vpop.f32.mrb[0].mxu0
      %584 = vdwg.mxu0
      %585 = vmatprep.subr.bf16.mxu0 0
      %586 = vmatpush1.bf16.msra.mxu0 %v484
      %587 = vmatprep.subr.bf16.mxu0 0
      %588 = vmatpush1.bf16.msra.mxu0 %v485
      %589 = vmatprep.subr.bf16.mxu0 0
      %590 = vmatpush1.bf16.msra.mxu0 %v486
      %591 = vmatprep.subr.bf16.mxu0 0
      %592 = vmatpush1.bf16.msra.mxu0 %v487
      %593 = vmatprep.subr.bf16.mxu0 0
      %594 = vmatpush1.bf16.msra.mxu0 %v488
      %595 = vmatprep.subr.bf16.mxu0 0
      %596 = vmatpush1.bf16.msra.mxu0 %v489
      %597 = vmatprep.subr.bf16.mxu0 0
      %598 = vmatpush1.bf16.msra.mxu0 %v490
      %599 = vmatprep.subr.bf16.mxu0 0
      %600 = vmatpush1.bf16.msra.mxu0 %v491
      %601 = vmatprep.subr.bf16.mxu0 0
      %602 = vmatpush1.bf16.msra.mxu0 %v492
      %603 = vmatprep.subr.bf16.mxu0 0
      %604 = vmatpush1.bf16.msra.mxu0 %v493
      %605 = vmatprep.subr.bf16.mxu0 0
      %606 = vmatpush1.bf16.msra.mxu0 %v494
      %607 = vmatprep.subr.bf16.mxu0 0
      %608 = vmatpush1.bf16.msra.mxu0 %v495
      %609 = vmatprep.subr.bf16.mxu0 0
      %610 = vmatpush1.bf16.msra.mxu0 %v496
      %611 = vmatprep.subr.bf16.mxu0 0
      %612 = vmatpush1.bf16.msra.mxu0 %v497
      %613 = vmatprep.subr.bf16.mxu0 0
      %614 = vmatpush1.bf16.msra.mxu0 %v498
      %615 = vmatprep.subr.bf16.mxu0 0
      %616 = vmatpush1.bf16.msra.mxu0 %v499
      %617 = vmatprep.mubr.bf16.mxu0 %v318
      %618 = vmatmul.mubr.bf16.gmra.mrb[0].mxu0 %v317
      %v619 = vpop.f32.mrb[0].mxu0
      %v620 = vadd.f32 %v579, %v619
      %v621 = vpop.f32.mrb[0].mxu0
      %v622 = vpop.f32.mrb[0].mxu0
      %v623 = vadd.f32 %v582, %v622
      %v624 = vpop.f32.mrb[0].mxu0
      %625 = vdwg.mxu0
      %626 = vmatprep.subr.bf16.mxu0 0
      %627 = vmatpush1.bf16.msra.mxu0 %v500
      %628 = vmatprep.subr.bf16.mxu0 0
      %629 = vmatpush1.bf16.msra.mxu0 %v501
      %630 = vmatprep.subr.bf16.mxu0 0
      %631 = vmatpush1.bf16.msra.mxu0 %v502
      %632 = vmatprep.subr.bf16.mxu0 0
      %633 = vmatpush1.bf16.msra.mxu0 %v503
      %634 = vmatprep.subr.bf16.mxu0 0
      %635 = vmatpush1.bf16.msra.mxu0 0
      %636 = vmatprep.subr.bf16.mxu0 0
      %637 = vmatpush1.bf16.msra.mxu0 0
      %638 = vmatprep.subr.bf16.mxu0 0
      %639 = vmatpush1.bf16.msra.mxu0 0
      %640 = vmatprep.subr.bf16.mxu0 0
      %641 = vmatpush1.bf16.msra.mxu0 0
      %642 = vmatprep.subr.bf16.mxu0 0
      %643 = vmatpush1.bf16.msra.mxu0 0
      %644 = vmatprep.subr.bf16.mxu0 0
      %645 = vmatpush1.bf16.msra.mxu0 0
      %646 = vmatprep.subr.bf16.mxu0 0
      %647 = vmatpush1.bf16.msra.mxu0 0
      %648 = vmatprep.subr.bf16.mxu0 0
      %649 = vmatpush1.bf16.msra.mxu0 0
      %650 = vmatprep.subr.bf16.mxu0 0
      %651 = vmatpush1.bf16.msra.mxu0 0
      %652 = vmatprep.subr.bf16.mxu0 0
      %653 = vmatpush1.bf16.msra.mxu0 0
      %654 = vmatprep.subr.bf16.mxu0 0
      %655 = vmatpush1.bf16.msra.mxu0 0
      %656 = vmatprep.subr.bf16.mxu0 0
      %657 = vmatpush1.bf16.msra.mxu0 0
      %658 = vmatprep.mubr.bf16.mxu0 0
      %659 = vmatmul.mubr.bf16.gmra.mrb[0].mxu0 %v542
      %v660 = vpop.f32.mrb[0].mxu0
      %v661 = vadd.f32 %v620, %v660
      %v662 = vpop.f32.mrb[0].mxu0
      %v663 = vpop.f32.mrb[0].mxu0
      %v664 = vadd.f32 %v623, %v663
      %v665 = vpop.f32.mrb[0].mxu0
      %666 = vdwg.mxu0
      %v667 = vmax.f32 %v661, 0.0
      %v668 = vmax.f32 %v664, 0.0
      %v669 = vpack.c.bf16 %v668, %v667
      %v671 = vunpack.c.l.b16 %v669
      %v672 = vunpack.c.h.b16 %v669
      %v673 = vpack.c.b16 %v671, %v671
      %v674 = vpack.c.b16 %v672, %v672
      %vm677 = vcmask 60416
      %678 = vst.msk [vmem:[%s211] sm:$0xf] %vm677, %v673
      %679 = vst.msk [vmem:[%s211 + $0x4] sm:$0xf] %vm677, %v674
      %s680 = smul.u32 2, %s19
      %p681 = scmp.lt.s32.totalorder %s18, 1
      %s682 = scalar_select %p681, %s18, 1
      %p683 = scmp.lt.s32.totalorder %s680, 1
      %s684 = scalar_select %p683, %s680, 1
      %s685 = smul.addr %s682, 2
      %s686 = sadd.s32 %s684, %s685
      %s687 = smul.addr %s686, 4
      %s688 = scalar_lea.vmem %s3, %s687
      // Predicated region
      $region33: #{styleless_gen_forward.23} parent=31 // pred_check
        %p689 = pneg %p116
      $region34: #{styleless_gen_forward.23} parent=31 // pred_check_branch
        %691 = sbr.rel (%p689) target = $region36
      $region35: #{styleless_gen_forward.23} parent=31 // pred_region
        %s692 = smul.u32 2, %s19
      $region36: #{styleless_gen_forward.23} parent=31 // pred_fallthru
        _
    $region32: #{styleless_gen_forward.23} parent=5 // pred_fallthru
      _
    %p693 = scmp.le.s32.totalorder 2, %s9
    // Predicated region
    $region37: #{styleless_gen_forward.23} parent=5 // pred_check
      %p694 = pneg %p693
    $region38: #{styleless_gen_forward.23} parent=5 // pred_check_branch
      %696 = sbr.rel (%p694) target = $region40
    $region39: #{styleless_gen_forward.23} parent=5 // pred_region
      %s697 = ssub.s32 %s9, 2
      // Predicated region
      $region41: #{styleless_gen_forward.23} parent=39 // pred_check
        %p698 = pneg %p122
      $region42: #{styleless_gen_forward.23} parent=39 // pred_check_branch
        %700 = sbr.rel (%p698) target = $region44
      $region43: #{styleless_gen_forward.23} parent=39 // pred_region
        %s701 = smul.u32 2, %s21
        %p702 = scmp.lt.s32.totalorder %s20, 1
        %s703 = scalar_select %p702, %s20, 1
        %p704 = scmp.lt.s32.totalorder %s701, 1
        %s705 = scalar_select %p704, %s701, 1
        %s706 = smul.addr %s703, 2
        %s707 = sadd.s32 %s705, %s706
        %s708 = smul.addr %s707, 4
        %s709 = scalar_lea.vmem %s3, %s708
      $region44: #{styleless_gen_forward.23} parent=39 // pred_fallthru
        _
    $region40: #{styleless_gen_forward.23} parent=5 // pred_fallthru
      _
  $region6: #{styleless_gen_forward.23} parent=0 // loop_footer
    %s13 = sadd.s32 1, %s9
  $region7: #{styleless_gen_forward.23} parent=0 // loop_footer_branch
    %8 = sbr.rel target = $region3
  $region8: #{styleless_gen_forward.23} parent=0 // loop_exit
    _

// kernel: styleless_gen_forward.24
$region0: #{styleless_gen_forward.24}
  #allocation0 [shape = 'u32[]', space=smem, size = 0x4, offset = 0x4, fixed_abs, tag = 'smem constant byte address 0x4 - core index']
  #allocation1 [shape = 'u32[144,128]{1,0:T(1,128)}', space=vmem, size = 0x12000, scoped, tag = 'internal scratch']
  %s0 = inlined_call_operand.vmem [shape: bf16[2,16,72], index: 0, kind: input, shape index: {}]
  %s1 = inlined_call_operand.vmem [shape: bf16[72,64], index: 1, kind: input, shape index: {}]
  %s2 = inlined_call_operand.vmem [shape: f32[1,64], index: 2, kind: input, shape index: {}]
  %s3 = inlined_call_operand.vmem [shape: bf16[2,16,64], index: 3, kind: output, shape index: {}]
  %s4 = sld [smem:[#allocation0]]
  $region45: #{styleless_gen_forward.24} parent=0
    _
  %s6 = ssub.s32 1, %s4
  %s7 = scalar_select 0, %s6, %s4
  loop: start=0, step=1, limit=4
  $region2: #{styleless_gen_forward.24} parent=0 // loop_pre_header
    _
  $region3: #{styleless_gen_forward.24} parent=0 // loop_header
    %s9 = sphi 0, %s13
    %p10 = scmp.ge.s32.totalorder %s9, 4
    %s16 = sphi 0, %s28
    %s17 = sphi 0, %s24
    %s18 = sphi 0, %s16
    %s19 = sphi 0, %s17
    %s20 = sphi 0, %s18
    %s21 = sphi 0, %s19
    %s33 = sphi 0, %s35
    %s36 = sphi 0, %s33
    %s37 = sphi 0, %s36
    %s53 = sphi 0, %s37
    %s57 = sphi 0, %s57
    %s59 = sphi 0, %s57
    %s60 = sphi 0, %s59
    %s74 = sphi 0, %s60
    %s78 = sphi 0, %s78
    %s80 = sphi 0, %s78
    %s81 = sphi 0, %s80
    %s95 = sphi 0, %s81
    %s103 = sphi 0, %s105
    %s106 = sphi 0, %s103
    %s107 = sphi 0, %s106
    %s123 = sphi 0, %s107
  $region4: #{styleless_gen_forward.24} parent=0 // loop_header_branch
    %12 = sbr.rel (%p10) target = $region8
  $region5: #{styleless_gen_forward.24} parent=0 // loop_body
    %s14 = ssub.s32 %s9, 1
    %s15 = ssub.s32 %s9, 2
    %s22 = sadd.s32 1, %s17
    %p23 = scmp.ge.s32.totalorder %s22, 1
    %s24 = scalar_select %p23, 0, %s22
    %s25 = sadd.s32 1, %s16
    %s26 = scalar_select %p23, %s25, %s16
    %p27 = scmp.ge.s32.totalorder %s26, 2
    %s28 = scalar_select %p27, 0, %s26
    %s29 = ssub.s32 %s16, %s28
    %s30 = ssub.s32 %s17, %s24
    %s31 = sor.u32 %s29, %s30
    %p32 = scmp.eq.s32.totalorder %s31, 0
    %s34 = sadd.s32 %s33, 1
    %s35 = scalar_select %p32, %s33, %s34
    %p38 = pneg %p32
    %p39 = scmp.eq.s32.totalorder %s9, 1
    %p40 = por %p38, %p39
    %p41 = scmp.ne.s32.totalorder %s33, %s36
    %p42 = scmp.eq.s32.totalorder %s9, 0
    %p43 = por %p41, %p42
    %p44 = scmp.ne.s32.totalorder %s33, %s36
    %p45 = scmp.eq.s32.totalorder %s14, 1
    %p46 = por %p44, %p45
    %p47 = scmp.ne.s32.totalorder %s36, %s37
    %p48 = scmp.eq.s32.totalorder %s14, 0
    %p49 = por %p47, %p48
    %p50 = scmp.ne.s32.totalorder %s36, %s37
    %p51 = scmp.eq.s32.totalorder %s15, 1
    %p52 = por %p50, %p51
    %p54 = scmp.ne.s32.totalorder %s37, %s53
    %p55 = scmp.eq.s32.totalorder %s15, 0
    %p56 = por %p54, %p55
    %s58 = sadd.s32 %s57, 1
    %p61 = scmp.eq.s32.totalorder %s9, 1
    %p62 = scmp.ne.s32.totalorder %s57, %s59
    %p63 = scmp.eq.s32.totalorder %s9, 0
    %p64 = por %p62, %p63
    %p65 = scmp.ne.s32.totalorder %s57, %s59
    %p66 = scmp.eq.s32.totalorder %s14, 1
    %p67 = por %p65, %p66
    %p68 = scmp.ne.s32.totalorder %s59, %s60
    %p69 = scmp.eq.s32.totalorder %s14, 0
    %p70 = por %p68, %p69
    %p71 = scmp.ne.s32.totalorder %s59, %s60
    %p72 = scmp.eq.s32.totalorder %s15, 1
    %p73 = por %p71, %p72
    %p75 = scmp.ne.s32.totalorder %s60, %s74
    %p76 = scmp.eq.s32.totalorder %s15, 0
    %p77 = por %p75, %p76
    %s79 = sadd.s32 %s78, 1
    %p82 = scmp.eq.s32.totalorder %s9, 1
    %p83 = scmp.ne.s32.totalorder %s78, %s80
    %p84 = scmp.eq.s32.totalorder %s9, 0
    %p85 = por %p83, %p84
    %p86 = scmp.ne.s32.totalorder %s78, %s80
    %p87 = scmp.eq.s32.totalorder %s14, 1
    %p88 = por %p86, %p87
    %p89 = scmp.ne.s32.totalorder %s80, %s81
    %p90 = scmp.eq.s32.totalorder %s14, 0
    %p91 = por %p89, %p90
    %p92 = scmp.ne.s32.totalorder %s80, %s81
    %p93 = scmp.eq.s32.totalorder %s15, 1
    %p94 = por %p92, %p93
    %p96 = scmp.ne.s32.totalorder %s81, %s95
    %p97 = scmp.eq.s32.totalorder %s15, 0
    %p98 = por %p96, %p97
    %s99 = ssub.s32 %s16, %s28
    %s100 = ssub.s32 %s17, %s24
    %s101 = sor.u32 %s99, %s100
    %p102 = scmp.eq.s32.totalorder %s101, 0
    %s104 = sadd.s32 %s103, 1
    %s105 = scalar_select %p102, %s103, %s104
    %p108 = pneg %p102
    %p109 = scmp.eq.s32.totalorder %s9, 1
    %p110 = por %p108, %p109
    %p111 = scmp.ne.s32.totalorder %s103, %s106
    %p112 = scmp.eq.s32.totalorder %s9, 0
    %p113 = por %p111, %p112
    %p114 = scmp.ne.s32.totalorder %s103, %s106
    %p115 = scmp.eq.s32.totalorder %s14, 1
    %p116 = por %p114, %p115
    %p117 = scmp.ne.s32.totalorder %s106, %s107
    %p118 = scmp.eq.s32.totalorder %s14, 0
    %p119 = por %p117, %p118
    %p120 = scmp.ne.s32.totalorder %s106, %s107
    %p121 = scmp.eq.s32.totalorder %s15, 1
    %p122 = por %p120, %p121
    %p124 = scmp.ne.s32.totalorder %s107, %s123
    %p125 = scmp.eq.s32.totalorder %s15, 0
    %p126 = por %p124, %p125
    %p127 = scmp.le.s32.totalorder 1, %s9
    %p128 = scmp.lt.s32.totalorder %s9, 3
    %p129 = pnand %p127, %p128
    %p130 = pneg %p129
    // Predicated region
    $region9: #{styleless_gen_forward.24} parent=5 // pred_check
      _
    $region10: #{styleless_gen_forward.24} parent=5 // pred_check_branch
      %132 = sbr.rel (%p129) target = $region12
    $region11: #{styleless_gen_forward.24} parent=5 // pred_region
      %s133 = ssub.s32 %s9, 1
      // Predicated region
      $region13: #{styleless_gen_forward.24} parent=11 // pred_check
        %p134 = pneg %p70
      $region14: #{styleless_gen_forward.24} parent=11 // pred_check_branch
        %136 = sbr.rel (%p134) target = $region16
      $region15: #{styleless_gen_forward.24} parent=11 // pred_region
        _
      $region16: #{styleless_gen_forward.24} parent=11 // pred_fallthru
        _
      // Predicated region
      $region17: #{styleless_gen_forward.24} parent=11 // pred_check
        %p137 = pneg %p91
      $region18: #{styleless_gen_forward.24} parent=11 // pred_check_branch
        %139 = sbr.rel (%p137) target = $region20
      $region19: #{styleless_gen_forward.24} parent=11 // pred_region
        _
      $region20: #{styleless_gen_forward.24} parent=11 // pred_fallthru
        _
    $region12: #{styleless_gen_forward.24} parent=5 // pred_fallthru
      _
    %p140 = scmp.lt.s32.totalorder %s9, 2
    // Predicated region
    $region21: #{styleless_gen_forward.24} parent=5 // pred_check
      %p141 = pneg %p140
    $region22: #{styleless_gen_forward.24} parent=5 // pred_check_branch
      %143 = sbr.rel (%p141) target = $region24
    $region23: #{styleless_gen_forward.24} parent=5 // pred_region
      // Predicated region
      $region25: #{styleless_gen_forward.24} parent=23 // pred_check
        %p144 = pneg %p43
      $region26: #{styleless_gen_forward.24} parent=23 // pred_check_branch
        %146 = sbr.rel (%p144) target = $region28
      $region27: #{styleless_gen_forward.24} parent=23 // pred_region
        %s147 = smul.u32 2, %s17
        %p148 = scmp.lt.s32.totalorder %s16, 1
        %s149 = scalar_select %p148, %s16, 1
        %p150 = scmp.lt.s32.totalorder %s147, 1
        %s151 = scalar_select %p150, %s147, 1
        %s152 = smul.addr %s149, 2
        %s153 = sadd.s32 %s151, %s152
        %s154 = smul.addr %s153, 4
        %s155 = scalar_lea.vmem %s0, %s154
        %s156 = smul.u32 2, %s17
      $region28: #{styleless_gen_forward.24} parent=23 // pred_fallthru
        _
    $region24: #{styleless_gen_forward.24} parent=5 // pred_fallthru
      _
    %p157 = scmp.le.s32.totalorder 1, %s9
    %p158 = scmp.lt.s32.totalorder %s9, 3
    %p159 = pnand %p157, %p158
    %p160 = pneg %p159
    // Predicated region
    $region29: #{styleless_gen_forward.24} parent=5 // pred_check
      _
    $region30: #{styleless_gen_forward.24} parent=5 // pred_check_branch
      %162 = sbr.rel (%p159) target = $region32
    $region31: #{styleless_gen_forward.24} parent=5 // pred_region
      %s163 = ssub.s32 %s9, 1
      %s164 = smul.u32 2, %s19
      %p165 = scmp.lt.s32.totalorder %s18, 1
      %s166 = scalar_select %p165, %s18, 1
      %p167 = scmp.lt.s32.totalorder %s164, 1
      %s168 = scalar_select %p167, %s164, 1
      %s169 = smul.addr %s166, 2
      %s170 = sadd.s32 %s168, %s169
      %s171 = smul.addr %s170, 4
      %s172 = scalar_lea.vmem %s0, %s171
      %p173 = pneg %p49
      %p174 = pneg %p46
      %p175 = pneg %p70
      %p176 = pneg %p67
      %p177 = pneg %p91
      %p178 = pneg %p88
      %p179 = pneg %p119
      %p180 = pneg %p116
      %s181 = smul.u32 2, %s19
      %p182 = scmp.lt.s32.totalorder %s18, 1
      %s183 = scalar_select %p182, %s18, 1
      %p184 = scmp.lt.s32.totalorder %s181, 1
      %s185 = scalar_select %p184, %s181, 1
      %s186 = smul.addr %s183, 2
      %s187 = sadd.s32 %s185, %s186
      %s188 = smul.addr %s187, 4
      %s189 = scalar_lea.vmem %s3, %s188
      %s190 = smul.u32 2, %s19
      %p191 = scmp.lt.s32.totalorder %s18, 1
      %s192 = scalar_select %p191, %s18, 1
      %p193 = scmp.lt.s32.totalorder %s190, 1
      %s194 = scalar_select %p193, %s190, 1
      %s195 = smul.addr %s192, 2
      %s196 = sadd.s32 %s194, %s195
      %s197 = smul.addr %s196, 4
      %s198 = scalar_lea.vmem %s0, %s197
      %s199 = smul.u32 2, %s19
      %s200 = smul.u32 2, %s19
      %p201 = scmp.lt.s32.totalorder %s18, 1
      %s202 = scalar_select %p201, %s18, 1
      %p203 = scmp.lt.s32.totalorder %s200, 1
      %s204 = scalar_select %p203, %s200, 1
      %s205 = smul.addr %s202, 2
      %s206 = sadd.s32 %s204, %s205
      %s207 = smul.addr %s206, 4
      %s208 = scalar_lea.vmem %s3, %s207
      %s209 = smul.u32 2, %s19
      %v211 = vld [vmem:[%s198] sm:$0xf]
      %v212 = vld [vmem:[%s198 + $0x4] sm:$0xf]
      %v213 = vld [vmem:[%s1] sm:$0xf]
      %v214 = vld [vmem:[%s1 + $0x4] sm:$0xf]
      %v215 = vld [vmem:[%s1 + $0x8] sm:$0xf]
      %v216 = vld [vmem:[%s1 + $0xc] sm:$0xf]
      %v217 = vld [vmem:[%s1 + $0x10] sm:$0xf]
      %v218 = vld [vmem:[%s1 + $0x14] sm:$0xf]
      %v219 = vld [vmem:[%s1 + $0x18] sm:$0xf]
      %v220 = vld [vmem:[%s1 + $0x1c] sm:$0xf]
      %v221 = vld [vmem:[%s1 + $0x20] sm:$0xf]
      %v222 = vld [vmem:[%s2] sm:$0x1]
      %v224 = vlaneseq
      %v225 = vshrl.u32 %v224, 7
      %v226 = vsub.s32 0, %v225
      %v227 = vrot.slane %v222, %v226
      %v231 = vunpack.c.l.b16 %v211
      %v232 = vunpack.c.l.b16 %v212
      %v233 = vpack.c.b16 %v232, %v231
      %v243 = vunpack.c.l.b16 %v213
      %v244 = vunpack.c.l.b16 %v214
      %v245 = vunpack.c.l.b16 %v215
      %v246 = vunpack.c.l.b16 %v216
      %v247 = vunpack.c.l.b16 %v217
      %v248 = vunpack.c.l.b16 %v218
      %v249 = vunpack.c.l.b16 %v219
      %v250 = vunpack.c.l.b16 %v220
      %v251 = vunpack.c.l.b16 %v221
      %v252 = vpack.c.b16 %v244, %v243
      %v253 = vpack.c.b16 %v246, %v245
      %v254 = vpack.c.b16 %v248, %v247
      %v255 = vpack.c.b16 %v250, %v249
      %v256 = vpack.c.b16 %v251, %v251
      %vm261 = vcmask 588800
      %v263 = vsel %vm261, %v233, 0
      %vm265 = vcmask 1043456
      %v267 = vsel %vm265, %v256, 0
      %269 = vmatprep.subr.bf16.mxu0 0
      %270 = vmatpush1.bf16.msra.mxu0 %v252
      %271 = vmatprep.subr.bf16.mxu0 0
      %272 = vmatpush1.bf16.msra.mxu0 %v253
      %273 = vmatprep.subr.bf16.mxu0 0
      %274 = vmatpush1.bf16.msra.mxu0 %v254
      %275 = vmatprep.subr.bf16.mxu0 0
      %276 = vmatpush1.bf16.msra.mxu0 %v255
      %277 = vmatprep.subr.bf16.mxu0 0
      %278 = vmatpush1.bf16.msra.mxu0 %v267
      %279 = vmatprep.subr.bf16.mxu0 0
      %280 = vmatpush1.bf16.msra.mxu0 0
      %281 = vmatprep.subr.bf16.mxu0 0
      %282 = vmatpush1.bf16.msra.mxu0 0
      %283 = vmatprep.subr.bf16.mxu0 0
      %284 = vmatpush1.bf16.msra.mxu0 0
      %285 = vmatprep.subr.bf16.mxu0 0
      %286 = vmatpush1.bf16.msra.mxu0 0
      %287 = vmatprep.subr.bf16.mxu0 0
      %288 = vmatpush1.bf16.msra.mxu0 0
      %289 = vmatprep.subr.bf16.mxu0 0
      %290 = vmatpush1.bf16.msra.mxu0 0
      %291 = vmatprep.subr.bf16.mxu0 0
      %292 = vmatpush1.bf16.msra.mxu0 0
      %293 = vmatprep.subr.bf16.mxu0 0
      %294 = vmatpush1.bf16.msra.mxu0 0
      %295 = vmatprep.subr.bf16.mxu0 0
      %296 = vmatpush1.bf16.msra.mxu0 0
      %297 = vmatprep.subr.bf16.mxu0 0
      %298 = vmatpush1.bf16.msra.mxu0 0
      %299 = vmatprep.subr.bf16.mxu0 0
      %300 = vmatpush1.bf16.msra.mxu0 0
      %301 = vmatprep.mubr.bf16.mxu0 0
      %302 = vmatmul.mubr.bf16.gmra.mrb[0].mxu0 %v263
      %v303 = vpop.f32.mrb[0].mxu0
      %v304 = vadd.f32 %v227, %v303
      %v305 = vpop.f32.mrb[0].mxu0
      %v306 = vpop.f32.mrb[0].mxu0
      %v307 = vadd.f32 %v227, %v306
      %v308 = vpop.f32.mrb[0].mxu0
      %309 = vdwg.mxu0
      %v310 = vmax.f32 %v304, 0.0
      %v311 = vmax.f32 %v307, 0.0
      %v312 = vpack.c.bf16 %v311, %v310
      %v314 = vunpack.c.l.b16 %v312
      %v315 = vunpack.c.h.b16 %v312
      %v316 = vpack.c.b16 %v314, %v314
      %v317 = vpack.c.b16 %v315, %v315
      %vm320 = vcmask 519168
      %321 = vst.msk [vmem:[%s208] sm:$0xf] %vm320, %v316
      %322 = vst.msk [vmem:[%s208 + $0x4] sm:$0xf] %vm320, %v317
      %s323 = smul.u32 2, %s19
      %p324 = scmp.lt.s32.totalorder %s18, 1
      %s325 = scalar_select %p324, %s18, 1
      %p326 = scmp.lt.s32.totalorder %s323, 1
      %s327 = scalar_select %p326, %s323, 1
      %s328 = smul.addr %s325, 2
      %s329 = sadd.s32 %s327, %s328
      %s330 = smul.addr %s329, 4
      %s331 = scalar_lea.vmem %s3, %s330
      // Predicated region
      $region33: #{styleless_gen_forward.24} parent=31 // pred_check
        %p332 = pneg %p116
      $region34: #{styleless_gen_forward.24} parent=31 // pred_check_branch
        %334 = sbr.rel (%p332) target = $region36
      $region35: #{styleless_gen_forward.24} parent=31 // pred_region
        %s335 = smul.u32 2, %s19
      $region36: #{styleless_gen_forward.24} parent=31 // pred_fallthru
        _
    $region32: #{styleless_gen_forward.24} parent=5 // pred_fallthru
      _
    %p336 = scmp.le.s32.totalorder 2, %s9
    // Predicated region
    $region37: #{styleless_gen_forward.24} parent=5 // pred_check
      %p337 = pneg %p336
    $region38: #{styleless_gen_forward.24} parent=5 // pred_check_branch
      %339 = sbr.rel (%p337) target = $region40
    $region39: #{styleless_gen_forward.24} parent=5 // pred_region
      %s340 = ssub.s32 %s9, 2
      // Predicated region
      $region41: #{styleless_gen_forward.24} parent=39 // pred_check
        %p341 = pneg %p122
      $region42: #{styleless_gen_forward.24} parent=39 // pred_check_branch
        %343 = sbr.rel (%p341) target = $region44
      $region43: #{styleless_gen_forward.24} parent=39 // pred_region
        %s344 = smul.u32 2, %s21
        %p345 = scmp.lt.s32.totalorder %s20, 1
        %s346 = scalar_select %p345, %s20, 1
        %p347 = scmp.lt.s32.totalorder %s344, 1
        %s348 = scalar_select %p347, %s344, 1
        %s349 = smul.addr %s346, 2
        %s350 = sadd.s32 %s348, %s349
        %s351 = smul.addr %s350, 4
        %s352 = scalar_lea.vmem %s3, %s351
      $region44: #{styleless_gen_forward.24} parent=39 // pred_fallthru
        _
    $region40: #{styleless_gen_forward.24} parent=5 // pred_fallthru
      _
  $region6: #{styleless_gen_forward.24} parent=0 // loop_footer
    %s13 = sadd.s32 1, %s9
  $region7: #{styleless_gen_forward.24} parent=0 // loop_footer_branch
    %8 = sbr.rel target = $region3
  $region8: #{styleless_gen_forward.24} parent=0 // loop_exit
    _

// kernel: styleless_gen_forward.29
$region0: #{styleless_gen_forward.29}
  #allocation0 [shape = 'u32[]', space=smem, size = 0x4, offset = 0x4, fixed_abs, tag = 'smem constant byte address 0x4 - core index']
  #allocation1 [shape = 'u32[144,128]{1,0:T(1,128)}', space=vmem, size = 0x12000, scoped, tag = 'internal scratch']
  %s0 = inlined_call_operand.vmem [shape: bf16[2,64,1600], index: 0, kind: input, shape index: {}]
  %s1 = inlined_call_operand.vmem [shape: bf16[1600,32], index: 1, kind: input, shape index: {}]
  %s2 = inlined_call_operand.vmem [shape: f32[1,32], index: 2, kind: input, shape index: {}]
  %s3 = inlined_call_operand.vmem [shape: f32[1,32], index: 3, kind: input, shape index: {}]
  %s4 = inlined_call_operand.vmem [shape: f32[1,32], index: 4, kind: input, shape index: {}]
  %s5 = inlined_call_operand.vmem [shape: bf16[2,64,32], index: 5, kind: output, shape index: {}]
  %s6 = sld [smem:[#allocation0]]
  $region53: #{styleless_gen_forward.29} parent=0
    _
  %s8 = ssub.s32 1, %s6
  %s9 = scalar_select 0, %s8, %s6
  loop: start=0, step=1, limit=4
  $region2: #{styleless_gen_forward.29} parent=0 // loop_pre_header
    _
  $region3: #{styleless_gen_forward.29} parent=0 // loop_header
    %s11 = sphi 0, %s15
    %p12 = scmp.ge.s32.totalorder %s11, 4
    %s18 = sphi 0, %s30
    %s19 = sphi 0, %s26
    %s20 = sphi 0, %s18
    %s21 = sphi 0, %s19
    %s22 = sphi 0, %s20
    %s23 = sphi 0, %s21
    %s35 = sphi 0, %s37
    %s38 = sphi 0, %s35
    %s39 = sphi 0, %s38
    %s55 = sphi 0, %s39
    %s59 = sphi 0, %s59
    %s61 = sphi 0, %s59
    %s62 = sphi 0, %s61
    %s76 = sphi 0, %s62
    %s80 = sphi 0, %s80
    %s82 = sphi 0, %s80
    %s83 = sphi 0, %s82
    %s97 = sphi 0, %s83
    %s101 = sphi 0, %s101
    %s103 = sphi 0, %s101
    %s104 = sphi 0, %s103
    %s118 = sphi 0, %s104
    %s122 = sphi 0, %s122
    %s124 = sphi 0, %s122
    %s125 = sphi 0, %s124
    %s139 = sphi 0, %s125
    %s147 = sphi 0, %s149
    %s150 = sphi 0, %s147
    %s151 = sphi 0, %s150
    %s167 = sphi 0, %s151
  $region4: #{styleless_gen_forward.29} parent=0 // loop_header_branch
    %14 = sbr.rel (%p12) target = $region8
  $region5: #{styleless_gen_forward.29} parent=0 // loop_body
    %s16 = ssub.s32 %s11, 1
    %s17 = ssub.s32 %s11, 2
    %s24 = sadd.s32 1, %s19
    %p25 = scmp.ge.s32.totalorder %s24, 1
    %s26 = scalar_select %p25, 0, %s24
    %s27 = sadd.s32 1, %s18
    %s28 = scalar_select %p25, %s27, %s18
    %p29 = scmp.ge.s32.totalorder %s28, 2
    %s30 = scalar_select %p29, 0, %s28
    %s31 = ssub.s32 %s18, %s30
    %s32 = ssub.s32 %s19, %s26
    %s33 = sor.u32 %s31, %s32
    %p34 = scmp.eq.s32.totalorder %s33, 0
    %s36 = sadd.s32 %s35, 1
    %s37 = scalar_select %p34, %s35, %s36
    %p40 = pneg %p34
    %p41 = scmp.eq.s32.totalorder %s11, 1
    %p42 = por %p40, %p41
    %p43 = scmp.ne.s32.totalorder %s35, %s38
    %p44 = scmp.eq.s32.totalorder %s11, 0
    %p45 = por %p43, %p44
    %p46 = scmp.ne.s32.totalorder %s35, %s38
    %p47 = scmp.eq.s32.totalorder %s16, 1
    %p48 = por %p46, %p47
    %p49 = scmp.ne.s32.totalorder %s38, %s39
    %p50 = scmp.eq.s32.totalorder %s16, 0
    %p51 = por %p49, %p50
    %p52 = scmp.ne.s32.totalorder %s38, %s39
    %p53 = scmp.eq.s32.totalorder %s17, 1
    %p54 = por %p52, %p53
    %p56 = scmp.ne.s32.totalorder %s39, %s55
    %p57 = scmp.eq.s32.totalorder %s17, 0
    %p58 = por %p56, %p57
    %s60 = sadd.s32 %s59, 1
    %p63 = scmp.eq.s32.totalorder %s11, 1
    %p64 = scmp.ne.s32.totalorder %s59, %s61
    %p65 = scmp.eq.s32.totalorder %s11, 0
    %p66 = por %p64, %p65
    %p67 = scmp.ne.s32.totalorder %s59, %s61
    %p68 = scmp.eq.s32.totalorder %s16, 1
    %p69 = por %p67, %p68
    %p70 = scmp.ne.s32.totalorder %s61, %s62
    %p71 = scmp.eq.s32.totalorder %s16, 0
    %p72 = por %p70, %p71
    %p73 = scmp.ne.s32.totalorder %s61, %s62
    %p74 = scmp.eq.s32.totalorder %s17, 1
    %p75 = por %p73, %p74
    %p77 = scmp.ne.s32.totalorder %s62, %s76
    %p78 = scmp.eq.s32.totalorder %s17, 0
    %p79 = por %p77, %p78
    %s81 = sadd.s32 %s80, 1
    %p84 = scmp.eq.s32.totalorder %s11, 1
    %p85 = scmp.ne.s32.totalorder %s80, %s82
    %p86 = scmp.eq.s32.totalorder %s11, 0
    %p87 = por %p85, %p86
    %p88 = scmp.ne.s32.totalorder %s80, %s82
    %p89 = scmp.eq.s32.totalorder %s16, 1
    %p90 = por %p88, %p89
    %p91 = scmp.ne.s32.totalorder %s82, %s83
    %p92 = scmp.eq.s32.totalorder %s16, 0
    %p93 = por %p91, %p92
    %p94 = scmp.ne.s32.totalorder %s82, %s83
    %p95 = scmp.eq.s32.totalorder %s17, 1
    %p96 = por %p94, %p95
    %p98 = scmp.ne.s32.totalorder %s83, %s97
    %p99 = scmp.eq.s32.totalorder %s17, 0
    %p100 = por %p98, %p99
    %s102 = sadd.s32 %s101, 1
    %p105 = scmp.eq.s32.totalorder %s11, 1
    %p106 = scmp.ne.s32.totalorder %s101, %s103
    %p107 = scmp.eq.s32.totalorder %s11, 0
    %p108 = por %p106, %p107
    %p109 = scmp.ne.s32.totalorder %s101, %s103
    %p110 = scmp.eq.s32.totalorder %s16, 1
    %p111 = por %p109, %p110
    %p112 = scmp.ne.s32.totalorder %s103, %s104
    %p113 = scmp.eq.s32.totalorder %s16, 0
    %p114 = por %p112, %p113
    %p115 = scmp.ne.s32.totalorder %s103, %s104
    %p116 = scmp.eq.s32.totalorder %s17, 1
    %p117 = por %p115, %p116
    %p119 = scmp.ne.s32.totalorder %s104, %s118
    %p120 = scmp.eq.s32.totalorder %s17, 0
    %p121 = por %p119, %p120
    %s123 = sadd.s32 %s122, 1
    %p126 = scmp.eq.s32.totalorder %s11, 1
    %p127 = scmp.ne.s32.totalorder %s122, %s124
    %p128 = scmp.eq.s32.totalorder %s11, 0
    %p129 = por %p127, %p128
    %p130 = scmp.ne.s32.totalorder %s122, %s124
    %p131 = scmp.eq.s32.totalorder %s16, 1
    %p132 = por %p130, %p131
    %p133 = scmp.ne.s32.totalorder %s124, %s125
    %p134 = scmp.eq.s32.totalorder %s16, 0
    %p135 = por %p133, %p134
    %p136 = scmp.ne.s32.totalorder %s124, %s125
    %p137 = scmp.eq.s32.totalorder %s17, 1
    %p138 = por %p136, %p137
    %p140 = scmp.ne.s32.totalorder %s125, %s139
    %p141 = scmp.eq.s32.totalorder %s17, 0
    %p142 = por %p140, %p141
    %s143 = ssub.s32 %s18, %s30
    %s144 = ssub.s32 %s19, %s26
    %s145 = sor.u32 %s143, %s144
    %p146 = scmp.eq.s32.totalorder %s145, 0
    %s148 = sadd.s32 %s147, 1
    %s149 = scalar_select %p146, %s147, %s148
    %p152 = pneg %p146
    %p153 = scmp.eq.s32.totalorder %s11, 1
    %p154 = por %p152, %p153
    %p155 = scmp.ne.s32.totalorder %s147, %s150
    %p156 = scmp.eq.s32.totalorder %s11, 0
    %p157 = por %p155, %p156
    %p158 = scmp.ne.s32.totalorder %s147, %s150
    %p159 = scmp.eq.s32.totalorder %s16, 1
    %p160 = por %p158, %p159
    %p161 = scmp.ne.s32.totalorder %s150, %s151
    %p162 = scmp.eq.s32.totalorder %s16, 0
    %p163 = por %p161, %p162
    %p164 = scmp.ne.s32.totalorder %s150, %s151
    %p165 = scmp.eq.s32.totalorder %s17, 1
    %p166 = por %p164, %p165
    %p168 = scmp.ne.s32.totalorder %s151, %s167
    %p169 = scmp.eq.s32.totalorder %s17, 0
    %p170 = por %p168, %p169
    %p171 = scmp.le.s32.totalorder 1, %s11
    %p172 = scmp.lt.s32.totalorder %s11, 3
    %p173 = pnand %p171, %p172
    %p174 = pneg %p173
    // Predicated region
    $region9: #{styleless_gen_forward.29} parent=5 // pred_check
      _
    $region10: #{styleless_gen_forward.29} parent=5 // pred_check_branch
      %176 = sbr.rel (%p173) target = $region12
    $region11: #{styleless_gen_forward.29} parent=5 // pred_region
      %s177 = ssub.s32 %s11, 1
      // Predicated region
      $region13: #{styleless_gen_forward.29} parent=11 // pred_check
        %p178 = pneg %p72
      $region14: #{styleless_gen_forward.29} parent=11 // pred_check_branch
        %180 = sbr.rel (%p178) target = $region16
      $region15: #{styleless_gen_forward.29} parent=11 // pred_region
        _
      $region16: #{styleless_gen_forward.29} parent=11 // pred_fallthru
        _
      // Predicated region
      $region17: #{styleless_gen_forward.29} parent=11 // pred_check
        %p181 = pneg %p93
      $region18: #{styleless_gen_forward.29} parent=11 // pred_check_branch
        %183 = sbr.rel (%p181) target = $region20
      $region19: #{styleless_gen_forward.29} parent=11 // pred_region
        _
      $region20: #{styleless_gen_forward.29} parent=11 // pred_fallthru
        _
      // Predicated region
      $region21: #{styleless_gen_forward.29} parent=11 // pred_check
        %p184 = pneg %p114
      $region22: #{styleless_gen_forward.29} parent=11 // pred_check_branch
        %186 = sbr.rel (%p184) target = $region24
      $region23: #{styleless_gen_forward.29} parent=11 // pred_region
        _
      $region24: #{styleless_gen_forward.29} parent=11 // pred_fallthru
        _
      // Predicated region
      $region25: #{styleless_gen_forward.29} parent=11 // pred_check
        %p187 = pneg %p135
      $region26: #{styleless_gen_forward.29} parent=11 // pred_check_branch
        %189 = sbr.rel (%p187) target = $region28
      $region27: #{styleless_gen_forward.29} parent=11 // pred_region
        _
      $region28: #{styleless_gen_forward.29} parent=11 // pred_fallthru
        _
    $region12: #{styleless_gen_forward.29} parent=5 // pred_fallthru
      _
    %p190 = scmp.lt.s32.totalorder %s11, 2
    // Predicated region
    $region29: #{styleless_gen_forward.29} parent=5 // pred_check
      %p191 = pneg %p190
    $region30: #{styleless_gen_forward.29} parent=5 // pred_check_branch
      %193 = sbr.rel (%p191) target = $region32
    $region31: #{styleless_gen_forward.29} parent=5 // pred_region
      // Predicated region
      $region33: #{styleless_gen_forward.29} parent=31 // pred_check
        %p194 = pneg %p45
      $region34: #{styleless_gen_forward.29} parent=31 // pred_check_branch
        %196 = sbr.rel (%p194) target = $region36
      $region35: #{styleless_gen_forward.29} parent=31 // pred_region
        %s197 = smul.u32 8, %s19
        %p198 = scmp.lt.s32.totalorder %s18, 1
        %s199 = scalar_select %p198, %s18, 1
        %p200 = scmp.lt.s32.totalorder %s197, 7
        %s201 = scalar_select %p200, %s197, 7
        %s202 = smul.addr %s201, 13
        %s203 = smul.addr %s199, 104
        %s204 = sadd.s32 %s202, %s203
        %s205 = smul.addr %s204, 4
        %s206 = scalar_lea.vmem %s0, %s205
        %s207 = smul.u32 8, %s19
      $region36: #{styleless_gen_forward.29} parent=31 // pred_fallthru
        _
    $region32: #{styleless_gen_forward.29} parent=5 // pred_fallthru
      _
    %p208 = scmp.le.s32.totalorder 1, %s11
    %p209 = scmp.lt.s32.totalorder %s11, 3
    %p210 = pnand %p208, %p209
    %p211 = pneg %p210
    // Predicated region
    $region37: #{styleless_gen_forward.29} parent=5 // pred_check
      _
    $region38: #{styleless_gen_forward.29} parent=5 // pred_check_branch
      %213 = sbr.rel (%p210) target = $region40
    $region39: #{styleless_gen_forward.29} parent=5 // pred_region
      %s214 = ssub.s32 %s11, 1
      %s215 = smul.u32 8, %s21
      %p216 = scmp.lt.s32.totalorder %s20, 1
      %s217 = scalar_select %p216, %s20, 1
      %p218 = scmp.lt.s32.totalorder %s215, 7
      %s219 = scalar_select %p218, %s215, 7
      %s220 = smul.addr %s219, 13
      %s221 = smul.addr %s217, 104
      %s222 = sadd.s32 %s220, %s221
      %s223 = smul.addr %s222, 4
      %s224 = scalar_lea.vmem %s0, %s223
      %p225 = pneg %p51
      %p226 = pneg %p48
      %p227 = pneg %p72
      %p228 = pneg %p69
      %p229 = pneg %p93
      %p230 = pneg %p90
      %p231 = pneg %p114
      %p232 = pneg %p111
      %p233 = pneg %p135
      %p234 = pneg %p132
      %p235 = pneg %p163
      %p236 = pneg %p160
      %s237 = smul.u32 8, %s21
      %p238 = scmp.lt.s32.totalorder %s20, 1
      %s239 = scalar_select %p238, %s20, 1
      %p240 = scmp.lt.s32.totalorder %s237, 7
      %s241 = scalar_select %p240, %s237, 7
      %s242 = smul.addr %s239, 8
      %s243 = sadd.s32 %s241, %s242
      %s244 = smul.addr %s243, 4
      %s245 = scalar_lea.vmem %s5, %s244
      %s246 = smul.u32 8, %s21
      %p247 = scmp.lt.s32.totalorder %s20, 1
      %s248 = scalar_select %p247, %s20, 1
      %p249 = scmp.lt.s32.totalorder %s246, 7
      %s250 = scalar_select %p249, %s246, 7
      %s251 = smul.addr %s250, 13
      %s252 = smul.addr %s248, 104
      %s253 = sadd.s32 %s251, %s252
      %s254 = smul.addr %s253, 4
      %s255 = scalar_lea.vmem %s0, %s254
      %s256 = smul.u32 8, %s21
      %s257 = smul.u32 8, %s21
      %p258 = scmp.lt.s32.totalorder %s20, 1
      %s259 = scalar_select %p258, %s20, 1
      %p260 = scmp.lt.s32.totalorder %s257, 7
      %s261 = scalar_select %p260, %s257, 7
      %s262 = smul.addr %s259, 8
      %s263 = sadd.s32 %s261, %s262
      %s264 = smul.addr %s263, 4
      %s265 = scalar_lea.vmem %s5, %s264
      %s266 = smul.u32 8, %s21
      %v268 = vld [vmem:[%s255] sm:$0xff]
      %v269 = vld [vmem:[%s255 + $0x8] sm:$0xff]
      %v270 = vld [vmem:[%s255 + $0x10] sm:$0xff]
      %v271 = vld [vmem:[%s255 + $0x18] sm:$0xff]
      %v272 = vld [vmem:[%s255 + $0x20] sm:$0xff]
      %v273 = vld [vmem:[%s255 + $0x28] sm:$0xff]
      %v274 = vld [vmem:[%s255 + $0x30] sm:$0xf]
      %v275 = vld [vmem:[%s255 + $0x34] sm:$0xff]
      %v276 = vld [vmem:[%s255 + $0x3c] sm:$0xff]
      %v277 = vld [vmem:[%s255 + $0x44] sm:$0xff]
      %v278 = vld [vmem:[%s255 + $0x4c] sm:$0xff]
      %v279 = vld [vmem:[%s255 + $0x54] sm:$0xff]
      %v280 = vld [vmem:[%s255 + $0x5c] sm:$0xff]
      %v281 = vld [vmem:[%s255 + $0x64] sm:$0xf]
      %v282 = vld [vmem:[%s255 + $0x68] sm:$0xff]
      %v283 = vld [vmem:[%s255 + $0x70] sm:$0xff]
      %v284 = vld [vmem:[%s255 + $0x78] sm:$0xff]
      %v285 = vld [vmem:[%s255 + $0x80] sm:$0xff]
      %v286 = vld [vmem:[%s255 + $0x88] sm:$0xff]
      %v287 = vld [vmem:[%s255 + $0x90] sm:$0xff]
      %v288 = vld [vmem:[%s255 + $0x98] sm:$0xf]
      %v289 = vld [vmem:[%s255 + $0x9c] sm:$0xff]
      %v290 = vld [vmem:[%s255 + $0xa4] sm:$0xff]
      %v291 = vld [vmem:[%s255 + $0xac] sm:$0xff]
      %v292 = vld [vmem:[%s255 + $0xb4] sm:$0xff]
      %v293 = vld [vmem:[%s255 + $0xbc] sm:$0xff]
      %v294 = vld [vmem:[%s255 + $0xc4] sm:$0xff]
      %v295 = vld [vmem:[%s255 + $0xcc] sm:$0xf]
      %v296 = vld [vmem:[%s255 + $0xd0] sm:$0xff]
      %v297 = vld [vmem:[%s255 + $0xd8] sm:$0xff]
      %v298 = vld [vmem:[%s255 + $0xe0] sm:$0xff]
      %v299 = vld [vmem:[%s255 + $0xe8] sm:$0xff]
      %v300 = vld [vmem:[%s255 + $0xf0] sm:$0xff]
      %v301 = vld [vmem:[%s255 + $0xf8] sm:$0xff]
      %v302 = vld [vmem:[%s255 + $0x100] sm:$0xf]
      %v303 = vld [vmem:[%s255 + $0x104] sm:$0xff]
      %v304 = vld [vmem:[%s255 + $0x10c] sm:$0xff]
      %v305 = vld [vmem:[%s255 + $0x114] sm:$0xff]
      %v306 = vld [vmem:[%s255 + $0x11c] sm:$0xff]
      %v307 = vld [vmem:[%s255 + $0x124] sm:$0xff]
      %v308 = vld [vmem:[%s255 + $0x12c] sm:$0xff]
      %v309 = vld [vmem:[%s255 + $0x134] sm:$0xf]
      %v310 = vld [vmem:[%s255 + $0x138] sm:$0xff]
      %v311 = vld [vmem:[%s255 + $0x140] sm:$0xff]
      %v312 = vld [vmem:[%s255 + $0x148] sm:$0xff]
      %v313 = vld [vmem:[%s255 + $0x150] sm:$0xff]
      %v314 = vld [vmem:[%s255 + $0x158] sm:$0xff]
      %v315 = vld [vmem:[%s255 + $0x160] sm:$0xff]
      %v316 = vld [vmem:[%s255 + $0x168] sm:$0xf]
      %v317 = vld [vmem:[%s255 + $0x16c] sm:$0xff]
      %v318 = vld [vmem:[%s255 + $0x174] sm:$0xff]
      %v319 = vld [vmem:[%s255 + $0x17c] sm:$0xff]
      %v320 = vld [vmem:[%s255 + $0x184] sm:$0xff]
      %v321 = vld [vmem:[%s255 + $0x18c] sm:$0xff]
      %v322 = vld [vmem:[%s255 + $0x194] sm:$0xff]
      %v323 = vld [vmem:[%s255 + $0x19c] sm:$0xf]
      %v324 = vld [vmem:[%s1] sm:$0xf]
      %v325 = vld [vmem:[%s1 + $0x4] sm:$0xf]
      %v326 = vld [vmem:[%s1 + $0x8] sm:$0xf]
      %v327 = vld [vmem:[%s1 + $0xc] sm:$0xf]
      %v328 = vld [vmem:[%s1 + $0x10] sm:$0xf]
      %v329 = vld [vmem:[%s1 + $0x14] sm:$0xf]
      %v330 = vld [vmem:[%s1 + $0x18] sm:$0xf]
      %v331 = vld [vmem:[%s1 + $0x1c] sm:$0xf]
      %v332 = vld [vmem:[%s1 + $0x20] sm:$0xf]
      %v333 = vld [vmem:[%s1 + $0x24] sm:$0xf]
      %v334 = vld [vmem:[%s1 + $0x28] sm:$0xf]
      %v335 = vld [vmem:[%s1 + $0x2c] sm:$0xf]
      %v336 = vld [vmem:[%s1 + $0x30] sm:$0xf]
      %v337 = vld [vmem:[%s1 + $0x34] sm:$0xf]
      %v338 = vld [vmem:[%s1 + $0x38] sm:$0xf]
      %v339 = vld [vmem:[%s1 + $0x3c] sm:$0xf]
      %v340 = vld [vmem:[%s1 + $0x40] sm:$0xf]
      %v341 = vld [vmem:[%s1 + $0x44] sm:$0xf]
      %v342 = vld [vmem:[%s1 + $0x48] sm:$0xf]
      %v343 = vld [vmem:[%s1 + $0x4c] sm:$0xf]
      %v344 = vld [vmem:[%s1 + $0x50] sm:$0xf]
      %v345 = vld [vmem:[%s1 + $0x54] sm:$0xf]
      %v346 = vld [vmem:[%s1 + $0x58] sm:$0xf]
      %v347 = vld [vmem:[%s1 + $0x5c] sm:$0xf]
      %v348 = vld [vmem:[%s1 + $0x60] sm:$0xf]
      %v349 = vld [vmem:[%s1 + $0x64] sm:$0xf]
      %v350 = vld [vmem:[%s1 + $0x68] sm:$0xf]
      %v351 = vld [vmem:[%s1 + $0x6c] sm:$0xf]
      %v352 = vld [vmem:[%s1 + $0x70] sm:$0xf]
      %v353 = vld [vmem:[%s1 + $0x74] sm:$0xf]
      %v354 = vld [vmem:[%s1 + $0x78] sm:$0xf]
      %v355 = vld [vmem:[%s1 + $0x7c] sm:$0xf]
      %v356 = vld [vmem:[%s1 + $0x80] sm:$0xf]
      %v357 = vld [vmem:[%s1 + $0x84] sm:$0xf]
      %v358 = vld [vmem:[%s1 + $0x88] sm:$0xf]
      %v359 = vld [vmem:[%s1 + $0x8c] sm:$0xf]
      %v360 = vld [vmem:[%s1 + $0x90] sm:$0xf]
      %v361 = vld [vmem:[%s1 + $0x94] sm:$0xf]
      %v362 = vld [vmem:[%s1 + $0x98] sm:$0xf]
      %v363 = vld [vmem:[%s1 + $0x9c] sm:$0xf]
      %v364 = vld [vmem:[%s1 + $0xa0] sm:$0xf]
      %v365 = vld [vmem:[%s1 + $0xa4] sm:$0xf]
      %v366 = vld [vmem:[%s1 + $0xa8] sm:$0xf]
      %v367 = vld [vmem:[%s1 + $0xac] sm:$0xf]
      %v368 = vld [vmem:[%s1 + $0xb0] sm:$0xf]
      %v369 = vld [vmem:[%s1 + $0xb4] sm:$0xf]
      %v370 = vld [vmem:[%s1 + $0xb8] sm:$0xf]
      %v371 = vld [vmem:[%s1 + $0xbc] sm:$0xf]
      %v372 = vld [vmem:[%s1 + $0xc0] sm:$0xf]
      %v373 = vld [vmem:[%s1 + $0xc4] sm:$0xf]
      %v374 = vld [vmem:[%s1 + $0xc8] sm:$0xf]
      %v375 = vld [vmem:[%s1 + $0xcc] sm:$0xf]
      %v376 = vld [vmem:[%s1 + $0xd0] sm:$0xf]
      %v377 = vld [vmem:[%s1 + $0xd4] sm:$0xf]
      %v378 = vld [vmem:[%s1 + $0xd8] sm:$0xf]
      %v379 = vld [vmem:[%s1 + $0xdc] sm:$0xf]
      %v380 = vld [vmem:[%s1 + $0xe0] sm:$0xf]
      %v381 = vld [vmem:[%s1 + $0xe4] sm:$0xf]
      %v382 = vld [vmem:[%s1 + $0xe8] sm:$0xf]
      %v383 = vld [vmem:[%s1 + $0xec] sm:$0xf]
      %v384 = vld [vmem:[%s1 + $0xf0] sm:$0xf]
      %v385 = vld [vmem:[%s1 + $0xf4] sm:$0xf]
      %v386 = vld [vmem:[%s1 + $0xf8] sm:$0xf]
      %v387 = vld [vmem:[%s1 + $0xfc] sm:$0xf]
      %v388 = vld [vmem:[%s1 + $0x100] sm:$0xf]
      %v389 = vld [vmem:[%s1 + $0x104] sm:$0xf]
      %v390 = vld [vmem:[%s1 + $0x108] sm:$0xf]
      %v391 = vld [vmem:[%s1 + $0x10c] sm:$0xf]
      %v392 = vld [vmem:[%s1 + $0x110] sm:$0xf]
      %v393 = vld [vmem:[%s1 + $0x114] sm:$0xf]
      %v394 = vld [vmem:[%s1 + $0x118] sm:$0xf]
      %v395 = vld [vmem:[%s1 + $0x11c] sm:$0xf]
      %v396 = vld [vmem:[%s1 + $0x120] sm:$0xf]
      %v397 = vld [vmem:[%s1 + $0x124] sm:$0xf]
      %v398 = vld [vmem:[%s1 + $0x128] sm:$0xf]
      %v399 = vld [vmem:[%s1 + $0x12c] sm:$0xf]
      %v400 = vld [vmem:[%s1 + $0x130] sm:$0xf]
      %v401 = vld [vmem:[%s1 + $0x134] sm:$0xf]
      %v402 = vld [vmem:[%s1 + $0x138] sm:$0xf]
      %v403 = vld [vmem:[%s1 + $0x13c] sm:$0xf]
      %v404 = vld [vmem:[%s1 + $0x140] sm:$0xf]
      %v405 = vld [vmem:[%s1 + $0x144] sm:$0xf]
      %v406 = vld [vmem:[%s1 + $0x148] sm:$0xf]
      %v407 = vld [vmem:[%s1 + $0x14c] sm:$0xf]
      %v408 = vld [vmem:[%s1 + $0x150] sm:$0xf]
      %v409 = vld [vmem:[%s1 + $0x154] sm:$0xf]
      %v410 = vld [vmem:[%s1 + $0x158] sm:$0xf]
      %v411 = vld [vmem:[%s1 + $0x15c] sm:$0xf]
      %v412 = vld [vmem:[%s1 + $0x160] sm:$0xf]
      %v413 = vld [vmem:[%s1 + $0x164] sm:$0xf]
      %v414 = vld [vmem:[%s1 + $0x168] sm:$0xf]
      %v415 = vld [vmem:[%s1 + $0x16c] sm:$0xf]
      %v416 = vld [vmem:[%s1 + $0x170] sm:$0xf]
      %v417 = vld [vmem:[%s1 + $0x174] sm:$0xf]
      %v418 = vld [vmem:[%s1 + $0x178] sm:$0xf]
      %v419 = vld [vmem:[%s1 + $0x17c] sm:$0xf]
      %v420 = vld [vmem:[%s1 + $0x180] sm:$0xf]
      %v421 = vld [vmem:[%s1 + $0x184] sm:$0xf]
      %v422 = vld [vmem:[%s1 + $0x188] sm:$0xf]
      %v423 = vld [vmem:[%s1 + $0x18c] sm:$0xf]
      %v424 = vld [vmem:[%s1 + $0x190] sm:$0xf]
      %v425 = vld [vmem:[%s1 + $0x194] sm:$0xf]
      %v426 = vld [vmem:[%s1 + $0x198] sm:$0xf]
      %v427 = vld [vmem:[%s1 + $0x19c] sm:$0xf]
      %v428 = vld [vmem:[%s1 + $0x1a0] sm:$0xf]
      %v429 = vld [vmem:[%s1 + $0x1a4] sm:$0xf]
      %v430 = vld [vmem:[%s1 + $0x1a8] sm:$0xf]
      %v431 = vld [vmem:[%s1 + $0x1ac] sm:$0xf]
      %v432 = vld [vmem:[%s1 + $0x1b0] sm:$0xf]
      %v433 = vld [vmem:[%s1 + $0x1b4] sm:$0xf]
      %v434 = vld [vmem:[%s1 + $0x1b8] sm:$0xf]
      %v435 = vld [vmem:[%s1 + $0x1bc] sm:$0xf]
      %v436 = vld [vmem:[%s1 + $0x1c0] sm:$0xf]
      %v437 = vld [vmem:[%s1 + $0x1c4] sm:$0xf]
      %v438 = vld [vmem:[%s1 + $0x1c8] sm:$0xf]
      %v439 = vld [vmem:[%s1 + $0x1cc] sm:$0xf]
      %v440 = vld [vmem:[%s1 + $0x1d0] sm:$0xf]
      %v441 = vld [vmem:[%s1 + $0x1d4] sm:$0xf]
      %v442 = vld [vmem:[%s1 + $0x1d8] sm:$0xf]
      %v443 = vld [vmem:[%s1 + $0x1dc] sm:$0xf]
      %v444 = vld [vmem:[%s1 + $0x1e0] sm:$0xf]
      %v445 = vld [vmem:[%s1 + $0x1e4] sm:$0xf]
      %v446 = vld [vmem:[%s1 + $0x1e8] sm:$0xf]
      %v447 = vld [vmem:[%s1 + $0x1ec] sm:$0xf]
      %v448 = vld [vmem:[%s1 + $0x1f0] sm:$0xf]
      %v449 = vld [vmem:[%s1 + $0x1f4] sm:$0xf]
      %v450 = vld [vmem:[%s1 + $0x1f8] sm:$0xf]
      %v451 = vld [vmem:[%s1 + $0x1fc] sm:$0xf]
      %v452 = vld [vmem:[%s1 + $0x200] sm:$0xf]
      %v453 = vld [vmem:[%s1 + $0x204] sm:$0xf]
      %v454 = vld [vmem:[%s1 + $0x208] sm:$0xf]
      %v455 = vld [vmem:[%s1 + $0x20c] sm:$0xf]
      %v456 = vld [vmem:[%s1 + $0x210] sm:$0xf]
      %v457 = vld [vmem:[%s1 + $0x214] sm:$0xf]
      %v458 = vld [vmem:[%s1 + $0x218] sm:$0xf]
      %v459 = vld [vmem:[%s1 + $0x21c] sm:$0xf]
      %v460 = vld [vmem:[%s1 + $0x220] sm:$0xf]
      %v461 = vld [vmem:[%s1 + $0x224] sm:$0xf]
      %v462 = vld [vmem:[%s1 + $0x228] sm:$0xf]
      %v463 = vld [vmem:[%s1 + $0x22c] sm:$0xf]
      %v464 = vld [vmem:[%s1 + $0x230] sm:$0xf]
      %v465 = vld [vmem:[%s1 + $0x234] sm:$0xf]
      %v466 = vld [vmem:[%s1 + $0x238] sm:$0xf]
      %v467 = vld [vmem:[%s1 + $0x23c] sm:$0xf]
      %v468 = vld [vmem:[%s1 + $0x240] sm:$0xf]
      %v469 = vld [vmem:[%s1 + $0x244] sm:$0xf]
      %v470 = vld [vmem:[%s1 + $0x248] sm:$0xf]
      %v471 = vld [vmem:[%s1 + $0x24c] sm:$0xf]
      %v472 = vld [vmem:[%s1 + $0x250] sm:$0xf]
      %v473 = vld [vmem:[%s1 + $0x254] sm:$0xf]
      %v474 = vld [vmem:[%s1 + $0x258] sm:$0xf]
      %v475 = vld [vmem:[%s1 + $0x25c] sm:$0xf]
      %v476 = vld [vmem:[%s1 + $0x260] sm:$0xf]
      %v477 = vld [vmem:[%s1 + $0x264] sm:$0xf]
      %v478 = vld [vmem:[%s1 + $0x268] sm:$0xf]
      %v479 = vld [vmem:[%s1 + $0x26c] sm:$0xf]
      %v480 = vld [vmem:[%s1 + $0x270] sm:$0xf]
      %v481 = vld [vmem:[%s1 + $0x274] sm:$0xf]
      %v482 = vld [vmem:[%s1 + $0x278] sm:$0xf]
      %v483 = vld [vmem:[%s1 + $0x27c] sm:$0xf]
      %v484 = vld [vmem:[%s1 + $0x280] sm:$0xf]
      %v485 = vld [vmem:[%s1 + $0x284] sm:$0xf]
      %v486 = vld [vmem:[%s1 + $0x288] sm:$0xf]
      %v487 = vld [vmem:[%s1 + $0x28c] sm:$0xf]
      %v488 = vld [vmem:[%s1 + $0x290] sm:$0xf]
      %v489 = vld [vmem:[%s1 + $0x294] sm:$0xf]
      %v490 = vld [vmem:[%s1 + $0x298] sm:$0xf]
      %v491 = vld [vmem:[%s1 + $0x29c] sm:$0xf]
      %v492 = vld [vmem:[%s1 + $0x2a0] sm:$0xf]
      %v493 = vld [vmem:[%s1 + $0x2a4] sm:$0xf]
      %v494 = vld [vmem:[%s1 + $0x2a8] sm:$0xf]
      %v495 = vld [vmem:[%s1 + $0x2ac] sm:$0xf]
      %v496 = vld [vmem:[%s1 + $0x2b0] sm:$0xf]
      %v497 = vld [vmem:[%s1 + $0x2b4] sm:$0xf]
      %v498 = vld [vmem:[%s1 + $0x2b8] sm:$0xf]
      %v499 = vld [vmem:[%s1 + $0x2bc] sm:$0xf]
      %v500 = vld [vmem:[%s1 + $0x2c0] sm:$0xf]
      %v501 = vld [vmem:[%s1 + $0x2c4] sm:$0xf]
      %v502 = vld [vmem:[%s1 + $0x2c8] sm:$0xf]
      %v503 = vld [vmem:[%s1 + $0x2cc] sm:$0xf]
      %v504 = vld [vmem:[%s1 + $0x2d0] sm:$0xf]
      %v505 = vld [vmem:[%s1 + $0x2d4] sm:$0xf]
      %v506 = vld [vmem:[%s1 + $0x2d8] sm:$0xf]
      %v507 = vld [vmem:[%s1 + $0x2dc] sm:$0xf]
      %v508 = vld [vmem:[%s1 + $0x2e0] sm:$0xf]
      %v509 = vld [vmem:[%s1 + $0x2e4] sm:$0xf]
      %v510 = vld [vmem:[%s1 + $0x2e8] sm:$0xf]
      %v511 = vld [vmem:[%s1 + $0x2ec] sm:$0xf]
      %v512 = vld [vmem:[%s1 + $0x2f0] sm:$0xf]
      %v513 = vld [vmem:[%s1 + $0x2f4] sm:$0xf]
      %v514 = vld [vmem:[%s1 + $0x2f8] sm:$0xf]
      %v515 = vld [vmem:[%s1 + $0x2fc] sm:$0xf]
      %v516 = vld [vmem:[%s1 + $0x300] sm:$0xf]
      %v517 = vld [vmem:[%s1 + $0x304] sm:$0xf]
      %v518 = vld [vmem:[%s1 + $0x308] sm:$0xf]
      %v519 = vld [vmem:[%s1 + $0x30c] sm:$0xf]
      %v520 = vld [vmem:[%s1 + $0x310] sm:$0xf]
      %v521 = vld [vmem:[%s1 + $0x314] sm:$0xf]
      %v522 = vld [vmem:[%s1 + $0x318] sm:$0xf]
      %v523 = vld [vmem:[%s1 + $0x31c] sm:$0xf]
      %v524 = vld [vmem:[%s2] sm:$0x1]
      %v526 = vlaneseq
      %v527 = vshrl.u32 %v526, 7
      %v528 = vsub.s32 0, %v527
      %v529 = vrot.slane %v524, %v528
      %v587 = vunpack.c.l.b16 %v268
      %v588 = vunpack.c.h.b16 %v268
      %v589 = vunpack.c.l.b16 %v269
      %v590 = vunpack.c.h.b16 %v269
      %v591 = vunpack.c.l.b16 %v270
      %v592 = vunpack.c.h.b16 %v270
      %v593 = vunpack.c.l.b16 %v271
      %v594 = vunpack.c.h.b16 %v271
      %v595 = vunpack.c.l.b16 %v272
      %v596 = vunpack.c.h.b16 %v272
      %v597 = vunpack.c.l.b16 %v273
      %v598 = vunpack.c.h.b16 %v273
      %v599 = vunpack.c.l.b16 %v274
      %v600 = vunpack.c.l.b16 %v275
      %v601 = vunpack.c.h.b16 %v275
      %v602 = vunpack.c.l.b16 %v276
      %v603 = vunpack.c.h.b16 %v276
      %v604 = vunpack.c.l.b16 %v277
      %v605 = vunpack.c.h.b16 %v277
      %v606 = vunpack.c.l.b16 %v278
      %v607 = vunpack.c.h.b16 %v278
      %v608 = vunpack.c.l.b16 %v279
      %v609 = vunpack.c.h.b16 %v279
      %v610 = vunpack.c.l.b16 %v280
      %v611 = vunpack.c.h.b16 %v280
      %v612 = vunpack.c.l.b16 %v281
      %v613 = vunpack.c.l.b16 %v282
      %v614 = vunpack.c.h.b16 %v282
      %v615 = vunpack.c.l.b16 %v283
      %v616 = vunpack.c.h.b16 %v283
      %v617 = vunpack.c.l.b16 %v284
      %v618 = vunpack.c.h.b16 %v284
      %v619 = vunpack.c.l.b16 %v285
      %v620 = vunpack.c.h.b16 %v285
      %v621 = vunpack.c.l.b16 %v286
      %v622 = vunpack.c.h.b16 %v286
      %v623 = vunpack.c.l.b16 %v287
      %v624 = vunpack.c.h.b16 %v287
      %v625 = vunpack.c.l.b16 %v288
      %v626 = vunpack.c.l.b16 %v289
      %v627 = vunpack.c.h.b16 %v289
      %v628 = vunpack.c.l.b16 %v290
      %v629 = vunpack.c.h.b16 %v290
      %v630 = vunpack.c.l.b16 %v291
      %v631 = vunpack.c.h.b16 %v291
      %v632 = vunpack.c.l.b16 %v292
      %v633 = vunpack.c.h.b16 %v292
      %v634 = vunpack.c.l.b16 %v293
      %v635 = vunpack.c.h.b16 %v293
      %v636 = vunpack.c.l.b16 %v294
      %v637 = vunpack.c.h.b16 %v294
      %v638 = vunpack.c.l.b16 %v295
      %v639 = vunpack.c.l.b16 %v296
      %v640 = vunpack.c.h.b16 %v296
      %v641 = vunpack.c.l.b16 %v297
      %v642 = vunpack.c.h.b16 %v297
      %v643 = vunpack.c.l.b16 %v298
      %v644 = vunpack.c.h.b16 %v298
      %v645 = vunpack.c.l.b16 %v299
      %v646 = vunpack.c.h.b16 %v299
      %v647 = vunpack.c.l.b16 %v300
      %v648 = vunpack.c.h.b16 %v300
      %v649 = vunpack.c.l.b16 %v301
      %v650 = vunpack.c.h.b16 %v301
      %v651 = vunpack.c.l.b16 %v302
      %v652 = vunpack.c.l.b16 %v303
      %v653 = vunpack.c.h.b16 %v303
      %v654 = vunpack.c.l.b16 %v304
      %v655 = vunpack.c.h.b16 %v304
      %v656 = vunpack.c.l.b16 %v305
      %v657 = vunpack.c.h.b16 %v305
      %v658 = vunpack.c.l.b16 %v306
      %v659 = vunpack.c.h.b16 %v306
      %v660 = vunpack.c.l.b16 %v307
      %v661 = vunpack.c.h.b16 %v307
      %v662 = vunpack.c.l.b16 %v308
      %v663 = vunpack.c.h.b16 %v308
      %v664 = vunpack.c.l.b16 %v309
      %v665 = vunpack.c.l.b16 %v310
      %v666 = vunpack.c.h.b16 %v310
      %v667 = vunpack.c.l.b16 %v311
      %v668 = vunpack.c.h.b16 %v311
      %v669 = vunpack.c.l.b16 %v312
      %v670 = vunpack.c.h.b16 %v312
      %v671 = vunpack.c.l.b16 %v313
      %v672 = vunpack.c.h.b16 %v313
      %v673 = vunpack.c.l.b16 %v314
      %v674 = vunpack.c.h.b16 %v314
      %v675 = vunpack.c.l.b16 %v315
      %v676 = vunpack.c.h.b16 %v315
      %v677 = vunpack.c.l.b16 %v316
      %v678 = vunpack.c.l.b16 %v317
      %v679 = vunpack.c.h.b16 %v317
      %v680 = vunpack.c.l.b16 %v318
      %v681 = vunpack.c.h.b16 %v318
      %v682 = vunpack.c.l.b16 %v319
      %v683 = vunpack.c.h.b16 %v319
      %v684 = vunpack.c.l.b16 %v320
      %v685 = vunpack.c.h.b16 %v320
      %v686 = vunpack.c.l.b16 %v321
      %v687 = vunpack.c.h.b16 %v321
      %v688 = vunpack.c.l.b16 %v322
      %v689 = vunpack.c.h.b16 %v322
      %v690 = vunpack.c.l.b16 %v323
      %v691 = vpack.c.b16 %v600, %v587
      %v692 = vpack.c.b16 %v601, %v588
      %v693 = vpack.c.b16 %v602, %v589
      %v694 = vpack.c.b16 %v603, %v590
      %v695 = vpack.c.b16 %v604, %v591
      %v696 = vpack.c.b16 %v605, %v592
      %v697 = vpack.c.b16 %v606, %v593
      %v698 = vpack.c.b16 %v607, %v594
      %v699 = vpack.c.b16 %v608, %v595
      %v700 = vpack.c.b16 %v609, %v596
      %v701 = vpack.c.b16 %v610, %v597
      %v702 = vpack.c.b16 %v611, %v598
      %v703 = vpack.c.b16 %v612, %v599
      %v704 = vpack.c.b16 %v626, %v613
      %v705 = vpack.c.b16 %v627, %v614
      %v706 = vpack.c.b16 %v628, %v615
      %v707 = vpack.c.b16 %v629, %v616
      %v708 = vpack.c.b16 %v630, %v617
      %v709 = vpack.c.b16 %v631, %v618
      %v710 = vpack.c.b16 %v632, %v619
      %v711 = vpack.c.b16 %v633, %v620
      %v712 = vpack.c.b16 %v634, %v621
      %v713 = vpack.c.b16 %v635, %v622
      %v714 = vpack.c.b16 %v636, %v623
      %v715 = vpack.c.b16 %v637, %v624
      %v716 = vpack.c.b16 %v638, %v625
      %v717 = vpack.c.b16 %v652, %v639
      %v718 = vpack.c.b16 %v653, %v640
      %v719 = vpack.c.b16 %v654, %v641
      %v720 = vpack.c.b16 %v655, %v642
      %v721 = vpack.c.b16 %v656, %v643
      %v722 = vpack.c.b16 %v657, %v644
      %v723 = vpack.c.b16 %v658, %v645
      %v724 = vpack.c.b16 %v659, %v646
      %v725 = vpack.c.b16 %v660, %v647
      %v726 = vpack.c.b16 %v661, %v648
      %v727 = vpack.c.b16 %v662, %v649
      %v728 = vpack.c.b16 %v663, %v650
      %v729 = vpack.c.b16 %v664, %v651
      %v730 = vpack.c.b16 %v678, %v665
      %v731 = vpack.c.b16 %v679, %v666
      %v732 = vpack.c.b16 %v680, %v667
      %v733 = vpack.c.b16 %v681, %v668
      %v734 = vpack.c.b16 %v682, %v669
      %v735 = vpack.c.b16 %v683, %v670
      %v736 = vpack.c.b16 %v684, %v671
      %v737 = vpack.c.b16 %v685, %v672
      %v738 = vpack.c.b16 %v686, %v673
      %v739 = vpack.c.b16 %v687, %v674
      %v740 = vpack.c.b16 %v688, %v675
      %v741 = vpack.c.b16 %v689, %v676
      %v742 = vpack.c.b16 %v690, %v677
      %v991 = vunpack.c.l.b16 %v324
      %v992 = vunpack.c.l.b16 %v325
      %v993 = vunpack.c.l.b16 %v326
      %v994 = vunpack.c.l.b16 %v327
      %v995 = vunpack.c.l.b16 %v328
      %v996 = vunpack.c.l.b16 %v329
      %v997 = vunpack.c.l.b16 %v330
      %v998 = vunpack.c.l.b16 %v331
      %v999 = vunpack.c.l.b16 %v332
      %v1000 = vunpack.c.l.b16 %v333
      %v1001 = vunpack.c.l.b16 %v334
      %v1002 = vunpack.c.l.b16 %v335
      %v1003 = vunpack.c.l.b16 %v336
      %v1004 = vunpack.c.l.b16 %v337
      %v1005 = vunpack.c.l.b16 %v338
      %v1006 = vunpack.c.l.b16 %v339
      %v1007 = vunpack.c.l.b16 %v340
      %v1008 = vunpack.c.l.b16 %v341
      %v1009 = vunpack.c.l.b16 %v342
      %v1010 = vunpack.c.l.b16 %v343
      %v1011 = vunpack.c.l.b16 %v344
      %v1012 = vunpack.c.l.b16 %v345
      %v1013 = vunpack.c.l.b16 %v346
      %v1014 = vunpack.c.l.b16 %v347
      %v1015 = vunpack.c.l.b16 %v348
      %v1016 = vunpack.c.l.b16 %v349
      %v1017 = vunpack.c.l.b16 %v350
      %v1018 = vunpack.c.l.b16 %v351
      %v1019 = vunpack.c.l.b16 %v352
      %v1020 = vunpack.c.l.b16 %v353
      %v1021 = vunpack.c.l.b16 %v354
      %v1022 = vunpack.c.l.b16 %v355
      %v1023 = vunpack.c.l.b16 %v356
      %v1024 = vunpack.c.l.b16 %v357
      %v1025 = vunpack.c.l.b16 %v358
      %v1026 = vunpack.c.l.b16 %v359
      %v1027 = vunpack.c.l.b16 %v360
      %v1028 = vunpack.c.l.b16 %v361
      %v1029 = vunpack.c.l.b16 %v362
      %v1030 = vunpack.c.l.b16 %v363
      %v1031 = vunpack.c.l.b16 %v364
      %v1032 = vunpack.c.l.b16 %v365
      %v1033 = vunpack.c.l.b16 %v366
      %v1034 = vunpack.c.l.b16 %v367
      %v1035 = vunpack.c.l.b16 %v368
      %v1036 = vunpack.c.l.b16 %v369
      %v1037 = vunpack.c.l.b16 %v370
      %v1038 = vunpack.c.l.b16 %v371
      %v1039 = vunpack.c.l.b16 %v372
      %v1040 = vunpack.c.l.b16 %v373
      %v1041 = vunpack.c.l.b16 %v374
      %v1042 = vunpack.c.l.b16 %v375
      %v1043 = vunpack.c.l.b16 %v376
      %v1044 = vunpack.c.l.b16 %v377
      %v1045 = vunpack.c.l.b16 %v378
      %v1046 = vunpack.c.l.b16 %v379
      %v1047 = vunpack.c.l.b16 %v380
      %v1048 = vunpack.c.l.b16 %v381
      %v1049 = vunpack.c.l.b16 %v382
      %v1050 = vunpack.c.l.b16 %v383
      %v1051 = vunpack.c.l.b16 %v384
      %v1052 = vunpack.c.l.b16 %v385
      %v1053 = vunpack.c.l.b16 %v386
      %v1054 = vunpack.c.l.b16 %v387
      %v1055 = vunpack.c.l.b16 %v388
      %v1056 = vunpack.c.l.b16 %v389
      %v1057 = vunpack.c.l.b16 %v390
      %v1058 = vunpack.c.l.b16 %v391
      %v1059 = vunpack.c.l.b16 %v392
      %v1060 = vunpack.c.l.b16 %v393
      %v1061 = vunpack.c.l.b16 %v394
      %v1062 = vunpack.c.l.b16 %v395
      %v1063 = vunpack.c.l.b16 %v396
      %v1064 = vunpack.c.l.b16 %v397
      %v1065 = vunpack.c.l.b16 %v398
      %v1066 = vunpack.c.l.b16 %v399
      %v1067 = vunpack.c.l.b16 %v400
      %v1068 = vunpack.c.l.b16 %v401
      %v1069 = vunpack.c.l.b16 %v402
      %v1070 = vunpack.c.l.b16 %v403
      %v1071 = vunpack.c.l.b16 %v404
      %v1072 = vunpack.c.l.b16 %v405
      %v1073 = vunpack.c.l.b16 %v406
      %v1074 = vunpack.c.l.b16 %v407
      %v1075 = vunpack.c.l.b16 %v408
      %v1076 = vunpack.c.l.b16 %v409
      %v1077 = vunpack.c.l.b16 %v410
      %v1078 = vunpack.c.l.b16 %v411
      %v1079 = vunpack.c.l.b16 %v412
      %v1080 = vunpack.c.l.b16 %v413
      %v1081 = vunpack.c.l.b16 %v414
      %v1082 = vunpack.c.l.b16 %v415
      %v1083 = vunpack.c.l.b16 %v416
      %v1084 = vunpack.c.l.b16 %v417
      %v1085 = vunpack.c.l.b16 %v418
      %v1086 = vunpack.c.l.b16 %v419
      %v1087 = vunpack.c.l.b16 %v420
      %v1088 = vunpack.c.l.b16 %v421
      %v1089 = vunpack.c.l.b16 %v422
      %v1090 = vunpack.c.l.b16 %v423
      %v1091 = vunpack.c.l.b16 %v424
      %v1092 = vunpack.c.l.b16 %v425
      %v1093 = vunpack.c.l.b16 %v426
      %v1094 = vunpack.c.l.b16 %v427
      %v1095 = vunpack.c.l.b16 %v428
      %v1096 = vunpack.c.l.b16 %v429
      %v1097 = vunpack.c.l.b16 %v430
      %v1098 = vunpack.c.l.b16 %v431
      %v1099 = vunpack.c.l.b16 %v432
      %v1100 = vunpack.c.l.b16 %v433
      %v1101 = vunpack.c.l.b16 %v434
      %v1102 = vunpack.c.l.b16 %v435
      %v1103 = vunpack.c.l.b16 %v436
      %v1104 = vunpack.c.l.b16 %v437
      %v1105 = vunpack.c.l.b16 %v438
      %v1106 = vunpack.c.l.b16 %v439
      %v1107 = vunpack.c.l.b16 %v440
      %v1108 = vunpack.c.l.b16 %v441
      %v1109 = vunpack.c.l.b16 %v442
      %v1110 = vunpack.c.l.b16 %v443
      %v1111 = vunpack.c.l.b16 %v444
      %v1112 = vunpack.c.l.b16 %v445
      %v1113 = vunpack.c.l.b16 %v446
      %v1114 = vunpack.c.l.b16 %v447
      %v1115 = vunpack.c.l.b16 %v448
      %v1116 = vunpack.c.l.b16 %v449
      %v1117 = vunpack.c.l.b16 %v450
      %v1118 = vunpack.c.l.b16 %v451
      %v1119 = vunpack.c.l.b16 %v452
      %v1120 = vunpack.c.l.b16 %v453
      %v1121 = vunpack.c.l.b16 %v454
      %v1122 = vunpack.c.l.b16 %v455
      %v1123 = vunpack.c.l.b16 %v456
      %v1124 = vunpack.c.l.b16 %v457
      %v1125 = vunpack.c.l.b16 %v458
      %v1126 = vunpack.c.l.b16 %v459
      %v1127 = vunpack.c.l.b16 %v460
      %v1128 = vunpack.c.l.b16 %v461
      %v1129 = vunpack.c.l.b16 %v462
      %v1130 = vunpack.c.l.b16 %v463
      %v1131 = vunpack.c.l.b16 %v464
      %v1132 = vunpack.c.l.b16 %v465
      %v1133 = vunpack.c.l.b16 %v466
      %v1134 = vunpack.c.l.b16 %v467
      %v1135 = vunpack.c.l.b16 %v468
      %v1136 = vunpack.c.l.b16 %v469
      %v1137 = vunpack.c.l.b16 %v470
      %v1138 = vunpack.c.l.b16 %v471
      %v1139 = vunpack.c.l.b16 %v472
      %v1140 = vunpack.c.l.b16 %v473
      %v1141 = vunpack.c.l.b16 %v474
      %v1142 = vunpack.c.l.b16 %v475
      %v1143 = vunpack.c.l.b16 %v476
      %v1144 = vunpack.c.l.b16 %v477
      %v1145 = vunpack.c.l.b16 %v478
      %v1146 = vunpack.c.l.b16 %v479
      %v1147 = vunpack.c.l.b16 %v480
      %v1148 = vunpack.c.l.b16 %v481
      %v1149 = vunpack.c.l.b16 %v482
      %v1150 = vunpack.c.l.b16 %v483
      %v1151 = vunpack.c.l.b16 %v484
      %v1152 = vunpack.c.l.b16 %v485
      %v1153 = vunpack.c.l.b16 %v486
      %v1154 = vunpack.c.l.b16 %v487
      %v1155 = vunpack.c.l.b16 %v488
      %v1156 = vunpack.c.l.b16 %v489
      %v1157 = vunpack.c.l.b16 %v490
      %v1158 = vunpack.c.l.b16 %v491
      %v1159 = vunpack.c.l.b16 %v492
      %v1160 = vunpack.c.l.b16 %v493
      %v1161 = vunpack.c.l.b16 %v494
      %v1162 = vunpack.c.l.b16 %v495
      %v1163 = vunpack.c.l.b16 %v496
      %v1164 = vunpack.c.l.b16 %v497
      %v1165 = vunpack.c.l.b16 %v498
      %v1166 = vunpack.c.l.b16 %v499
      %v1167 = vunpack.c.l.b16 %v500
      %v1168 = vunpack.c.l.b16 %v501
      %v1169 = vunpack.c.l.b16 %v502
      %v1170 = vunpack.c.l.b16 %v503
      %v1171 = vunpack.c.l.b16 %v504
      %v1172 = vunpack.c.l.b16 %v505
      %v1173 = vunpack.c.l.b16 %v506
      %v1174 = vunpack.c.l.b16 %v507
      %v1175 = vunpack.c.l.b16 %v508
      %v1176 = vunpack.c.l.b16 %v509
      %v1177 = vunpack.c.l.b16 %v510
      %v1178 = vunpack.c.l.b16 %v511
      %v1179 = vunpack.c.l.b16 %v512
      %v1180 = vunpack.c.l.b16 %v513
      %v1181 = vunpack.c.l.b16 %v514
      %v1182 = vunpack.c.l.b16 %v515
      %v1183 = vunpack.c.l.b16 %v516
      %v1184 = vunpack.c.l.b16 %v517
      %v1185 = vunpack.c.l.b16 %v518
      %v1186 = vunpack.c.l.b16 %v519
      %v1187 = vunpack.c.l.b16 %v520
      %v1188 = vunpack.c.l.b16 %v521
      %v1189 = vunpack.c.l.b16 %v522
      %v1190 = vunpack.c.l.b16 %v523
      %v1191 = vpack.c.b16 %v992, %v991
      %v1192 = vpack.c.b16 %v994, %v993
      %v1193 = vpack.c.b16 %v996, %v995
      %v1194 = vpack.c.b16 %v998, %v997
      %v1195 = vpack.c.b16 %v1000, %v999
      %v1196 = vpack.c.b16 %v1002, %v1001
      %v1197 = vpack.c.b16 %v1004, %v1003
      %v1198 = vpack.c.b16 %v1006, %v1005
      %v1199 = vpack.c.b16 %v1008, %v1007
      %v1200 = vpack.c.b16 %v1010, %v1009
      %v1201 = vpack.c.b16 %v1012, %v1011
      %v1202 = vpack.c.b16 %v1014, %v1013
      %v1203 = vpack.c.b16 %v1016, %v1015
      %v1204 = vpack.c.b16 %v1018, %v1017
      %v1205 = vpack.c.b16 %v1020, %v1019
      %v1206 = vpack.c.b16 %v1022, %v1021
      %v1207 = vpack.c.b16 %v1024, %v1023
      %v1208 = vpack.c.b16 %v1026, %v1025
      %v1209 = vpack.c.b16 %v1028, %v1027
      %v1210 = vpack.c.b16 %v1030, %v1029
      %v1211 = vpack.c.b16 %v1032, %v1031
      %v1212 = vpack.c.b16 %v1034, %v1033
      %v1213 = vpack.c.b16 %v1036, %v1035
      %v1214 = vpack.c.b16 %v1038, %v1037
      %v1215 = vpack.c.b16 %v1040, %v1039
      %v1216 = vpack.c.b16 %v1042, %v1041
      %v1217 = vpack.c.b16 %v1044, %v1043
      %v1218 = vpack.c.b16 %v1046, %v1045
      %v1219 = vpack.c.b16 %v1048, %v1047
      %v1220 = vpack.c.b16 %v1050, %v1049
      %v1221 = vpack.c.b16 %v1052, %v1051
      %v1222 = vpack.c.b16 %v1054, %v1053
      %v1223 = vpack.c.b16 %v1056, %v1055
      %v1224 = vpack.c.b16 %v1058, %v1057
      %v1225 = vpack.c.b16 %v1060, %v1059
      %v1226 = vpack.c.b16 %v1062, %v1061
      %v1227 = vpack.c.b16 %v1064, %v1063
      %v1228 = vpack.c.b16 %v1066, %v1065
      %v1229 = vpack.c.b16 %v1068, %v1067
      %v1230 = vpack.c.b16 %v1070, %v1069
      %v1231 = vpack.c.b16 %v1072, %v1071
      %v1232 = vpack.c.b16 %v1074, %v1073
      %v1233 = vpack.c.b16 %v1076, %v1075
      %v1234 = vpack.c.b16 %v1078, %v1077
      %v1235 = vpack.c.b16 %v1080, %v1079
      %v1236 = vpack.c.b16 %v1082, %v1081
      %v1237 = vpack.c.b16 %v1084, %v1083
      %v1238 = vpack.c.b16 %v1086, %v1085
      %v1239 = vpack.c.b16 %v1088, %v1087
      %v1240 = vpack.c.b16 %v1090, %v1089
      %v1241 = vpack.c.b16 %v1092, %v1091
      %v1242 = vpack.c.b16 %v1094, %v1093
      %v1243 = vpack.c.b16 %v1096, %v1095
      %v1244 = vpack.c.b16 %v1098, %v1097
      %v1245 = vpack.c.b16 %v1100, %v1099
      %v1246 = vpack.c.b16 %v1102, %v1101
      %v1247 = vpack.c.b16 %v1104, %v1103
      %v1248 = vpack.c.b16 %v1106, %v1105
      %v1249 = vpack.c.b16 %v1108, %v1107
      %v1250 = vpack.c.b16 %v1110, %v1109
      %v1251 = vpack.c.b16 %v1112, %v1111
      %v1252 = vpack.c.b16 %v1114, %v1113
      %v1253 = vpack.c.b16 %v1116, %v1115
      %v1254 = vpack.c.b16 %v1118, %v1117
      %v1255 = vpack.c.b16 %v1120, %v1119
      %v1256 = vpack.c.b16 %v1122, %v1121
      %v1257 = vpack.c.b16 %v1124, %v1123
      %v1258 = vpack.c.b16 %v1126, %v1125
      %v1259 = vpack.c.b16 %v1128, %v1127
      %v1260 = vpack.c.b16 %v1130, %v1129
      %v1261 = vpack.c.b16 %v1132, %v1131
      %v1262 = vpack.c.b16 %v1134, %v1133
      %v1263 = vpack.c.b16 %v1136, %v1135
      %v1264 = vpack.c.b16 %v1138, %v1137
      %v1265 = vpack.c.b16 %v1140, %v1139
      %v1266 = vpack.c.b16 %v1142, %v1141
      %v1267 = vpack.c.b16 %v1144, %v1143
      %v1268 = vpack.c.b16 %v1146, %v1145
      %v1269 = vpack.c.b16 %v1148, %v1147
      %v1270 = vpack.c.b16 %v1150, %v1149
      %v1271 = vpack.c.b16 %v1152, %v1151
      %v1272 = vpack.c.b16 %v1154, %v1153
      %v1273 = vpack.c.b16 %v1156, %v1155
      %v1274 = vpack.c.b16 %v1158, %v1157
      %v1275 = vpack.c.b16 %v1160, %v1159
      %v1276 = vpack.c.b16 %v1162, %v1161
      %v1277 = vpack.c.b16 %v1164, %v1163
      %v1278 = vpack.c.b16 %v1166, %v1165
      %v1279 = vpack.c.b16 %v1168, %v1167
      %v1280 = vpack.c.b16 %v1170, %v1169
      %v1281 = vpack.c.b16 %v1172, %v1171
      %v1282 = vpack.c.b16 %v1174, %v1173
      %v1283 = vpack.c.b16 %v1176, %v1175
      %v1284 = vpack.c.b16 %v1178, %v1177
      %v1285 = vpack.c.b16 %v1180, %v1179
      %v1286 = vpack.c.b16 %v1182, %v1181
      %v1287 = vpack.c.b16 %v1184, %v1183
      %v1288 = vpack.c.b16 %v1186, %v1185
      %v1289 = vpack.c.b16 %v1188, %v1187
      %v1290 = vpack.c.b16 %v1190, %v1189
      %vm1391 = vcmask 523264
      %v1393 = vsel %vm1391, %v703, 0
      %v1396 = vsel %vm1391, %v716, 0
      %v1399 = vsel %vm1391, %v729, 0
      %v1402 = vsel %vm1391, %v742, 0
      %1404 = vmatprep.subr.bf16.mxu0 0
      %1405 = vmatpush1.bf16.msra.mxu0 %v1191
      %1406 = vmatprep.subr.bf16.mxu0 0
      %1407 = vmatpush1.bf16.msra.mxu0 %v1192
      %1408 = vmatprep.subr.bf16.mxu0 0
      %1409 = vmatpush1.bf16.msra.mxu0 %v1193
      %1410 = vmatprep.subr.bf16.mxu0 0
      %1411 = vmatpush1.bf16.msra.mxu0 %v1194
      %1412 = vmatprep.subr.bf16.mxu0 0
      %1413 = vmatpush1.bf16.msra.mxu0 %v1195
      %1414 = vmatprep.subr.bf16.mxu0 0
      %1415 = vmatpush1.bf16.msra.mxu0 %v1196
      %1416 = vmatprep.subr.bf16.mxu0 0
      %1417 = vmatpush1.bf16.msra.mxu0 %v1197
      %1418 = vmatprep.subr.bf16.mxu0 0
      %1419 = vmatpush1.bf16.msra.mxu0 %v1198
      %1420 = vmatprep.subr.bf16.mxu0 0
      %1421 = vmatpush1.bf16.msra.mxu0 %v1199
      %1422 = vmatprep.subr.bf16.mxu0 0
      %1423 = vmatpush1.bf16.msra.mxu0 %v1200
      %1424 = vmatprep.subr.bf16.mxu0 0
      %1425 = vmatpush1.bf16.msra.mxu0 %v1201
      %1426 = vmatprep.subr.bf16.mxu0 0
      %1427 = vmatpush1.bf16.msra.mxu0 %v1202
      %1428 = vmatprep.subr.bf16.mxu0 0
      %1429 = vmatpush1.bf16.msra.mxu0 %v1203
      %1430 = vmatprep.subr.bf16.mxu0 0
      %1431 = vmatpush1.bf16.msra.mxu0 %v1204
      %1432 = vmatprep.subr.bf16.mxu0 0
      %1433 = vmatpush1.bf16.msra.mxu0 %v1205
      %1434 = vmatprep.subr.bf16.mxu0 0
      %1435 = vmatpush1.bf16.msra.mxu0 %v1206
      %1436 = vmatprep.mubr.bf16.mxu0 %v692
      %1437 = vmatmul.mubr.bf16.gmra.mrb[0].mxu0 %v691
      %v1438 = vpop.f32.mrb[0].mxu0
      %v1439 = vadd.f32 %v529, %v1438
      %v1440 = vpop.f32.mrb[0].mxu0
      %v1441 = vpop.f32.mrb[0].mxu0
      %v1442 = vadd.f32 %v529, %v1441
      %v1443 = vpop.f32.mrb[0].mxu0
      %1444 = vmatprep.mubr.bf16.mxu0 %v705
      %1445 = vmatmul.mubr.bf16.gmra.mrb[0].mxu0 %v704
      %v1446 = vpop.f32.mrb[0].mxu0
      %v1447 = vadd.f32 %v529, %v1446
      %v1448 = vpop.f32.mrb[0].mxu0
      %v1449 = vpop.f32.mrb[0].mxu0
      %v1450 = vadd.f32 %v529, %v1449
      %v1451 = vpop.f32.mrb[0].mxu0
      %1452 = vmatprep.mubr.bf16.mxu0 %v718
      %1453 = vmatmul.mubr.bf16.gmra.mrb[0].mxu0 %v717
      %v1454 = vpop.f32.mrb[0].mxu0
      %v1455 = vadd.f32 %v529, %v1454
      %v1456 = vpop.f32.mrb[0].mxu0
      %v1457 = vpop.f32.mrb[0].mxu0
      %v1458 = vadd.f32 %v529, %v1457
      %v1459 = vpop.f32.mrb[0].mxu0
      %1460 = vmatprep.mubr.bf16.mxu0 %v731
      %1461 = vmatmul.mubr.bf16.gmra.mrb[0].mxu0 %v730
      %v1462 = vpop.f32.mrb[0].mxu0
      %v1463 = vadd.f32 %v529, %v1462
      %v1464 = vpop.f32.mrb[0].mxu0
      %v1465 = vpop.f32.mrb[0].mxu0
      %v1466 = vadd.f32 %v529, %v1465
      %v1467 = vpop.f32.mrb[0].mxu0
      %1468 = vdwg.mxu0
      %1469 = vmatprep.subr.bf16.mxu0 0
      %1470 = vmatpush1.bf16.msra.mxu0 %v1207
      %1471 = vmatprep.subr.bf16.mxu0 0
      %1472 = vmatpush1.bf16.msra.mxu0 %v1208
      %1473 = vmatprep.subr.bf16.mxu0 0
      %1474 = vmatpush1.bf16.msra.mxu0 %v1209
      %1475 = vmatprep.subr.bf16.mxu0 0
      %1476 = vmatpush1.bf16.msra.mxu0 %v1210
      %1477 = vmatprep.subr.bf16.mxu0 0
      %1478 = vmatpush1.bf16.msra.mxu0 %v1211
      %1479 = vmatprep.subr.bf16.mxu0 0
      %1480 = vmatpush1.bf16.msra.mxu0 %v1212
      %1481 = vmatprep.subr.bf16.mxu0 0
      %1482 = vmatpush1.bf16.msra.mxu0 %v1213
      %1483 = vmatprep.subr.bf16.mxu0 0
      %1484 = vmatpush1.bf16.msra.mxu0 %v1214
      %1485 = vmatprep.subr.bf16.mxu0 0
      %1486 = vmatpush1.bf16.msra.mxu0 %v1215
      %1487 = vmatprep.subr.bf16.mxu0 0
      %1488 = vmatpush1.bf16.msra.mxu0 %v1216
      %1489 = vmatprep.subr.bf16.mxu0 0
      %1490 = vmatpush1.bf16.msra.mxu0 %v1217
      %1491 = vmatprep.subr.bf16.mxu0 0
      %1492 = vmatpush1.bf16.msra.mxu0 %v1218
      %1493 = vmatprep.subr.bf16.mxu0 0
      %1494 = vmatpush1.bf16.msra.mxu0 %v1219
      %1495 = vmatprep.subr.bf16.mxu0 0
      %1496 = vmatpush1.bf16.msra.mxu0 %v1220
      %1497 = vmatprep.subr.bf16.mxu0 0
      %1498 = vmatpush1.bf16.msra.mxu0 %v1221
      %1499 = vmatprep.subr.bf16.mxu0 0
      %1500 = vmatpush1.bf16.msra.mxu0 %v1222
      %1501 = vmatprep.mubr.bf16.mxu0 %v694
      %1502 = vmatmul.mubr.bf16.gmra.mrb[0].mxu0 %v693
      %v1503 = vpop.f32.mrb[0].mxu0
      %v1504 = vadd.f32 %v1439, %v1503
      %v1505 = vpop.f32.mrb[0].mxu0
      %v1506 = vpop.f32.mrb[0].mxu0
      %v1507 = vadd.f32 %v1442, %v1506
      %v1508 = vpop.f32.mrb[0].mxu0
      %1509 = vmatprep.mubr.bf16.mxu0 %v707
      %1510 = vmatmul.mubr.bf16.gmra.mrb[0].mxu0 %v706
      %v1511 = vpop.f32.mrb[0].mxu0
      %v1512 = vadd.f32 %v1447, %v1511
      %v1513 = vpop.f32.mrb[0].mxu0
      %v1514 = vpop.f32.mrb[0].mxu0
      %v1515 = vadd.f32 %v1450, %v1514
      %v1516 = vpop.f32.mrb[0].mxu0
      %1517 = vmatprep.mubr.bf16.mxu0 %v720
      %1518 = vmatmul.mubr.bf16.gmra.mrb[0].mxu0 %v719
      %v1519 = vpop.f32.mrb[0].mxu0
      %v1520 = vadd.f32 %v1455, %v1519
      %v1521 = vpop.f32.mrb[0].mxu0
      %v1522 = vpop.f32.mrb[0].mxu0
      %v1523 = vadd.f32 %v1458, %v1522
      %v1524 = vpop.f32.mrb[0].mxu0
      %1525 = vmatprep.mubr.bf16.mxu0 %v733
      %1526 = vmatmul.mubr.bf16.gmra.mrb[0].mxu0 %v732
      %v1527 = vpop.f32.mrb[0].mxu0
      %v1528 = vadd.f32 %v1463, %v1527
      %v1529 = vpop.f32.mrb[0].mxu0
      %v1530 = vpop.f32.mrb[0].mxu0
      %v1531 = vadd.f32 %v1466, %v1530
      %v1532 = vpop.f32.mrb[0].mxu0
      %1533 = vdwg.mxu0
      %1534 = vmatprep.subr.bf16.mxu0 0
      %1535 = vmatpush1.bf16.msra.mxu0 %v1223
      %1536 = vmatprep.subr.bf16.mxu0 0
      %1537 = vmatpush1.bf16.msra.mxu0 %v1224
      %1538 = vmatprep.subr.bf16.mxu0 0
      %1539 = vmatpush1.bf16.msra.mxu0 %v1225
      %1540 = vmatprep.subr.bf16.mxu0 0
      %1541 = vmatpush1.bf16.msra.mxu0 %v1226
      %1542 = vmatprep.subr.bf16.mxu0 0
      %1543 = vmatpush1.bf16.msra.mxu0 %v1227
      %1544 = vmatprep.subr.bf16.mxu0 0
      %1545 = vmatpush1.bf16.msra.mxu0 %v1228
      %1546 = vmatprep.subr.bf16.mxu0 0
      %1547 = vmatpush1.bf16.msra.mxu0 %v1229
      %1548 = vmatprep.subr.bf16.mxu0 0
      %1549 = vmatpush1.bf16.msra.mxu0 %v1230
      %1550 = vmatprep.subr.bf16.mxu0 0
      %1551 = vmatpush1.bf16.msra.mxu0 %v1231
      %1552 = vmatprep.subr.bf16.mxu0 0
      %1553 = vmatpush1.bf16.msra.mxu0 %v1232
      %1554 = vmatprep.subr.bf16.mxu0 0
      %1555 = vmatpush1.bf16.msra.mxu0 %v1233
      %1556 = vmatprep.subr.bf16.mxu0 0
      %1557 = vmatpush1.bf16.msra.mxu0 %v1234
      %1558 = vmatprep.subr.bf16.mxu0 0
      %1559 = vmatpush1.bf16.msra.mxu0 %v1235
      %1560 = vmatprep.subr.bf16.mxu0 0
      %1561 = vmatpush1.bf16.msra.mxu0 %v1236
      %1562 = vmatprep.subr.bf16.mxu0 0
      %1563 = vmatpush1.bf16.msra.mxu0 %v1237
      %1564 = vmatprep.subr.bf16.mxu0 0
      %1565 = vmatpush1.bf16.msra.mxu0 %v1238
      %1566 = vmatprep.mubr.bf16.mxu0 %v696
      %1567 = vmatmul.mubr.bf16.gmra.mrb[0].mxu0 %v695
      %v1568 = vpop.f32.mrb[0].mxu0
      %v1569 = vadd.f32 %v1504, %v1568
      %v1570 = vpop.f32.mrb[0].mxu0
      %v1571 = vpop.f32.mrb[0].mxu0
      %v1572 = vadd.f32 %v1507, %v1571
      %v1573 = vpop.f32.mrb[0].mxu0
      %1574 = vmatprep.mubr.bf16.mxu0 %v709
      %1575 = vmatmul.mubr.bf16.gmra.mrb[0].mxu0 %v708
      %v1576 = vpop.f32.mrb[0].mxu0
      %v1577 = vadd.f32 %v1512, %v1576
      %v1578 = vpop.f32.mrb[0].mxu0
      %v1579 = vpop.f32.mrb[0].mxu0
      %v1580 = vadd.f32 %v1515, %v1579
      %v1581 = vpop.f32.mrb[0].mxu0
      %1582 = vmatprep.mubr.bf16.mxu0 %v722
      %1583 = vmatmul.mubr.bf16.gmra.mrb[0].mxu0 %v721
      %v1584 = vpop.f32.mrb[0].mxu0
      %v1585 = vadd.f32 %v1520, %v1584
      %v1586 = vpop.f32.mrb[0].mxu0
      %v1587 = vpop.f32.mrb[0].mxu0
      %v1588 = vadd.f32 %v1523, %v1587
      %v1589 = vpop.f32.mrb[0].mxu0
      %1590 = vmatprep.mubr.bf16.mxu0 %v735
      %1591 = vmatmul.mubr.bf16.gmra.mrb[0].mxu0 %v734
      %v1592 = vpop.f32.mrb[0].mxu0
      %v1593 = vadd.f32 %v1528, %v1592
      %v1594 = vpop.f32.mrb[0].mxu0
      %v1595 = vpop.f32.mrb[0].mxu0
      %v1596 = vadd.f32 %v1531, %v1595
      %v1597 = vpop.f32.mrb[0].mxu0
      %1598 = vdwg.mxu0
      %1599 = vmatprep.subr.bf16.mxu0 0
      %1600 = vmatpush1.bf16.msra.mxu0 %v1239
      %1601 = vmatprep.subr.bf16.mxu0 0
      %1602 = vmatpush1.bf16.msra.mxu0 %v1240
      %1603 = vmatprep.subr.bf16.mxu0 0
      %1604 = vmatpush1.bf16.msra.mxu0 %v1241
      %1605 = vmatprep.subr.bf16.mxu0 0
      %1606 = vmatpush1.bf16.msra.mxu0 %v1242
      %1607 = vmatprep.subr.bf16.mxu0 0
      %1608 = vmatpush1.bf16.msra.mxu0 %v1243
      %1609 = vmatprep.subr.bf16.mxu0 0
      %1610 = vmatpush1.bf16.msra.mxu0 %v1244
      %1611 = vmatprep.subr.bf16.mxu0 0
      %1612 = vmatpush1.bf16.msra.mxu0 %v1245
      %1613 = vmatprep.subr.bf16.mxu0 0
      %1614 = vmatpush1.bf16.msra.mxu0 %v1246
      %1615 = vmatprep.subr.bf16.mxu0 0
      %1616 = vmatpush1.bf16.msra.mxu0 %v1247
      %1617 = vmatprep.subr.bf16.mxu0 0
      %1618 = vmatpush1.bf16.msra.mxu0 %v1248
      %1619 = vmatprep.subr.bf16.mxu0 0
      %1620 = vmatpush1.bf16.msra.mxu0 %v1249
      %1621 = vmatprep.subr.bf16.mxu0 0
      %1622 = vmatpush1.bf16.msra.mxu0 %v1250
      %1623 = vmatprep.subr.bf16.mxu0 0
      %1624 = vmatpush1.bf16.msra.mxu0 %v1251
      %1625 = vmatprep.subr.bf16.mxu0 0
      %1626 = vmatpush1.bf16.msra.mxu0 %v1252
      %1627 = vmatprep.subr.bf16.mxu0 0
      %1628 = vmatpush1.bf16.msra.mxu0 %v1253
      %1629 = vmatprep.subr.bf16.mxu0 0
      %1630 = vmatpush1.bf16.msra.mxu0 %v1254
      %1631 = vmatprep.mubr.bf16.mxu0 %v698
      %1632 = vmatmul.mubr.bf16.gmra.mrb[0].mxu0 %v697
      %v1633 = vpop.f32.mrb[0].mxu0
      %v1634 = vadd.f32 %v1569, %v1633
      %v1635 = vpop.f32.mrb[0].mxu0
      %v1636 = vpop.f32.mrb[0].mxu0
      %v1637 = vadd.f32 %v1572, %v1636
      %v1638 = vpop.f32.mrb[0].mxu0
      %1639 = vmatprep.mubr.bf16.mxu0 %v711
      %1640 = vmatmul.mubr.bf16.gmra.mrb[0].mxu0 %v710
      %v1641 = vpop.f32.mrb[0].mxu0
      %v1642 = vadd.f32 %v1577, %v1641
      %v1643 = vpop.f32.mrb[0].mxu0
      %v1644 = vpop.f32.mrb[0].mxu0
      %v1645 = vadd.f32 %v1580, %v1644
      %v1646 = vpop.f32.mrb[0].mxu0
      %1647 = vmatprep.mubr.bf16.mxu0 %v724
      %1648 = vmatmul.mubr.bf16.gmra.mrb[0].mxu0 %v723
      %v1649 = vpop.f32.mrb[0].mxu0
      %v1650 = vadd.f32 %v1585, %v1649
      %v1651 = vpop.f32.mrb[0].mxu0
      %v1652 = vpop.f32.mrb[0].mxu0
      %v1653 = vadd.f32 %v1588, %v1652
      %v1654 = vpop.f32.mrb[0].mxu0
      %1655 = vmatprep.mubr.bf16.mxu0 %v737
      %1656 = vmatmul.mubr.bf16.gmra.mrb[0].mxu0 %v736
      %v1657 = vpop.f32.mrb[0].mxu0
      %v1658 = vadd.f32 %v1593, %v1657
      %v1659 = vpop.f32.mrb[0].mxu0
      %v1660 = vpop.f32.mrb[0].mxu0
      %v1661 = vadd.f32 %v1596, %v1660
      %v1662 = vpop.f32.mrb[0].mxu0
      %1663 = vdwg.mxu0
      %1664 = vmatprep.subr.bf16.mxu0 0
      %1665 = vmatpush1.bf16.msra.mxu0 %v1255
      %1666 = vmatprep.subr.bf16.mxu0 0
      %1667 = vmatpush1.bf16.msra.mxu0 %v1256
      %1668 = vmatprep.subr.bf16.mxu0 0
      %1669 = vmatpush1.bf16.msra.mxu0 %v1257
      %1670 = vmatprep.subr.bf16.mxu0 0
      %1671 = vmatpush1.bf16.msra.mxu0 %v1258
      %1672 = vmatprep.subr.bf16.mxu0 0
      %1673 = vmatpush1.bf16.msra.mxu0 %v1259
      %1674 = vmatprep.subr.bf16.mxu0 0
      %1675 = vmatpush1.bf16.msra.mxu0 %v1260
      %1676 = vmatprep.subr.bf16.mxu0 0
      %1677 = vmatpush1.bf16.msra.mxu0 %v1261
      %1678 = vmatprep.subr.bf16.mxu0 0
      %1679 = vmatpush1.bf16.msra.mxu0 %v1262
      %1680 = vmatprep.subr.bf16.mxu0 0
      %1681 = vmatpush1.bf16.msra.mxu0 %v1263
      %1682 = vmatprep.subr.bf16.mxu0 0
      %1683 = vmatpush1.bf16.msra.mxu0 %v1264
      %1684 = vmatprep.subr.bf16.mxu0 0
      %1685 = vmatpush1.bf16.msra.mxu0 %v1265
      %1686 = vmatprep.subr.bf16.mxu0 0
      %1687 = vmatpush1.bf16.msra.mxu0 %v1266
      %1688 = vmatprep.subr.bf16.mxu0 0
      %1689 = vmatpush1.bf16.msra.mxu0 %v1267
      %1690 = vmatprep.subr.bf16.mxu0 0
      %1691 = vmatpush1.bf16.msra.mxu0 %v1268
      %1692 = vmatprep.subr.bf16.mxu0 0
      %1693 = vmatpush1.bf16.msra.mxu0 %v1269
      %1694 = vmatprep.subr.bf16.mxu0 0
      %1695 = vmatpush1.bf16.msra.mxu0 %v1270
      %1696 = vmatprep.mubr.bf16.mxu0 %v700
      %1697 = vmatmul.mubr.bf16.gmra.mrb[0].mxu0 %v699
      %v1698 = vpop.f32.mrb[0].mxu0
      %v1699 = vadd.f32 %v1634, %v1698
      %v1700 = vpop.f32.mrb[0].mxu0
      %v1701 = vpop.f32.mrb[0].mxu0
      %v1702 = vadd.f32 %v1637, %v1701
      %v1703 = vpop.f32.mrb[0].mxu0
      %1704 = vmatprep.mubr.bf16.mxu0 %v713
      %1705 = vmatmul.mubr.bf16.gmra.mrb[0].mxu0 %v712
      %v1706 = vpop.f32.mrb[0].mxu0
      %v1707 = vadd.f32 %v1642, %v1706
      %v1708 = vpop.f32.mrb[0].mxu0
      %v1709 = vpop.f32.mrb[0].mxu0
      %v1710 = vadd.f32 %v1645, %v1709
      %v1711 = vpop.f32.mrb[0].mxu0
      %1712 = vmatprep.mubr.bf16.mxu0 %v726
      %1713 = vmatmul.mubr.bf16.gmra.mrb[0].mxu0 %v725
      %v1714 = vpop.f32.mrb[0].mxu0
      %v1715 = vadd.f32 %v1650, %v1714
      %v1716 = vpop.f32.mrb[0].mxu0
      %v1717 = vpop.f32.mrb[0].mxu0
      %v1718 = vadd.f32 %v1653, %v1717
      %v1719 = vpop.f32.mrb[0].mxu0
      %1720 = vmatprep.mubr.bf16.mxu0 %v739
      %1721 = vmatmul.mubr.bf16.gmra.mrb[0].mxu0 %v738
      %v1722 = vpop.f32.mrb[0].mxu0
      %v1723 = vadd.f32 %v1658, %v1722
      %v1724 = vpop.f32.mrb[0].mxu0
      %v1725 = vpop.f32.mrb[0].mxu0
      %v1726 = vadd.f32 %v1661, %v1725
      %v1727 = vpop.f32.mrb[0].mxu0
      %1728 = vdwg.mxu0
      %1729 = vmatprep.subr.bf16.mxu0 0
      %1730 = vmatpush1.bf16.msra.mxu0 %v1271
      %1731 = vmatprep.subr.bf16.mxu0 0
      %1732 = vmatpush1.bf16.msra.mxu0 %v1272
      %1733 = vmatprep.subr.bf16.mxu0 0
      %1734 = vmatpush1.bf16.msra.mxu0 %v1273
      %1735 = vmatprep.subr.bf16.mxu0 0
      %1736 = vmatpush1.bf16.msra.mxu0 %v1274
      %1737 = vmatprep.subr.bf16.mxu0 0
      %1738 = vmatpush1.bf16.msra.mxu0 %v1275
      %1739 = vmatprep.subr.bf16.mxu0 0
      %1740 = vmatpush1.bf16.msra.mxu0 %v1276
      %1741 = vmatprep.subr.bf16.mxu0 0
      %1742 = vmatpush1.bf16.msra.mxu0 %v1277
      %1743 = vmatprep.subr.bf16.mxu0 0
      %1744 = vmatpush1.bf16.msra.mxu0 %v1278
      %1745 = vmatprep.subr.bf16.mxu0 0
      %1746 = vmatpush1.bf16.msra.mxu0 %v1279
      %1747 = vmatprep.subr.bf16.mxu0 0
      %1748 = vmatpush1.bf16.msra.mxu0 %v1280
      %1749 = vmatprep.subr.bf16.mxu0 0
      %1750 = vmatpush1.bf16.msra.mxu0 %v1281
      %1751 = vmatprep.subr.bf16.mxu0 0
      %1752 = vmatpush1.bf16.msra.mxu0 %v1282
      %1753 = vmatprep.subr.bf16.mxu0 0
      %1754 = vmatpush1.bf16.msra.mxu0 %v1283
      %1755 = vmatprep.subr.bf16.mxu0 0
      %1756 = vmatpush1.bf16.msra.mxu0 %v1284
      %1757 = vmatprep.subr.bf16.mxu0 0
      %1758 = vmatpush1.bf16.msra.mxu0 %v1285
      %1759 = vmatprep.subr.bf16.mxu0 0
      %1760 = vmatpush1.bf16.msra.mxu0 %v1286
      %1761 = vmatprep.mubr.bf16.mxu0 %v702
      %1762 = vmatmul.mubr.bf16.gmra.mrb[0].mxu0 %v701
      %v1763 = vpop.f32.mrb[0].mxu0
      %v1764 = vadd.f32 %v1699, %v1763
      %v1765 = vpop.f32.mrb[0].mxu0
      %v1766 = vpop.f32.mrb[0].mxu0
      %v1767 = vadd.f32 %v1702, %v1766
      %v1768 = vpop.f32.mrb[0].mxu0
      %1769 = vmatprep.mubr.bf16.mxu0 %v715
      %1770 = vmatmul.mubr.bf16.gmra.mrb[0].mxu0 %v714
      %v1771 = vpop.f32.mrb[0].mxu0
      %v1772 = vadd.f32 %v1707, %v1771
      %v1773 = vpop.f32.mrb[0].mxu0
      %v1774 = vpop.f32.mrb[0].mxu0
      %v1775 = vadd.f32 %v1710, %v1774
      %v1776 = vpop.f32.mrb[0].mxu0
      %1777 = vmatprep.mubr.bf16.mxu0 %v728
      %1778 = vmatmul.mubr.bf16.gmra.mrb[0].mxu0 %v727
      %v1779 = vpop.f32.mrb[0].mxu0
      %v1780 = vadd.f32 %v1715, %v1779
      %v1781 = vpop.f32.mrb[0].mxu0
      %v1782 = vpop.f32.mrb[0].mxu0
      %v1783 = vadd.f32 %v1718, %v1782
      %v1784 = vpop.f32.mrb[0].mxu0
      %1785 = vmatprep.mubr.bf16.mxu0 %v741
      %1786 = vmatmul.mubr.bf16.gmra.mrb[0].mxu0 %v740
      %v1787 = vpop.f32.mrb[0].mxu0
      %v1788 = vadd.f32 %v1723, %v1787
      %v1789 = vpop.f32.mrb[0].mxu0
      %v1790 = vpop.f32.mrb[0].mxu0
      %v1791 = vadd.f32 %v1726, %v1790
      %v1792 = vpop.f32.mrb[0].mxu0
      %1793 = vdwg.mxu0
      %1794 = vmatprep.subr.bf16.mxu0 0
      %1795 = vmatpush1.bf16.msra.mxu0 %v1287
      %1796 = vmatprep.subr.bf16.mxu0 0
      %1797 = vmatpush1.bf16.msra.mxu0 %v1288
      %1798 = vmatprep.subr.bf16.mxu0 0
      %1799 = vmatpush1.bf16.msra.mxu0 %v1289
      %1800 = vmatprep.subr.bf16.mxu0 0
      %1801 = vmatpush1.bf16.msra.mxu0 %v1290
      %1802 = vmatprep.subr.bf16.mxu0 0
      %1803 = vmatpush1.bf16.msra.mxu0 0
      %1804 = vmatprep.subr.bf16.mxu0 0
      %1805 = vmatpush1.bf16.msra.mxu0 0
      %1806 = vmatprep.subr.bf16.mxu0 0
      %1807 = vmatpush1.bf16.msra.mxu0 0
      %1808 = vmatprep.subr.bf16.mxu0 0
      %1809 = vmatpush1.bf16.msra.mxu0 0
      %1810 = vmatprep.subr.bf16.mxu0 0
      %1811 = vmatpush1.bf16.msra.mxu0 0
      %1812 = vmatprep.subr.bf16.mxu0 0
      %1813 = vmatpush1.bf16.msra.mxu0 0
      %1814 = vmatprep.subr.bf16.mxu0 0
      %1815 = vmatpush1.bf16.msra.mxu0 0
      %1816 = vmatprep.subr.bf16.mxu0 0
      %1817 = vmatpush1.bf16.msra.mxu0 0
      %1818 = vmatprep.subr.bf16.mxu0 0
      %1819 = vmatpush1.bf16.msra.mxu0 0
      %1820 = vmatprep.subr.bf16.mxu0 0
      %1821 = vmatpush1.bf16.msra.mxu0 0
      %1822 = vmatprep.subr.bf16.mxu0 0
      %1823 = vmatpush1.bf16.msra.mxu0 0
      %1824 = vmatprep.subr.bf16.mxu0 0
      %1825 = vmatpush1.bf16.msra.mxu0 0
      %1826 = vmatprep.mubr.bf16.mxu0 0
      %1827 = vmatmul.mubr.bf16.gmra.mrb[0].mxu0 %v1393
      %v1828 = vpop.f32.mrb[0].mxu0
      %v1829 = vadd.f32 %v1764, %v1828
      %v1830 = vpop.f32.mrb[0].mxu0
      %v1831 = vpop.f32.mrb[0].mxu0
      %v1832 = vadd.f32 %v1767, %v1831
      %v1833 = vpop.f32.mrb[0].mxu0
      %1834 = vmatprep.mubr.bf16.mxu0 0
      %1835 = vmatmul.mubr.bf16.gmra.mrb[0].mxu0 %v1396
      %v1836 = vpop.f32.mrb[0].mxu0
      %v1837 = vadd.f32 %v1772, %v1836
      %v1838 = vpop.f32.mrb[0].mxu0
      %v1839 = vpop.f32.mrb[0].mxu0
      %v1840 = vadd.f32 %v1775, %v1839
      %v1841 = vpop.f32.mrb[0].mxu0
      %1842 = vmatprep.mubr.bf16.mxu0 0
      %1843 = vmatmul.mubr.bf16.gmra.mrb[0].mxu0 %v1399
      %v1844 = vpop.f32.mrb[0].mxu0
      %v1845 = vadd.f32 %v1780, %v1844
      %v1846 = vpop.f32.mrb[0].mxu0
      %v1847 = vpop.f32.mrb[0].mxu0
      %v1848 = vadd.f32 %v1783, %v1847
      %v1849 = vpop.f32.mrb[0].mxu0
      %1850 = vmatprep.mubr.bf16.mxu0 0
      %1851 = vmatmul.mubr.bf16.gmra.mrb[0].mxu0 %v1402
      %v1852 = vpop.f32.mrb[0].mxu0
      %v1853 = vadd.f32 %v1788, %v1852
      %v1854 = vpop.f32.mrb[0].mxu0
      %v1855 = vpop.f32.mrb[0].mxu0
      %v1856 = vadd.f32 %v1791, %v1855
      %v1857 = vpop.f32.mrb[0].mxu0
      %1858 = vdwg.mxu0
      %vm1859 = vcmask 261120
      %v1860 = vsel %vm1859, %v1829, 0.0
      %1861 = vadd.xlane.f32.xlu0 %v1860
      %v1862 = vpop.xlane.xlu0 %1861
      %v1863 = vsel %vm1859, %v1832, 0.0
      %1864 = vadd.xlane.f32.xlu0 %v1863
      %v1865 = vpop.xlane.xlu0 %1864
      %v1866 = vsel %vm1859, %v1837, 0.0
      %1867 = vadd.xlane.f32.xlu0 %v1866
      %v1868 = vpop.xlane.xlu0 %1867
      %v1869 = vsel %vm1859, %v1840, 0.0
      %1870 = vadd.xlane.f32.xlu0 %v1869
      %v1871 = vpop.xlane.xlu0 %1870
      %v1872 = vsel %vm1859, %v1845, 0.0
      %1873 = vadd.xlane.f32.xlu0 %v1872
      %v1874 = vpop.xlane.xlu0 %1873
      %v1875 = vsel %vm1859, %v1848, 0.0
      %1876 = vadd.xlane.f32.xlu0 %v1875
      %v1877 = vpop.xlane.xlu0 %1876
      %v1878 = vsel %vm1859, %v1853, 0.0
      %1879 = vadd.xlane.f32.xlu0 %v1878
      %v1880 = vpop.xlane.xlu0 %1879
      %v1881 = vsel %vm1859, %v1856, 0.0
      %1882 = vadd.xlane.f32.xlu0 %v1881
      %v1883 = vpop.xlane.xlu0 %1882
      %v1884 = vadd.f32 %v1862, %v1865
      %v1885 = vadd.f32 %v1884, %v1868
      %v1886 = vadd.f32 %v1885, %v1871
      %v1887 = vadd.f32 %v1886, %v1874
      %v1888 = vadd.f32 %v1887, %v1877
      %v1889 = vadd.f32 %v1888, %v1880
      %v1890 = vadd.f32 %v1889, %v1883
      %v1891 = vrot.slane %v1890, 4
      %v1892 = vadd.f32 %v1890, %v1891
      %v1893 = vrot.slane %v1892, 2
      %v1894 = vadd.f32 %v1892, %v1893
      %v1895 = vrot.slane %v1894, 1
      %v1896 = vadd.f32 %v1894, %v1895
      %v1897 = vmul.f32 %v1896, 0.00048828125
      %v1898 = vsub.f32 %v1829, %v1897
      %v1899 = vsub.f32 %v1832, %v1897
      %v1900 = vsub.f32 %v1837, %v1897
      %v1901 = vsub.f32 %v1840, %v1897
      %v1902 = vsub.f32 %v1845, %v1897
      %v1903 = vsub.f32 %v1848, %v1897
      %v1904 = vsub.f32 %v1853, %v1897
      %v1905 = vsub.f32 %v1856, %v1897
      %v1906 = vmul.f32 %v1898, %v1898
      %v1907 = vmul.f32 %v1899, %v1899
      %v1908 = vmul.f32 %v1900, %v1900
      %v1909 = vmul.f32 %v1901, %v1901
      %v1910 = vmul.f32 %v1902, %v1902
      %v1911 = vmul.f32 %v1903, %v1903
      %v1912 = vmul.f32 %v1904, %v1904
      %v1913 = vmul.f32 %v1905, %v1905
      %v1914 = vsel %vm1859, %v1906, 0.0
      %1915 = vadd.xlane.f32.xlu0 %v1914
      %v1916 = vpop.xlane.xlu0 %1915
      %v1917 = vsel %vm1859, %v1907, 0.0
      %1918 = vadd.xlane.f32.xlu0 %v1917
      %v1919 = vpop.xlane.xlu0 %1918
      %v1920 = vsel %vm1859, %v1908, 0.0
      %1921 = vadd.xlane.f32.xlu0 %v1920
      %v1922 = vpop.xlane.xlu0 %1921
      %v1923 = vsel %vm1859, %v1909, 0.0
      %1924 = vadd.xlane.f32.xlu0 %v1923
      %v1925 = vpop.xlane.xlu0 %1924
      %v1926 = vsel %vm1859, %v1910, 0.0
      %1927 = vadd.xlane.f32.xlu0 %v1926
      %v1928 = vpop.xlane.xlu0 %1927
      %v1929 = vsel %vm1859, %v1911, 0.0
      %1930 = vadd.xlane.f32.xlu0 %v1929
      %v1931 = vpop.xlane.xlu0 %1930
      %v1932 = vsel %vm1859, %v1912, 0.0
      %1933 = vadd.xlane.f32.xlu0 %v1932
      %v1934 = vpop.xlane.xlu0 %1933
      %v1935 = vsel %vm1859, %v1913, 0.0
      %1936 = vadd.xlane.f32.xlu0 %v1935
      %v1937 = vpop.xlane.xlu0 %1936
      %v1938 = vadd.f32 %v1916, %v1919
      %v1939 = vadd.f32 %v1938, %v1922
      %v1940 = vadd.f32 %v1939, %v1925
      %v1941 = vadd.f32 %v1940, %v1928
      %v1942 = vadd.f32 %v1941, %v1931
      %v1943 = vadd.f32 %v1942, %v1934
      %v1944 = vadd.f32 %v1943, %v1937
      %v1945 = vrot.slane %v1944, 4
      %v1946 = vadd.f32 %v1944, %v1945
      %v1947 = vrot.slane %v1946, 2
      %v1948 = vadd.f32 %v1946, %v1947
      %v1949 = vrot.slane %v1948, 1
      %v1950 = vadd.f32 %v1948, %v1949
      %v1951 = vmul.f32 %v1950, 0.0004885198
      %v1952 = vrsqrt.pop %v1951
      %v1953 = vmul.f32 %v1951, %v1952
      %vm1954 = vcmp.eq.f32.partialorder %v1951, inf
      %v1955 = vsel %vm1954, %v1951, %v1953
      %vm1956 = vcmp.eq.f32.partialorder %v1951, 0.0
      %v1957 = vand.u32 %v1951, 2147483648
      %v1958 = vsel %vm1956, %v1957, %v1955
      %v1959 = vadd.f32 %v1958, 1e-05
      %v1960 = vrcp.pop %v1959
      %v1961 = vmul.f32 %v1898, %v1960
      %v1962 = vmul.f32 %v1899, %v1960
      %v1963 = vmul.f32 %v1900, %v1960
      %v1964 = vmul.f32 %v1901, %v1960
      %v1965 = vmul.f32 %v1902, %v1960
      %v1966 = vmul.f32 %v1903, %v1960
      %v1967 = vmul.f32 %v1904, %v1960
      %v1968 = vmul.f32 %v1905, %v1960
      %v1969 = vld [vmem:[%s3] sm:$0x1]
      %v1971 = vlaneseq
      %v1972 = vshrl.u32 %v1971, 7
      %v1973 = vsub.s32 0, %v1972
      %v1974 = vrot.slane %v1969, %v1973
      %v1976 = vmul.f32 %v1961, %v1974
      %v1977 = vmul.f32 %v1962, %v1974
      %v1978 = vmul.f32 %v1963, %v1974
      %v1979 = vmul.f32 %v1964, %v1974
      %v1980 = vmul.f32 %v1965, %v1974
      %v1981 = vmul.f32 %v1966, %v1974
      %v1982 = vmul.f32 %v1967, %v1974
      %v1983 = vmul.f32 %v1968, %v1974
      %v1984 = vld [vmem:[%s4] sm:$0x1]
      %v1986 = vlaneseq
      %v1987 = vshrl.u32 %v1986, 7
      %v1988 = vsub.s32 0, %v1987
      %v1989 = vrot.slane %v1984, %v1988
      %v1991 = vadd.f32 %v1976, %v1989
      %v1992 = vadd.f32 %v1977, %v1989
      %v1993 = vadd.f32 %v1978, %v1989
      %v1994 = vadd.f32 %v1979, %v1989
      %v1995 = vadd.f32 %v1980, %v1989
      %v1996 = vadd.f32 %v1981, %v1989
      %v1997 = vadd.f32 %v1982, %v1989
      %v1998 = vadd.f32 %v1983, %v1989
      %v1999 = vmax.f32 %v1991, 0.0
      %v2000 = vmax.f32 %v1992, 0.0
      %v2001 = vmax.f32 %v1993, 0.0
      %v2002 = vmax.f32 %v1994, 0.0
      %v2003 = vmax.f32 %v1995, 0.0
      %v2004 = vmax.f32 %v1996, 0.0
      %v2005 = vmax.f32 %v1997, 0.0
      %v2006 = vmax.f32 %v1998, 0.0
      %v2007 = vpack.c.bf16 %v2000, %v1999
      %v2008 = vpack.c.bf16 %v2002, %v2001
      %v2009 = vpack.c.bf16 %v2004, %v2003
      %v2010 = vpack.c.bf16 %v2006, %v2005
      %v2015 = vunpack.c.l.b16 %v2007
      %v2016 = vunpack.c.h.b16 %v2007
      %v2017 = vunpack.c.l.b16 %v2008
      %v2018 = vunpack.c.h.b16 %v2008
      %v2019 = vunpack.c.l.b16 %v2009
      %v2020 = vunpack.c.h.b16 %v2009
      %v2021 = vunpack.c.l.b16 %v2010
      %v2022 = vunpack.c.h.b16 %v2010
      %v2023 = vpack.c.b16 %v2015, %v2015
      %v2024 = vpack.c.b16 %v2016, %v2016
      %v2025 = vpack.c.b16 %v2017, %v2017
      %v2026 = vpack.c.b16 %v2018, %v2018
      %v2027 = vpack.c.b16 %v2019, %v2019
      %v2028 = vpack.c.b16 %v2020, %v2020
      %v2029 = vpack.c.b16 %v2021, %v2021
      %v2030 = vpack.c.b16 %v2022, %v2022
      %vm2039 = vcmask 257024
      %2040 = vst.msk [vmem:[%s265] sm:$0xf] %vm2039, %v2023
      %2041 = vst.msk [vmem:[%s265 + $0x4] sm:$0xf] %vm2039, %v2024
      %2042 = vst.msk [vmem:[%s265 + $0x8] sm:$0xf] %vm2039, %v2025
      %2043 = vst.msk [vmem:[%s265 + $0xc] sm:$0xf] %vm2039, %v2026
      %2044 = vst.msk [vmem:[%s265 + $0x10] sm:$0xf] %vm2039, %v2027
      %2045 = vst.msk [vmem:[%s265 + $0x14] sm:$0xf] %vm2039, %v2028
      %2046 = vst.msk [vmem:[%s265 + $0x18] sm:$0xf] %vm2039, %v2029
      %2047 = vst.msk [vmem:[%s265 + $0x1c] sm:$0xf] %vm2039, %v2030
      %s2048 = smul.u32 8, %s21
      %p2049 = scmp.lt.s32.totalorder %s20, 1
      %s2050 = scalar_select %p2049, %s20, 1
      %p2051 = scmp.lt.s32.totalorder %s2048, 7
      %s2052 = scalar_select %p2051, %s2048, 7
      %s2053 = smul.addr %s2050, 8
      %s2054 = sadd.s32 %s2052, %s2053
      %s2055 = smul.addr %s2054, 4
      %s2056 = scalar_lea.vmem %s5, %s2055
      // Predicated region
      $region41: #{styleless_gen_forward.29} parent=39 // pred_check
        %p2057 = pneg %p160
      $region42: #{styleless_gen_forward.29} parent=39 // pred_check_branch
        %2059 = sbr.rel (%p2057) target = $region44
      $region43: #{styleless_gen_forward.29} parent=39 // pred_region
        %s2060 = smul.u32 8, %s21
      $region44: #{styleless_gen_forward.29} parent=39 // pred_fallthru
        _
    $region40: #{styleless_gen_forward.29} parent=5 // pred_fallthru
      _
    %p2061 = scmp.le.s32.totalorder 2, %s11
    // Predicated region
    $region45: #{styleless_gen_forward.29} parent=5 // pred_check
      %p2062 = pneg %p2061
    $region46: #{styleless_gen_forward.29} parent=5 // pred_check_branch
      %2064 = sbr.rel (%p2062) target = $region48
    $region47: #{styleless_gen_forward.29} parent=5 // pred_region
      %s2065 = ssub.s32 %s11, 2
      // Predicated region
      $region49: #{styleless_gen_forward.29} parent=47 // pred_check
        %p2066 = pneg %p166
      $region50: #{styleless_gen_forward.29} parent=47 // pred_check_branch
        %2068 = sbr.rel (%p2066) target = $region52
      $region51: #{styleless_gen_forward.29} parent=47 // pred_region
        %s2069 = smul.u32 8, %s23
        %p2070 = scmp.lt.s32.totalorder %s22, 1
        %s2071 = scalar_select %p2070, %s22, 1
        %p2072 = scmp.lt.s32.totalorder %s2069, 7
        %s2073 = scalar_select %p2072, %s2069, 7
        %s2074 = smul.addr %s2071, 8
        %s2075 = sadd.s32 %s2073, %s2074
        %s2076 = smul.addr %s2075, 4
        %s2077 = scalar_lea.vmem %s5, %s2076
      $region52: #{styleless_gen_forward.29} parent=47 // pred_fallthru
        _
    $region48: #{styleless_gen_forward.29} parent=5 // pred_fallthru
      _
  $region6: #{styleless_gen_forward.29} parent=0 // loop_footer
    %s15 = sadd.s32 1, %s11
  $region7: #{styleless_gen_forward.29} parent=0 // loop_footer_branch
    %10 = sbr.rel target = $region3
  $region8: #{styleless_gen_forward.29} parent=0 // loop_exit
    _

// kernel: styleless_gen_forward.30
$region0: #{styleless_gen_forward.30}
  #allocation0 [shape = 'u32[]', space=smem, size = 0x4, offset = 0x4, fixed_abs, tag = 'smem constant byte address 0x4 - core index']
  #allocation1 [shape = 'u32[144,128]{1,0:T(1,128)}', space=vmem, size = 0x12000, scoped, tag = 'internal scratch']
  %s0 = inlined_call_operand.vmem [shape: bf16[2,256,800], index: 0, kind: input, shape index: {}]
  %s1 = inlined_call_operand.vmem [shape: bf16[800,16], index: 1, kind: input, shape index: {}]
  %s2 = inlined_call_operand.vmem [shape: f32[1,16], index: 2, kind: input, shape index: {}]
  %s3 = inlined_call_operand.vmem [shape: f32[1,16], index: 3, kind: input, shape index: {}]
  %s4 = inlined_call_operand.vmem [shape: f32[1,16], index: 4, kind: input, shape index: {}]
  %s5 = inlined_call_operand.vmem [shape: bf16[2,256,16], index: 5, kind: output, shape index: {}]
  %s6 = sld [smem:[#allocation0]]
  $region53: #{styleless_gen_forward.30} parent=0
    _
  %s8 = ssub.s32 1, %s6
  %s9 = scalar_select 0, %s8, %s6
  loop: start=0, step=1, limit=4
  $region2: #{styleless_gen_forward.30} parent=0 // loop_pre_header
    _
  $region3: #{styleless_gen_forward.30} parent=0 // loop_header
    %s11 = sphi 0, %s15
    %p12 = scmp.ge.s32.totalorder %s11, 4
    %s18 = sphi 0, %s30
    %s19 = sphi 0, %s26
    %s20 = sphi 0, %s18
    %s21 = sphi 0, %s19
    %s22 = sphi 0, %s20
    %s23 = sphi 0, %s21
    %s35 = sphi 0, %s37
    %s38 = sphi 0, %s35
    %s39 = sphi 0, %s38
    %s55 = sphi 0, %s39
    %s59 = sphi 0, %s59
    %s61 = sphi 0, %s59
    %s62 = sphi 0, %s61
    %s76 = sphi 0, %s62
    %s80 = sphi 0, %s80
    %s82 = sphi 0, %s80
    %s83 = sphi 0, %s82
    %s97 = sphi 0, %s83
    %s101 = sphi 0, %s101
    %s103 = sphi 0, %s101
    %s104 = sphi 0, %s103
    %s118 = sphi 0, %s104
    %s122 = sphi 0, %s122
    %s124 = sphi 0, %s122
    %s125 = sphi 0, %s124
    %s139 = sphi 0, %s125
    %s147 = sphi 0, %s149
    %s150 = sphi 0, %s147
    %s151 = sphi 0, %s150
    %s167 = sphi 0, %s151
  $region4: #{styleless_gen_forward.30} parent=0 // loop_header_branch
    %14 = sbr.rel (%p12) target = $region8
  $region5: #{styleless_gen_forward.30} parent=0 // loop_body
    %s16 = ssub.s32 %s11, 1
    %s17 = ssub.s32 %s11, 2
    %s24 = sadd.s32 1, %s19
    %p25 = scmp.ge.s32.totalorder %s24, 1
    %s26 = scalar_select %p25, 0, %s24
    %s27 = sadd.s32 1, %s18
    %s28 = scalar_select %p25, %s27, %s18
    %p29 = scmp.ge.s32.totalorder %s28, 2
    %s30 = scalar_select %p29, 0, %s28
    %s31 = ssub.s32 %s18, %s30
    %s32 = ssub.s32 %s19, %s26
    %s33 = sor.u32 %s31, %s32
    %p34 = scmp.eq.s32.totalorder %s33, 0
    %s36 = sadd.s32 %s35, 1
    %s37 = scalar_select %p34, %s35, %s36
    %p40 = pneg %p34
    %p41 = scmp.eq.s32.totalorder %s11, 1
    %p42 = por %p40, %p41
    %p43 = scmp.ne.s32.totalorder %s35, %s38
    %p44 = scmp.eq.s32.totalorder %s11, 0
    %p45 = por %p43, %p44
    %p46 = scmp.ne.s32.totalorder %s35, %s38
    %p47 = scmp.eq.s32.totalorder %s16, 1
    %p48 = por %p46, %p47
    %p49 = scmp.ne.s32.totalorder %s38, %s39
    %p50 = scmp.eq.s32.totalorder %s16, 0
    %p51 = por %p49, %p50
    %p52 = scmp.ne.s32.totalorder %s38, %s39
    %p53 = scmp.eq.s32.totalorder %s17, 1
    %p54 = por %p52, %p53
    %p56 = scmp.ne.s32.totalorder %s39, %s55
    %p57 = scmp.eq.s32.totalorder %s17, 0
    %p58 = por %p56, %p57
    %s60 = sadd.s32 %s59, 1
    %p63 = scmp.eq.s32.totalorder %s11, 1
    %p64 = scmp.ne.s32.totalorder %s59, %s61
    %p65 = scmp.eq.s32.totalorder %s11, 0
    %p66 = por %p64, %p65
    %p67 = scmp.ne.s32.totalorder %s59, %s61
    %p68 = scmp.eq.s32.totalorder %s16, 1
    %p69 = por %p67, %p68
    %p70 = scmp.ne.s32.totalorder %s61, %s62
    %p71 = scmp.eq.s32.totalorder %s16, 0
    %p72 = por %p70, %p71
    %p73 = scmp.ne.s32.totalorder %s61, %s62
    %p74 = scmp.eq.s32.totalorder %s17, 1
    %p75 = por %p73, %p74
    %p77 = scmp.ne.s32.totalorder %s62, %s76
    %p78 = scmp.eq.s32.totalorder %s17, 0
    %p79 = por %p77, %p78
    %s81 = sadd.s32 %s80, 1
    %p84 = scmp.eq.s32.totalorder %s11, 1
    %p85 = scmp.ne.s32.totalorder %s80, %s82
    %p86 = scmp.eq.s32.totalorder %s11, 0
    %p87 = por %p85, %p86
    %p88 = scmp.ne.s32.totalorder %s80, %s82
    %p89 = scmp.eq.s32.totalorder %s16, 1
    %p90 = por %p88, %p89
    %p91 = scmp.ne.s32.totalorder %s82, %s83
    %p92 = scmp.eq.s32.totalorder %s16, 0
    %p93 = por %p91, %p92
    %p94 = scmp.ne.s32.totalorder %s82, %s83
    %p95 = scmp.eq.s32.totalorder %s17, 1
    %p96 = por %p94, %p95
    %p98 = scmp.ne.s32.totalorder %s83, %s97
    %p99 = scmp.eq.s32.totalorder %s17, 0
    %p100 = por %p98, %p99
    %s102 = sadd.s32 %s101, 1
    %p105 = scmp.eq.s32.totalorder %s11, 1
    %p106 = scmp.ne.s32.totalorder %s101, %s103
    %p107 = scmp.eq.s32.totalorder %s11, 0
    %p108 = por %p106, %p107
    %p109 = scmp.ne.s32.totalorder %s101, %s103
    %p110 = scmp.eq.s32.totalorder %s16, 1
    %p111 = por %p109, %p110
    %p112 = scmp.ne.s32.totalorder %s103, %s104
    %p113 = scmp.eq.s32.totalorder %s16, 0
    %p114 = por %p112, %p113
    %p115 = scmp.ne.s32.totalorder %s103, %s104
    %p116 = scmp.eq.s32.totalorder %s17, 1
    %p117 = por %p115, %p116
    %p119 = scmp.ne.s32.totalorder %s104, %s118
    %p120 = scmp.eq.s32.totalorder %s17, 0
    %p121 = por %p119, %p120
    %s123 = sadd.s32 %s122, 1
    %p126 = scmp.eq.s32.totalorder %s11, 1
    %p127 = scmp.ne.s32.totalorder %s122, %s124
    %p128 = scmp.eq.s32.totalorder %s11, 0
    %p129 = por %p127, %p128
    %p130 = scmp.ne.s32.totalorder %s122, %s124
    %p131 = scmp.eq.s32.totalorder %s16, 1
    %p132 = por %p130, %p131
    %p133 = scmp.ne.s32.totalorder %s124, %s125
    %p134 = scmp.eq.s32.totalorder %s16, 0
    %p135 = por %p133, %p134
    %p136 = scmp.ne.s32.totalorder %s124, %s125
    %p137 = scmp.eq.s32.totalorder %s17, 1
    %p138 = por %p136, %p137
    %p140 = scmp.ne.s32.totalorder %s125, %s139
    %p141 = scmp.eq.s32.totalorder %s17, 0
    %p142 = por %p140, %p141
    %s143 = ssub.s32 %s18, %s30
    %s144 = ssub.s32 %s19, %s26
    %s145 = sor.u32 %s143, %s144
    %p146 = scmp.eq.s32.totalorder %s145, 0
    %s148 = sadd.s32 %s147, 1
    %s149 = scalar_select %p146, %s147, %s148
    %p152 = pneg %p146
    %p153 = scmp.eq.s32.totalorder %s11, 1
    %p154 = por %p152, %p153
    %p155 = scmp.ne.s32.totalorder %s147, %s150
    %p156 = scmp.eq.s32.totalorder %s11, 0
    %p157 = por %p155, %p156
    %p158 = scmp.ne.s32.totalorder %s147, %s150
    %p159 = scmp.eq.s32.totalorder %s16, 1
    %p160 = por %p158, %p159
    %p161 = scmp.ne.s32.totalorder %s150, %s151
    %p162 = scmp.eq.s32.totalorder %s16, 0
    %p163 = por %p161, %p162
    %p164 = scmp.ne.s32.totalorder %s150, %s151
    %p165 = scmp.eq.s32.totalorder %s17, 1
    %p166 = por %p164, %p165
    %p168 = scmp.ne.s32.totalorder %s151, %s167
    %p169 = scmp.eq.s32.totalorder %s17, 0
    %p170 = por %p168, %p169
    %p171 = scmp.le.s32.totalorder 1, %s11
    %p172 = scmp.lt.s32.totalorder %s11, 3
    %p173 = pnand %p171, %p172
    %p174 = pneg %p173
    // Predicated region
    $region9: #{styleless_gen_forward.30} parent=5 // pred_check
      _
    $region10: #{styleless_gen_forward.30} parent=5 // pred_check_branch
      %176 = sbr.rel (%p173) target = $region12
    $region11: #{styleless_gen_forward.30} parent=5 // pred_region
      %s177 = ssub.s32 %s11, 1
      // Predicated region
      $region13: #{styleless_gen_forward.30} parent=11 // pred_check
        %p178 = pneg %p72
      $region14: #{styleless_gen_forward.30} parent=11 // pred_check_branch
        %180 = sbr.rel (%p178) target = $region16
      $region15: #{styleless_gen_forward.30} parent=11 // pred_region
        _
      $region16: #{styleless_gen_forward.30} parent=11 // pred_fallthru
        _
      // Predicated region
      $region17: #{styleless_gen_forward.30} parent=11 // pred_check
        %p181 = pneg %p93
      $region18: #{styleless_gen_forward.30} parent=11 // pred_check_branch
        %183 = sbr.rel (%p181) target = $region20
      $region19: #{styleless_gen_forward.30} parent=11 // pred_region
        _
      $region20: #{styleless_gen_forward.30} parent=11 // pred_fallthru
        _
      // Predicated region
      $region21: #{styleless_gen_forward.30} parent=11 // pred_check
        %p184 = pneg %p114
      $region22: #{styleless_gen_forward.30} parent=11 // pred_check_branch
        %186 = sbr.rel (%p184) target = $region24
      $region23: #{styleless_gen_forward.30} parent=11 // pred_region
        _
      $region24: #{styleless_gen_forward.30} parent=11 // pred_fallthru
        _
      // Predicated region
      $region25: #{styleless_gen_forward.30} parent=11 // pred_check
        %p187 = pneg %p135
      $region26: #{styleless_gen_forward.30} parent=11 // pred_check_branch
        %189 = sbr.rel (%p187) target = $region28
      $region27: #{styleless_gen_forward.30} parent=11 // pred_region
        _
      $region28: #{styleless_gen_forward.30} parent=11 // pred_fallthru
        _
    $region12: #{styleless_gen_forward.30} parent=5 // pred_fallthru
      _
    %p190 = scmp.lt.s32.totalorder %s11, 2
    // Predicated region
    $region29: #{styleless_gen_forward.30} parent=5 // pred_check
      %p191 = pneg %p190
    $region30: #{styleless_gen_forward.30} parent=5 // pred_check_branch
      %193 = sbr.rel (%p191) target = $region32
    $region31: #{styleless_gen_forward.30} parent=5 // pred_region
      // Predicated region
      $region33: #{styleless_gen_forward.30} parent=31 // pred_check
        %p194 = pneg %p45
      $region34: #{styleless_gen_forward.30} parent=31 // pred_check_branch
        %196 = sbr.rel (%p194) target = $region36
      $region35: #{styleless_gen_forward.30} parent=31 // pred_region
        %s197 = smul.u32 32, %s19
        %p198 = scmp.lt.s32.totalorder %s18, 1
        %s199 = scalar_select %p198, %s18, 1
        %p200 = scmp.lt.s32.totalorder %s197, 31
        %s201 = scalar_select %p200, %s197, 31
        %s202 = smul.addr %s201, 7
        %s203 = smul.addr %s199, 224
        %s204 = sadd.s32 %s202, %s203
        %s205 = smul.addr %s204, 4
        %s206 = scalar_lea.vmem %s0, %s205
        %s207 = smul.u32 32, %s19
      $region36: #{styleless_gen_forward.30} parent=31 // pred_fallthru
        _
    $region32: #{styleless_gen_forward.30} parent=5 // pred_fallthru
      _
    %p208 = scmp.le.s32.totalorder 1, %s11
    %p209 = scmp.lt.s32.totalorder %s11, 3
    %p210 = pnand %p208, %p209
    %p211 = pneg %p210
    // Predicated region
    $region37: #{styleless_gen_forward.30} parent=5 // pred_check
      _
    $region38: #{styleless_gen_forward.30} parent=5 // pred_check_branch
      %213 = sbr.rel (%p210) target = $region40
    $region39: #{styleless_gen_forward.30} parent=5 // pred_region
      %s214 = ssub.s32 %s11, 1
      %s215 = smul.u32 32, %s21
      %p216 = scmp.lt.s32.totalorder %s20, 1
      %s217 = scalar_select %p216, %s20, 1
      %p218 = scmp.lt.s32.totalorder %s215, 31
      %s219 = scalar_select %p218, %s215, 31
      %s220 = smul.addr %s219, 7
      %s221 = smul.addr %s217, 224
      %s222 = sadd.s32 %s220, %s221
      %s223 = smul.addr %s222, 4
      %s224 = scalar_lea.vmem %s0, %s223
      %p225 = pneg %p51
      %p226 = pneg %p48
      %p227 = pneg %p72
      %p228 = pneg %p69
      %p229 = pneg %p93
      %p230 = pneg %p90
      %p231 = pneg %p114
      %p232 = pneg %p111
      %p233 = pneg %p135
      %p234 = pneg %p132
      %p235 = pneg %p163
      %p236 = pneg %p160
      %s237 = smul.u32 32, %s21
      %p238 = scmp.lt.s32.totalorder %s20, 1
      %s239 = scalar_select %p238, %s20, 1
      %p240 = scmp.lt.s32.totalorder %s237, 31
      %s241 = scalar_select %p240, %s237, 31
      %s242 = smul.addr %s239, 32
      %s243 = sadd.s32 %s241, %s242
      %s244 = smul.addr %s243, 4
      %s245 = scalar_lea.vmem %s5, %s244
      %s246 = smul.u32 32, %s21
      %p247 = scmp.lt.s32.totalorder %s20, 1
      %s248 = scalar_select %p247, %s20, 1
      %p249 = scmp.lt.s32.totalorder %s246, 31
      %s250 = scalar_select %p249, %s246, 31
      %s251 = smul.addr %s250, 7
      %s252 = smul.addr %s248, 224
      %s253 = sadd.s32 %s251, %s252
      %s254 = smul.addr %s253, 4
      %s255 = scalar_lea.vmem %s0, %s254
      %s256 = smul.u32 32, %s21
      %s257 = smul.u32 32, %s21
      %p258 = scmp.lt.s32.totalorder %s20, 1
      %s259 = scalar_select %p258, %s20, 1
      %p260 = scmp.lt.s32.totalorder %s257, 31
      %s261 = scalar_select %p260, %s257, 31
      %s262 = smul.addr %s259, 32
      %s263 = sadd.s32 %s261, %s262
      %s264 = smul.addr %s263, 4
      %s265 = scalar_lea.vmem %s5, %s264
      %s266 = smul.u32 32, %s21
      %v268 = vld [vmem:[%s255] sm:$0xff]
      %v269 = vld [vmem:[%s255 + $0x8] sm:$0xff]
      %v270 = vld [vmem:[%s255 + $0x10] sm:$0xff]
      %v271 = vld [vmem:[%s255 + $0x18] sm:$0xf]
      %v272 = vld [vmem:[%s255 + $0x1c] sm:$0xff]
      %v273 = vld [vmem:[%s255 + $0x24] sm:$0xff]
      %v274 = vld [vmem:[%s255 + $0x2c] sm:$0xff]
      %v275 = vld [vmem:[%s255 + $0x34] sm:$0xf]
      %v276 = vld [vmem:[%s255 + $0x38] sm:$0xff]
      %v277 = vld [vmem:[%s255 + $0x40] sm:$0xff]
      %v278 = vld [vmem:[%s255 + $0x48] sm:$0xff]
      %v279 = vld [vmem:[%s255 + $0x50] sm:$0xf]
      %v280 = vld [vmem:[%s255 + $0x54] sm:$0xff]
      %v281 = vld [vmem:[%s255 + $0x5c] sm:$0xff]
      %v282 = vld [vmem:[%s255 + $0x64] sm:$0xff]
      %v283 = vld [vmem:[%s255 + $0x6c] sm:$0xf]
      %v284 = vld [vmem:[%s255 + $0x70] sm:$0xff]
      %v285 = vld [vmem:[%s255 + $0x78] sm:$0xff]
      %v286 = vld [vmem:[%s255 + $0x80] sm:$0xff]
      %v287 = vld [vmem:[%s255 + $0x88] sm:$0xf]
      %v288 = vld [vmem:[%s255 + $0x8c] sm:$0xff]
      %v289 = vld [vmem:[%s255 + $0x94] sm:$0xff]
      %v290 = vld [vmem:[%s255 + $0x9c] sm:$0xff]
      %v291 = vld [vmem:[%s255 + $0xa4] sm:$0xf]
      %v292 = vld [vmem:[%s255 + $0xa8] sm:$0xff]
      %v293 = vld [vmem:[%s255 + $0xb0] sm:$0xff]
      %v294 = vld [vmem:[%s255 + $0xb8] sm:$0xff]
      %v295 = vld [vmem:[%s255 + $0xc0] sm:$0xf]
      %v296 = vld [vmem:[%s255 + $0xc4] sm:$0xff]
      %v297 = vld [vmem:[%s255 + $0xcc] sm:$0xff]
      %v298 = vld [vmem:[%s255 + $0xd4] sm:$0xff]
      %v299 = vld [vmem:[%s255 + $0xdc] sm:$0xf]
      %v300 = vld [vmem:[%s255 + $0xe0] sm:$0xff]
      %v301 = vld [vmem:[%s255 + $0xe8] sm:$0xff]
      %v302 = vld [vmem:[%s255 + $0xf0] sm:$0xff]
      %v303 = vld [vmem:[%s255 + $0xf8] sm:$0xf]
      %v304 = vld [vmem:[%s255 + $0xfc] sm:$0xff]
      %v305 = vld [vmem:[%s255 + $0x104] sm:$0xff]
      %v306 = vld [vmem:[%s255 + $0x10c] sm:$0xff]
      %v307 = vld [vmem:[%s255 + $0x114] sm:$0xf]
      %v308 = vld [vmem:[%s255 + $0x118] sm:$0xff]
      %v309 = vld [vmem:[%s255 + $0x120] sm:$0xff]
      %v310 = vld [vmem:[%s255 + $0x128] sm:$0xff]
      %v311 = vld [vmem:[%s255 + $0x130] sm:$0xf]
      %v312 = vld [vmem:[%s255 + $0x134] sm:$0xff]
      %v313 = vld [vmem:[%s255 + $0x13c] sm:$0xff]
      %v314 = vld [vmem:[%s255 + $0x144] sm:$0xff]
      %v315 = vld [vmem:[%s255 + $0x14c] sm:$0xf]
      %v316 = vld [vmem:[%s255 + $0x150] sm:$0xff]
      %v317 = vld [vmem:[%s255 + $0x158] sm:$0xff]
      %v318 = vld [vmem:[%s255 + $0x160] sm:$0xff]
      %v319 = vld [vmem:[%s255 + $0x168] sm:$0xf]
      %v320 = vld [vmem:[%s255 + $0x16c] sm:$0xff]
      %v321 = vld [vmem:[%s255 + $0x174] sm:$0xff]
      %v322 = vld [vmem:[%s255 + $0x17c] sm:$0xff]
      %v323 = vld [vmem:[%s255 + $0x184] sm:$0xf]
      %v324 = vld [vmem:[%s255 + $0x188] sm:$0xff]
      %v325 = vld [vmem:[%s255 + $0x190] sm:$0xff]
      %v326 = vld [vmem:[%s255 + $0x198] sm:$0xff]
      %v327 = vld [vmem:[%s255 + $0x1a0] sm:$0xf]
      %v328 = vld [vmem:[%s255 + $0x1a4] sm:$0xff]
      %v329 = vld [vmem:[%s255 + $0x1ac] sm:$0xff]
      %v330 = vld [vmem:[%s255 + $0x1b4] sm:$0xff]
      %v331 = vld [vmem:[%s255 + $0x1bc] sm:$0xf]
      %v332 = vld [vmem:[%s255 + $0x1c0] sm:$0xff]
      %v333 = vld [vmem:[%s255 + $0x1c8] sm:$0xff]
      %v334 = vld [vmem:[%s255 + $0x1d0] sm:$0xff]
      %v335 = vld [vmem:[%s255 + $0x1d8] sm:$0xf]
      %v336 = vld [vmem:[%s255 + $0x1dc] sm:$0xff]
      %v337 = vld [vmem:[%s255 + $0x1e4] sm:$0xff]
      %v338 = vld [vmem:[%s255 + $0x1ec] sm:$0xff]
      %v339 = vld [vmem:[%s255 + $0x1f4] sm:$0xf]
      %v340 = vld [vmem:[%s255 + $0x1f8] sm:$0xff]
      %v341 = vld [vmem:[%s255 + $0x200] sm:$0xff]
      %v342 = vld [vmem:[%s255 + $0x208] sm:$0xff]
      %v343 = vld [vmem:[%s255 + $0x210] sm:$0xf]
      %v344 = vld [vmem:[%s255 + $0x214] sm:$0xff]
      %v345 = vld [vmem:[%s255 + $0x21c] sm:$0xff]
      %v346 = vld [vmem:[%s255 + $0x224] sm:$0xff]
      %v347 = vld [vmem:[%s255 + $0x22c] sm:$0xf]
      %v348 = vld [vmem:[%s255 + $0x230] sm:$0xff]
      %v349 = vld [vmem:[%s255 + $0x238] sm:$0xff]
      %v350 = vld [vmem:[%s255 + $0x240] sm:$0xff]
      %v351 = vld [vmem:[%s255 + $0x248] sm:$0xf]
      %v352 = vld [vmem:[%s255 + $0x24c] sm:$0xff]
      %v353 = vld [vmem:[%s255 + $0x254] sm:$0xff]
      %v354 = vld [vmem:[%s255 + $0x25c] sm:$0xff]
      %v355 = vld [vmem:[%s255 + $0x264] sm:$0xf]
      %v356 = vld [vmem:[%s255 + $0x268] sm:$0xff]
      %v357 = vld [vmem:[%s255 + $0x270] sm:$0xff]
      %v358 = vld [vmem:[%s255 + $0x278] sm:$0xff]
      %v359 = vld [vmem:[%s255 + $0x280] sm:$0xf]
      %v360 = vld [vmem:[%s255 + $0x284] sm:$0xff]
      %v361 = vld [vmem:[%s255 + $0x28c] sm:$0xff]
      %v362 = vld [vmem:[%s255 + $0x294] sm:$0xff]
      %v363 = vld [vmem:[%s255 + $0x29c] sm:$0xf]
      %v364 = vld [vmem:[%s255 + $0x2a0] sm:$0xff]
      %v365 = vld [vmem:[%s255 + $0x2a8] sm:$0xff]
      %v366 = vld [vmem:[%s255 + $0x2b0] sm:$0xff]
      %v367 = vld [vmem:[%s255 + $0x2b8] sm:$0xf]
      %v368 = vld [vmem:[%s255 + $0x2bc] sm:$0xff]
      %v369 = vld [vmem:[%s255 + $0x2c4] sm:$0xff]
      %v370 = vld [vmem:[%s255 + $0x2cc] sm:$0xff]
      %v371 = vld [vmem:[%s255 + $0x2d4] sm:$0xf]
      %v372 = vld [vmem:[%s255 + $0x2d8] sm:$0xff]
      %v373 = vld [vmem:[%s255 + $0x2e0] sm:$0xff]
      %v374 = vld [vmem:[%s255 + $0x2e8] sm:$0xff]
      %v375 = vld [vmem:[%s255 + $0x2f0] sm:$0xf]
      %v376 = vld [vmem:[%s255 + $0x2f4] sm:$0xff]
      %v377 = vld [vmem:[%s255 + $0x2fc] sm:$0xff]
      %v378 = vld [vmem:[%s255 + $0x304] sm:$0xff]
      %v379 = vld [vmem:[%s255 + $0x30c] sm:$0xf]
      %v380 = vld [vmem:[%s255 + $0x310] sm:$0xff]
      %v381 = vld [vmem:[%s255 + $0x318] sm:$0xff]
      %v382 = vld [vmem:[%s255 + $0x320] sm:$0xff]
      %v383 = vld [vmem:[%s255 + $0x328] sm:$0xf]
      %v384 = vld [vmem:[%s255 + $0x32c] sm:$0xff]
      %v385 = vld [vmem:[%s255 + $0x334] sm:$0xff]
      %v386 = vld [vmem:[%s255 + $0x33c] sm:$0xff]
      %v387 = vld [vmem:[%s255 + $0x344] sm:$0xf]
      %v388 = vld [vmem:[%s255 + $0x348] sm:$0xff]
      %v389 = vld [vmem:[%s255 + $0x350] sm:$0xff]
      %v390 = vld [vmem:[%s255 + $0x358] sm:$0xff]
      %v391 = vld [vmem:[%s255 + $0x360] sm:$0xf]
      %v392 = vld [vmem:[%s255 + $0x364] sm:$0xff]
      %v393 = vld [vmem:[%s255 + $0x36c] sm:$0xff]
      %v394 = vld [vmem:[%s255 + $0x374] sm:$0xff]
      %v395 = vld [vmem:[%s255 + $0x37c] sm:$0xf]
      %v396 = vld [vmem:[%s1] sm:$0xf]
      %v397 = vld [vmem:[%s1 + $0x4] sm:$0xf]
      %v398 = vld [vmem:[%s1 + $0x8] sm:$0xf]
      %v399 = vld [vmem:[%s1 + $0xc] sm:$0xf]
      %v400 = vld [vmem:[%s1 + $0x10] sm:$0xf]
      %v401 = vld [vmem:[%s1 + $0x14] sm:$0xf]
      %v402 = vld [vmem:[%s1 + $0x18] sm:$0xf]
      %v403 = vld [vmem:[%s1 + $0x1c] sm:$0xf]
      %v404 = vld [vmem:[%s1 + $0x20] sm:$0xf]
      %v405 = vld [vmem:[%s1 + $0x24] sm:$0xf]
      %v406 = vld [vmem:[%s1 + $0x28] sm:$0xf]
      %v407 = vld [vmem:[%s1 + $0x2c] sm:$0xf]
      %v408 = vld [vmem:[%s1 + $0x30] sm:$0xf]
      %v409 = vld [vmem:[%s1 + $0x34] sm:$0xf]
      %v410 = vld [vmem:[%s1 + $0x38] sm:$0xf]
      %v411 = vld [vmem:[%s1 + $0x3c] sm:$0xf]
      %v412 = vld [vmem:[%s1 + $0x40] sm:$0xf]
      %v413 = vld [vmem:[%s1 + $0x44] sm:$0xf]
      %v414 = vld [vmem:[%s1 + $0x48] sm:$0xf]
      %v415 = vld [vmem:[%s1 + $0x4c] sm:$0xf]
      %v416 = vld [vmem:[%s1 + $0x50] sm:$0xf]
      %v417 = vld [vmem:[%s1 + $0x54] sm:$0xf]
      %v418 = vld [vmem:[%s1 + $0x58] sm:$0xf]
      %v419 = vld [vmem:[%s1 + $0x5c] sm:$0xf]
      %v420 = vld [vmem:[%s1 + $0x60] sm:$0xf]
      %v421 = vld [vmem:[%s1 + $0x64] sm:$0xf]
      %v422 = vld [vmem:[%s1 + $0x68] sm:$0xf]
      %v423 = vld [vmem:[%s1 + $0x6c] sm:$0xf]
      %v424 = vld [vmem:[%s1 + $0x70] sm:$0xf]
      %v425 = vld [vmem:[%s1 + $0x74] sm:$0xf]
      %v426 = vld [vmem:[%s1 + $0x78] sm:$0xf]
      %v427 = vld [vmem:[%s1 + $0x7c] sm:$0xf]
      %v428 = vld [vmem:[%s1 + $0x80] sm:$0xf]
      %v429 = vld [vmem:[%s1 + $0x84] sm:$0xf]
      %v430 = vld [vmem:[%s1 + $0x88] sm:$0xf]
      %v431 = vld [vmem:[%s1 + $0x8c] sm:$0xf]
      %v432 = vld [vmem:[%s1 + $0x90] sm:$0xf]
      %v433 = vld [vmem:[%s1 + $0x94] sm:$0xf]
      %v434 = vld [vmem:[%s1 + $0x98] sm:$0xf]
      %v435 = vld [vmem:[%s1 + $0x9c] sm:$0xf]
      %v436 = vld [vmem:[%s1 + $0xa0] sm:$0xf]
      %v437 = vld [vmem:[%s1 + $0xa4] sm:$0xf]
      %v438 = vld [vmem:[%s1 + $0xa8] sm:$0xf]
      %v439 = vld [vmem:[%s1 + $0xac] sm:$0xf]
      %v440 = vld [vmem:[%s1 + $0xb0] sm:$0xf]
      %v441 = vld [vmem:[%s1 + $0xb4] sm:$0xf]
      %v442 = vld [vmem:[%s1 + $0xb8] sm:$0xf]
      %v443 = vld [vmem:[%s1 + $0xbc] sm:$0xf]
      %v444 = vld [vmem:[%s1 + $0xc0] sm:$0xf]
      %v445 = vld [vmem:[%s1 + $0xc4] sm:$0xf]
      %v446 = vld [vmem:[%s1 + $0xc8] sm:$0xf]
      %v447 = vld [vmem:[%s1 + $0xcc] sm:$0xf]
      %v448 = vld [vmem:[%s1 + $0xd0] sm:$0xf]
      %v449 = vld [vmem:[%s1 + $0xd4] sm:$0xf]
      %v450 = vld [vmem:[%s1 + $0xd8] sm:$0xf]
      %v451 = vld [vmem:[%s1 + $0xdc] sm:$0xf]
      %v452 = vld [vmem:[%s1 + $0xe0] sm:$0xf]
      %v453 = vld [vmem:[%s1 + $0xe4] sm:$0xf]
      %v454 = vld [vmem:[%s1 + $0xe8] sm:$0xf]
      %v455 = vld [vmem:[%s1 + $0xec] sm:$0xf]
      %v456 = vld [vmem:[%s1 + $0xf0] sm:$0xf]
      %v457 = vld [vmem:[%s1 + $0xf4] sm:$0xf]
      %v458 = vld [vmem:[%s1 + $0xf8] sm:$0xf]
      %v459 = vld [vmem:[%s1 + $0xfc] sm:$0xf]
      %v460 = vld [vmem:[%s1 + $0x100] sm:$0xf]
      %v461 = vld [vmem:[%s1 + $0x104] sm:$0xf]
      %v462 = vld [vmem:[%s1 + $0x108] sm:$0xf]
      %v463 = vld [vmem:[%s1 + $0x10c] sm:$0xf]
      %v464 = vld [vmem:[%s1 + $0x110] sm:$0xf]
      %v465 = vld [vmem:[%s1 + $0x114] sm:$0xf]
      %v466 = vld [vmem:[%s1 + $0x118] sm:$0xf]
      %v467 = vld [vmem:[%s1 + $0x11c] sm:$0xf]
      %v468 = vld [vmem:[%s1 + $0x120] sm:$0xf]
      %v469 = vld [vmem:[%s1 + $0x124] sm:$0xf]
      %v470 = vld [vmem:[%s1 + $0x128] sm:$0xf]
      %v471 = vld [vmem:[%s1 + $0x12c] sm:$0xf]
      %v472 = vld [vmem:[%s1 + $0x130] sm:$0xf]
      %v473 = vld [vmem:[%s1 + $0x134] sm:$0xf]
      %v474 = vld [vmem:[%s1 + $0x138] sm:$0xf]
      %v475 = vld [vmem:[%s1 + $0x13c] sm:$0xf]
      %v476 = vld [vmem:[%s1 + $0x140] sm:$0xf]
      %v477 = vld [vmem:[%s1 + $0x144] sm:$0xf]
      %v478 = vld [vmem:[%s1 + $0x148] sm:$0xf]
      %v479 = vld [vmem:[%s1 + $0x14c] sm:$0xf]
      %v480 = vld [vmem:[%s1 + $0x150] sm:$0xf]
      %v481 = vld [vmem:[%s1 + $0x154] sm:$0xf]
      %v482 = vld [vmem:[%s1 + $0x158] sm:$0xf]
      %v483 = vld [vmem:[%s1 + $0x15c] sm:$0xf]
      %v484 = vld [vmem:[%s1 + $0x160] sm:$0xf]
      %v485 = vld [vmem:[%s1 + $0x164] sm:$0xf]
      %v486 = vld [vmem:[%s1 + $0x168] sm:$0xf]
      %v487 = vld [vmem:[%s1 + $0x16c] sm:$0xf]
      %v488 = vld [vmem:[%s1 + $0x170] sm:$0xf]
      %v489 = vld [vmem:[%s1 + $0x174] sm:$0xf]
      %v490 = vld [vmem:[%s1 + $0x178] sm:$0xf]
      %v491 = vld [vmem:[%s1 + $0x17c] sm:$0xf]
      %v492 = vld [vmem:[%s1 + $0x180] sm:$0xf]
      %v493 = vld [vmem:[%s1 + $0x184] sm:$0xf]
      %v494 = vld [vmem:[%s1 + $0x188] sm:$0xf]
      %v495 = vld [vmem:[%s1 + $0x18c] sm:$0xf]
      %v496 = vld [vmem:[%s2] sm:$0x1]
      %v498 = vlaneseq
      %v499 = vshrl.u32 %v498, 7
      %v500 = vsub.s32 0, %v499
      %v501 = vrot.slane %v496, %v500
      %v631 = vunpack.c.l.b16 %v268
      %v632 = vunpack.c.h.b16 %v268
      %v633 = vunpack.c.l.b16 %v269
      %v634 = vunpack.c.h.b16 %v269
      %v635 = vunpack.c.l.b16 %v270
      %v636 = vunpack.c.h.b16 %v270
      %v637 = vunpack.c.l.b16 %v271
      %v638 = vunpack.c.l.b16 %v272
      %v639 = vunpack.c.h.b16 %v272
      %v640 = vunpack.c.l.b16 %v273
      %v641 = vunpack.c.h.b16 %v273
      %v642 = vunpack.c.l.b16 %v274
      %v643 = vunpack.c.h.b16 %v274
      %v644 = vunpack.c.l.b16 %v275
      %v645 = vunpack.c.l.b16 %v276
      %v646 = vunpack.c.h.b16 %v276
      %v647 = vunpack.c.l.b16 %v277
      %v648 = vunpack.c.h.b16 %v277
      %v649 = vunpack.c.l.b16 %v278
      %v650 = vunpack.c.h.b16 %v278
      %v651 = vunpack.c.l.b16 %v279
      %v652 = vunpack.c.l.b16 %v280
      %v653 = vunpack.c.h.b16 %v280
      %v654 = vunpack.c.l.b16 %v281
      %v655 = vunpack.c.h.b16 %v281
      %v656 = vunpack.c.l.b16 %v282
      %v657 = vunpack.c.h.b16 %v282
      %v658 = vunpack.c.l.b16 %v283
      %v659 = vunpack.c.l.b16 %v284
      %v660 = vunpack.c.h.b16 %v284
      %v661 = vunpack.c.l.b16 %v285
      %v662 = vunpack.c.h.b16 %v285
      %v663 = vunpack.c.l.b16 %v286
      %v664 = vunpack.c.h.b16 %v286
      %v665 = vunpack.c.l.b16 %v287
      %v666 = vunpack.c.l.b16 %v288
      %v667 = vunpack.c.h.b16 %v288
      %v668 = vunpack.c.l.b16 %v289
      %v669 = vunpack.c.h.b16 %v289
      %v670 = vunpack.c.l.b16 %v290
      %v671 = vunpack.c.h.b16 %v290
      %v672 = vunpack.c.l.b16 %v291
      %v673 = vunpack.c.l.b16 %v292
      %v674 = vunpack.c.h.b16 %v292
      %v675 = vunpack.c.l.b16 %v293
      %v676 = vunpack.c.h.b16 %v293
      %v677 = vunpack.c.l.b16 %v294
      %v678 = vunpack.c.h.b16 %v294
      %v679 = vunpack.c.l.b16 %v295
      %v680 = vunpack.c.l.b16 %v296
      %v681 = vunpack.c.h.b16 %v296
      %v682 = vunpack.c.l.b16 %v297
      %v683 = vunpack.c.h.b16 %v297
      %v684 = vunpack.c.l.b16 %v298
      %v685 = vunpack.c.h.b16 %v298
      %v686 = vunpack.c.l.b16 %v299
      %v687 = vunpack.c.l.b16 %v300
      %v688 = vunpack.c.h.b16 %v300
      %v689 = vunpack.c.l.b16 %v301
      %v690 = vunpack.c.h.b16 %v301
      %v691 = vunpack.c.l.b16 %v302
      %v692 = vunpack.c.h.b16 %v302
      %v693 = vunpack.c.l.b16 %v303
      %v694 = vunpack.c.l.b16 %v304
      %v695 = vunpack.c.h.b16 %v304
      %v696 = vunpack.c.l.b16 %v305
      %v697 = vunpack.c.h.b16 %v305
      %v698 = vunpack.c.l.b16 %v306
      %v699 = vunpack.c.h.b16 %v306
      %v700 = vunpack.c.l.b16 %v307
      %v701 = vunpack.c.l.b16 %v308
      %v702 = vunpack.c.h.b16 %v308
      %v703 = vunpack.c.l.b16 %v309
      %v704 = vunpack.c.h.b16 %v309
      %v705 = vunpack.c.l.b16 %v310
      %v706 = vunpack.c.h.b16 %v310
      %v707 = vunpack.c.l.b16 %v311
      %v708 = vunpack.c.l.b16 %v312
      %v709 = vunpack.c.h.b16 %v312
      %v710 = vunpack.c.l.b16 %v313
      %v711 = vunpack.c.h.b16 %v313
      %v712 = vunpack.c.l.b16 %v314
      %v713 = vunpack.c.h.b16 %v314
      %v714 = vunpack.c.l.b16 %v315
      %v715 = vunpack.c.l.b16 %v316
      %v716 = vunpack.c.h.b16 %v316
      %v717 = vunpack.c.l.b16 %v317
      %v718 = vunpack.c.h.b16 %v317
      %v719 = vunpack.c.l.b16 %v318
      %v720 = vunpack.c.h.b16 %v318
      %v721 = vunpack.c.l.b16 %v319
      %v722 = vunpack.c.l.b16 %v320
      %v723 = vunpack.c.h.b16 %v320
      %v724 = vunpack.c.l.b16 %v321
      %v725 = vunpack.c.h.b16 %v321
      %v726 = vunpack.c.l.b16 %v322
      %v727 = vunpack.c.h.b16 %v322
      %v728 = vunpack.c.l.b16 %v323
      %v729 = vunpack.c.l.b16 %v324
      %v730 = vunpack.c.h.b16 %v324
      %v731 = vunpack.c.l.b16 %v325
      %v732 = vunpack.c.h.b16 %v325
      %v733 = vunpack.c.l.b16 %v326
      %v734 = vunpack.c.h.b16 %v326
      %v735 = vunpack.c.l.b16 %v327
      %v736 = vunpack.c.l.b16 %v328
      %v737 = vunpack.c.h.b16 %v328
      %v738 = vunpack.c.l.b16 %v329
      %v739 = vunpack.c.h.b16 %v329
      %v740 = vunpack.c.l.b16 %v330
      %v741 = vunpack.c.h.b16 %v330
      %v742 = vunpack.c.l.b16 %v331
      %v743 = vunpack.c.l.b16 %v332
      %v744 = vunpack.c.h.b16 %v332
      %v745 = vunpack.c.l.b16 %v333
      %v746 = vunpack.c.h.b16 %v333
      %v747 = vunpack.c.l.b16 %v334
      %v748 = vunpack.c.h.b16 %v334
      %v749 = vunpack.c.l.b16 %v335
      %v750 = vunpack.c.l.b16 %v336
      %v751 = vunpack.c.h.b16 %v336
      %v752 = vunpack.c.l.b16 %v337
      %v753 = vunpack.c.h.b16 %v337
      %v754 = vunpack.c.l.b16 %v338
      %v755 = vunpack.c.h.b16 %v338
      %v756 = vunpack.c.l.b16 %v339
      %v757 = vunpack.c.l.b16 %v340
      %v758 = vunpack.c.h.b16 %v340
      %v759 = vunpack.c.l.b16 %v341
      %v760 = vunpack.c.h.b16 %v341
      %v761 = vunpack.c.l.b16 %v342
      %v762 = vunpack.c.h.b16 %v342
      %v763 = vunpack.c.l.b16 %v343
      %v764 = vunpack.c.l.b16 %v344
      %v765 = vunpack.c.h.b16 %v344
      %v766 = vunpack.c.l.b16 %v345
      %v767 = vunpack.c.h.b16 %v345
      %v768 = vunpack.c.l.b16 %v346
      %v769 = vunpack.c.h.b16 %v346
      %v770 = vunpack.c.l.b16 %v347
      %v771 = vunpack.c.l.b16 %v348
      %v772 = vunpack.c.h.b16 %v348
      %v773 = vunpack.c.l.b16 %v349
      %v774 = vunpack.c.h.b16 %v349
      %v775 = vunpack.c.l.b16 %v350
      %v776 = vunpack.c.h.b16 %v350
      %v777 = vunpack.c.l.b16 %v351
      %v778 = vunpack.c.l.b16 %v352
      %v779 = vunpack.c.h.b16 %v352
      %v780 = vunpack.c.l.b16 %v353
      %v781 = vunpack.c.h.b16 %v353
      %v782 = vunpack.c.l.b16 %v354
      %v783 = vunpack.c.h.b16 %v354
      %v784 = vunpack.c.l.b16 %v355
      %v785 = vunpack.c.l.b16 %v356
      %v786 = vunpack.c.h.b16 %v356
      %v787 = vunpack.c.l.b16 %v357
      %v788 = vunpack.c.h.b16 %v357
      %v789 = vunpack.c.l.b16 %v358
      %v790 = vunpack.c.h.b16 %v358
      %v791 = vunpack.c.l.b16 %v359
      %v792 = vunpack.c.l.b16 %v360
      %v793 = vunpack.c.h.b16 %v360
      %v794 = vunpack.c.l.b16 %v361
      %v795 = vunpack.c.h.b16 %v361
      %v796 = vunpack.c.l.b16 %v362
      %v797 = vunpack.c.h.b16 %v362
      %v798 = vunpack.c.l.b16 %v363
      %v799 = vunpack.c.l.b16 %v364
      %v800 = vunpack.c.h.b16 %v364
      %v801 = vunpack.c.l.b16 %v365
      %v802 = vunpack.c.h.b16 %v365
      %v803 = vunpack.c.l.b16 %v366
      %v804 = vunpack.c.h.b16 %v366
      %v805 = vunpack.c.l.b16 %v367
      %v806 = vunpack.c.l.b16 %v368
      %v807 = vunpack.c.h.b16 %v368
      %v808 = vunpack.c.l.b16 %v369
      %v809 = vunpack.c.h.b16 %v369
      %v810 = vunpack.c.l.b16 %v370
      %v811 = vunpack.c.h.b16 %v370
      %v812 = vunpack.c.l.b16 %v371
      %v813 = vunpack.c.l.b16 %v372
      %v814 = vunpack.c.h.b16 %v372
      %v815 = vunpack.c.l.b16 %v373
      %v816 = vunpack.c.h.b16 %v373
      %v817 = vunpack.c.l.b16 %v374
      %v818 = vunpack.c.h.b16 %v374
      %v819 = vunpack.c.l.b16 %v375
      %v820 = vunpack.c.l.b16 %v376
      %v821 = vunpack.c.h.b16 %v376
      %v822 = vunpack.c.l.b16 %v377
      %v823 = vunpack.c.h.b16 %v377
      %v824 = vunpack.c.l.b16 %v378
      %v825 = vunpack.c.h.b16 %v378
      %v826 = vunpack.c.l.b16 %v379
      %v827 = vunpack.c.l.b16 %v380
      %v828 = vunpack.c.h.b16 %v380
      %v829 = vunpack.c.l.b16 %v381
      %v830 = vunpack.c.h.b16 %v381
      %v831 = vunpack.c.l.b16 %v382
      %v832 = vunpack.c.h.b16 %v382
      %v833 = vunpack.c.l.b16 %v383
      %v834 = vunpack.c.l.b16 %v384
      %v835 = vunpack.c.h.b16 %v384
      %v836 = vunpack.c.l.b16 %v385
      %v837 = vunpack.c.h.b16 %v385
      %v838 = vunpack.c.l.b16 %v386
      %v839 = vunpack.c.h.b16 %v386
      %v840 = vunpack.c.l.b16 %v387
      %v841 = vunpack.c.l.b16 %v388
      %v842 = vunpack.c.h.b16 %v388
      %v843 = vunpack.c.l.b16 %v389
      %v844 = vunpack.c.h.b16 %v389
      %v845 = vunpack.c.l.b16 %v390
      %v846 = vunpack.c.h.b16 %v390
      %v847 = vunpack.c.l.b16 %v391
      %v848 = vunpack.c.l.b16 %v392
      %v849 = vunpack.c.h.b16 %v392
      %v850 = vunpack.c.l.b16 %v393
      %v851 = vunpack.c.h.b16 %v393
      %v852 = vunpack.c.l.b16 %v394
      %v853 = vunpack.c.h.b16 %v394
      %v854 = vunpack.c.l.b16 %v395
      %v855 = vpack.c.b16 %v638, %v631
      %v856 = vpack.c.b16 %v639, %v632
      %v857 = vpack.c.b16 %v640, %v633
      %v858 = vpack.c.b16 %v641, %v634
      %v859 = vpack.c.b16 %v642, %v635
      %v860 = vpack.c.b16 %v643, %v636
      %v861 = vpack.c.b16 %v644, %v637
      %v862 = vpack.c.b16 %v652, %v645
      %v863 = vpack.c.b16 %v653, %v646
      %v864 = vpack.c.b16 %v654, %v647
      %v865 = vpack.c.b16 %v655, %v648
      %v866 = vpack.c.b16 %v656, %v649
      %v867 = vpack.c.b16 %v657, %v650
      %v868 = vpack.c.b16 %v658, %v651
      %v869 = vpack.c.b16 %v666, %v659
      %v870 = vpack.c.b16 %v667, %v660
      %v871 = vpack.c.b16 %v668, %v661
      %v872 = vpack.c.b16 %v669, %v662
      %v873 = vpack.c.b16 %v670, %v663
      %v874 = vpack.c.b16 %v671, %v664
      %v875 = vpack.c.b16 %v672, %v665
      %v876 = vpack.c.b16 %v680, %v673
      %v877 = vpack.c.b16 %v681, %v674
      %v878 = vpack.c.b16 %v682, %v675
      %v879 = vpack.c.b16 %v683, %v676
      %v880 = vpack.c.b16 %v684, %v677
      %v881 = vpack.c.b16 %v685, %v678
      %v882 = vpack.c.b16 %v686, %v679
      %v883 = vpack.c.b16 %v694, %v687
      %v884 = vpack.c.b16 %v695, %v688
      %v885 = vpack.c.b16 %v696, %v689
      %v886 = vpack.c.b16 %v697, %v690
      %v887 = vpack.c.b16 %v698, %v691
      %v888 = vpack.c.b16 %v699, %v692
      %v889 = vpack.c.b16 %v700, %v693
      %v890 = vpack.c.b16 %v708, %v701
      %v891 = vpack.c.b16 %v709, %v702
      %v892 = vpack.c.b16 %v710, %v703
      %v893 = vpack.c.b16 %v711, %v704
      %v894 = vpack.c.b16 %v712, %v705
      %v895 = vpack.c.b16 %v713, %v706
      %v896 = vpack.c.b16 %v714, %v707
      %v897 = vpack.c.b16 %v722, %v715
      %v898 = vpack.c.b16 %v723, %v716
      %v899 = vpack.c.b16 %v724, %v717
      %v900 = vpack.c.b16 %v725, %v718
      %v901 = vpack.c.b16 %v726, %v719
      %v902 = vpack.c.b16 %v727, %v720
      %v903 = vpack.c.b16 %v728, %v721
      %v904 = vpack.c.b16 %v736, %v729
      %v905 = vpack.c.b16 %v737, %v730
      %v906 = vpack.c.b16 %v738, %v731
      %v907 = vpack.c.b16 %v739, %v732
      %v908 = vpack.c.b16 %v740, %v733
      %v909 = vpack.c.b16 %v741, %v734
      %v910 = vpack.c.b16 %v742, %v735
      %v911 = vpack.c.b16 %v750, %v743
      %v912 = vpack.c.b16 %v751, %v744
      %v913 = vpack.c.b16 %v752, %v745
      %v914 = vpack.c.b16 %v753, %v746
      %v915 = vpack.c.b16 %v754, %v747
      %v916 = vpack.c.b16 %v755, %v748
      %v917 = vpack.c.b16 %v756, %v749
      %v918 = vpack.c.b16 %v764, %v757
      %v919 = vpack.c.b16 %v765, %v758
      %v920 = vpack.c.b16 %v766, %v759
      %v921 = vpack.c.b16 %v767, %v760
      %v922 = vpack.c.b16 %v768, %v761
      %v923 = vpack.c.b16 %v769, %v762
      %v924 = vpack.c.b16 %v770, %v763
      %v925 = vpack.c.b16 %v778, %v771
      %v926 = vpack.c.b16 %v779, %v772
      %v927 = vpack.c.b16 %v780, %v773
      %v928 = vpack.c.b16 %v781, %v774
      %v929 = vpack.c.b16 %v782, %v775
      %v930 = vpack.c.b16 %v783, %v776
      %v931 = vpack.c.b16 %v784, %v777
      %v932 = vpack.c.b16 %v792, %v785
      %v933 = vpack.c.b16 %v793, %v786
      %v934 = vpack.c.b16 %v794, %v787
      %v935 = vpack.c.b16 %v795, %v788
      %v936 = vpack.c.b16 %v796, %v789
      %v937 = vpack.c.b16 %v797, %v790
      %v938 = vpack.c.b16 %v798, %v791
      %v939 = vpack.c.b16 %v806, %v799
      %v940 = vpack.c.b16 %v807, %v800
      %v941 = vpack.c.b16 %v808, %v801
      %v942 = vpack.c.b16 %v809, %v802
      %v943 = vpack.c.b16 %v810, %v803
      %v944 = vpack.c.b16 %v811, %v804
      %v945 = vpack.c.b16 %v812, %v805
      %v946 = vpack.c.b16 %v820, %v813
      %v947 = vpack.c.b16 %v821, %v814
      %v948 = vpack.c.b16 %v822, %v815
      %v949 = vpack.c.b16 %v823, %v816
      %v950 = vpack.c.b16 %v824, %v817
      %v951 = vpack.c.b16 %v825, %v818
      %v952 = vpack.c.b16 %v826, %v819
      %v953 = vpack.c.b16 %v834, %v827
      %v954 = vpack.c.b16 %v835, %v828
      %v955 = vpack.c.b16 %v836, %v829
      %v956 = vpack.c.b16 %v837, %v830
      %v957 = vpack.c.b16 %v838, %v831
      %v958 = vpack.c.b16 %v839, %v832
      %v959 = vpack.c.b16 %v840, %v833
      %v960 = vpack.c.b16 %v848, %v841
      %v961 = vpack.c.b16 %v849, %v842
      %v962 = vpack.c.b16 %v850, %v843
      %v963 = vpack.c.b16 %v851, %v844
      %v964 = vpack.c.b16 %v852, %v845
      %v965 = vpack.c.b16 %v853, %v846
      %v966 = vpack.c.b16 %v854, %v847
      %v1163 = vunpack.c.l.b16 %v396
      %v1164 = vunpack.c.l.b16 %v397
      %v1165 = vunpack.c.l.b16 %v398
      %v1166 = vunpack.c.l.b16 %v399
      %v1167 = vunpack.c.l.b16 %v400
      %v1168 = vunpack.c.l.b16 %v401
      %v1169 = vunpack.c.l.b16 %v402
      %v1170 = vunpack.c.l.b16 %v403
      %v1171 = vunpack.c.l.b16 %v404
      %v1172 = vunpack.c.l.b16 %v405
      %v1173 = vunpack.c.l.b16 %v406
      %v1174 = vunpack.c.l.b16 %v407
      %v1175 = vunpack.c.l.b16 %v408
      %v1176 = vunpack.c.l.b16 %v409
      %v1177 = vunpack.c.l.b16 %v410
      %v1178 = vunpack.c.l.b16 %v411
      %v1179 = vunpack.c.l.b16 %v412
      %v1180 = vunpack.c.l.b16 %v413
      %v1181 = vunpack.c.l.b16 %v414
      %v1182 = vunpack.c.l.b16 %v415
      %v1183 = vunpack.c.l.b16 %v416
      %v1184 = vunpack.c.l.b16 %v417
      %v1185 = vunpack.c.l.b16 %v418
      %v1186 = vunpack.c.l.b16 %v419
      %v1187 = vunpack.c.l.b16 %v420
      %v1188 = vunpack.c.l.b16 %v421
      %v1189 = vunpack.c.l.b16 %v422
      %v1190 = vunpack.c.l.b16 %v423
      %v1191 = vunpack.c.l.b16 %v424
      %v1192 = vunpack.c.l.b16 %v425
      %v1193 = vunpack.c.l.b16 %v426
      %v1194 = vunpack.c.l.b16 %v427
      %v1195 = vunpack.c.l.b16 %v428
      %v1196 = vunpack.c.l.b16 %v429
      %v1197 = vunpack.c.l.b16 %v430
      %v1198 = vunpack.c.l.b16 %v431
      %v1199 = vunpack.c.l.b16 %v432
      %v1200 = vunpack.c.l.b16 %v433
      %v1201 = vunpack.c.l.b16 %v434
      %v1202 = vunpack.c.l.b16 %v435
      %v1203 = vunpack.c.l.b16 %v436
      %v1204 = vunpack.c.l.b16 %v437
      %v1205 = vunpack.c.l.b16 %v438
      %v1206 = vunpack.c.l.b16 %v439
      %v1207 = vunpack.c.l.b16 %v440
      %v1208 = vunpack.c.l.b16 %v441
      %v1209 = vunpack.c.l.b16 %v442
      %v1210 = vunpack.c.l.b16 %v443
      %v1211 = vunpack.c.l.b16 %v444
      %v1212 = vunpack.c.l.b16 %v445
      %v1213 = vunpack.c.l.b16 %v446
      %v1214 = vunpack.c.l.b16 %v447
      %v1215 = vunpack.c.l.b16 %v448
      %v1216 = vunpack.c.l.b16 %v449
      %v1217 = vunpack.c.l.b16 %v450
      %v1218 = vunpack.c.l.b16 %v451
      %v1219 = vunpack.c.l.b16 %v452
      %v1220 = vunpack.c.l.b16 %v453
      %v1221 = vunpack.c.l.b16 %v454
      %v1222 = vunpack.c.l.b16 %v455
      %v1223 = vunpack.c.l.b16 %v456
      %v1224 = vunpack.c.l.b16 %v457
      %v1225 = vunpack.c.l.b16 %v458
      %v1226 = vunpack.c.l.b16 %v459
      %v1227 = vunpack.c.l.b16 %v460
      %v1228 = vunpack.c.l.b16 %v461
      %v1229 = vunpack.c.l.b16 %v462
      %v1230 = vunpack.c.l.b16 %v463
      %v1231 = vunpack.c.l.b16 %v464
      %v1232 = vunpack.c.l.b16 %v465
      %v1233 = vunpack.c.l.b16 %v466
      %v1234 = vunpack.c.l.b16 %v467
      %v1235 = vunpack.c.l.b16 %v468
      %v1236 = vunpack.c.l.b16 %v469
      %v1237 = vunpack.c.l.b16 %v470
      %v1238 = vunpack.c.l.b16 %v471
      %v1239 = vunpack.c.l.b16 %v472
      %v1240 = vunpack.c.l.b16 %v473
      %v1241 = vunpack.c.l.b16 %v474
      %v1242 = vunpack.c.l.b16 %v475
      %v1243 = vunpack.c.l.b16 %v476
      %v1244 = vunpack.c.l.b16 %v477
      %v1245 = vunpack.c.l.b16 %v478
      %v1246 = vunpack.c.l.b16 %v479
      %v1247 = vunpack.c.l.b16 %v480
      %v1248 = vunpack.c.l.b16 %v481
      %v1249 = vunpack.c.l.b16 %v482
      %v1250 = vunpack.c.l.b16 %v483
      %v1251 = vunpack.c.l.b16 %v484
      %v1252 = vunpack.c.l.b16 %v485
      %v1253 = vunpack.c.l.b16 %v486
      %v1254 = vunpack.c.l.b16 %v487
      %v1255 = vunpack.c.l.b16 %v488
      %v1256 = vunpack.c.l.b16 %v489
      %v1257 = vunpack.c.l.b16 %v490
      %v1258 = vunpack.c.l.b16 %v491
      %v1259 = vunpack.c.l.b16 %v492
      %v1260 = vunpack.c.l.b16 %v493
      %v1261 = vunpack.c.l.b16 %v494
      %v1262 = vunpack.c.l.b16 %v495
      %v1263 = vpack.c.b16 %v1164, %v1163
      %v1264 = vpack.c.b16 %v1166, %v1165
      %v1265 = vpack.c.b16 %v1168, %v1167
      %v1266 = vpack.c.b16 %v1170, %v1169
      %v1267 = vpack.c.b16 %v1172, %v1171
      %v1268 = vpack.c.b16 %v1174, %v1173
      %v1269 = vpack.c.b16 %v1176, %v1175
      %v1270 = vpack.c.b16 %v1178, %v1177
      %v1271 = vpack.c.b16 %v1180, %v1179
      %v1272 = vpack.c.b16 %v1182, %v1181
      %v1273 = vpack.c.b16 %v1184, %v1183
      %v1274 = vpack.c.b16 %v1186, %v1185
      %v1275 = vpack.c.b16 %v1188, %v1187
      %v1276 = vpack.c.b16 %v1190, %v1189
      %v1277 = vpack.c.b16 %v1192, %v1191
      %v1278 = vpack.c.b16 %v1194, %v1193
      %v1279 = vpack.c.b16 %v1196, %v1195
      %v1280 = vpack.c.b16 %v1198, %v1197
      %v1281 = vpack.c.b16 %v1200, %v1199
      %v1282 = vpack.c.b16 %v1202, %v1201
      %v1283 = vpack.c.b16 %v1204, %v1203
      %v1284 = vpack.c.b16 %v1206, %v1205
      %v1285 = vpack.c.b16 %v1208, %v1207
      %v1286 = vpack.c.b16 %v1210, %v1209
      %v1287 = vpack.c.b16 %v1212, %v1211
      %v1288 = vpack.c.b16 %v1214, %v1213
      %v1289 = vpack.c.b16 %v1216, %v1215
      %v1290 = vpack.c.b16 %v1218, %v1217
      %v1291 = vpack.c.b16 %v1220, %v1219
      %v1292 = vpack.c.b16 %v1222, %v1221
      %v1293 = vpack.c.b16 %v1224, %v1223
      %v1294 = vpack.c.b16 %v1226, %v1225
      %v1295 = vpack.c.b16 %v1228, %v1227
      %v1296 = vpack.c.b16 %v1230, %v1229
      %v1297 = vpack.c.b16 %v1232, %v1231
      %v1298 = vpack.c.b16 %v1234, %v1233
      %v1299 = vpack.c.b16 %v1236, %v1235
      %v1300 = vpack.c.b16 %v1238, %v1237
      %v1301 = vpack.c.b16 %v1240, %v1239
      %v1302 = vpack.c.b16 %v1242, %v1241
      %v1303 = vpack.c.b16 %v1244, %v1243
      %v1304 = vpack.c.b16 %v1246, %v1245
      %v1305 = vpack.c.b16 %v1248, %v1247
      %v1306 = vpack.c.b16 %v1250, %v1249
      %v1307 = vpack.c.b16 %v1252, %v1251
      %v1308 = vpack.c.b16 %v1254, %v1253
      %v1309 = vpack.c.b16 %v1256, %v1255
      %v1310 = vpack.c.b16 %v1258, %v1257
      %v1311 = vpack.c.b16 %v1260, %v1259
      %v1312 = vpack.c.b16 %v1262, %v1261
      %vm1363 = vcmask 261120
      %v1365 = vsel %vm1363, %v861, 0
      %v1368 = vsel %vm1363, %v868, 0
      %v1371 = vsel %vm1363, %v875, 0
      %v1374 = vsel %vm1363, %v882, 0
      %v1377 = vsel %vm1363, %v889, 0
      %v1380 = vsel %vm1363, %v896, 0
      %v1383 = vsel %vm1363, %v903, 0
      %v1386 = vsel %vm1363, %v910, 0
      %v1389 = vsel %vm1363, %v917, 0
      %v1392 = vsel %vm1363, %v924, 0
      %v1395 = vsel %vm1363, %v931, 0
      %v1398 = vsel %vm1363, %v938, 0
      %v1401 = vsel %vm1363, %v945, 0
      %v1404 = vsel %vm1363, %v952, 0
      %v1407 = vsel %vm1363, %v959, 0
      %v1410 = vsel %vm1363, %v966, 0
      %1412 = vmatprep.subr.bf16.mxu0 0
      %1413 = vmatpush1.bf16.msra.mxu0 %v1263
      %1414 = vmatprep.subr.bf16.mxu0 0
      %1415 = vmatpush1.bf16.msra.mxu0 %v1264
      %1416 = vmatprep.subr.bf16.mxu0 0
      %1417 = vmatpush1.bf16.msra.mxu0 %v1265
      %1418 = vmatprep.subr.bf16.mxu0 0
      %1419 = vmatpush1.bf16.msra.mxu0 %v1266
      %1420 = vmatprep.subr.bf16.mxu0 0
      %1421 = vmatpush1.bf16.msra.mxu0 %v1267
      %1422 = vmatprep.subr.bf16.mxu0 0
      %1423 = vmatpush1.bf16.msra.mxu0 %v1268
      %1424 = vmatprep.subr.bf16.mxu0 0
      %1425 = vmatpush1.bf16.msra.mxu0 %v1269
      %1426 = vmatprep.subr.bf16.mxu0 0
      %1427 = vmatpush1.bf16.msra.mxu0 %v1270
      %1428 = vmatprep.subr.bf16.mxu0 0
      %1429 = vmatpush1.bf16.msra.mxu0 %v1271
      %1430 = vmatprep.subr.bf16.mxu0 0
      %1431 = vmatpush1.bf16.msra.mxu0 %v1272
      %1432 = vmatprep.subr.bf16.mxu0 0
      %1433 = vmatpush1.bf16.msra.mxu0 %v1273
      %1434 = vmatprep.subr.bf16.mxu0 0
      %1435 = vmatpush1.bf16.msra.mxu0 %v1274
      %1436 = vmatprep.subr.bf16.mxu0 0
      %1437 = vmatpush1.bf16.msra.mxu0 %v1275
      %1438 = vmatprep.subr.bf16.mxu0 0
      %1439 = vmatpush1.bf16.msra.mxu0 %v1276
      %1440 = vmatprep.subr.bf16.mxu0 0
      %1441 = vmatpush1.bf16.msra.mxu0 %v1277
      %1442 = vmatprep.subr.bf16.mxu0 0
      %1443 = vmatpush1.bf16.msra.mxu0 %v1278
      %1444 = vmatprep.mubr.bf16.mxu0 %v856
      %1445 = vmatmul.mubr.bf16.gmra.mrb[0].mxu0 %v855
      %v1446 = vpop.f32.mrb[0].mxu0
      %v1447 = vadd.f32 %v501, %v1446
      %v1448 = vpop.f32.mrb[0].mxu0
      %v1449 = vpop.f32.mrb[0].mxu0
      %v1450 = vadd.f32 %v501, %v1449
      %v1451 = vpop.f32.mrb[0].mxu0
      %1452 = vmatprep.mubr.bf16.mxu0 %v863
      %1453 = vmatmul.mubr.bf16.gmra.mrb[0].mxu0 %v862
      %v1454 = vpop.f32.mrb[0].mxu0
      %v1455 = vadd.f32 %v501, %v1454
      %v1456 = vpop.f32.mrb[0].mxu0
      %v1457 = vpop.f32.mrb[0].mxu0
      %v1458 = vadd.f32 %v501, %v1457
      %v1459 = vpop.f32.mrb[0].mxu0
      %1460 = vmatprep.mubr.bf16.mxu0 %v870
      %1461 = vmatmul.mubr.bf16.gmra.mrb[0].mxu0 %v869
      %v1462 = vpop.f32.mrb[0].mxu0
      %v1463 = vadd.f32 %v501, %v1462
      %v1464 = vpop.f32.mrb[0].mxu0
      %v1465 = vpop.f32.mrb[0].mxu0
      %v1466 = vadd.f32 %v501, %v1465
      %v1467 = vpop.f32.mrb[0].mxu0
      %1468 = vmatprep.mubr.bf16.mxu0 %v877
      %1469 = vmatmul.mubr.bf16.gmra.mrb[0].mxu0 %v876
      %v1470 = vpop.f32.mrb[0].mxu0
      %v1471 = vadd.f32 %v501, %v1470
      %v1472 = vpop.f32.mrb[0].mxu0
      %v1473 = vpop.f32.mrb[0].mxu0
      %v1474 = vadd.f32 %v501, %v1473
      %v1475 = vpop.f32.mrb[0].mxu0
      %1476 = vmatprep.mubr.bf16.mxu0 %v884
      %1477 = vmatmul.mubr.bf16.gmra.mrb[0].mxu0 %v883
      %v1478 = vpop.f32.mrb[0].mxu0
      %v1479 = vadd.f32 %v501, %v1478
      %v1480 = vpop.f32.mrb[0].mxu0
      %v1481 = vpop.f32.mrb[0].mxu0
      %v1482 = vadd.f32 %v501, %v1481
      %v1483 = vpop.f32.mrb[0].mxu0
      %1484 = vmatprep.mubr.bf16.mxu0 %v891
      %1485 = vmatmul.mubr.bf16.gmra.mrb[0].mxu0 %v890
      %v1486 = vpop.f32.mrb[0].mxu0
      %v1487 = vadd.f32 %v501, %v1486
      %v1488 = vpop.f32.mrb[0].mxu0
      %v1489 = vpop.f32.mrb[0].mxu0
      %v1490 = vadd.f32 %v501, %v1489
      %v1491 = vpop.f32.mrb[0].mxu0
      %1492 = vmatprep.mubr.bf16.mxu0 %v898
      %1493 = vmatmul.mubr.bf16.gmra.mrb[0].mxu0 %v897
      %v1494 = vpop.f32.mrb[0].mxu0
      %v1495 = vadd.f32 %v501, %v1494
      %v1496 = vpop.f32.mrb[0].mxu0
      %v1497 = vpop.f32.mrb[0].mxu0
      %v1498 = vadd.f32 %v501, %v1497
      %v1499 = vpop.f32.mrb[0].mxu0
      %1500 = vmatprep.mubr.bf16.mxu0 %v905
      %1501 = vmatmul.mubr.bf16.gmra.mrb[0].mxu0 %v904
      %v1502 = vpop.f32.mrb[0].mxu0
      %v1503 = vadd.f32 %v501, %v1502
      %v1504 = vpop.f32.mrb[0].mxu0
      %v1505 = vpop.f32.mrb[0].mxu0
      %v1506 = vadd.f32 %v501, %v1505
      %v1507 = vpop.f32.mrb[0].mxu0
      %1508 = vmatprep.mubr.bf16.mxu0 %v912
      %1509 = vmatmul.mubr.bf16.gmra.mrb[0].mxu0 %v911
      %v1510 = vpop.f32.mrb[0].mxu0
      %v1511 = vadd.f32 %v501, %v1510
      %v1512 = vpop.f32.mrb[0].mxu0
      %v1513 = vpop.f32.mrb[0].mxu0
      %v1514 = vadd.f32 %v501, %v1513
      %v1515 = vpop.f32.mrb[0].mxu0
      %1516 = vmatprep.mubr.bf16.mxu0 %v919
      %1517 = vmatmul.mubr.bf16.gmra.mrb[0].mxu0 %v918
      %v1518 = vpop.f32.mrb[0].mxu0
      %v1519 = vadd.f32 %v501, %v1518
      %v1520 = vpop.f32.mrb[0].mxu0
      %v1521 = vpop.f32.mrb[0].mxu0
      %v1522 = vadd.f32 %v501, %v1521
      %v1523 = vpop.f32.mrb[0].mxu0
      %1524 = vmatprep.mubr.bf16.mxu0 %v926
      %1525 = vmatmul.mubr.bf16.gmra.mrb[0].mxu0 %v925
      %v1526 = vpop.f32.mrb[0].mxu0
      %v1527 = vadd.f32 %v501, %v1526
      %v1528 = vpop.f32.mrb[0].mxu0
      %v1529 = vpop.f32.mrb[0].mxu0
      %v1530 = vadd.f32 %v501, %v1529
      %v1531 = vpop.f32.mrb[0].mxu0
      %1532 = vmatprep.mubr.bf16.mxu0 %v933
      %1533 = vmatmul.mubr.bf16.gmra.mrb[0].mxu0 %v932
      %v1534 = vpop.f32.mrb[0].mxu0
      %v1535 = vadd.f32 %v501, %v1534
      %v1536 = vpop.f32.mrb[0].mxu0
      %v1537 = vpop.f32.mrb[0].mxu0
      %v1538 = vadd.f32 %v501, %v1537
      %v1539 = vpop.f32.mrb[0].mxu0
      %1540 = vmatprep.mubr.bf16.mxu0 %v940
      %1541 = vmatmul.mubr.bf16.gmra.mrb[0].mxu0 %v939
      %v1542 = vpop.f32.mrb[0].mxu0
      %v1543 = vadd.f32 %v501, %v1542
      %v1544 = vpop.f32.mrb[0].mxu0
      %v1545 = vpop.f32.mrb[0].mxu0
      %v1546 = vadd.f32 %v501, %v1545
      %v1547 = vpop.f32.mrb[0].mxu0
      %1548 = vmatprep.mubr.bf16.mxu0 %v947
      %1549 = vmatmul.mubr.bf16.gmra.mrb[0].mxu0 %v946
      %v1550 = vpop.f32.mrb[0].mxu0
      %v1551 = vadd.f32 %v501, %v1550
      %v1552 = vpop.f32.mrb[0].mxu0
      %v1553 = vpop.f32.mrb[0].mxu0
      %v1554 = vadd.f32 %v501, %v1553
      %v1555 = vpop.f32.mrb[0].mxu0
      %1556 = vmatprep.mubr.bf16.mxu0 %v954
      %1557 = vmatmul.mubr.bf16.gmra.mrb[0].mxu0 %v953
      %v1558 = vpop.f32.mrb[0].mxu0
      %v1559 = vadd.f32 %v501, %v1558
      %v1560 = vpop.f32.mrb[0].mxu0
      %v1561 = vpop.f32.mrb[0].mxu0
      %v1562 = vadd.f32 %v501, %v1561
      %v1563 = vpop.f32.mrb[0].mxu0
      %1564 = vmatprep.mubr.bf16.mxu0 %v961
      %1565 = vmatmul.mubr.bf16.gmra.mrb[0].mxu0 %v960
      %v1566 = vpop.f32.mrb[0].mxu0
      %v1567 = vadd.f32 %v501, %v1566
      %v1568 = vpop.f32.mrb[0].mxu0
      %v1569 = vpop.f32.mrb[0].mxu0
      %v1570 = vadd.f32 %v501, %v1569
      %v1571 = vpop.f32.mrb[0].mxu0
      %1572 = vdwg.mxu0
      %1573 = vmatprep.subr.bf16.mxu0 0
      %1574 = vmatpush1.bf16.msra.mxu0 %v1279
      %1575 = vmatprep.subr.bf16.mxu0 0
      %1576 = vmatpush1.bf16.msra.mxu0 %v1280
      %1577 = vmatprep.subr.bf16.mxu0 0
      %1578 = vmatpush1.bf16.msra.mxu0 %v1281
      %1579 = vmatprep.subr.bf16.mxu0 0
      %1580 = vmatpush1.bf16.msra.mxu0 %v1282
      %1581 = vmatprep.subr.bf16.mxu0 0
      %1582 = vmatpush1.bf16.msra.mxu0 %v1283
      %1583 = vmatprep.subr.bf16.mxu0 0
      %1584 = vmatpush1.bf16.msra.mxu0 %v1284
      %1585 = vmatprep.subr.bf16.mxu0 0
      %1586 = vmatpush1.bf16.msra.mxu0 %v1285
      %1587 = vmatprep.subr.bf16.mxu0 0
      %1588 = vmatpush1.bf16.msra.mxu0 %v1286
      %1589 = vmatprep.subr.bf16.mxu0 0
      %1590 = vmatpush1.bf16.msra.mxu0 %v1287
      %1591 = vmatprep.subr.bf16.mxu0 0
      %1592 = vmatpush1.bf16.msra.mxu0 %v1288
      %1593 = vmatprep.subr.bf16.mxu0 0
      %1594 = vmatpush1.bf16.msra.mxu0 %v1289
      %1595 = vmatprep.subr.bf16.mxu0 0
      %1596 = vmatpush1.bf16.msra.mxu0 %v1290
      %1597 = vmatprep.subr.bf16.mxu0 0
      %1598 = vmatpush1.bf16.msra.mxu0 %v1291
      %1599 = vmatprep.subr.bf16.mxu0 0
      %1600 = vmatpush1.bf16.msra.mxu0 %v1292
      %1601 = vmatprep.subr.bf16.mxu0 0
      %1602 = vmatpush1.bf16.msra.mxu0 %v1293
      %1603 = vmatprep.subr.bf16.mxu0 0
      %1604 = vmatpush1.bf16.msra.mxu0 %v1294
      %1605 = vmatprep.mubr.bf16.mxu0 %v858
      %1606 = vmatmul.mubr.bf16.gmra.mrb[0].mxu0 %v857
      %v1607 = vpop.f32.mrb[0].mxu0
      %v1608 = vadd.f32 %v1447, %v1607
      %v1609 = vpop.f32.mrb[0].mxu0
      %v1610 = vpop.f32.mrb[0].mxu0
      %v1611 = vadd.f32 %v1450, %v1610
      %v1612 = vpop.f32.mrb[0].mxu0
      %1613 = vmatprep.mubr.bf16.mxu0 %v865
      %1614 = vmatmul.mubr.bf16.gmra.mrb[0].mxu0 %v864
      %v1615 = vpop.f32.mrb[0].mxu0
      %v1616 = vadd.f32 %v1455, %v1615
      %v1617 = vpop.f32.mrb[0].mxu0
      %v1618 = vpop.f32.mrb[0].mxu0
      %v1619 = vadd.f32 %v1458, %v1618
      %v1620 = vpop.f32.mrb[0].mxu0
      %1621 = vmatprep.mubr.bf16.mxu0 %v872
      %1622 = vmatmul.mubr.bf16.gmra.mrb[0].mxu0 %v871
      %v1623 = vpop.f32.mrb[0].mxu0
      %v1624 = vadd.f32 %v1463, %v1623
      %v1625 = vpop.f32.mrb[0].mxu0
      %v1626 = vpop.f32.mrb[0].mxu0
      %v1627 = vadd.f32 %v1466, %v1626
      %v1628 = vpop.f32.mrb[0].mxu0
      %1629 = vmatprep.mubr.bf16.mxu0 %v879
      %1630 = vmatmul.mubr.bf16.gmra.mrb[0].mxu0 %v878
      %v1631 = vpop.f32.mrb[0].mxu0
      %v1632 = vadd.f32 %v1471, %v1631
      %v1633 = vpop.f32.mrb[0].mxu0
      %v1634 = vpop.f32.mrb[0].mxu0
      %v1635 = vadd.f32 %v1474, %v1634
      %v1636 = vpop.f32.mrb[0].mxu0
      %1637 = vmatprep.mubr.bf16.mxu0 %v886
      %1638 = vmatmul.mubr.bf16.gmra.mrb[0].mxu0 %v885
      %v1639 = vpop.f32.mrb[0].mxu0
      %v1640 = vadd.f32 %v1479, %v1639
      %v1641 = vpop.f32.mrb[0].mxu0
      %v1642 = vpop.f32.mrb[0].mxu0
      %v1643 = vadd.f32 %v1482, %v1642
      %v1644 = vpop.f32.mrb[0].mxu0
      %1645 = vmatprep.mubr.bf16.mxu0 %v893
      %1646 = vmatmul.mubr.bf16.gmra.mrb[0].mxu0 %v892
      %v1647 = vpop.f32.mrb[0].mxu0
      %v1648 = vadd.f32 %v1487, %v1647
      %v1649 = vpop.f32.mrb[0].mxu0
      %v1650 = vpop.f32.mrb[0].mxu0
      %v1651 = vadd.f32 %v1490, %v1650
      %v1652 = vpop.f32.mrb[0].mxu0
      %1653 = vmatprep.mubr.bf16.mxu0 %v900
      %1654 = vmatmul.mubr.bf16.gmra.mrb[0].mxu0 %v899
      %v1655 = vpop.f32.mrb[0].mxu0
      %v1656 = vadd.f32 %v1495, %v1655
      %v1657 = vpop.f32.mrb[0].mxu0
      %v1658 = vpop.f32.mrb[0].mxu0
      %v1659 = vadd.f32 %v1498, %v1658
      %v1660 = vpop.f32.mrb[0].mxu0
      %1661 = vmatprep.mubr.bf16.mxu0 %v907
      %1662 = vmatmul.mubr.bf16.gmra.mrb[0].mxu0 %v906
      %v1663 = vpop.f32.mrb[0].mxu0
      %v1664 = vadd.f32 %v1503, %v1663
      %v1665 = vpop.f32.mrb[0].mxu0
      %v1666 = vpop.f32.mrb[0].mxu0
      %v1667 = vadd.f32 %v1506, %v1666
      %v1668 = vpop.f32.mrb[0].mxu0
      %1669 = vmatprep.mubr.bf16.mxu0 %v914
      %1670 = vmatmul.mubr.bf16.gmra.mrb[0].mxu0 %v913
      %v1671 = vpop.f32.mrb[0].mxu0
      %v1672 = vadd.f32 %v1511, %v1671
      %v1673 = vpop.f32.mrb[0].mxu0
      %v1674 = vpop.f32.mrb[0].mxu0
      %v1675 = vadd.f32 %v1514, %v1674
      %v1676 = vpop.f32.mrb[0].mxu0
      %1677 = vmatprep.mubr.bf16.mxu0 %v921
      %1678 = vmatmul.mubr.bf16.gmra.mrb[0].mxu0 %v920
      %v1679 = vpop.f32.mrb[0].mxu0
      %v1680 = vadd.f32 %v1519, %v1679
      %v1681 = vpop.f32.mrb[0].mxu0
      %v1682 = vpop.f32.mrb[0].mxu0
      %v1683 = vadd.f32 %v1522, %v1682
      %v1684 = vpop.f32.mrb[0].mxu0
      %1685 = vmatprep.mubr.bf16.mxu0 %v928
      %1686 = vmatmul.mubr.bf16.gmra.mrb[0].mxu0 %v927
      %v1687 = vpop.f32.mrb[0].mxu0
      %v1688 = vadd.f32 %v1527, %v1687
      %v1689 = vpop.f32.mrb[0].mxu0
      %v1690 = vpop.f32.mrb[0].mxu0
      %v1691 = vadd.f32 %v1530, %v1690
      %v1692 = vpop.f32.mrb[0].mxu0
      %1693 = vmatprep.mubr.bf16.mxu0 %v935
      %1694 = vmatmul.mubr.bf16.gmra.mrb[0].mxu0 %v934
      %v1695 = vpop.f32.mrb[0].mxu0
      %v1696 = vadd.f32 %v1535, %v1695
      %v1697 = vpop.f32.mrb[0].mxu0
      %v1698 = vpop.f32.mrb[0].mxu0
      %v1699 = vadd.f32 %v1538, %v1698
      %v1700 = vpop.f32.mrb[0].mxu0
      %1701 = vmatprep.mubr.bf16.mxu0 %v942
      %1702 = vmatmul.mubr.bf16.gmra.mrb[0].mxu0 %v941
      %v1703 = vpop.f32.mrb[0].mxu0
      %v1704 = vadd.f32 %v1543, %v1703
      %v1705 = vpop.f32.mrb[0].mxu0
      %v1706 = vpop.f32.mrb[0].mxu0
      %v1707 = vadd.f32 %v1546, %v1706
      %v1708 = vpop.f32.mrb[0].mxu0
      %1709 = vmatprep.mubr.bf16.mxu0 %v949
      %1710 = vmatmul.mubr.bf16.gmra.mrb[0].mxu0 %v948
      %v1711 = vpop.f32.mrb[0].mxu0
      %v1712 = vadd.f32 %v1551, %v1711
      %v1713 = vpop.f32.mrb[0].mxu0
      %v1714 = vpop.f32.mrb[0].mxu0
      %v1715 = vadd.f32 %v1554, %v1714
      %v1716 = vpop.f32.mrb[0].mxu0
      %1717 = vmatprep.mubr.bf16.mxu0 %v956
      %1718 = vmatmul.mubr.bf16.gmra.mrb[0].mxu0 %v955
      %v1719 = vpop.f32.mrb[0].mxu0
      %v1720 = vadd.f32 %v1559, %v1719
      %v1721 = vpop.f32.mrb[0].mxu0
      %v1722 = vpop.f32.mrb[0].mxu0
      %v1723 = vadd.f32 %v1562, %v1722
      %v1724 = vpop.f32.mrb[0].mxu0
      %1725 = vmatprep.mubr.bf16.mxu0 %v963
      %1726 = vmatmul.mubr.bf16.gmra.mrb[0].mxu0 %v962
      %v1727 = vpop.f32.mrb[0].mxu0
      %v1728 = vadd.f32 %v1567, %v1727
      %v1729 = vpop.f32.mrb[0].mxu0
      %v1730 = vpop.f32.mrb[0].mxu0
      %v1731 = vadd.f32 %v1570, %v1730
      %v1732 = vpop.f32.mrb[0].mxu0
      %1733 = vdwg.mxu0
      %1734 = vmatprep.subr.bf16.mxu0 0
      %1735 = vmatpush1.bf16.msra.mxu0 %v1295
      %1736 = vmatprep.subr.bf16.mxu0 0
      %1737 = vmatpush1.bf16.msra.mxu0 %v1296
      %1738 = vmatprep.subr.bf16.mxu0 0
      %1739 = vmatpush1.bf16.msra.mxu0 %v1297
      %1740 = vmatprep.subr.bf16.mxu0 0
      %1741 = vmatpush1.bf16.msra.mxu0 %v1298
      %1742 = vmatprep.subr.bf16.mxu0 0
      %1743 = vmatpush1.bf16.msra.mxu0 %v1299
      %1744 = vmatprep.subr.bf16.mxu0 0
      %1745 = vmatpush1.bf16.msra.mxu0 %v1300
      %1746 = vmatprep.subr.bf16.mxu0 0
      %1747 = vmatpush1.bf16.msra.mxu0 %v1301
      %1748 = vmatprep.subr.bf16.mxu0 0
      %1749 = vmatpush1.bf16.msra.mxu0 %v1302
      %1750 = vmatprep.subr.bf16.mxu0 0
      %1751 = vmatpush1.bf16.msra.mxu0 %v1303
      %1752 = vmatprep.subr.bf16.mxu0 0
      %1753 = vmatpush1.bf16.msra.mxu0 %v1304
      %1754 = vmatprep.subr.bf16.mxu0 0
      %1755 = vmatpush1.bf16.msra.mxu0 %v1305
      %1756 = vmatprep.subr.bf16.mxu0 0
      %1757 = vmatpush1.bf16.msra.mxu0 %v1306
      %1758 = vmatprep.subr.bf16.mxu0 0
      %1759 = vmatpush1.bf16.msra.mxu0 %v1307
      %1760 = vmatprep.subr.bf16.mxu0 0
      %1761 = vmatpush1.bf16.msra.mxu0 %v1308
      %1762 = vmatprep.subr.bf16.mxu0 0
      %1763 = vmatpush1.bf16.msra.mxu0 %v1309
      %1764 = vmatprep.subr.bf16.mxu0 0
      %1765 = vmatpush1.bf16.msra.mxu0 %v1310
      %1766 = vmatprep.mubr.bf16.mxu0 %v860
      %1767 = vmatmul.mubr.bf16.gmra.mrb[0].mxu0 %v859
      %v1768 = vpop.f32.mrb[0].mxu0
      %v1769 = vadd.f32 %v1608, %v1768
      %v1770 = vpop.f32.mrb[0].mxu0
      %v1771 = vpop.f32.mrb[0].mxu0
      %v1772 = vadd.f32 %v1611, %v1771
      %v1773 = vpop.f32.mrb[0].mxu0
      %1774 = vmatprep.mubr.bf16.mxu0 %v867
      %1775 = vmatmul.mubr.bf16.gmra.mrb[0].mxu0 %v866
      %v1776 = vpop.f32.mrb[0].mxu0
      %v1777 = vadd.f32 %v1616, %v1776
      %v1778 = vpop.f32.mrb[0].mxu0
      %v1779 = vpop.f32.mrb[0].mxu0
      %v1780 = vadd.f32 %v1619, %v1779
      %v1781 = vpop.f32.mrb[0].mxu0
      %1782 = vmatprep.mubr.bf16.mxu0 %v874
      %1783 = vmatmul.mubr.bf16.gmra.mrb[0].mxu0 %v873
      %v1784 = vpop.f32.mrb[0].mxu0
      %v1785 = vadd.f32 %v1624, %v1784
      %v1786 = vpop.f32.mrb[0].mxu0
      %v1787 = vpop.f32.mrb[0].mxu0
      %v1788 = vadd.f32 %v1627, %v1787
      %v1789 = vpop.f32.mrb[0].mxu0
      %1790 = vmatprep.mubr.bf16.mxu0 %v881
      %1791 = vmatmul.mubr.bf16.gmra.mrb[0].mxu0 %v880
      %v1792 = vpop.f32.mrb[0].mxu0
      %v1793 = vadd.f32 %v1632, %v1792
      %v1794 = vpop.f32.mrb[0].mxu0
      %v1795 = vpop.f32.mrb[0].mxu0
      %v1796 = vadd.f32 %v1635, %v1795
      %v1797 = vpop.f32.mrb[0].mxu0
      %1798 = vmatprep.mubr.bf16.mxu0 %v888
      %1799 = vmatmul.mubr.bf16.gmra.mrb[0].mxu0 %v887
      %v1800 = vpop.f32.mrb[0].mxu0
      %v1801 = vadd.f32 %v1640, %v1800
      %v1802 = vpop.f32.mrb[0].mxu0
      %v1803 = vpop.f32.mrb[0].mxu0
      %v1804 = vadd.f32 %v1643, %v1803
      %v1805 = vpop.f32.mrb[0].mxu0
      %1806 = vmatprep.mubr.bf16.mxu0 %v895
      %1807 = vmatmul.mubr.bf16.gmra.mrb[0].mxu0 %v894
      %v1808 = vpop.f32.mrb[0].mxu0
      %v1809 = vadd.f32 %v1648, %v1808
      %v1810 = vpop.f32.mrb[0].mxu0
      %v1811 = vpop.f32.mrb[0].mxu0
      %v1812 = vadd.f32 %v1651, %v1811
      %v1813 = vpop.f32.mrb[0].mxu0
      %1814 = vmatprep.mubr.bf16.mxu0 %v902
      %1815 = vmatmul.mubr.bf16.gmra.mrb[0].mxu0 %v901
      %v1816 = vpop.f32.mrb[0].mxu0
      %v1817 = vadd.f32 %v1656, %v1816
      %v1818 = vpop.f32.mrb[0].mxu0
      %v1819 = vpop.f32.mrb[0].mxu0
      %v1820 = vadd.f32 %v1659, %v1819
      %v1821 = vpop.f32.mrb[0].mxu0
      %1822 = vmatprep.mubr.bf16.mxu0 %v909
      %1823 = vmatmul.mubr.bf16.gmra.mrb[0].mxu0 %v908
      %v1824 = vpop.f32.mrb[0].mxu0
      %v1825 = vadd.f32 %v1664, %v1824
      %v1826 = vpop.f32.mrb[0].mxu0
      %v1827 = vpop.f32.mrb[0].mxu0
      %v1828 = vadd.f32 %v1667, %v1827
      %v1829 = vpop.f32.mrb[0].mxu0
      %1830 = vmatprep.mubr.bf16.mxu0 %v916
      %1831 = vmatmul.mubr.bf16.gmra.mrb[0].mxu0 %v915
      %v1832 = vpop.f32.mrb[0].mxu0
      %v1833 = vadd.f32 %v1672, %v1832
      %v1834 = vpop.f32.mrb[0].mxu0
      %v1835 = vpop.f32.mrb[0].mxu0
      %v1836 = vadd.f32 %v1675, %v1835
      %v1837 = vpop.f32.mrb[0].mxu0
      %1838 = vmatprep.mubr.bf16.mxu0 %v923
      %1839 = vmatmul.mubr.bf16.gmra.mrb[0].mxu0 %v922
      %v1840 = vpop.f32.mrb[0].mxu0
      %v1841 = vadd.f32 %v1680, %v1840
      %v1842 = vpop.f32.mrb[0].mxu0
      %v1843 = vpop.f32.mrb[0].mxu0
      %v1844 = vadd.f32 %v1683, %v1843
      %v1845 = vpop.f32.mrb[0].mxu0
      %1846 = vmatprep.mubr.bf16.mxu0 %v930
      %1847 = vmatmul.mubr.bf16.gmra.mrb[0].mxu0 %v929
      %v1848 = vpop.f32.mrb[0].mxu0
      %v1849 = vadd.f32 %v1688, %v1848
      %v1850 = vpop.f32.mrb[0].mxu0
      %v1851 = vpop.f32.mrb[0].mxu0
      %v1852 = vadd.f32 %v1691, %v1851
      %v1853 = vpop.f32.mrb[0].mxu0
      %1854 = vmatprep.mubr.bf16.mxu0 %v937
      %1855 = vmatmul.mubr.bf16.gmra.mrb[0].mxu0 %v936
      %v1856 = vpop.f32.mrb[0].mxu0
      %v1857 = vadd.f32 %v1696, %v1856
      %v1858 = vpop.f32.mrb[0].mxu0
      %v1859 = vpop.f32.mrb[0].mxu0
      %v1860 = vadd.f32 %v1699, %v1859
      %v1861 = vpop.f32.mrb[0].mxu0
      %1862 = vmatprep.mubr.bf16.mxu0 %v944
      %1863 = vmatmul.mubr.bf16.gmra.mrb[0].mxu0 %v943
      %v1864 = vpop.f32.mrb[0].mxu0
      %v1865 = vadd.f32 %v1704, %v1864
      %v1866 = vpop.f32.mrb[0].mxu0
      %v1867 = vpop.f32.mrb[0].mxu0
      %v1868 = vadd.f32 %v1707, %v1867
      %v1869 = vpop.f32.mrb[0].mxu0
      %1870 = vmatprep.mubr.bf16.mxu0 %v951
      %1871 = vmatmul.mubr.bf16.gmra.mrb[0].mxu0 %v950
      %v1872 = vpop.f32.mrb[0].mxu0
      %v1873 = vadd.f32 %v1712, %v1872
      %v1874 = vpop.f32.mrb[0].mxu0
      %v1875 = vpop.f32.mrb[0].mxu0
      %v1876 = vadd.f32 %v1715, %v1875
      %v1877 = vpop.f32.mrb[0].mxu0
      %1878 = vmatprep.mubr.bf16.mxu0 %v958
      %1879 = vmatmul.mubr.bf16.gmra.mrb[0].mxu0 %v957
      %v1880 = vpop.f32.mrb[0].mxu0
      %v1881 = vadd.f32 %v1720, %v1880
      %v1882 = vpop.f32.mrb[0].mxu0
      %v1883 = vpop.f32.mrb[0].mxu0
      %v1884 = vadd.f32 %v1723, %v1883
      %v1885 = vpop.f32.mrb[0].mxu0
      %1886 = vmatprep.mubr.bf16.mxu0 %v965
      %1887 = vmatmul.mubr.bf16.gmra.mrb[0].mxu0 %v964
      %v1888 = vpop.f32.mrb[0].mxu0
      %v1889 = vadd.f32 %v1728, %v1888
      %v1890 = vpop.f32.mrb[0].mxu0
      %v1891 = vpop.f32.mrb[0].mxu0
      %v1892 = vadd.f32 %v1731, %v1891
      %v1893 = vpop.f32.mrb[0].mxu0
      %1894 = vdwg.mxu0
      %1895 = vmatprep.subr.bf16.mxu0 0
      %1896 = vmatpush1.bf16.msra.mxu0 %v1311
      %1897 = vmatprep.subr.bf16.mxu0 0
      %1898 = vmatpush1.bf16.msra.mxu0 %v1312
      %1899 = vmatprep.subr.bf16.mxu0 0
      %1900 = vmatpush1.bf16.msra.mxu0 0
      %1901 = vmatprep.subr.bf16.mxu0 0
      %1902 = vmatpush1.bf16.msra.mxu0 0
      %1903 = vmatprep.subr.bf16.mxu0 0
      %1904 = vmatpush1.bf16.msra.mxu0 0
      %1905 = vmatprep.subr.bf16.mxu0 0
      %1906 = vmatpush1.bf16.msra.mxu0 0
      %1907 = vmatprep.subr.bf16.mxu0 0
      %1908 = vmatpush1.bf16.msra.mxu0 0
      %1909 = vmatprep.subr.bf16.mxu0 0
      %1910 = vmatpush1.bf16.msra.mxu0 0
      %1911 = vmatprep.subr.bf16.mxu0 0
      %1912 = vmatpush1.bf16.msra.mxu0 0
      %1913 = vmatprep.subr.bf16.mxu0 0
      %1914 = vmatpush1.bf16.msra.mxu0 0
      %1915 = vmatprep.subr.bf16.mxu0 0
      %1916 = vmatpush1.bf16.msra.mxu0 0
      %1917 = vmatprep.subr.bf16.mxu0 0
      %1918 = vmatpush1.bf16.msra.mxu0 0
      %1919 = vmatprep.subr.bf16.mxu0 0
      %1920 = vmatpush1.bf16.msra.mxu0 0
      %1921 = vmatprep.subr.bf16.mxu0 0
      %1922 = vmatpush1.bf16.msra.mxu0 0
      %1923 = vmatprep.subr.bf16.mxu0 0
      %1924 = vmatpush1.bf16.msra.mxu0 0
      %1925 = vmatprep.subr.bf16.mxu0 0
      %1926 = vmatpush1.bf16.msra.mxu0 0
      %1927 = vmatprep.mubr.bf16.mxu0 0
      %1928 = vmatmul.mubr.bf16.gmra.mrb[0].mxu0 %v1365
      %v1929 = vpop.f32.mrb[0].mxu0
      %v1930 = vadd.f32 %v1769, %v1929
      %v1931 = vpop.f32.mrb[0].mxu0
      %v1932 = vpop.f32.mrb[0].mxu0
      %v1933 = vadd.f32 %v1772, %v1932
      %v1934 = vpop.f32.mrb[0].mxu0
      %1935 = vmatprep.mubr.bf16.mxu0 0
      %1936 = vmatmul.mubr.bf16.gmra.mrb[0].mxu0 %v1368
      %v1937 = vpop.f32.mrb[0].mxu0
      %v1938 = vadd.f32 %v1777, %v1937
      %v1939 = vpop.f32.mrb[0].mxu0
      %v1940 = vpop.f32.mrb[0].mxu0
      %v1941 = vadd.f32 %v1780, %v1940
      %v1942 = vpop.f32.mrb[0].mxu0
      %1943 = vmatprep.mubr.bf16.mxu0 0
      %1944 = vmatmul.mubr.bf16.gmra.mrb[0].mxu0 %v1371
      %v1945 = vpop.f32.mrb[0].mxu0
      %v1946 = vadd.f32 %v1785, %v1945
      %v1947 = vpop.f32.mrb[0].mxu0
      %v1948 = vpop.f32.mrb[0].mxu0
      %v1949 = vadd.f32 %v1788, %v1948
      %v1950 = vpop.f32.mrb[0].mxu0
      %1951 = vmatprep.mubr.bf16.mxu0 0
      %1952 = vmatmul.mubr.bf16.gmra.mrb[0].mxu0 %v1374
      %v1953 = vpop.f32.mrb[0].mxu0
      %v1954 = vadd.f32 %v1793, %v1953
      %v1955 = vpop.f32.mrb[0].mxu0
      %v1956 = vpop.f32.mrb[0].mxu0
      %v1957 = vadd.f32 %v1796, %v1956
      %v1958 = vpop.f32.mrb[0].mxu0
      %1959 = vmatprep.mubr.bf16.mxu0 0
      %1960 = vmatmul.mubr.bf16.gmra.mrb[0].mxu0 %v1377
      %v1961 = vpop.f32.mrb[0].mxu0
      %v1962 = vadd.f32 %v1801, %v1961
      %v1963 = vpop.f32.mrb[0].mxu0
      %v1964 = vpop.f32.mrb[0].mxu0
      %v1965 = vadd.f32 %v1804, %v1964
      %v1966 = vpop.f32.mrb[0].mxu0
      %1967 = vmatprep.mubr.bf16.mxu0 0
      %1968 = vmatmul.mubr.bf16.gmra.mrb[0].mxu0 %v1380
      %v1969 = vpop.f32.mrb[0].mxu0
      %v1970 = vadd.f32 %v1809, %v1969
      %v1971 = vpop.f32.mrb[0].mxu0
      %v1972 = vpop.f32.mrb[0].mxu0
      %v1973 = vadd.f32 %v1812, %v1972
      %v1974 = vpop.f32.mrb[0].mxu0
      %1975 = vmatprep.mubr.bf16.mxu0 0
      %1976 = vmatmul.mubr.bf16.gmra.mrb[0].mxu0 %v1383
      %v1977 = vpop.f32.mrb[0].mxu0
      %v1978 = vadd.f32 %v1817, %v1977
      %v1979 = vpop.f32.mrb[0].mxu0
      %v1980 = vpop.f32.mrb[0].mxu0
      %v1981 = vadd.f32 %v1820, %v1980
      %v1982 = vpop.f32.mrb[0].mxu0
      %1983 = vmatprep.mubr.bf16.mxu0 0
      %1984 = vmatmul.mubr.bf16.gmra.mrb[0].mxu0 %v1386
      %v1985 = vpop.f32.mrb[0].mxu0
      %v1986 = vadd.f32 %v1825, %v1985
      %v1987 = vpop.f32.mrb[0].mxu0
      %v1988 = vpop.f32.mrb[0].mxu0
      %v1989 = vadd.f32 %v1828, %v1988
      %v1990 = vpop.f32.mrb[0].mxu0
      %1991 = vmatprep.mubr.bf16.mxu0 0
      %1992 = vmatmul.mubr.bf16.gmra.mrb[0].mxu0 %v1389
      %v1993 = vpop.f32.mrb[0].mxu0
      %v1994 = vadd.f32 %v1833, %v1993
      %v1995 = vpop.f32.mrb[0].mxu0
      %v1996 = vpop.f32.mrb[0].mxu0
      %v1997 = vadd.f32 %v1836, %v1996
      %v1998 = vpop.f32.mrb[0].mxu0
      %1999 = vmatprep.mubr.bf16.mxu0 0
      %2000 = vmatmul.mubr.bf16.gmra.mrb[0].mxu0 %v1392
      %v2001 = vpop.f32.mrb[0].mxu0
      %v2002 = vadd.f32 %v1841, %v2001
      %v2003 = vpop.f32.mrb[0].mxu0
      %v2004 = vpop.f32.mrb[0].mxu0
      %v2005 = vadd.f32 %v1844, %v2004
      %v2006 = vpop.f32.mrb[0].mxu0
      %2007 = vmatprep.mubr.bf16.mxu0 0
      %2008 = vmatmul.mubr.bf16.gmra.mrb[0].mxu0 %v1395
      %v2009 = vpop.f32.mrb[0].mxu0
      %v2010 = vadd.f32 %v1849, %v2009
      %v2011 = vpop.f32.mrb[0].mxu0
      %v2012 = vpop.f32.mrb[0].mxu0
      %v2013 = vadd.f32 %v1852, %v2012
      %v2014 = vpop.f32.mrb[0].mxu0
      %2015 = vmatprep.mubr.bf16.mxu0 0
      %2016 = vmatmul.mubr.bf16.gmra.mrb[0].mxu0 %v1398
      %v2017 = vpop.f32.mrb[0].mxu0
      %v2018 = vadd.f32 %v1857, %v2017
      %v2019 = vpop.f32.mrb[0].mxu0
      %v2020 = vpop.f32.mrb[0].mxu0
      %v2021 = vadd.f32 %v1860, %v2020
      %v2022 = vpop.f32.mrb[0].mxu0
      %2023 = vmatprep.mubr.bf16.mxu0 0
      %2024 = vmatmul.mubr.bf16.gmra.mrb[0].mxu0 %v1401
      %v2025 = vpop.f32.mrb[0].mxu0
      %v2026 = vadd.f32 %v1865, %v2025
      %v2027 = vpop.f32.mrb[0].mxu0
      %v2028 = vpop.f32.mrb[0].mxu0
      %v2029 = vadd.f32 %v1868, %v2028
      %v2030 = vpop.f32.mrb[0].mxu0
      %2031 = vmatprep.mubr.bf16.mxu0 0
      %2032 = vmatmul.mubr.bf16.gmra.mrb[0].mxu0 %v1404
      %v2033 = vpop.f32.mrb[0].mxu0
      %v2034 = vadd.f32 %v1873, %v2033
      %v2035 = vpop.f32.mrb[0].mxu0
      %v2036 = vpop.f32.mrb[0].mxu0
      %v2037 = vadd.f32 %v1876, %v2036
      %v2038 = vpop.f32.mrb[0].mxu0
      %2039 = vmatprep.mubr.bf16.mxu0 0
      %2040 = vmatmul.mubr.bf16.gmra.mrb[0].mxu0 %v1407
      %v2041 = vpop.f32.mrb[0].mxu0
      %v2042 = vadd.f32 %v1881, %v2041
      %v2043 = vpop.f32.mrb[0].mxu0
      %v2044 = vpop.f32.mrb[0].mxu0
      %v2045 = vadd.f32 %v1884, %v2044
      %v2046 = vpop.f32.mrb[0].mxu0
      %2047 = vmatprep.mubr.bf16.mxu0 0
      %2048 = vmatmul.mubr.bf16.gmra.mrb[0].mxu0 %v1410
      %v2049 = vpop.f32.mrb[0].mxu0
      %v2050 = vadd.f32 %v1889, %v2049
      %v2051 = vpop.f32.mrb[0].mxu0
      %v2052 = vpop.f32.mrb[0].mxu0
      %v2053 = vadd.f32 %v1892, %v2052
      %v2054 = vpop.f32.mrb[0].mxu0
      %2055 = vdwg.mxu0
      %vm2056 = vcmask 130048
      %v2057 = vsel %vm2056, %v1930, 0.0
      %2058 = vadd.xlane.f32.xlu0 %v2057
      %v2059 = vpop.xlane.xlu0 %2058
      %v2060 = vsel %vm2056, %v1933, 0.0
      %2061 = vadd.xlane.f32.xlu0 %v2060
      %v2062 = vpop.xlane.xlu0 %2061
      %v2063 = vsel %vm2056, %v1938, 0.0
      %2064 = vadd.xlane.f32.xlu0 %v2063
      %v2065 = vpop.xlane.xlu0 %2064
      %v2066 = vsel %vm2056, %v1941, 0.0
      %2067 = vadd.xlane.f32.xlu0 %v2066
      %v2068 = vpop.xlane.xlu0 %2067
      %v2069 = vsel %vm2056, %v1946, 0.0
      %2070 = vadd.xlane.f32.xlu0 %v2069
      %v2071 = vpop.xlane.xlu0 %2070
      %v2072 = vsel %vm2056, %v1949, 0.0
      %2073 = vadd.xlane.f32.xlu0 %v2072
      %v2074 = vpop.xlane.xlu0 %2073
      %v2075 = vsel %vm2056, %v1954, 0.0
      %2076 = vadd.xlane.f32.xlu0 %v2075
      %v2077 = vpop.xlane.xlu0 %2076
      %v2078 = vsel %vm2056, %v1957, 0.0
      %2079 = vadd.xlane.f32.xlu0 %v2078
      %v2080 = vpop.xlane.xlu0 %2079
      %v2081 = vsel %vm2056, %v1962, 0.0
      %2082 = vadd.xlane.f32.xlu0 %v2081
      %v2083 = vpop.xlane.xlu0 %2082
      %v2084 = vsel %vm2056, %v1965, 0.0
      %2085 = vadd.xlane.f32.xlu0 %v2084
      %v2086 = vpop.xlane.xlu0 %2085
      %v2087 = vsel %vm2056, %v1970, 0.0
      %2088 = vadd.xlane.f32.xlu0 %v2087
      %v2089 = vpop.xlane.xlu0 %2088
      %v2090 = vsel %vm2056, %v1973, 0.0
      %2091 = vadd.xlane.f32.xlu0 %v2090
      %v2092 = vpop.xlane.xlu0 %2091
      %v2093 = vsel %vm2056, %v1978, 0.0
      %2094 = vadd.xlane.f32.xlu0 %v2093
      %v2095 = vpop.xlane.xlu0 %2094
      %v2096 = vsel %vm2056, %v1981, 0.0
      %2097 = vadd.xlane.f32.xlu0 %v2096
      %v2098 = vpop.xlane.xlu0 %2097
      %v2099 = vsel %vm2056, %v1986, 0.0
      %2100 = vadd.xlane.f32.xlu0 %v2099
      %v2101 = vpop.xlane.xlu0 %2100
      %v2102 = vsel %vm2056, %v1989, 0.0
      %2103 = vadd.xlane.f32.xlu0 %v2102
      %v2104 = vpop.xlane.xlu0 %2103
      %v2105 = vsel %vm2056, %v1994, 0.0
      %2106 = vadd.xlane.f32.xlu0 %v2105
      %v2107 = vpop.xlane.xlu0 %2106
      %v2108 = vsel %vm2056, %v1997, 0.0
      %2109 = vadd.xlane.f32.xlu0 %v2108
      %v2110 = vpop.xlane.xlu0 %2109
      %v2111 = vsel %vm2056, %v2002, 0.0
      %2112 = vadd.xlane.f32.xlu0 %v2111
      %v2113 = vpop.xlane.xlu0 %2112
      %v2114 = vsel %vm2056, %v2005, 0.0
      %2115 = vadd.xlane.f32.xlu0 %v2114
      %v2116 = vpop.xlane.xlu0 %2115
      %v2117 = vsel %vm2056, %v2010, 0.0
      %2118 = vadd.xlane.f32.xlu0 %v2117
      %v2119 = vpop.xlane.xlu0 %2118
      %v2120 = vsel %vm2056, %v2013, 0.0
      %2121 = vadd.xlane.f32.xlu0 %v2120
      %v2122 = vpop.xlane.xlu0 %2121
      %v2123 = vsel %vm2056, %v2018, 0.0
      %2124 = vadd.xlane.f32.xlu0 %v2123
      %v2125 = vpop.xlane.xlu0 %2124
      %v2126 = vsel %vm2056, %v2021, 0.0
      %2127 = vadd.xlane.f32.xlu0 %v2126
      %v2128 = vpop.xlane.xlu0 %2127
      %v2129 = vsel %vm2056, %v2026, 0.0
      %2130 = vadd.xlane.f32.xlu0 %v2129
      %v2131 = vpop.xlane.xlu0 %2130
      %v2132 = vsel %vm2056, %v2029, 0.0
      %2133 = vadd.xlane.f32.xlu0 %v2132
      %v2134 = vpop.xlane.xlu0 %2133
      %v2135 = vsel %vm2056, %v2034, 0.0
      %2136 = vadd.xlane.f32.xlu0 %v2135
      %v2137 = vpop.xlane.xlu0 %2136
      %v2138 = vsel %vm2056, %v2037, 0.0
      %2139 = vadd.xlane.f32.xlu0 %v2138
      %v2140 = vpop.xlane.xlu0 %2139
      %v2141 = vsel %vm2056, %v2042, 0.0
      %2142 = vadd.xlane.f32.xlu0 %v2141
      %v2143 = vpop.xlane.xlu0 %2142
      %v2144 = vsel %vm2056, %v2045, 0.0
      %2145 = vadd.xlane.f32.xlu0 %v2144
      %v2146 = vpop.xlane.xlu0 %2145
      %v2147 = vsel %vm2056, %v2050, 0.0
      %2148 = vadd.xlane.f32.xlu0 %v2147
      %v2149 = vpop.xlane.xlu0 %2148
      %v2150 = vsel %vm2056, %v2053, 0.0
      %2151 = vadd.xlane.f32.xlu0 %v2150
      %v2152 = vpop.xlane.xlu0 %2151
      %v2153 = vadd.f32 %v2059, %v2062
      %v2154 = vadd.f32 %v2153, %v2065
      %v2155 = vadd.f32 %v2154, %v2068
      %v2156 = vadd.f32 %v2155, %v2071
      %v2157 = vadd.f32 %v2156, %v2074
      %v2158 = vadd.f32 %v2157, %v2077
      %v2159 = vadd.f32 %v2158, %v2080
      %v2160 = vadd.f32 %v2159, %v2083
      %v2161 = vadd.f32 %v2160, %v2086
      %v2162 = vadd.f32 %v2161, %v2089
      %v2163 = vadd.f32 %v2162, %v2092
      %v2164 = vadd.f32 %v2163, %v2095
      %v2165 = vadd.f32 %v2164, %v2098
      %v2166 = vadd.f32 %v2165, %v2101
      %v2167 = vadd.f32 %v2166, %v2104
      %v2168 = vadd.f32 %v2167, %v2107
      %v2169 = vadd.f32 %v2168, %v2110
      %v2170 = vadd.f32 %v2169, %v2113
      %v2171 = vadd.f32 %v2170, %v2116
      %v2172 = vadd.f32 %v2171, %v2119
      %v2173 = vadd.f32 %v2172, %v2122
      %v2174 = vadd.f32 %v2173, %v2125
      %v2175 = vadd.f32 %v2174, %v2128
      %v2176 = vadd.f32 %v2175, %v2131
      %v2177 = vadd.f32 %v2176, %v2134
      %v2178 = vadd.f32 %v2177, %v2137
      %v2179 = vadd.f32 %v2178, %v2140
      %v2180 = vadd.f32 %v2179, %v2143
      %v2181 = vadd.f32 %v2180, %v2146
      %v2182 = vadd.f32 %v2181, %v2149
      %v2183 = vadd.f32 %v2182, %v2152
      %v2184 = vrot.slane %v2183, 4
      %v2185 = vadd.f32 %v2183, %v2184
      %v2186 = vrot.slane %v2185, 2
      %v2187 = vadd.f32 %v2185, %v2186
      %v2188 = vrot.slane %v2187, 1
      %v2189 = vadd.f32 %v2187, %v2188
      %v2190 = vmul.f32 %v2189, 0.00024414063
      %v2191 = vsub.f32 %v1930, %v2190
      %v2192 = vsub.f32 %v1933, %v2190
      %v2193 = vsub.f32 %v1938, %v2190
      %v2194 = vsub.f32 %v1941, %v2190
      %v2195 = vsub.f32 %v1946, %v2190
      %v2196 = vsub.f32 %v1949, %v2190
      %v2197 = vsub.f32 %v1954, %v2190
      %v2198 = vsub.f32 %v1957, %v2190
      %v2199 = vsub.f32 %v1962, %v2190
      %v2200 = vsub.f32 %v1965, %v2190
      %v2201 = vsub.f32 %v1970, %v2190
      %v2202 = vsub.f32 %v1973, %v2190
      %v2203 = vsub.f32 %v1978, %v2190
      %v2204 = vsub.f32 %v1981, %v2190
      %v2205 = vsub.f32 %v1986, %v2190
      %v2206 = vsub.f32 %v1989, %v2190
      %v2207 = vsub.f32 %v1994, %v2190
      %v2208 = vsub.f32 %v1997, %v2190
      %v2209 = vsub.f32 %v2002, %v2190
      %v2210 = vsub.f32 %v2005, %v2190
      %v2211 = vsub.f32 %v2010, %v2190
      %v2212 = vsub.f32 %v2013, %v2190
      %v2213 = vsub.f32 %v2018, %v2190
      %v2214 = vsub.f32 %v2021, %v2190
      %v2215 = vsub.f32 %v2026, %v2190
      %v2216 = vsub.f32 %v2029, %v2190
      %v2217 = vsub.f32 %v2034, %v2190
      %v2218 = vsub.f32 %v2037, %v2190
      %v2219 = vsub.f32 %v2042, %v2190
      %v2220 = vsub.f32 %v2045, %v2190
      %v2221 = vsub.f32 %v2050, %v2190
      %v2222 = vsub.f32 %v2053, %v2190
      %v2223 = vmul.f32 %v2191, %v2191
      %v2224 = vmul.f32 %v2192, %v2192
      %v2225 = vmul.f32 %v2193, %v2193
      %v2226 = vmul.f32 %v2194, %v2194
      %v2227 = vmul.f32 %v2195, %v2195
      %v2228 = vmul.f32 %v2196, %v2196
      %v2229 = vmul.f32 %v2197, %v2197
      %v2230 = vmul.f32 %v2198, %v2198
      %v2231 = vmul.f32 %v2199, %v2199
      %v2232 = vmul.f32 %v2200, %v2200
      %v2233 = vmul.f32 %v2201, %v2201
      %v2234 = vmul.f32 %v2202, %v2202
      %v2235 = vmul.f32 %v2203, %v2203
      %v2236 = vmul.f32 %v2204, %v2204
      %v2237 = vmul.f32 %v2205, %v2205
      %v2238 = vmul.f32 %v2206, %v2206
      %v2239 = vmul.f32 %v2207, %v2207
      %v2240 = vmul.f32 %v2208, %v2208
      %v2241 = vmul.f32 %v2209, %v2209
      %v2242 = vmul.f32 %v2210, %v2210
      %v2243 = vmul.f32 %v2211, %v2211
      %v2244 = vmul.f32 %v2212, %v2212
      %v2245 = vmul.f32 %v2213, %v2213
      %v2246 = vmul.f32 %v2214, %v2214
      %v2247 = vmul.f32 %v2215, %v2215
      %v2248 = vmul.f32 %v2216, %v2216
      %v2249 = vmul.f32 %v2217, %v2217
      %v2250 = vmul.f32 %v2218, %v2218
      %v2251 = vmul.f32 %v2219, %v2219
      %v2252 = vmul.f32 %v2220, %v2220
      %v2253 = vmul.f32 %v2221, %v2221
      %v2254 = vmul.f32 %v2222, %v2222
      %v2255 = vsel %vm2056, %v2223, 0.0
      %2256 = vadd.xlane.f32.xlu0 %v2255
      %v2257 = vpop.xlane.xlu0 %2256
      %v2258 = vsel %vm2056, %v2224, 0.0
      %2259 = vadd.xlane.f32.xlu0 %v2258
      %v2260 = vpop.xlane.xlu0 %2259
      %v2261 = vsel %vm2056, %v2225, 0.0
      %2262 = vadd.xlane.f32.xlu0 %v2261
      %v2263 = vpop.xlane.xlu0 %2262
      %v2264 = vsel %vm2056, %v2226, 0.0
      %2265 = vadd.xlane.f32.xlu0 %v2264
      %v2266 = vpop.xlane.xlu0 %2265
      %v2267 = vsel %vm2056, %v2227, 0.0
      %2268 = vadd.xlane.f32.xlu0 %v2267
      %v2269 = vpop.xlane.xlu0 %2268
      %v2270 = vsel %vm2056, %v2228, 0.0
      %2271 = vadd.xlane.f32.xlu0 %v2270
      %v2272 = vpop.xlane.xlu0 %2271
      %v2273 = vsel %vm2056, %v2229, 0.0
      %2274 = vadd.xlane.f32.xlu0 %v2273
      %v2275 = vpop.xlane.xlu0 %2274
      %v2276 = vsel %vm2056, %v2230, 0.0
      %2277 = vadd.xlane.f32.xlu0 %v2276
      %v2278 = vpop.xlane.xlu0 %2277
      %v2279 = vsel %vm2056, %v2231, 0.0
      %2280 = vadd.xlane.f32.xlu0 %v2279
      %v2281 = vpop.xlane.xlu0 %2280
      %v2282 = vsel %vm2056, %v2232, 0.0
      %2283 = vadd.xlane.f32.xlu0 %v2282
      %v2284 = vpop.xlane.xlu0 %2283
      %v2285 = vsel %vm2056, %v2233, 0.0
      %2286 = vadd.xlane.f32.xlu0 %v2285
      %v2287 = vpop.xlane.xlu0 %2286
      %v2288 = vsel %vm2056, %v2234, 0.0
      %2289 = vadd.xlane.f32.xlu0 %v2288
      %v2290 = vpop.xlane.xlu0 %2289
      %v2291 = vsel %vm2056, %v2235, 0.0
      %2292 = vadd.xlane.f32.xlu0 %v2291
      %v2293 = vpop.xlane.xlu0 %2292
      %v2294 = vsel %vm2056, %v2236, 0.0
      %2295 = vadd.xlane.f32.xlu0 %v2294
      %v2296 = vpop.xlane.xlu0 %2295
      %v2297 = vsel %vm2056, %v2237, 0.0
      %2298 = vadd.xlane.f32.xlu0 %v2297
      %v2299 = vpop.xlane.xlu0 %2298
      %v2300 = vsel %vm2056, %v2238, 0.0
      %2301 = vadd.xlane.f32.xlu0 %v2300
      %v2302 = vpop.xlane.xlu0 %2301
      %v2303 = vsel %vm2056, %v2239, 0.0
      %2304 = vadd.xlane.f32.xlu0 %v2303
      %v2305 = vpop.xlane.xlu0 %2304
      %v2306 = vsel %vm2056, %v2240, 0.0
      %2307 = vadd.xlane.f32.xlu0 %v2306
      %v2308 = vpop.xlane.xlu0 %2307
      %v2309 = vsel %vm2056, %v2241, 0.0
      %2310 = vadd.xlane.f32.xlu0 %v2309
      %v2311 = vpop.xlane.xlu0 %2310
      %v2312 = vsel %vm2056, %v2242, 0.0
      %2313 = vadd.xlane.f32.xlu0 %v2312
      %v2314 = vpop.xlane.xlu0 %2313
      %v2315 = vsel %vm2056, %v2243, 0.0
      %2316 = vadd.xlane.f32.xlu0 %v2315
      %v2317 = vpop.xlane.xlu0 %2316
      %v2318 = vsel %vm2056, %v2244, 0.0
      %2319 = vadd.xlane.f32.xlu0 %v2318
      %v2320 = vpop.xlane.xlu0 %2319
      %v2321 = vsel %vm2056, %v2245, 0.0
      %2322 = vadd.xlane.f32.xlu0 %v2321
      %v2323 = vpop.xlane.xlu0 %2322
      %v2324 = vsel %vm2056, %v2246, 0.0
      %2325 = vadd.xlane.f32.xlu0 %v2324
      %v2326 = vpop.xlane.xlu0 %2325
      %v2327 = vsel %vm2056, %v2247, 0.0
      %2328 = vadd.xlane.f32.xlu0 %v2327
      %v2329 = vpop.xlane.xlu0 %2328
      %v2330 = vsel %vm2056, %v2248, 0.0
      %2331 = vadd.xlane.f32.xlu0 %v2330
      %v2332 = vpop.xlane.xlu0 %2331
      %v2333 = vsel %vm2056, %v2249, 0.0
      %2334 = vadd.xlane.f32.xlu0 %v2333
      %v2335 = vpop.xlane.xlu0 %2334
      %v2336 = vsel %vm2056, %v2250, 0.0
      %2337 = vadd.xlane.f32.xlu0 %v2336
      %v2338 = vpop.xlane.xlu0 %2337
      %v2339 = vsel %vm2056, %v2251, 0.0
      %2340 = vadd.xlane.f32.xlu0 %v2339
      %v2341 = vpop.xlane.xlu0 %2340
      %v2342 = vsel %vm2056, %v2252, 0.0
      %2343 = vadd.xlane.f32.xlu0 %v2342
      %v2344 = vpop.xlane.xlu0 %2343
      %v2345 = vsel %vm2056, %v2253, 0.0
      %2346 = vadd.xlane.f32.xlu0 %v2345
      %v2347 = vpop.xlane.xlu0 %2346
      %v2348 = vsel %vm2056, %v2254, 0.0
      %2349 = vadd.xlane.f32.xlu0 %v2348
      %v2350 = vpop.xlane.xlu0 %2349
      %v2351 = vadd.f32 %v2257, %v2260
      %v2352 = vadd.f32 %v2351, %v2263
      %v2353 = vadd.f32 %v2352, %v2266
      %v2354 = vadd.f32 %v2353, %v2269
      %v2355 = vadd.f32 %v2354, %v2272
      %v2356 = vadd.f32 %v2355, %v2275
      %v2357 = vadd.f32 %v2356, %v2278
      %v2358 = vadd.f32 %v2357, %v2281
      %v2359 = vadd.f32 %v2358, %v2284
      %v2360 = vadd.f32 %v2359, %v2287
      %v2361 = vadd.f32 %v2360, %v2290
      %v2362 = vadd.f32 %v2361, %v2293
      %v2363 = vadd.f32 %v2362, %v2296
      %v2364 = vadd.f32 %v2363, %v2299
      %v2365 = vadd.f32 %v2364, %v2302
      %v2366 = vadd.f32 %v2365, %v2305
      %v2367 = vadd.f32 %v2366, %v2308
      %v2368 = vadd.f32 %v2367, %v2311
      %v2369 = vadd.f32 %v2368, %v2314
      %v2370 = vadd.f32 %v2369, %v2317
      %v2371 = vadd.f32 %v2370, %v2320
      %v2372 = vadd.f32 %v2371, %v2323
      %v2373 = vadd.f32 %v2372, %v2326
      %v2374 = vadd.f32 %v2373, %v2329
      %v2375 = vadd.f32 %v2374, %v2332
      %v2376 = vadd.f32 %v2375, %v2335
      %v2377 = vadd.f32 %v2376, %v2338
      %v2378 = vadd.f32 %v2377, %v2341
      %v2379 = vadd.f32 %v2378, %v2344
      %v2380 = vadd.f32 %v2379, %v2347
      %v2381 = vadd.f32 %v2380, %v2350
      %v2382 = vrot.slane %v2381, 4
      %v2383 = vadd.f32 %v2381, %v2382
      %v2384 = vrot.slane %v2383, 2
      %v2385 = vadd.f32 %v2383, %v2384
      %v2386 = vrot.slane %v2385, 1
      %v2387 = vadd.f32 %v2385, %v2386
      %v2388 = vmul.f32 %v2387, 0.00024420026
      %v2389 = vrsqrt.pop %v2388
      %v2390 = vmul.f32 %v2388, %v2389
      %vm2391 = vcmp.eq.f32.partialorder %v2388, inf
      %v2392 = vsel %vm2391, %v2388, %v2390
      %vm2393 = vcmp.eq.f32.partialorder %v2388, 0.0
      %v2394 = vand.u32 %v2388, 2147483648
      %v2395 = vsel %vm2393, %v2394, %v2392
      %v2396 = vadd.f32 %v2395, 1e-05
      %v2397 = vrcp.pop %v2396
      %v2398 = vmul.f32 %v2191, %v2397
      %v2399 = vmul.f32 %v2192, %v2397
      %v2400 = vmul.f32 %v2193, %v2397
      %v2401 = vmul.f32 %v2194, %v2397
      %v2402 = vmul.f32 %v2195, %v2397
      %v2403 = vmul.f32 %v2196, %v2397
      %v2404 = vmul.f32 %v2197, %v2397
      %v2405 = vmul.f32 %v2198, %v2397
      %v2406 = vmul.f32 %v2199, %v2397
      %v2407 = vmul.f32 %v2200, %v2397
      %v2408 = vmul.f32 %v2201, %v2397
      %v2409 = vmul.f32 %v2202, %v2397
      %v2410 = vmul.f32 %v2203, %v2397
      %v2411 = vmul.f32 %v2204, %v2397
      %v2412 = vmul.f32 %v2205, %v2397
      %v2413 = vmul.f32 %v2206, %v2397
      %v2414 = vmul.f32 %v2207, %v2397
      %v2415 = vmul.f32 %v2208, %v2397
      %v2416 = vmul.f32 %v2209, %v2397
      %v2417 = vmul.f32 %v2210, %v2397
      %v2418 = vmul.f32 %v2211, %v2397
      %v2419 = vmul.f32 %v2212, %v2397
      %v2420 = vmul.f32 %v2213, %v2397
      %v2421 = vmul.f32 %v2214, %v2397
      %v2422 = vmul.f32 %v2215, %v2397
      %v2423 = vmul.f32 %v2216, %v2397
      %v2424 = vmul.f32 %v2217, %v2397
      %v2425 = vmul.f32 %v2218, %v2397
      %v2426 = vmul.f32 %v2219, %v2397
      %v2427 = vmul.f32 %v2220, %v2397
      %v2428 = vmul.f32 %v2221, %v2397
      %v2429 = vmul.f32 %v2222, %v2397
      %v2430 = vld [vmem:[%s3] sm:$0x1]
      %v2432 = vlaneseq
      %v2433 = vshrl.u32 %v2432, 7
      %v2434 = vsub.s32 0, %v2433
      %v2435 = vrot.slane %v2430, %v2434
      %v2437 = vmul.f32 %v2398, %v2435
      %v2438 = vmul.f32 %v2399, %v2435
      %v2439 = vmul.f32 %v2400, %v2435
      %v2440 = vmul.f32 %v2401, %v2435
      %v2441 = vmul.f32 %v2402, %v2435
      %v2442 = vmul.f32 %v2403, %v2435
      %v2443 = vmul.f32 %v2404, %v2435
      %v2444 = vmul.f32 %v2405, %v2435
      %v2445 = vmul.f32 %v2406, %v2435
      %v2446 = vmul.f32 %v2407, %v2435
      %v2447 = vmul.f32 %v2408, %v2435
      %v2448 = vmul.f32 %v2409, %v2435
      %v2449 = vmul.f32 %v2410, %v2435
      %v2450 = vmul.f32 %v2411, %v2435
      %v2451 = vmul.f32 %v2412, %v2435
      %v2452 = vmul.f32 %v2413, %v2435
      %v2453 = vmul.f32 %v2414, %v2435
      %v2454 = vmul.f32 %v2415, %v2435
      %v2455 = vmul.f32 %v2416, %v2435
      %v2456 = vmul.f32 %v2417, %v2435
      %v2457 = vmul.f32 %v2418, %v2435
      %v2458 = vmul.f32 %v2419, %v2435
      %v2459 = vmul.f32 %v2420, %v2435
      %v2460 = vmul.f32 %v2421, %v2435
      %v2461 = vmul.f32 %v2422, %v2435
      %v2462 = vmul.f32 %v2423, %v2435
      %v2463 = vmul.f32 %v2424, %v2435
      %v2464 = vmul.f32 %v2425, %v2435
      %v2465 = vmul.f32 %v2426, %v2435
      %v2466 = vmul.f32 %v2427, %v2435
      %v2467 = vmul.f32 %v2428, %v2435
      %v2468 = vmul.f32 %v2429, %v2435
      %v2469 = vld [vmem:[%s4] sm:$0x1]
      %v2471 = vlaneseq
      %v2472 = vshrl.u32 %v2471, 7
      %v2473 = vsub.s32 0, %v2472
      %v2474 = vrot.slane %v2469, %v2473
      %v2476 = vadd.f32 %v2437, %v2474
      %v2477 = vadd.f32 %v2438, %v2474
      %v2478 = vadd.f32 %v2439, %v2474
      %v2479 = vadd.f32 %v2440, %v2474
      %v2480 = vadd.f32 %v2441, %v2474
      %v2481 = vadd.f32 %v2442, %v2474
      %v2482 = vadd.f32 %v2443, %v2474
      %v2483 = vadd.f32 %v2444, %v2474
      %v2484 = vadd.f32 %v2445, %v2474
      %v2485 = vadd.f32 %v2446, %v2474
      %v2486 = vadd.f32 %v2447, %v2474
      %v2487 = vadd.f32 %v2448, %v2474
      %v2488 = vadd.f32 %v2449, %v2474
      %v2489 = vadd.f32 %v2450, %v2474
      %v2490 = vadd.f32 %v2451, %v2474
      %v2491 = vadd.f32 %v2452, %v2474
      %v2492 = vadd.f32 %v2453, %v2474
      %v2493 = vadd.f32 %v2454, %v2474
      %v2494 = vadd.f32 %v2455, %v2474
      %v2495 = vadd.f32 %v2456, %v2474
      %v2496 = vadd.f32 %v2457, %v2474
      %v2497 = vadd.f32 %v2458, %v2474
      %v2498 = vadd.f32 %v2459, %v2474
      %v2499 = vadd.f32 %v2460, %v2474
      %v2500 = vadd.f32 %v2461, %v2474
      %v2501 = vadd.f32 %v2462, %v2474
      %v2502 = vadd.f32 %v2463, %v2474
      %v2503 = vadd.f32 %v2464, %v2474
      %v2504 = vadd.f32 %v2465, %v2474
      %v2505 = vadd.f32 %v2466, %v2474
      %v2506 = vadd.f32 %v2467, %v2474
      %v2507 = vadd.f32 %v2468, %v2474
      %v2508 = vmax.f32 %v2476, 0.0
      %v2509 = vmax.f32 %v2477, 0.0
      %v2510 = vmax.f32 %v2478, 0.0
      %v2511 = vmax.f32 %v2479, 0.0
      %v2512 = vmax.f32 %v2480, 0.0
      %v2513 = vmax.f32 %v2481, 0.0
      %v2514 = vmax.f32 %v2482, 0.0
      %v2515 = vmax.f32 %v2483, 0.0
      %v2516 = vmax.f32 %v2484, 0.0
      %v2517 = vmax.f32 %v2485, 0.0
      %v2518 = vmax.f32 %v2486, 0.0
      %v2519 = vmax.f32 %v2487, 0.0
      %v2520 = vmax.f32 %v2488, 0.0
      %v2521 = vmax.f32 %v2489, 0.0
      %v2522 = vmax.f32 %v2490, 0.0
      %v2523 = vmax.f32 %v2491, 0.0
      %v2524 = vmax.f32 %v2492, 0.0
      %v2525 = vmax.f32 %v2493, 0.0
      %v2526 = vmax.f32 %v2494, 0.0
      %v2527 = vmax.f32 %v2495, 0.0
      %v2528 = vmax.f32 %v2496, 0.0
      %v2529 = vmax.f32 %v2497, 0.0
      %v2530 = vmax.f32 %v2498, 0.0
      %v2531 = vmax.f32 %v2499, 0.0
      %v2532 = vmax.f32 %v2500, 0.0
      %v2533 = vmax.f32 %v2501, 0.0
      %v2534 = vmax.f32 %v2502, 0.0
      %v2535 = vmax.f32 %v2503, 0.0
      %v2536 = vmax.f32 %v2504, 0.0
      %v2537 = vmax.f32 %v2505, 0.0
      %v2538 = vmax.f32 %v2506, 0.0
      %v2539 = vmax.f32 %v2507, 0.0
      %v2540 = vpack.c.bf16 %v2509, %v2508
      %v2541 = vpack.c.bf16 %v2511, %v2510
      %v2542 = vpack.c.bf16 %v2513, %v2512
      %v2543 = vpack.c.bf16 %v2515, %v2514
      %v2544 = vpack.c.bf16 %v2517, %v2516
      %v2545 = vpack.c.bf16 %v2519, %v2518
      %v2546 = vpack.c.bf16 %v2521, %v2520
      %v2547 = vpack.c.bf16 %v2523, %v2522
      %v2548 = vpack.c.bf16 %v2525, %v2524
      %v2549 = vpack.c.bf16 %v2527, %v2526
      %v2550 = vpack.c.bf16 %v2529, %v2528
      %v2551 = vpack.c.bf16 %v2531, %v2530
      %v2552 = vpack.c.bf16 %v2533, %v2532
      %v2553 = vpack.c.bf16 %v2535, %v2534
      %v2554 = vpack.c.bf16 %v2537, %v2536
      %v2555 = vpack.c.bf16 %v2539, %v2538
      %v2572 = vunpack.c.l.b16 %v2540
      %v2573 = vunpack.c.h.b16 %v2540
      %v2574 = vunpack.c.l.b16 %v2541
      %v2575 = vunpack.c.h.b16 %v2541
      %v2576 = vunpack.c.l.b16 %v2542
      %v2577 = vunpack.c.h.b16 %v2542
      %v2578 = vunpack.c.l.b16 %v2543
      %v2579 = vunpack.c.h.b16 %v2543
      %v2580 = vunpack.c.l.b16 %v2544
      %v2581 = vunpack.c.h.b16 %v2544
      %v2582 = vunpack.c.l.b16 %v2545
      %v2583 = vunpack.c.h.b16 %v2545
      %v2584 = vunpack.c.l.b16 %v2546
      %v2585 = vunpack.c.h.b16 %v2546
      %v2586 = vunpack.c.l.b16 %v2547
      %v2587 = vunpack.c.h.b16 %v2547
      %v2588 = vunpack.c.l.b16 %v2548
      %v2589 = vunpack.c.h.b16 %v2548
      %v2590 = vunpack.c.l.b16 %v2549
      %v2591 = vunpack.c.h.b16 %v2549
      %v2592 = vunpack.c.l.b16 %v2550
      %v2593 = vunpack.c.h.b16 %v2550
      %v2594 = vunpack.c.l.b16 %v2551
      %v2595 = vunpack.c.h.b16 %v2551
      %v2596 = vunpack.c.l.b16 %v2552
      %v2597 = vunpack.c.h.b16 %v2552
      %v2598 = vunpack.c.l.b16 %v2553
      %v2599 = vunpack.c.h.b16 %v2553
      %v2600 = vunpack.c.l.b16 %v2554
      %v2601 = vunpack.c.h.b16 %v2554
      %v2602 = vunpack.c.l.b16 %v2555
      %v2603 = vunpack.c.h.b16 %v2555
      %v2604 = vpack.c.b16 %v2572, %v2572
      %v2605 = vpack.c.b16 %v2573, %v2573
      %v2606 = vpack.c.b16 %v2574, %v2574
      %v2607 = vpack.c.b16 %v2575, %v2575
      %v2608 = vpack.c.b16 %v2576, %v2576
      %v2609 = vpack.c.b16 %v2577, %v2577
      %v2610 = vpack.c.b16 %v2578, %v2578
      %v2611 = vpack.c.b16 %v2579, %v2579
      %v2612 = vpack.c.b16 %v2580, %v2580
      %v2613 = vpack.c.b16 %v2581, %v2581
      %v2614 = vpack.c.b16 %v2582, %v2582
      %v2615 = vpack.c.b16 %v2583, %v2583
      %v2616 = vpack.c.b16 %v2584, %v2584
      %v2617 = vpack.c.b16 %v2585, %v2585
      %v2618 = vpack.c.b16 %v2586, %v2586
      %v2619 = vpack.c.b16 %v2587, %v2587
      %v2620 = vpack.c.b16 %v2588, %v2588
      %v2621 = vpack.c.b16 %v2589, %v2589
      %v2622 = vpack.c.b16 %v2590, %v2590
      %v2623 = vpack.c.b16 %v2591, %v2591
      %v2624 = vpack.c.b16 %v2592, %v2592
      %v2625 = vpack.c.b16 %v2593, %v2593
      %v2626 = vpack.c.b16 %v2594, %v2594
      %v2627 = vpack.c.b16 %v2595, %v2595
      %v2628 = vpack.c.b16 %v2596, %v2596
      %v2629 = vpack.c.b16 %v2597, %v2597
      %v2630 = vpack.c.b16 %v2598, %v2598
      %v2631 = vpack.c.b16 %v2599, %v2599
      %v2632 = vpack.c.b16 %v2600, %v2600
      %v2633 = vpack.c.b16 %v2601, %v2601
      %v2634 = vpack.c.b16 %v2602, %v2602
      %v2635 = vpack.c.b16 %v2603, %v2603
      %vm2668 = vcmask 125952
      %2669 = vst.msk [vmem:[%s265] sm:$0xf] %vm2668, %v2604
      %2670 = vst.msk [vmem:[%s265 + $0x4] sm:$0xf] %vm2668, %v2605
      %2671 = vst.msk [vmem:[%s265 + $0x8] sm:$0xf] %vm2668, %v2606
      %2672 = vst.msk [vmem:[%s265 + $0xc] sm:$0xf] %vm2668, %v2607
      %2673 = vst.msk [vmem:[%s265 + $0x10] sm:$0xf] %vm2668, %v2608
      %2674 = vst.msk [vmem:[%s265 + $0x14] sm:$0xf] %vm2668, %v2609
      %2675 = vst.msk [vmem:[%s265 + $0x18] sm:$0xf] %vm2668, %v2610
      %2676 = vst.msk [vmem:[%s265 + $0x1c] sm:$0xf] %vm2668, %v2611
      %2677 = vst.msk [vmem:[%s265 + $0x20] sm:$0xf] %vm2668, %v2612
      %2678 = vst.msk [vmem:[%s265 + $0x24] sm:$0xf] %vm2668, %v2613
      %2679 = vst.msk [vmem:[%s265 + $0x28] sm:$0xf] %vm2668, %v2614
      %2680 = vst.msk [vmem:[%s265 + $0x2c] sm:$0xf] %vm2668, %v2615
      %2681 = vst.msk [vmem:[%s265 + $0x30] sm:$0xf] %vm2668, %v2616
      %2682 = vst.msk [vmem:[%s265 + $0x34] sm:$0xf] %vm2668, %v2617
      %2683 = vst.msk [vmem:[%s265 + $0x38] sm:$0xf] %vm2668, %v2618
      %2684 = vst.msk [vmem:[%s265 + $0x3c] sm:$0xf] %vm2668, %v2619
      %2685 = vst.msk [vmem:[%s265 + $0x40] sm:$0xf] %vm2668, %v2620
      %2686 = vst.msk [vmem:[%s265 + $0x44] sm:$0xf] %vm2668, %v2621
      %2687 = vst.msk [vmem:[%s265 + $0x48] sm:$0xf] %vm2668, %v2622
      %2688 = vst.msk [vmem:[%s265 + $0x4c] sm:$0xf] %vm2668, %v2623
      %2689 = vst.msk [vmem:[%s265 + $0x50] sm:$0xf] %vm2668, %v2624
      %2690 = vst.msk [vmem:[%s265 + $0x54] sm:$0xf] %vm2668, %v2625
      %2691 = vst.msk [vmem:[%s265 + $0x58] sm:$0xf] %vm2668, %v2626
      %2692 = vst.msk [vmem:[%s265 + $0x5c] sm:$0xf] %vm2668, %v2627
      %2693 = vst.msk [vmem:[%s265 + $0x60] sm:$0xf] %vm2668, %v2628
      %2694 = vst.msk [vmem:[%s265 + $0x64] sm:$0xf] %vm2668, %v2629
      %2695 = vst.msk [vmem:[%s265 + $0x68] sm:$0xf] %vm2668, %v2630
      %2696 = vst.msk [vmem:[%s265 + $0x6c] sm:$0xf] %vm2668, %v2631
      %2697 = vst.msk [vmem:[%s265 + $0x70] sm:$0xf] %vm2668, %v2632
      %2698 = vst.msk [vmem:[%s265 + $0x74] sm:$0xf] %vm2668, %v2633
      %2699 = vst.msk [vmem:[%s265 + $0x78] sm:$0xf] %vm2668, %v2634
      %2700 = vst.msk [vmem:[%s265 + $0x7c] sm:$0xf] %vm2668, %v2635
      %s2701 = smul.u32 32, %s21
      %p2702 = scmp.lt.s32.totalorder %s20, 1
      %s2703 = scalar_select %p2702, %s20, 1
      %p2704 = scmp.lt.s32.totalorder %s2701, 31
      %s2705 = scalar_select %p2704, %s2701, 31
      %s2706 = smul.addr %s2703, 32
      %s2707 = sadd.s32 %s2705, %s2706
      %s2708 = smul.addr %s2707, 4
      %s2709 = scalar_lea.vmem %s5, %s2708
      // Predicated region
      $region41: #{styleless_gen_forward.30} parent=39 // pred_check
        %p2710 = pneg %p160
      $region42: #{styleless_gen_forward.30} parent=39 // pred_check_branch
        %2712 = sbr.rel (%p2710) target = $region44
      $region43: #{styleless_gen_forward.30} parent=39 // pred_region
        %s2713 = smul.u32 32, %s21
      $region44: #{styleless_gen_forward.30} parent=39 // pred_fallthru
        _
    $region40: #{styleless_gen_forward.30} parent=5 // pred_fallthru
      _
    %p2714 = scmp.le.s32.totalorder 2, %s11
    // Predicated region
    $region45: #{styleless_gen_forward.30} parent=5 // pred_check
      %p2715 = pneg %p2714
    $region46: #{styleless_gen_forward.30} parent=5 // pred_check_branch
      %2717 = sbr.rel (%p2715) target = $region48
    $region47: #{styleless_gen_forward.30} parent=5 // pred_region
      %s2718 = ssub.s32 %s11, 2
      // Predicated region
      $region49: #{styleless_gen_forward.30} parent=47 // pred_check
        %p2719 = pneg %p166
      $region50: #{styleless_gen_forward.30} parent=47 // pred_check_branch
        %2721 = sbr.rel (%p2719) target = $region52
      $region51: #{styleless_gen_forward.30} parent=47 // pred_region
        %s2722 = smul.u32 32, %s23
        %p2723 = scmp.lt.s32.totalorder %s22, 1
        %s2724 = scalar_select %p2723, %s22, 1
        %p2725 = scmp.lt.s32.totalorder %s2722, 31
        %s2726 = scalar_select %p2725, %s2722, 31
        %s2727 = smul.addr %s2724, 32
        %s2728 = sadd.s32 %s2726, %s2727
        %s2729 = smul.addr %s2728, 4
        %s2730 = scalar_lea.vmem %s5, %s2729
      $region52: #{styleless_gen_forward.30} parent=47 // pred_fallthru
        _
    $region48: #{styleless_gen_forward.30} parent=5 // pred_fallthru
      _
  $region6: #{styleless_gen_forward.30} parent=0 // loop_footer
    %s15 = sadd.s32 1, %s11
  $region7: #{styleless_gen_forward.30} parent=0 // loop_footer_branch
    %10 = sbr.rel target = $region3
  $region8: #{styleless_gen_forward.30} parent=0 // loop_exit
    _

// kernel: styleless_gen_forward.31
$region0: #{styleless_gen_forward.31}
  #allocation0 [shape = 'u32[]', space=smem, size = 0x4, offset = 0x4, fixed_abs, tag = 'smem constant byte address 0x4 - core index']
  #allocation1 [shape = 'u32[144,128]{1,0:T(1,128)}', space=vmem, size = 0x12000, scoped, tag = 'internal scratch']
  %s0 = inlined_call_operand.vmem [shape: bf16[2,784,256], index: 0, kind: input, shape index: {}]
  %s1 = inlined_call_operand.vmem [shape: bf16[3,784], index: 1, kind: input, shape index: {}]
  %s2 = inlined_call_operand.vmem [shape: f32[3,1], index: 2, kind: input, shape index: {}]
  %s3 = inlined_call_operand.vmem [shape: f32[2,3,256], index: 3, kind: output, shape index: {}]
  %s4 = sld [smem:[#allocation0]]
  $region45: #{styleless_gen_forward.31} parent=0
    _
  %s6 = ssub.s32 1, %s4
  %s7 = scalar_select 0, %s6, %s4
  loop: start=0, step=1, limit=4
  $region2: #{styleless_gen_forward.31} parent=0 // loop_pre_header
    _
  $region3: #{styleless_gen_forward.31} parent=0 // loop_header
    %s9 = sphi 0, %s13
    %p10 = scmp.ge.s32.totalorder %s9, 4
    %s19 = sphi 0, %s21
    %s22 = sphi 0, %s19
    %s23 = sphi 0, %s22
    %s39 = sphi 0, %s23
    %s43 = sphi 0, %s43
    %s45 = sphi 0, %s43
    %s46 = sphi 0, %s45
    %s60 = sphi 0, %s46
    %s64 = sphi 0, %s64
    %s66 = sphi 0, %s64
    %s67 = sphi 0, %s66
    %s81 = sphi 0, %s67
    %s87 = sphi 0, %s89
    %s90 = sphi 0, %s87
    %s91 = sphi 0, %s90
    %s107 = sphi 0, %s91
  $region4: #{styleless_gen_forward.31} parent=0 // loop_header_branch
    %12 = sbr.rel (%p10) target = $region8
  $region5: #{styleless_gen_forward.31} parent=0 // loop_body
    %s14 = ssub.s32 %s9, 1
    %s15 = ssub.s32 %s9, 2
    %s16 = sadd.s32 %s9, 1
    %s17 = ssub.s32 %s9, %s16
    %p18 = scmp.eq.s32.totalorder %s17, 0
    %s20 = sadd.s32 %s19, 1
    %s21 = scalar_select %p18, %s19, %s20
    %p24 = pneg %p18
    %p25 = scmp.eq.s32.totalorder %s9, 1
    %p26 = por %p24, %p25
    %p27 = scmp.ne.s32.totalorder %s19, %s22
    %p28 = scmp.eq.s32.totalorder %s9, 0
    %p29 = por %p27, %p28
    %p30 = scmp.ne.s32.totalorder %s19, %s22
    %p31 = scmp.eq.s32.totalorder %s14, 1
    %p32 = por %p30, %p31
    %p33 = scmp.ne.s32.totalorder %s22, %s23
    %p34 = scmp.eq.s32.totalorder %s14, 0
    %p35 = por %p33, %p34
    %p36 = scmp.ne.s32.totalorder %s22, %s23
    %p37 = scmp.eq.s32.totalorder %s15, 1
    %p38 = por %p36, %p37
    %p40 = scmp.ne.s32.totalorder %s23, %s39
    %p41 = scmp.eq.s32.totalorder %s15, 0
    %p42 = por %p40, %p41
    %s44 = sadd.s32 %s43, 1
    %p47 = scmp.eq.s32.totalorder %s9, 1
    %p48 = scmp.ne.s32.totalorder %s43, %s45
    %p49 = scmp.eq.s32.totalorder %s9, 0
    %p50 = por %p48, %p49
    %p51 = scmp.ne.s32.totalorder %s43, %s45
    %p52 = scmp.eq.s32.totalorder %s14, 1
    %p53 = por %p51, %p52
    %p54 = scmp.ne.s32.totalorder %s45, %s46
    %p55 = scmp.eq.s32.totalorder %s14, 0
    %p56 = por %p54, %p55
    %p57 = scmp.ne.s32.totalorder %s45, %s46
    %p58 = scmp.eq.s32.totalorder %s15, 1
    %p59 = por %p57, %p58
    %p61 = scmp.ne.s32.totalorder %s46, %s60
    %p62 = scmp.eq.s32.totalorder %s15, 0
    %p63 = por %p61, %p62
    %s65 = sadd.s32 %s64, 1
    %p68 = scmp.eq.s32.totalorder %s9, 1
    %p69 = scmp.ne.s32.totalorder %s64, %s66
    %p70 = scmp.eq.s32.totalorder %s9, 0
    %p71 = por %p69, %p70
    %p72 = scmp.ne.s32.totalorder %s64, %s66
    %p73 = scmp.eq.s32.totalorder %s14, 1
    %p74 = por %p72, %p73
    %p75 = scmp.ne.s32.totalorder %s66, %s67
    %p76 = scmp.eq.s32.totalorder %s14, 0
    %p77 = por %p75, %p76
    %p78 = scmp.ne.s32.totalorder %s66, %s67
    %p79 = scmp.eq.s32.totalorder %s15, 1
    %p80 = por %p78, %p79
    %p82 = scmp.ne.s32.totalorder %s67, %s81
    %p83 = scmp.eq.s32.totalorder %s15, 0
    %p84 = por %p82, %p83
    %s85 = ssub.s32 %s9, %s16
    %p86 = scmp.eq.s32.totalorder %s85, 0
    %s88 = sadd.s32 %s87, 1
    %s89 = scalar_select %p86, %s87, %s88
    %p92 = pneg %p86
    %p93 = scmp.eq.s32.totalorder %s9, 1
    %p94 = por %p92, %p93
    %p95 = scmp.ne.s32.totalorder %s87, %s90
    %p96 = scmp.eq.s32.totalorder %s9, 0
    %p97 = por %p95, %p96
    %p98 = scmp.ne.s32.totalorder %s87, %s90
    %p99 = scmp.eq.s32.totalorder %s14, 1
    %p100 = por %p98, %p99
    %p101 = scmp.ne.s32.totalorder %s90, %s91
    %p102 = scmp.eq.s32.totalorder %s14, 0
    %p103 = por %p101, %p102
    %p104 = scmp.ne.s32.totalorder %s90, %s91
    %p105 = scmp.eq.s32.totalorder %s15, 1
    %p106 = por %p104, %p105
    %p108 = scmp.ne.s32.totalorder %s91, %s107
    %p109 = scmp.eq.s32.totalorder %s15, 0
    %p110 = por %p108, %p109
    %p111 = scmp.le.s32.totalorder 1, %s9
    %p112 = scmp.lt.s32.totalorder %s9, 3
    %p113 = pnand %p111, %p112
    %p114 = pneg %p113
    // Predicated region
    $region9: #{styleless_gen_forward.31} parent=5 // pred_check
      _
    $region10: #{styleless_gen_forward.31} parent=5 // pred_check_branch
      %116 = sbr.rel (%p113) target = $region12
    $region11: #{styleless_gen_forward.31} parent=5 // pred_region
      %s117 = ssub.s32 %s9, 1
      // Predicated region
      $region13: #{styleless_gen_forward.31} parent=11 // pred_check
        %p118 = pneg %p56
      $region14: #{styleless_gen_forward.31} parent=11 // pred_check_branch
        %120 = sbr.rel (%p118) target = $region16
      $region15: #{styleless_gen_forward.31} parent=11 // pred_region
        _
      $region16: #{styleless_gen_forward.31} parent=11 // pred_fallthru
        _
      // Predicated region
      $region17: #{styleless_gen_forward.31} parent=11 // pred_check
        %p121 = pneg %p77
      $region18: #{styleless_gen_forward.31} parent=11 // pred_check_branch
        %123 = sbr.rel (%p121) target = $region20
      $region19: #{styleless_gen_forward.31} parent=11 // pred_region
        _
      $region20: #{styleless_gen_forward.31} parent=11 // pred_fallthru
        _
    $region12: #{styleless_gen_forward.31} parent=5 // pred_fallthru
      _
    %p124 = scmp.lt.s32.totalorder %s9, 2
    // Predicated region
    $region21: #{styleless_gen_forward.31} parent=5 // pred_check
      %p125 = pneg %p124
    $region22: #{styleless_gen_forward.31} parent=5 // pred_check_branch
      %127 = sbr.rel (%p125) target = $region24
    $region23: #{styleless_gen_forward.31} parent=5 // pred_region
      // Predicated region
      $region25: #{styleless_gen_forward.31} parent=23 // pred_check
        %p128 = pneg %p29
      $region26: #{styleless_gen_forward.31} parent=23 // pred_check_branch
        %130 = sbr.rel (%p128) target = $region28
      $region27: #{styleless_gen_forward.31} parent=23 // pred_region
        %p131 = scmp.lt.s32.totalorder %s9, 1
        %s132 = scalar_select %p131, %s9, 1
        %s133 = smul.addr %s132, 196
        %s134 = smul.addr %s133, 4
        %s135 = scalar_lea.vmem %s0, %s134
      $region28: #{styleless_gen_forward.31} parent=23 // pred_fallthru
        _
    $region24: #{styleless_gen_forward.31} parent=5 // pred_fallthru
      _
    %p136 = scmp.le.s32.totalorder 1, %s9
    %p137 = scmp.lt.s32.totalorder %s9, 3
    %p138 = pnand %p136, %p137
    %p139 = pneg %p138
    // Predicated region
    $region29: #{styleless_gen_forward.31} parent=5 // pred_check
      _
    $region30: #{styleless_gen_forward.31} parent=5 // pred_check_branch
      %141 = sbr.rel (%p138) target = $region32
    $region31: #{styleless_gen_forward.31} parent=5 // pred_region
      %s142 = ssub.s32 %s9, 1
      %p143 = scmp.lt.s32.totalorder %s14, 1
      %s144 = scalar_select %p143, %s14, 1
      %s145 = smul.addr %s144, 196
      %s146 = smul.addr %s145, 4
      %s147 = scalar_lea.vmem %s0, %s146
      %p148 = pneg %p35
      %p149 = pneg %p32
      %p150 = pneg %p56
      %p151 = pneg %p53
      %p152 = pneg %p77
      %p153 = pneg %p74
      %p154 = pneg %p103
      %p155 = pneg %p100
      %p156 = scmp.lt.s32.totalorder %s14, 1
      %s157 = scalar_select %p156, %s14, 1
      %s158 = smul.addr %s157, 2
      %s159 = smul.addr %s158, 4
      %s160 = scalar_lea.vmem %s3, %s159
      %p161 = scmp.lt.s32.totalorder %s14, 1
      %s162 = scalar_select %p161, %s14, 1
      %s163 = smul.addr %s162, 196
      %s164 = smul.addr %s163, 4
      %s165 = scalar_lea.vmem %s0, %s164
      %p166 = scmp.lt.s32.totalorder %s14, 1
      %s167 = scalar_select %p166, %s14, 1
      %s168 = smul.addr %s167, 2
      %s169 = smul.addr %s168, 4
      %s170 = scalar_lea.vmem %s3, %s169
      %v172 = vld [vmem:[%s1] sm:$0xff]
      %v173 = vld [vmem:[%s1 + $0x8] sm:$0x3f]
      %v174 = vld [vmem:[%s165] sm:$0xff]
      %v175 = vld [vmem:[%s165 + $0x8] sm:$0xff]
      %v176 = vld [vmem:[%s165 + $0x10] sm:$0xff]
      %v177 = vld [vmem:[%s165 + $0x18] sm:$0xff]
      %v178 = vld [vmem:[%s165 + $0x20] sm:$0xff]
      %v179 = vld [vmem:[%s165 + $0x28] sm:$0xff]
      %v180 = vld [vmem:[%s165 + $0x30] sm:$0xff]
      %v181 = vld [vmem:[%s165 + $0x38] sm:$0xff]
      %v182 = vld [vmem:[%s165 + $0x40] sm:$0xff]
      %v183 = vld [vmem:[%s165 + $0x48] sm:$0xff]
      %v184 = vld [vmem:[%s165 + $0x50] sm:$0xff]
      %v185 = vld [vmem:[%s165 + $0x58] sm:$0xff]
      %v186 = vld [vmem:[%s165 + $0x60] sm:$0xff]
      %v187 = vld [vmem:[%s165 + $0x68] sm:$0xff]
      %v188 = vld [vmem:[%s165 + $0x70] sm:$0xff]
      %v189 = vld [vmem:[%s165 + $0x78] sm:$0xff]
      %v190 = vld [vmem:[%s165 + $0x80] sm:$0xff]
      %v191 = vld [vmem:[%s165 + $0x88] sm:$0xff]
      %v192 = vld [vmem:[%s165 + $0x90] sm:$0xff]
      %v193 = vld [vmem:[%s165 + $0x98] sm:$0xff]
      %v194 = vld [vmem:[%s165 + $0xa0] sm:$0xff]
      %v195 = vld [vmem:[%s165 + $0xa8] sm:$0xff]
      %v196 = vld [vmem:[%s165 + $0xb0] sm:$0xff]
      %v197 = vld [vmem:[%s165 + $0xb8] sm:$0xff]
      %v198 = vld [vmem:[%s165 + $0xc0] sm:$0xff]
      %v199 = vld [vmem:[%s165 + $0xc8] sm:$0xff]
      %v200 = vld [vmem:[%s165 + $0xd0] sm:$0xff]
      %v201 = vld [vmem:[%s165 + $0xd8] sm:$0xff]
      %v202 = vld [vmem:[%s165 + $0xe0] sm:$0xff]
      %v203 = vld [vmem:[%s165 + $0xe8] sm:$0xff]
      %v204 = vld [vmem:[%s165 + $0xf0] sm:$0xff]
      %v205 = vld [vmem:[%s165 + $0xf8] sm:$0xff]
      %v206 = vld [vmem:[%s165 + $0x100] sm:$0xff]
      %v207 = vld [vmem:[%s165 + $0x108] sm:$0xff]
      %v208 = vld [vmem:[%s165 + $0x110] sm:$0xff]
      %v209 = vld [vmem:[%s165 + $0x118] sm:$0xff]
      %v210 = vld [vmem:[%s165 + $0x120] sm:$0xff]
      %v211 = vld [vmem:[%s165 + $0x128] sm:$0xff]
      %v212 = vld [vmem:[%s165 + $0x130] sm:$0xff]
      %v213 = vld [vmem:[%s165 + $0x138] sm:$0xff]
      %v214 = vld [vmem:[%s165 + $0x140] sm:$0xff]
      %v215 = vld [vmem:[%s165 + $0x148] sm:$0xff]
      %v216 = vld [vmem:[%s165 + $0x150] sm:$0xff]
      %v217 = vld [vmem:[%s165 + $0x158] sm:$0xff]
      %v218 = vld [vmem:[%s165 + $0x160] sm:$0xff]
      %v219 = vld [vmem:[%s165 + $0x168] sm:$0xff]
      %v220 = vld [vmem:[%s165 + $0x170] sm:$0xff]
      %v221 = vld [vmem:[%s165 + $0x178] sm:$0xff]
      %v222 = vld [vmem:[%s165 + $0x180] sm:$0xff]
      %v223 = vld [vmem:[%s165 + $0x188] sm:$0xff]
      %v224 = vld [vmem:[%s165 + $0x190] sm:$0xff]
      %v225 = vld [vmem:[%s165 + $0x198] sm:$0xff]
      %v226 = vld [vmem:[%s165 + $0x1a0] sm:$0xff]
      %v227 = vld [vmem:[%s165 + $0x1a8] sm:$0xff]
      %v228 = vld [vmem:[%s165 + $0x1b0] sm:$0xff]
      %v229 = vld [vmem:[%s165 + $0x1b8] sm:$0xff]
      %v230 = vld [vmem:[%s165 + $0x1c0] sm:$0xff]
      %v231 = vld [vmem:[%s165 + $0x1c8] sm:$0xff]
      %v232 = vld [vmem:[%s165 + $0x1d0] sm:$0xff]
      %v233 = vld [vmem:[%s165 + $0x1d8] sm:$0xff]
      %v234 = vld [vmem:[%s165 + $0x1e0] sm:$0xff]
      %v235 = vld [vmem:[%s165 + $0x1e8] sm:$0xff]
      %v236 = vld [vmem:[%s165 + $0x1f0] sm:$0xff]
      %v237 = vld [vmem:[%s165 + $0x1f8] sm:$0xff]
      %v238 = vld [vmem:[%s165 + $0x200] sm:$0xff]
      %v239 = vld [vmem:[%s165 + $0x208] sm:$0xff]
      %v240 = vld [vmem:[%s165 + $0x210] sm:$0xff]
      %v241 = vld [vmem:[%s165 + $0x218] sm:$0xff]
      %v242 = vld [vmem:[%s165 + $0x220] sm:$0xff]
      %v243 = vld [vmem:[%s165 + $0x228] sm:$0xff]
      %v244 = vld [vmem:[%s165 + $0x230] sm:$0xff]
      %v245 = vld [vmem:[%s165 + $0x238] sm:$0xff]
      %v246 = vld [vmem:[%s165 + $0x240] sm:$0xff]
      %v247 = vld [vmem:[%s165 + $0x248] sm:$0xff]
      %v248 = vld [vmem:[%s165 + $0x250] sm:$0xff]
      %v249 = vld [vmem:[%s165 + $0x258] sm:$0xff]
      %v250 = vld [vmem:[%s165 + $0x260] sm:$0xff]
      %v251 = vld [vmem:[%s165 + $0x268] sm:$0xff]
      %v252 = vld [vmem:[%s165 + $0x270] sm:$0xff]
      %v253 = vld [vmem:[%s165 + $0x278] sm:$0xff]
      %v254 = vld [vmem:[%s165 + $0x280] sm:$0xff]
      %v255 = vld [vmem:[%s165 + $0x288] sm:$0xff]
      %v256 = vld [vmem:[%s165 + $0x290] sm:$0xff]
      %v257 = vld [vmem:[%s165 + $0x298] sm:$0xff]
      %v258 = vld [vmem:[%s165 + $0x2a0] sm:$0xff]
      %v259 = vld [vmem:[%s165 + $0x2a8] sm:$0xff]
      %v260 = vld [vmem:[%s165 + $0x2b0] sm:$0xff]
      %v261 = vld [vmem:[%s165 + $0x2b8] sm:$0xff]
      %v262 = vld [vmem:[%s165 + $0x2c0] sm:$0xff]
      %v263 = vld [vmem:[%s165 + $0x2c8] sm:$0xff]
      %v264 = vld [vmem:[%s165 + $0x2d0] sm:$0xff]
      %v265 = vld [vmem:[%s165 + $0x2d8] sm:$0xff]
      %v266 = vld [vmem:[%s165 + $0x2e0] sm:$0xff]
      %v267 = vld [vmem:[%s165 + $0x2e8] sm:$0xff]
      %v268 = vld [vmem:[%s165 + $0x2f0] sm:$0xff]
      %v269 = vld [vmem:[%s165 + $0x2f8] sm:$0xff]
      %v270 = vld [vmem:[%s165 + $0x300] sm:$0xff]
      %v271 = vld [vmem:[%s165 + $0x308] sm:$0xff]
      %v272 = vld [vmem:[%s2] sm:$0x7]
      %274 = vset.pattern.permute.xlu0 0
      %275 = vperm.xlu0 %274, %v272
      %v276 = vpop.permute.xlu0 %275
      %v280 = vcombine.high %v172, %v172
      %v282 = vunpack.c.l.s4 1983009808
      %v283 = vunpack.c.0.s8 %v282
      %v284 = vlaneseq
      %v285 = vshrl.u32 %v284, 7
      %v286 = vsub.s32 %v283, %v285
      %v287 = vrot.slane %v172, %v286
      %v289 = vunpack.c.l.s4 1983009808
      %v290 = vunpack.c.0.s8 %v289
      %v291 = vlaneseq
      %v292 = vshrl.u32 %v291, 7
      %v293 = vsub.s32 %v290, %v292
      %v294 = vrot.slane %v280, %v293
      %v295 = vcombine.high %v287, %v287
      %v296 = vcombine.high %v294, %v294
      %v297 = vcombine.high %v173, %v173
      %v299 = vunpack.c.l.s4 1983009808
      %v300 = vunpack.c.0.s8 %v299
      %v301 = vlaneseq
      %v302 = vshrl.u32 %v301, 7
      %v303 = vsub.s32 %v300, %v302
      %v304 = vrot.slane %v173, %v303
      %v306 = vunpack.c.l.s4 1983009808
      %v307 = vunpack.c.0.s8 %v306
      %v308 = vlaneseq
      %v309 = vshrl.u32 %v308, 7
      %v310 = vsub.s32 %v307, %v309
      %v311 = vrot.slane %v297, %v310
      %v312 = vcombine.high %v304, %v304
      %v417 = vunpack.c.l.b16 %v174
      %v418 = vunpack.c.h.b16 %v174
      %v419 = vunpack.c.l.b16 %v175
      %v420 = vunpack.c.h.b16 %v175
      %v421 = vunpack.c.l.b16 %v176
      %v422 = vunpack.c.h.b16 %v176
      %v423 = vunpack.c.l.b16 %v177
      %v424 = vunpack.c.h.b16 %v177
      %v425 = vunpack.c.l.b16 %v178
      %v426 = vunpack.c.h.b16 %v178
      %v427 = vunpack.c.l.b16 %v179
      %v428 = vunpack.c.h.b16 %v179
      %v429 = vunpack.c.l.b16 %v180
      %v430 = vunpack.c.h.b16 %v180
      %v431 = vunpack.c.l.b16 %v181
      %v432 = vunpack.c.h.b16 %v181
      %v433 = vunpack.c.l.b16 %v182
      %v434 = vunpack.c.h.b16 %v182
      %v435 = vunpack.c.l.b16 %v183
      %v436 = vunpack.c.h.b16 %v183
      %v437 = vunpack.c.l.b16 %v184
      %v438 = vunpack.c.h.b16 %v184
      %v439 = vunpack.c.l.b16 %v185
      %v440 = vunpack.c.h.b16 %v185
      %v441 = vunpack.c.l.b16 %v186
      %v442 = vunpack.c.h.b16 %v186
      %v443 = vunpack.c.l.b16 %v187
      %v444 = vunpack.c.h.b16 %v187
      %v445 = vunpack.c.l.b16 %v188
      %v446 = vunpack.c.h.b16 %v188
      %v447 = vunpack.c.l.b16 %v189
      %v448 = vunpack.c.h.b16 %v189
      %v449 = vunpack.c.l.b16 %v190
      %v450 = vunpack.c.h.b16 %v190
      %v451 = vunpack.c.l.b16 %v191
      %v452 = vunpack.c.h.b16 %v191
      %v453 = vunpack.c.l.b16 %v192
      %v454 = vunpack.c.h.b16 %v192
      %v455 = vunpack.c.l.b16 %v193
      %v456 = vunpack.c.h.b16 %v193
      %v457 = vunpack.c.l.b16 %v194
      %v458 = vunpack.c.h.b16 %v194
      %v459 = vunpack.c.l.b16 %v195
      %v460 = vunpack.c.h.b16 %v195
      %v461 = vunpack.c.l.b16 %v196
      %v462 = vunpack.c.h.b16 %v196
      %v463 = vunpack.c.l.b16 %v197
      %v464 = vunpack.c.h.b16 %v197
      %v465 = vunpack.c.l.b16 %v198
      %v466 = vunpack.c.h.b16 %v198
      %v467 = vunpack.c.l.b16 %v199
      %v468 = vunpack.c.h.b16 %v199
      %v469 = vunpack.c.l.b16 %v200
      %v470 = vunpack.c.h.b16 %v200
      %v471 = vunpack.c.l.b16 %v201
      %v472 = vunpack.c.h.b16 %v201
      %v473 = vunpack.c.l.b16 %v202
      %v474 = vunpack.c.h.b16 %v202
      %v475 = vunpack.c.l.b16 %v203
      %v476 = vunpack.c.h.b16 %v203
      %v477 = vunpack.c.l.b16 %v204
      %v478 = vunpack.c.h.b16 %v204
      %v479 = vunpack.c.l.b16 %v205
      %v480 = vunpack.c.h.b16 %v205
      %v481 = vunpack.c.l.b16 %v206
      %v482 = vunpack.c.h.b16 %v206
      %v483 = vunpack.c.l.b16 %v207
      %v484 = vunpack.c.h.b16 %v207
      %v485 = vunpack.c.l.b16 %v208
      %v486 = vunpack.c.h.b16 %v208
      %v487 = vunpack.c.l.b16 %v209
      %v488 = vunpack.c.h.b16 %v209
      %v489 = vunpack.c.l.b16 %v210
      %v490 = vunpack.c.h.b16 %v210
      %v491 = vunpack.c.l.b16 %v211
      %v492 = vunpack.c.h.b16 %v211
      %v493 = vunpack.c.l.b16 %v212
      %v494 = vunpack.c.h.b16 %v212
      %v495 = vunpack.c.l.b16 %v213
      %v496 = vunpack.c.h.b16 %v213
      %v497 = vunpack.c.l.b16 %v214
      %v498 = vunpack.c.h.b16 %v214
      %v499 = vunpack.c.l.b16 %v215
      %v500 = vunpack.c.h.b16 %v215
      %v501 = vunpack.c.l.b16 %v216
      %v502 = vunpack.c.h.b16 %v216
      %v503 = vunpack.c.l.b16 %v217
      %v504 = vunpack.c.h.b16 %v217
      %v505 = vunpack.c.l.b16 %v218
      %v506 = vunpack.c.h.b16 %v218
      %v507 = vunpack.c.l.b16 %v219
      %v508 = vunpack.c.h.b16 %v219
      %v509 = vunpack.c.l.b16 %v220
      %v510 = vunpack.c.h.b16 %v220
      %v511 = vunpack.c.l.b16 %v221
      %v512 = vunpack.c.h.b16 %v221
      %v513 = vunpack.c.l.b16 %v222
      %v514 = vunpack.c.h.b16 %v222
      %v515 = vunpack.c.l.b16 %v223
      %v516 = vunpack.c.h.b16 %v223
      %v517 = vunpack.c.l.b16 %v224
      %v518 = vunpack.c.h.b16 %v224
      %v519 = vunpack.c.l.b16 %v225
      %v520 = vunpack.c.h.b16 %v225
      %v521 = vunpack.c.l.b16 %v226
      %v522 = vunpack.c.h.b16 %v226
      %v523 = vunpack.c.l.b16 %v227
      %v524 = vunpack.c.h.b16 %v227
      %v525 = vunpack.c.l.b16 %v228
      %v526 = vunpack.c.h.b16 %v228
      %v527 = vunpack.c.l.b16 %v229
      %v528 = vunpack.c.h.b16 %v229
      %v529 = vunpack.c.l.b16 %v230
      %v530 = vunpack.c.h.b16 %v230
      %v531 = vunpack.c.l.b16 %v231
      %v532 = vunpack.c.h.b16 %v231
      %v533 = vunpack.c.l.b16 %v232
      %v534 = vunpack.c.h.b16 %v232
      %v535 = vunpack.c.l.b16 %v233
      %v536 = vunpack.c.h.b16 %v233
      %v537 = vunpack.c.l.b16 %v234
      %v538 = vunpack.c.h.b16 %v234
      %v539 = vunpack.c.l.b16 %v235
      %v540 = vunpack.c.h.b16 %v235
      %v541 = vunpack.c.l.b16 %v236
      %v542 = vunpack.c.h.b16 %v236
      %v543 = vunpack.c.l.b16 %v237
      %v544 = vunpack.c.h.b16 %v237
      %v545 = vunpack.c.l.b16 %v238
      %v546 = vunpack.c.h.b16 %v238
      %v547 = vunpack.c.l.b16 %v239
      %v548 = vunpack.c.h.b16 %v239
      %v549 = vunpack.c.l.b16 %v240
      %v550 = vunpack.c.h.b16 %v240
      %v551 = vunpack.c.l.b16 %v241
      %v552 = vunpack.c.h.b16 %v241
      %v553 = vunpack.c.l.b16 %v242
      %v554 = vunpack.c.h.b16 %v242
      %v555 = vunpack.c.l.b16 %v243
      %v556 = vunpack.c.h.b16 %v243
      %v557 = vunpack.c.l.b16 %v244
      %v558 = vunpack.c.h.b16 %v244
      %v559 = vunpack.c.l.b16 %v245
      %v560 = vunpack.c.h.b16 %v245
      %v561 = vunpack.c.l.b16 %v246
      %v562 = vunpack.c.h.b16 %v246
      %v563 = vunpack.c.l.b16 %v247
      %v564 = vunpack.c.h.b16 %v247
      %v565 = vunpack.c.l.b16 %v248
      %v566 = vunpack.c.h.b16 %v248
      %v567 = vunpack.c.l.b16 %v249
      %v568 = vunpack.c.h.b16 %v249
      %v569 = vunpack.c.l.b16 %v250
      %v570 = vunpack.c.h.b16 %v250
      %v571 = vunpack.c.l.b16 %v251
      %v572 = vunpack.c.h.b16 %v251
      %v573 = vunpack.c.l.b16 %v252
      %v574 = vunpack.c.h.b16 %v252
      %v575 = vunpack.c.l.b16 %v253
      %v576 = vunpack.c.h.b16 %v253
      %v577 = vunpack.c.l.b16 %v254
      %v578 = vunpack.c.h.b16 %v254
      %v579 = vunpack.c.l.b16 %v255
      %v580 = vunpack.c.h.b16 %v255
      %v581 = vunpack.c.l.b16 %v256
      %v582 = vunpack.c.h.b16 %v256
      %v583 = vunpack.c.l.b16 %v257
      %v584 = vunpack.c.h.b16 %v257
      %v585 = vunpack.c.l.b16 %v258
      %v586 = vunpack.c.h.b16 %v258
      %v587 = vunpack.c.l.b16 %v259
      %v588 = vunpack.c.h.b16 %v259
      %v589 = vunpack.c.l.b16 %v260
      %v590 = vunpack.c.h.b16 %v260
      %v591 = vunpack.c.l.b16 %v261
      %v592 = vunpack.c.h.b16 %v261
      %v593 = vunpack.c.l.b16 %v262
      %v594 = vunpack.c.h.b16 %v262
      %v595 = vunpack.c.l.b16 %v263
      %v596 = vunpack.c.h.b16 %v263
      %v597 = vunpack.c.l.b16 %v264
      %v598 = vunpack.c.h.b16 %v264
      %v599 = vunpack.c.l.b16 %v265
      %v600 = vunpack.c.h.b16 %v265
      %v601 = vunpack.c.l.b16 %v266
      %v602 = vunpack.c.h.b16 %v266
      %v603 = vunpack.c.l.b16 %v267
      %v604 = vunpack.c.h.b16 %v267
      %v605 = vunpack.c.l.b16 %v268
      %v606 = vunpack.c.h.b16 %v268
      %v607 = vunpack.c.l.b16 %v269
      %v608 = vunpack.c.h.b16 %v269
      %v609 = vunpack.c.l.b16 %v270
      %v610 = vunpack.c.h.b16 %v270
      %v611 = vunpack.c.l.b16 %v271
      %v612 = vunpack.c.h.b16 %v271
      %v613 = vpack.c.b16 %v419, %v417
      %v614 = vpack.c.b16 %v420, %v418
      %v615 = vpack.c.b16 %v423, %v421
      %v616 = vpack.c.b16 %v424, %v422
      %v617 = vpack.c.b16 %v427, %v425
      %v618 = vpack.c.b16 %v428, %v426
      %v619 = vpack.c.b16 %v431, %v429
      %v620 = vpack.c.b16 %v432, %v430
      %v621 = vpack.c.b16 %v435, %v433
      %v622 = vpack.c.b16 %v436, %v434
      %v623 = vpack.c.b16 %v439, %v437
      %v624 = vpack.c.b16 %v440, %v438
      %v625 = vpack.c.b16 %v443, %v441
      %v626 = vpack.c.b16 %v444, %v442
      %v627 = vpack.c.b16 %v447, %v445
      %v628 = vpack.c.b16 %v448, %v446
      %v629 = vpack.c.b16 %v451, %v449
      %v630 = vpack.c.b16 %v452, %v450
      %v631 = vpack.c.b16 %v455, %v453
      %v632 = vpack.c.b16 %v456, %v454
      %v633 = vpack.c.b16 %v459, %v457
      %v634 = vpack.c.b16 %v460, %v458
      %v635 = vpack.c.b16 %v463, %v461
      %v636 = vpack.c.b16 %v464, %v462
      %v637 = vpack.c.b16 %v467, %v465
      %v638 = vpack.c.b16 %v468, %v466
      %v639 = vpack.c.b16 %v471, %v469
      %v640 = vpack.c.b16 %v472, %v470
      %v641 = vpack.c.b16 %v475, %v473
      %v642 = vpack.c.b16 %v476, %v474
      %v643 = vpack.c.b16 %v479, %v477
      %v644 = vpack.c.b16 %v480, %v478
      %v645 = vpack.c.b16 %v483, %v481
      %v646 = vpack.c.b16 %v484, %v482
      %v647 = vpack.c.b16 %v487, %v485
      %v648 = vpack.c.b16 %v488, %v486
      %v649 = vpack.c.b16 %v491, %v489
      %v650 = vpack.c.b16 %v492, %v490
      %v651 = vpack.c.b16 %v495, %v493
      %v652 = vpack.c.b16 %v496, %v494
      %v653 = vpack.c.b16 %v499, %v497
      %v654 = vpack.c.b16 %v500, %v498
      %v655 = vpack.c.b16 %v503, %v501
      %v656 = vpack.c.b16 %v504, %v502
      %v657 = vpack.c.b16 %v507, %v505
      %v658 = vpack.c.b16 %v508, %v506
      %v659 = vpack.c.b16 %v511, %v509
      %v660 = vpack.c.b16 %v512, %v510
      %v661 = vpack.c.b16 %v515, %v513
      %v662 = vpack.c.b16 %v516, %v514
      %v663 = vpack.c.b16 %v519, %v517
      %v664 = vpack.c.b16 %v520, %v518
      %v665 = vpack.c.b16 %v523, %v521
      %v666 = vpack.c.b16 %v524, %v522
      %v667 = vpack.c.b16 %v527, %v525
      %v668 = vpack.c.b16 %v528, %v526
      %v669 = vpack.c.b16 %v531, %v529
      %v670 = vpack.c.b16 %v532, %v530
      %v671 = vpack.c.b16 %v535, %v533
      %v672 = vpack.c.b16 %v536, %v534
      %v673 = vpack.c.b16 %v539, %v537
      %v674 = vpack.c.b16 %v540, %v538
      %v675 = vpack.c.b16 %v543, %v541
      %v676 = vpack.c.b16 %v544, %v542
      %v677 = vpack.c.b16 %v547, %v545
      %v678 = vpack.c.b16 %v548, %v546
      %v679 = vpack.c.b16 %v551, %v549
      %v680 = vpack.c.b16 %v552, %v550
      %v681 = vpack.c.b16 %v555, %v553
      %v682 = vpack.c.b16 %v556, %v554
      %v683 = vpack.c.b16 %v559, %v557
      %v684 = vpack.c.b16 %v560, %v558
      %v685 = vpack.c.b16 %v563, %v561
      %v686 = vpack.c.b16 %v564, %v562
      %v687 = vpack.c.b16 %v567, %v565
      %v688 = vpack.c.b16 %v568, %v566
      %v689 = vpack.c.b16 %v571, %v569
      %v690 = vpack.c.b16 %v572, %v570
      %v691 = vpack.c.b16 %v575, %v573
      %v692 = vpack.c.b16 %v576, %v574
      %v693 = vpack.c.b16 %v579, %v577
      %v694 = vpack.c.b16 %v580, %v578
      %v695 = vpack.c.b16 %v583, %v581
      %v696 = vpack.c.b16 %v584, %v582
      %v697 = vpack.c.b16 %v587, %v585
      %v698 = vpack.c.b16 %v588, %v586
      %v699 = vpack.c.b16 %v591, %v589
      %v700 = vpack.c.b16 %v592, %v590
      %v701 = vpack.c.b16 %v595, %v593
      %v702 = vpack.c.b16 %v596, %v594
      %v703 = vpack.c.b16 %v599, %v597
      %v704 = vpack.c.b16 %v600, %v598
      %v705 = vpack.c.b16 %v603, %v601
      %v706 = vpack.c.b16 %v604, %v602
      %v707 = vpack.c.b16 %v607, %v605
      %v708 = vpack.c.b16 %v608, %v606
      %v709 = vpack.c.b16 %v611, %v609
      %v710 = vpack.c.b16 %v612, %v610
      %vm809 = vcmask 130048
      %v811 = vsel %vm809, %v311, 0
      %813 = vmatprep.subr.bf16.mxu0 %v614
      %814 = vmatpush1.bf16.msra.mxu0 %v613
      %815 = vmatprep.subr.bf16.mxu0 %v616
      %816 = vmatpush1.bf16.msra.mxu0 %v615
      %817 = vmatprep.subr.bf16.mxu0 %v618
      %818 = vmatpush1.bf16.msra.mxu0 %v617
      %819 = vmatprep.subr.bf16.mxu0 %v620
      %820 = vmatpush1.bf16.msra.mxu0 %v619
      %821 = vmatprep.subr.bf16.mxu0 %v622
      %822 = vmatpush1.bf16.msra.mxu0 %v621
      %823 = vmatprep.subr.bf16.mxu0 %v624
      %824 = vmatpush1.bf16.msra.mxu0 %v623
      %825 = vmatprep.subr.bf16.mxu0 %v626
      %826 = vmatpush1.bf16.msra.mxu0 %v625
      %827 = vmatprep.subr.bf16.mxu0 %v628
      %828 = vmatpush1.bf16.msra.mxu0 %v627
      %829 = vmatprep.subr.bf16.mxu0 %v630
      %830 = vmatpush1.bf16.msra.mxu0 %v629
      %831 = vmatprep.subr.bf16.mxu0 %v632
      %832 = vmatpush1.bf16.msra.mxu0 %v631
      %833 = vmatprep.subr.bf16.mxu0 %v634
      %834 = vmatpush1.bf16.msra.mxu0 %v633
      %835 = vmatprep.subr.bf16.mxu0 %v636
      %836 = vmatpush1.bf16.msra.mxu0 %v635
      %837 = vmatprep.subr.bf16.mxu0 %v638
      %838 = vmatpush1.bf16.msra.mxu0 %v637
      %839 = vmatprep.subr.bf16.mxu0 %v640
      %840 = vmatpush1.bf16.msra.mxu0 %v639
      %841 = vmatprep.subr.bf16.mxu0 %v642
      %842 = vmatpush1.bf16.msra.mxu0 %v641
      %843 = vmatprep.subr.bf16.mxu0 %v644
      %844 = vmatpush1.bf16.msra.mxu0 %v643
      %845 = vmatprep.mubr.bf16.mxu0 %v295
      %846 = vmatmul.mubr.bf16.gmra.mrb[0].mxu0 %v287
      %v847 = vpop.f32.mrb[0].mxu0
      %v848 = vadd.f32 %v276, %v847
      %v849 = vpop.f32.mrb[0].mxu0
      %v850 = vadd.f32 %v276, %v849
      %v851 = vpop.f32.mrb[0].mxu0
      %v852 = vpop.f32.mrb[0].mxu0
      %853 = vdwg.mxu0
      %854 = vmatprep.subr.bf16.mxu0 %v646
      %855 = vmatpush1.bf16.msra.mxu0 %v645
      %856 = vmatprep.subr.bf16.mxu0 %v648
      %857 = vmatpush1.bf16.msra.mxu0 %v647
      %858 = vmatprep.subr.bf16.mxu0 %v650
      %859 = vmatpush1.bf16.msra.mxu0 %v649
      %860 = vmatprep.subr.bf16.mxu0 %v652
      %861 = vmatpush1.bf16.msra.mxu0 %v651
      %862 = vmatprep.subr.bf16.mxu0 %v654
      %863 = vmatpush1.bf16.msra.mxu0 %v653
      %864 = vmatprep.subr.bf16.mxu0 %v656
      %865 = vmatpush1.bf16.msra.mxu0 %v655
      %866 = vmatprep.subr.bf16.mxu0 %v658
      %867 = vmatpush1.bf16.msra.mxu0 %v657
      %868 = vmatprep.subr.bf16.mxu0 %v660
      %869 = vmatpush1.bf16.msra.mxu0 %v659
      %870 = vmatprep.subr.bf16.mxu0 %v662
      %871 = vmatpush1.bf16.msra.mxu0 %v661
      %872 = vmatprep.subr.bf16.mxu0 %v664
      %873 = vmatpush1.bf16.msra.mxu0 %v663
      %874 = vmatprep.subr.bf16.mxu0 %v666
      %875 = vmatpush1.bf16.msra.mxu0 %v665
      %876 = vmatprep.subr.bf16.mxu0 %v668
      %877 = vmatpush1.bf16.msra.mxu0 %v667
      %878 = vmatprep.subr.bf16.mxu0 %v670
      %879 = vmatpush1.bf16.msra.mxu0 %v669
      %880 = vmatprep.subr.bf16.mxu0 %v672
      %881 = vmatpush1.bf16.msra.mxu0 %v671
      %882 = vmatprep.subr.bf16.mxu0 %v674
      %883 = vmatpush1.bf16.msra.mxu0 %v673
      %884 = vmatprep.subr.bf16.mxu0 %v676
      %885 = vmatpush1.bf16.msra.mxu0 %v675
      %886 = vmatprep.mubr.bf16.mxu0 %v296
      %887 = vmatmul.mubr.bf16.gmra.mrb[0].mxu0 %v294
      %v888 = vpop.f32.mrb[0].mxu0
      %v889 = vadd.f32 %v848, %v888
      %v890 = vpop.f32.mrb[0].mxu0
      %v891 = vadd.f32 %v850, %v890
      %v892 = vpop.f32.mrb[0].mxu0
      %v893 = vpop.f32.mrb[0].mxu0
      %894 = vdwg.mxu0
      %895 = vmatprep.subr.bf16.mxu0 %v678
      %896 = vmatpush1.bf16.msra.mxu0 %v677
      %897 = vmatprep.subr.bf16.mxu0 %v680
      %898 = vmatpush1.bf16.msra.mxu0 %v679
      %899 = vmatprep.subr.bf16.mxu0 %v682
      %900 = vmatpush1.bf16.msra.mxu0 %v681
      %901 = vmatprep.subr.bf16.mxu0 %v684
      %902 = vmatpush1.bf16.msra.mxu0 %v683
      %903 = vmatprep.subr.bf16.mxu0 %v686
      %904 = vmatpush1.bf16.msra.mxu0 %v685
      %905 = vmatprep.subr.bf16.mxu0 %v688
      %906 = vmatpush1.bf16.msra.mxu0 %v687
      %907 = vmatprep.subr.bf16.mxu0 %v690
      %908 = vmatpush1.bf16.msra.mxu0 %v689
      %909 = vmatprep.subr.bf16.mxu0 %v692
      %910 = vmatpush1.bf16.msra.mxu0 %v691
      %911 = vmatprep.subr.bf16.mxu0 %v694
      %912 = vmatpush1.bf16.msra.mxu0 %v693
      %913 = vmatprep.subr.bf16.mxu0 %v696
      %914 = vmatpush1.bf16.msra.mxu0 %v695
      %915 = vmatprep.subr.bf16.mxu0 %v698
      %916 = vmatpush1.bf16.msra.mxu0 %v697
      %917 = vmatprep.subr.bf16.mxu0 %v700
      %918 = vmatpush1.bf16.msra.mxu0 %v699
      %919 = vmatprep.subr.bf16.mxu0 %v702
      %920 = vmatpush1.bf16.msra.mxu0 %v701
      %921 = vmatprep.subr.bf16.mxu0 %v704
      %922 = vmatpush1.bf16.msra.mxu0 %v703
      %923 = vmatprep.subr.bf16.mxu0 %v706
      %924 = vmatpush1.bf16.msra.mxu0 %v705
      %925 = vmatprep.subr.bf16.mxu0 %v708
      %926 = vmatpush1.bf16.msra.mxu0 %v707
      %927 = vmatprep.mubr.bf16.mxu0 %v312
      %928 = vmatmul.mubr.bf16.gmra.mrb[0].mxu0 %v304
      %v929 = vpop.f32.mrb[0].mxu0
      %v930 = vadd.f32 %v889, %v929
      %v931 = vpop.f32.mrb[0].mxu0
      %v932 = vadd.f32 %v891, %v931
      %v933 = vpop.f32.mrb[0].mxu0
      %v934 = vpop.f32.mrb[0].mxu0
      %935 = vdwg.mxu0
      %936 = vmatprep.subr.bf16.mxu0 %v710
      %937 = vmatpush1.bf16.msra.mxu0 %v709
      %938 = vmatprep.subr.bf16.mxu0 0
      %939 = vmatpush1.bf16.msra.mxu0 0
      %940 = vmatprep.subr.bf16.mxu0 0
      %941 = vmatpush1.bf16.msra.mxu0 0
      %942 = vmatprep.subr.bf16.mxu0 0
      %943 = vmatpush1.bf16.msra.mxu0 0
      %944 = vmatprep.subr.bf16.mxu0 0
      %945 = vmatpush1.bf16.msra.mxu0 0
      %946 = vmatprep.subr.bf16.mxu0 0
      %947 = vmatpush1.bf16.msra.mxu0 0
      %948 = vmatprep.subr.bf16.mxu0 0
      %949 = vmatpush1.bf16.msra.mxu0 0
      %950 = vmatprep.subr.bf16.mxu0 0
      %951 = vmatpush1.bf16.msra.mxu0 0
      %952 = vmatprep.subr.bf16.mxu0 0
      %953 = vmatpush1.bf16.msra.mxu0 0
      %954 = vmatprep.subr.bf16.mxu0 0
      %955 = vmatpush1.bf16.msra.mxu0 0
      %956 = vmatprep.subr.bf16.mxu0 0
      %957 = vmatpush1.bf16.msra.mxu0 0
      %958 = vmatprep.subr.bf16.mxu0 0
      %959 = vmatpush1.bf16.msra.mxu0 0
      %960 = vmatprep.subr.bf16.mxu0 0
      %961 = vmatpush1.bf16.msra.mxu0 0
      %962 = vmatprep.subr.bf16.mxu0 0
      %963 = vmatpush1.bf16.msra.mxu0 0
      %964 = vmatprep.subr.bf16.mxu0 0
      %965 = vmatpush1.bf16.msra.mxu0 0
      %966 = vmatprep.subr.bf16.mxu0 0
      %967 = vmatpush1.bf16.msra.mxu0 0
      %968 = vmatprep.mubr.bf16.mxu0 0
      %969 = vmatmul.mubr.bf16.gmra.mrb[0].mxu0 %v811
      %v970 = vpop.f32.mrb[0].mxu0
      %v971 = vadd.f32 %v930, %v970
      %v972 = vpop.f32.mrb[0].mxu0
      %v973 = vadd.f32 %v932, %v972
      %v974 = vpop.f32.mrb[0].mxu0
      %v975 = vpop.f32.mrb[0].mxu0
      %976 = vdwg.mxu0
      %v977 = vtanh.pop %v971
      %v978 = vtanh.pop %v973
      %v981 = vcombine.low %v977, %v978
      %983 = vst [vmem:[%s170] sm:$0x77] %v981
      %p984 = scmp.lt.s32.totalorder %s14, 1
      %s985 = scalar_select %p984, %s14, 1
      %s986 = smul.addr %s985, 2
      %s987 = smul.addr %s986, 4
      %s988 = scalar_lea.vmem %s3, %s987
      // Predicated region
      $region33: #{styleless_gen_forward.31} parent=31 // pred_check
        %p989 = pneg %p100
      $region34: #{styleless_gen_forward.31} parent=31 // pred_check_branch
        %991 = sbr.rel (%p989) target = $region36
      $region35: #{styleless_gen_forward.31} parent=31 // pred_region
        _
      $region36: #{styleless_gen_forward.31} parent=31 // pred_fallthru
        _
    $region32: #{styleless_gen_forward.31} parent=5 // pred_fallthru
      _
    %p992 = scmp.le.s32.totalorder 2, %s9
    // Predicated region
    $region37: #{styleless_gen_forward.31} parent=5 // pred_check
      %p993 = pneg %p992
    $region38: #{styleless_gen_forward.31} parent=5 // pred_check_branch
      %995 = sbr.rel (%p993) target = $region40
    $region39: #{styleless_gen_forward.31} parent=5 // pred_region
      %s996 = ssub.s32 %s9, 2
      // Predicated region
      $region41: #{styleless_gen_forward.31} parent=39 // pred_check
        %p997 = pneg %p106
      $region42: #{styleless_gen_forward.31} parent=39 // pred_check_branch
        %999 = sbr.rel (%p997) target = $region44
      $region43: #{styleless_gen_forward.31} parent=39 // pred_region
        %p1000 = scmp.lt.s32.totalorder %s15, 1
        %s1001 = scalar_select %p1000, %s15, 1
        %s1002 = smul.addr %s1001, 2
        %s1003 = smul.addr %s1002, 4
        %s1004 = scalar_lea.vmem %s3, %s1003
      $region44: #{styleless_gen_forward.31} parent=39 // pred_fallthru
        _
    $region40: #{styleless_gen_forward.31} parent=5 // pred_fallthru
      _
  $region6: #{styleless_gen_forward.31} parent=0 // loop_footer
    %s13 = sadd.s32 1, %s9
  $region7: #{styleless_gen_forward.31} parent=0 // loop_footer_branch
    %8 = sbr.rel target = $region3
  $region8: #{styleless_gen_forward.31} parent=0 // loop_exit
    _

</llo_original>
